<compile_context>
chip_gen: v7x
topology: tpu7x:2x2x1
jax: 0.10.0
libtpu: 0.0.40
codegen_flags: <defaults>
</compile_context>

<pallas_src>
import functools
import math

import jax
import jax.numpy as jnp
from jax.experimental import pallas as pl
from jax.experimental.pallas import tpu as pltpu

_LANES = 128
_K_BINS = 256
_BIN_BLOCK = 32            # bins per register-resident accumulator block (4 vregs)
_MAX_ROW_TILE = 64         # 128-pixel rows streamed per grid step

# Deep-hist constants: K bins, L = 1/K, W = L/2.5, mu_k = L*(k+0.5).
_BIN_L = 1.0 / _K_BINS
_INV_W = 2.5 * _K_BINS                      # 1 / W
_T = 0.5 * _BIN_L * _INV_W                  # (L/2)/W = 1.25
_COEF_NUM = math.exp(_T) - math.exp(-_T)    # b - a
_COEF_DEN = math.exp(_T) + math.exp(-_T)    # a + b   (a*b == 1)
_CLIP = 40.0                                # |arg|<=40 -> e^2 finite, clipped phi ~1e-17
_PAD_SENTINEL = 1e6                         # padded pixels -> arg clips to -40 -> phi ~ 0

# RGB -> YUV coefficient rows (Y, U, V), kornia convention.
_YUV_COEFFS = (
    (0.299, 0.587, 0.114),
    (-0.147, -0.289, 0.436),
    (0.615, -0.515, -0.100),
)


def _round_up(x, m):
    return (x + m - 1) // m * m


# --------------- fused rgb->yuv + soft histograms (x & y) + L1/L2 kernel ---------------

def _hist_l1l2_kernel(x_ref, y_ref, hx_ref, hy_ref, l1_ref, l2_ref, zbuf_ref,
                      *, ts, n_valid):
    """One grid step = one batch element x one tile of `ts` rows of 128 pixels.

    x_ref / y_ref : (1, 3, ts, 128)      RGB pixel tiles of output / target.
    hx_ref/hy_ref : (1, 3, 256, 128)     per-lane partial soft histograms (resident over
                                         the pixel-chunk axis; finalized outside).
    l1_ref/l2_ref : (1, 1, 128)          lane-partial sum|d| / sum d^2 accumulators.
    zbuf_ref      : (2, 3, ts, 128) VMEM scratch: YUV values * (1/W), padded pixels masked.
    """
    p = pl.program_id(1)

    @pl.when(p == 0)
    def _init():
        hx_ref[...] = jnp.zeros_like(hx_ref)
        hy_ref[...] = jnp.zeros_like(hy_ref)
        l1_ref[...] = jnp.zeros_like(l1_ref)
        l2_ref[...] = jnp.zeros_like(l2_ref)

    # Validity mask for the ragged pixel tail (built once per tile).
    row_ids = jax.lax.broadcasted_iota(jnp.int32, (ts, _LANES), 0)
    lane_ids = jax.lax.broadcasted_iota(jnp.int32, (ts, _LANES), 1)
    pix = (p * ts + row_ids) * _LANES + lane_ids
    valid = pix < n_valid

    # Fused rgb->yuv, pre-scaled by 1/W, padded pixels -> sentinel (phi underflows to ~0).
    for ii, img_ref in enumerate((x_ref, y_ref)):
        for c, (wr, wg, wb) in enumerate(_YUV_COEFFS):
            val = wr * img_ref[0, 0] + wg * img_ref[0, 1] + wb * img_ref[0, 2]
            zbuf_ref[ii, c] = jnp.where(valid, val, _PAD_SENTINEL) * _INV_W

    # L1 / L2 lane partials (raw RGB diffs; padding is zero for both -> contributes 0).
    l1_acc = jnp.zeros((1, _LANES), jnp.float32)
    l2_acc = jnp.zeros((1, _LANES), jnp.float32)
    for c in range(3):
        d = x_ref[0, c] - y_ref[0, c]
        l1_acc = l1_acc + jnp.sum(jnp.abs(d), axis=0, keepdims=True)
        l2_acc = l2_acc + jnp.sum(d * d, axis=0, keepdims=True)
    l1_ref[...] += l1_acc[None]
    l2_ref[...] += l2_acc[None]

    # Soft histograms: bin-block outer loop (4-vreg accumulator), pixel-row fori inside.
    scale = _BIN_L * _INV_W  # = 2.5
    for bb in range(_K_BINS // _BIN_BLOCK):
        base = bb * _BIN_BLOCK
        mu_iw = (jax.lax.broadcasted_iota(jnp.int32, (_BIN_BLOCK, _LANES), 0)
                 .astype(jnp.float32) + (base + 0.5)) * scale
        for ii, h_ref in enumerate((hx_ref, hy_ref)):
            for c in range(3):
                def row_body(s, acc, _ii=ii, _c=c, _mu=mu_iw):
                    z = zbuf_ref[_ii, _c, pl.ds(s, 1), :]              # (1, 128)
                    arg = jnp.clip(_mu - z, -_CLIP, _CLIP)             # (BB, 128)
                    e = jnp.exp(arg)                                   # 1 EUP op
                    num = _COEF_NUM * e
                    den = (_COEF_DEN * e + 1.0) + e * e
                    r = pl.reciprocal(den, approx=True)
                    r = r * (2.0 - den * r)          # one Newton step: VPU-only, ~f32 exact
                    return acc + num * r
                acc = jax.lax.fori_loop(
                    0, ts, row_body,
                    jnp.zeros((_BIN_BLOCK, _LANES), jnp.float32))
                h_ref[0, c, base:base + _BIN_BLOCK, :] += acc


def _prep_pixels(img, nr_pad):
    B, C, H, W = img.shape
    n = H * W
    x = img.reshape(B, C, n).astype(jnp.float32)
    pad = nr_pad * _LANES - n
    if pad:
        x = jnp.pad(x, ((0, 0), (0, 0), (0, pad)))
    return x.reshape(B, C, nr_pad, _LANES)


def fused_hist_l1l2(output, target):
    """Single pass over both images: soft YUV histograms + L1/L2 partial sums."""
    B, C, H, W = output.shape
    n = H * W
    nr = pl.cdiv(n, _LANES)
    ts = min(_round_up(nr, 8), _MAX_ROW_TILE)
    nr_pad = _round_up(nr, ts)

    x = _prep_pixels(output, nr_pad)
    y = _prep_pixels(target, nr_pad)

    kern = functools.partial(_hist_l1l2_kernel, ts=ts, n_valid=n)
    hx_p, hy_p, l1_p, l2_p = pl.pallas_call(
        kern,
        out_shape=(
            jax.ShapeDtypeStruct((B, 3, _K_BINS, _LANES), jnp.float32),
            jax.ShapeDtypeStruct((B, 3, _K_BINS, _LANES), jnp.float32),
            jax.ShapeDtypeStruct((B, 1, _LANES), jnp.float32),
            jax.ShapeDtypeStruct((B, 1, _LANES), jnp.float32),
        ),
        grid=(B, nr_pad // ts),
        in_specs=[
            pl.BlockSpec((1, 3, ts, _LANES), lambda b, p: (b, 0, p, 0)),
            pl.BlockSpec((1, 3, ts, _LANES), lambda b, p: (b, 0, p, 0)),
        ],
        out_specs=(
            pl.BlockSpec((1, 3, _K_BINS, _LANES), lambda b, p: (b, 0, 0, 0)),
            pl.BlockSpec((1, 3, _K_BINS, _LANES), lambda b, p: (b, 0, 0, 0)),
            pl.BlockSpec((1, 1, _LANES), lambda b, p: (b, 0, 0)),
            pl.BlockSpec((1, 1, _LANES), lambda b, p: (b, 0, 0)),
        ),
        scratch_shapes=[pltpu.VMEM((2, 3, ts, _LANES), jnp.float32)],
        compiler_params=pltpu.CompilerParams(
            dimension_semantics=("parallel", "arbitrary")),
    )(x, y)
    # TODO(synk): on v7x with B == 1, split the pixel-chunk axis into a leading 'parallel'
    # pair with two partial outputs (summed here) so both TensorCores are used.

    hist_x = hx_p.sum(axis=-1) / float(n)          # (B, 3, K)
    hist_y = hy_p.sum(axis=-1) / float(n)
    return hist_x, hist_y, l1_p.sum(), l2_p.sum()


# --------------------------- EMD (squared CDF diff) ---------------------------

def _emd_kernel(hx_ref, hy_ref, tri_ref, o_ref):
    d = hx_ref[...] - hy_ref[...]                       # (R, K) histogram diffs
    # bf16x2 operand split: both pieces are exact in bf16, so the default-precision MXU
    # passes introduce no operand-rounding error on the ~1e-3 CDF differences.
    d_hi = d.astype(jnp.bfloat16).astype(jnp.float32)
    d_lo = d - d_hi
    tri = tri_ref[...]
    cdf_d = (jnp.dot(d_hi, tri, preferred_element_type=jnp.float32)
             + jnp.dot(d_lo, tri, preferred_element_type=jnp.float32))
    o_ref[0, 0] = jnp.sum(cdf_d * cdf_d)


def emd_cdf_ssd_pallas(hist_x, hist_y):
    """sum over all rows/bins of (CDF_x - CDF_y)^2  (rows = batch x channel)."""
    r, k = hist_x.shape
    r_pad = _round_up(r, 8)
    if r_pad != r:
        pad = ((0, r_pad - r), (0, 0))
        hist_x = jnp.pad(hist_x, pad)
        hist_y = jnp.pad(hist_y, pad)
    tri = jnp.triu(jnp.ones((k, k), jnp.float32))       # precomputed cumulative-sum matrix
    out = pl.pallas_call(
        _emd_kernel,
        out_shape=jax.ShapeDtypeStruct((1, 1), jnp.float32),
        grid=(1,),
        in_specs=[pl.BlockSpec((r_pad, k), lambda i: (0, 0)),
                  pl.BlockSpec((r_pad, k), lambda i: (0, 0)),
                  pl.BlockSpec((k, k), lambda i: (0, 0))],
        out_specs=pl.BlockSpec(memory_space=pltpu.MemorySpace.SMEM),
    )(hist_x, hist_y, tri)
    return out[0, 0]


# ------------------------------- DeepHistL1Loss --------------------------------

def deep_hist_l1_loss(output, target, emd_factor=0.2, l1_factor=1.0, l2_factor=0.0):
    B, C, H, W = output.shape
    assert C == 3 and target.shape == output.shape

    hist_x, hist_y, sum_abs, sum_sq = fused_hist_l1l2(output, target)

    # emd_loss.mean() == sum over (batch, channel) rows of EMD / (3 * B)
    emd_total = emd_cdf_ssd_pallas(hist_x.reshape(3 * B, _K_BINS),
                                   hist_y.reshape(3 * B, _K_BINS))
    emd_term = emd_total / (3.0 * B)

    n_el = float(output.size)
    l1_term = sum_abs / n_el
    l2_term = sum_sq / n_el
    return emd_factor * emd_term + l1_factor * l1_term + l2_factor * l2_term


# -------------------------- pure-jnp reference (check) --------------------------

def _reference_loss(output, target, emd_factor=0.2, l1_factor=1.0, l2_factor=0.0):
    B, C, H, W = output.shape
    n = H * W
    mu = (jnp.arange(_K_BINS, dtype=jnp.float32) + 0.5) * _BIN_L

    def hists(img):
        per_c = []
        for (wr, wg, wb) in _YUV_COEFFS:
            v = (wr * img[:, 0] + wg * img[:, 1] + wb * img[:, 2]).reshape(B, n)
            d = v[:, :, None] - mu[None, None, :]
            phi = (jax.nn.sigmoid((d + 0.5 * _BIN_L) * _INV_W)
                   - jax.nn.sigmoid((d - 0.5 * _BIN_L) * _INV_W))
            per_c.append(phi.sum(axis=1) / n)
        return jnp.stack(per_c, axis=1)                # (B, 3, K)

    hx, hy = hists(output), hists(target)
    cd = jnp.cumsum(hx, axis=-1) - jnp.cumsum(hy, axis=-1)
    emd = jnp.sum(cd * cd) / (3.0 * B)
    l1 = jnp.mean(jnp.abs(output - target))
    l2 = jnp.mean((output - target) ** 2)
    return emd_factor * emd + l1_factor * l1 + l2_factor * l2


# ------------------------------------ main -------------------------------------

if __name__ == "__main__":
    key = jax.random.PRNGKey(0)
    k_out, k_tgt = jax.random.split(key)
    output = jax.random.uniform(k_out, (2, 3, 16, 16), jnp.float32)   # NCHW, RGB in [0,1)
    target = jax.random.uniform(k_tgt, (2, 3, 16, 16), jnp.float32)

    loss_fn = jax.jit(deep_hist_l1_loss)
    loss = loss_fn(output, target)
    jax.block_until_ready(loss)
    assert jnp.isfinite(loss)

    ref = float(_reference_loss(output, target))
    assert abs(float(loss) - ref) <= 5e-3 * abs(ref) + 1e-4, (float(loss), ref)
    print("KERNEL_OK")
</pallas_src>

<mosaic_0001>
module attributes {stable_mosaic.version = 11 : i64} {
  func.func @_emd_kernel(%arg0: i32, %arg1: memref<8x256xf32, #tpu.memory_space<vmem>>, %arg2: memref<8x256xf32, #tpu.memory_space<vmem>>, %arg3: memref<256x256xf32, #tpu.memory_space<vmem>>, %arg4: memref<1x1xf32, #tpu.memory_space<smem>>) attributes {dimension_semantics = [#tpu.dimension_semantics<arbitrary>], iteration_bounds = array<i64: 1>, scalar_prefetch = 0 : i64, scratch_operands = 0 : i64, tpu.core_type = #tpu.core_type<tc>, window_params = [{pipeline_mode = #tpu.pipeline_mode<synchronous>, transform_indices = @transform_0, window_bounds = array<i64: 8, 256>}, {pipeline_mode = #tpu.pipeline_mode<synchronous>, transform_indices = @transform_1, window_bounds = array<i64: 8, 256>}, {pipeline_mode = #tpu.pipeline_mode<synchronous>, transform_indices = @transform_2, window_bounds = array<i64: 256, 256>}, {transform_indices = @transform_3, window_bounds = array<i64: 1, 1>}]} {
    %c0 = arith.constant 0 : index
    %c0_0 = arith.constant 0 : index
    %0 = vector.load %arg1[%c0, %c0_0] : memref<8x256xf32, #tpu.memory_space<vmem>>, vector<8x256xf32>
    %c0_1 = arith.constant 0 : index
    %c0_2 = arith.constant 0 : index
    %1 = vector.load %arg2[%c0_1, %c0_2] : memref<8x256xf32, #tpu.memory_space<vmem>>, vector<8x256xf32>
    %2 = arith.subf %0, %1 : vector<8x256xf32>
    %3 = arith.truncf %2 : vector<8x256xf32> to vector<8x256xbf16>
    %4 = arith.extf %3 : vector<8x256xbf16> to vector<8x256xf32>
    %5 = arith.subf %2, %4 : vector<8x256xf32>
    %c0_3 = arith.constant 0 : index
    %c0_4 = arith.constant 0 : index
    %6 = vector.load %arg3[%c0_3, %c0_4] : memref<256x256xf32, #tpu.memory_space<vmem>>, vector<256x256xf32>
    %cst = arith.constant dense<0.000000e+00> : vector<8x256xf32>
    %7 = tpu.matmul %4, %6, %cst {dimension_numbers = #tpu.dot_dimension_numbers<[1], [0], [0], [1], [0, 0, 1, 1], [], []>} : vector<8x256xf32>, vector<256x256xf32>, vector<8x256xf32> -> vector<8x256xf32>
    %cst_5 = arith.constant dense<0.000000e+00> : vector<8x256xf32>
    %8 = tpu.matmul %5, %6, %cst_5 {dimension_numbers = #tpu.dot_dimension_numbers<[1], [0], [0], [1], [0, 0, 1, 1], [], []>} : vector<8x256xf32>, vector<256x256xf32>, vector<8x256xf32> -> vector<8x256xf32>
    %9 = arith.addf %7, %8 : vector<8x256xf32>
    %10 = arith.mulf %9, %9 : vector<8x256xf32>
    %11 = vector.shape_cast %10 : vector<8x256xf32> to vector<1x8x256xf32>
    %cst_6 = arith.constant dense<0.000000e+00> : vector<1xf32>
    %12 = vector.multi_reduction <add>, %11, %cst_6 [1, 2] : vector<1x8x256xf32> to vector<1xf32>
    %13 = vector.shape_cast %12 : vector<1xf32> to vector<1x1x1xf32>
    %14 = vector.extract %13[0, 0, 0] : f32 from vector<1x1x1xf32>
    %c0_7 = arith.constant 0 : index
    %c0_8 = arith.constant 0 : index
    %15 = memref.load %arg4[%c0_7, %c0_8] : memref<1x1xf32, #tpu.memory_space<smem>>
    memref.store %14, %arg4[%c0_7, %c0_8] : memref<1x1xf32, #tpu.memory_space<smem>>
    return
  }
  func.func @transform_0(%arg0: i32) -> (i32, i32) {
    %c0_i32 = arith.constant 0 : i32
    %c0_i32_0 = arith.constant 0 : i32
    %c0_i32_1 = arith.constant 0 : i32
    return %c0_i32, %c0_i32_0 : i32, i32
  }
  func.func @transform_1(%arg0: i32) -> (i32, i32) {
    %c0_i32 = arith.constant 0 : i32
    %c0_i32_0 = arith.constant 0 : i32
    %c0_i32_1 = arith.constant 0 : i32
    return %c0_i32, %c0_i32_0 : i32, i32
  }
  func.func @transform_2(%arg0: i32) -> (i32, i32) {
    %c0_i32 = arith.constant 0 : i32
    %c0_i32_0 = arith.constant 0 : i32
    %c0_i32_1 = arith.constant 0 : i32
    return %c0_i32, %c0_i32_0 : i32, i32
  }
  func.func @transform_3(%arg0: i32) -> (i32, i32) {
    %c0_i32 = arith.constant 0 : i32
    %c0_i32_0 = arith.constant 0 : i32
    %c0_i32_1 = arith.constant 0 : i32
    return %c0_i32, %c0_i32_0 : i32, i32
  }
}

module attributes {stable_mosaic.version = 11 : i64} {
  func.func @_hist_l1l2_kernel(%arg0: i32, %arg1: i32, %arg2: memref<1x3x8x128xf32, #tpu.memory_space<vmem>>, %arg3: memref<1x3x8x128xf32, #tpu.memory_space<vmem>>, %arg4: memref<1x3x256x128xf32, #tpu.memory_space<vmem>>, %arg5: memref<1x3x256x128xf32, #tpu.memory_space<vmem>>, %arg6: memref<1x1x128xf32, #tpu.memory_space<vmem>>, %arg7: memref<1x1x128xf32, #tpu.memory_space<vmem>>, %arg8: memref<2x3x8x128xf32, #tpu.memory_space<vmem>>) attributes {dimension_semantics = [#tpu.dimension_semantics<parallel>, #tpu.dimension_semantics<arbitrary>], iteration_bounds = array<i64: 2, 1>, scalar_prefetch = 0 : i64, scratch_operands = 1 : i64, tpu.core_type = #tpu.core_type<tc>, window_params = [{transform_indices = @transform_0, window_bounds = array<i64: 1, 3, 8, 128>}, {transform_indices = @transform_1, window_bounds = array<i64: 1, 3, 8, 128>}, {transform_indices = @transform_2, window_bounds = array<i64: 1, 3, 256, 128>}, {transform_indices = @transform_3, window_bounds = array<i64: 1, 3, 256, 128>}, {transform_indices = @transform_4, window_bounds = array<i64: 1, 1, 128>}, {transform_indices = @transform_5, window_bounds = array<i64: 1, 1, 128>}]} {
    %c0_i32 = arith.constant 0 : i32
    %0 = arith.cmpi eq, %arg1, %c0_i32 : i32
    %1 = arith.extui %0 : i1 to i32
    %c0_i32_0 = arith.constant 0 : i32
    %2 = arith.cmpi ne, %1, %c0_i32_0 : i32
    scf.if %2 {
      %cst_799 = arith.constant 0.000000e+00 : f32
      %668 = vector.broadcast %cst_799 : f32 to vector<1x3x256x128xf32>
      %c0_800 = arith.constant 0 : index
      %c0_801 = arith.constant 0 : index
      %c0_802 = arith.constant 0 : index
      %c0_803 = arith.constant 0 : index
      %669 = vector.load %arg4[%c0_800, %c0_801, %c0_802, %c0_803] : memref<1x3x256x128xf32, #tpu.memory_space<vmem>>, vector<1x3x256x128xf32>
      tpu.vector_store %arg4[%c0_800, %c0_801, %c0_802, %c0_803], %668 {strides = array<i32>} : memref<1x3x256x128xf32, #tpu.memory_space<vmem>>, vector<1x3x256x128xf32>,
      %cst_804 = arith.constant 0.000000e+00 : f32
      %670 = vector.broadcast %cst_804 : f32 to vector<1x3x256x128xf32>
      %c0_805 = arith.constant 0 : index
      %c0_806 = arith.constant 0 : index
      %c0_807 = arith.constant 0 : index
      %c0_808 = arith.constant 0 : index
      %671 = vector.load %arg5[%c0_805, %c0_806, %c0_807, %c0_808] : memref<1x3x256x128xf32, #tpu.memory_space<vmem>>, vector<1x3x256x128xf32>
      tpu.vector_store %arg5[%c0_805, %c0_806, %c0_807, %c0_808], %670 {strides = array<i32>} : memref<1x3x256x128xf32, #tpu.memory_space<vmem>>, vector<1x3x256x128xf32>,
      %cst_809 = arith.constant 0.000000e+00 : f32
      %672 = vector.broadcast %cst_809 : f32 to vector<1x1x128xf32>
      %c0_810 = arith.constant 0 : index
      %c0_811 = arith.constant 0 : index
      %c0_812 = arith.constant 0 : index
      %673 = vector.load %arg6[%c0_810, %c0_811, %c0_812] : memref<1x1x128xf32, #tpu.memory_space<vmem>>, vector<1x1x128xf32>
      tpu.vector_store %arg6[%c0_810, %c0_811, %c0_812], %672 {strides = array<i32>} : memref<1x1x128xf32, #tpu.memory_space<vmem>>, vector<1x1x128xf32>,
      %cst_813 = arith.constant 0.000000e+00 : f32
      %674 = vector.broadcast %cst_813 : f32 to vector<1x1x128xf32>
      %c0_814 = arith.constant 0 : index
      %c0_815 = arith.constant 0 : index
      %c0_816 = arith.constant 0 : index
      %675 = vector.load %arg7[%c0_814, %c0_815, %c0_816] : memref<1x1x128xf32, #tpu.memory_space<vmem>>, vector<1x1x128xf32>
      tpu.vector_store %arg7[%c0_814, %c0_815, %c0_816], %674 {strides = array<i32>} : memref<1x1x128xf32, #tpu.memory_space<vmem>>, vector<1x1x128xf32>,
    } else {
    }
    %3 = tpu.iota {dimensions = array<i32: 0>} : vector<8x128xi32>
    %4 = tpu.iota {dimensions = array<i32: 1>} : vector<8x128xi32>
    %c8_i32 = arith.constant 8 : i32
    %5 = arith.muli %arg1, %c8_i32 : i32
    %6 = vector.broadcast %5 : i32 to vector<8x128xi32>
    %7 = arith.addi %6, %3 : vector<8x128xi32>
    %c128_i32 = arith.constant 128 : i32
    %8 = vector.broadcast %c128_i32 : i32 to vector<8x128xi32>
    %9 = arith.muli %7, %8 : vector<8x128xi32>
    %10 = arith.addi %9, %4 : vector<8x128xi32>
    %c256_i32 = arith.constant 256 : i32
    %11 = vector.broadcast %c256_i32 : i32 to vector<8x128xi32>
    %12 = arith.cmpi slt, %10, %11 : vector<8x128xi32>
    %c0 = arith.constant 0 : index
    %c0_1 = arith.constant 0 : index
    %c0_2 = arith.constant 0 : index
    %c0_3 = arith.constant 0 : index
    %13 = vector.load %arg2[%c0, %c0_1, %c0_2, %c0_3] : memref<1x3x8x128xf32, #tpu.memory_space<vmem>>, vector<1x1x8x128xf32>
    %14 = vector.shape_cast %13 : vector<1x1x8x128xf32> to vector<8x128xf32>
    %cst = arith.constant 2.990000e-01 : f32
    %15 = vector.broadcast %cst : f32 to vector<8x128xf32>
    %16 = arith.mulf %15, %14 : vector<8x128xf32>
    %c0_4 = arith.constant 0 : index
    %c1 = arith.constant 1 : index
    %c0_5 = arith.constant 0 : index
    %c0_6 = arith.constant 0 : index
    %17 = vector.load %arg2[%c0_4, %c1, %c0_5, %c0_6] : memref<1x3x8x128xf32, #tpu.memory_space<vmem>>, vector<1x1x8x128xf32>
    %18 = vector.shape_cast %17 : vector<1x1x8x128xf32> to vector<8x128xf32>
    %cst_7 = arith.constant 5.870000e-01 : f32
    %19 = vector.broadcast %cst_7 : f32 to vector<8x128xf32>
    %20 = arith.mulf %19, %18 : vector<8x128xf32>
    %21 = arith.addf %16, %20 : vector<8x128xf32>
    %c0_8 = arith.constant 0 : index
    %c2 = arith.constant 2 : index
    %c0_9 = arith.constant 0 : index
    %c0_10 = arith.constant 0 : index
    %22 = vector.load %arg2[%c0_8, %c2, %c0_9, %c0_10] : memref<1x3x8x128xf32, #tpu.memory_space<vmem>>, vector<1x1x8x128xf32>
    %23 = vector.shape_cast %22 : vector<1x1x8x128xf32> to vector<8x128xf32>
    %cst_11 = arith.constant 1.140000e-01 : f32
    %24 = vector.broadcast %cst_11 : f32 to vector<8x128xf32>
    %25 = arith.mulf %24, %23 : vector<8x128xf32>
    %26 = arith.addf %21, %25 : vector<8x128xf32>
    %cst_12 = arith.constant 1.000000e+06 : f32
    %27 = vector.broadcast %cst_12 : f32 to vector<8x128xf32>
    %28 = arith.select %12, %26, %27 : vector<8x128xi1>, vector<8x128xf32>
    %cst_13 = arith.constant 6.400000e+02 : f32
    %29 = vector.broadcast %cst_13 : f32 to vector<8x128xf32>
    %30 = arith.mulf %28, %29 : vector<8x128xf32>
    %c0_14 = arith.constant 0 : index
    %c0_15 = arith.constant 0 : index
    %c0_16 = arith.constant 0 : index
    %c0_17 = arith.constant 0 : index
    %31 = vector.load %arg8[%c0_14, %c0_15, %c0_16, %c0_17] : memref<2x3x8x128xf32, #tpu.memory_space<vmem>>, vector<1x1x8x128xf32>
    %32 = vector.shape_cast %31 : vector<1x1x8x128xf32> to vector<8x128xf32>
    %33 = vector.shape_cast %30 : vector<8x128xf32> to vector<1x1x8x128xf32>
    tpu.vector_store %arg8[%c0_14, %c0_15, %c0_16, %c0_17], %33 {strides = array<i32>} : memref<2x3x8x128xf32, #tpu.memory_space<vmem>>, vector<1x1x8x128xf32>,
    %c0_18 = arith.constant 0 : index
    %c0_19 = arith.constant 0 : index
    %c0_20 = arith.constant 0 : index
    %c0_21 = arith.constant 0 : index
    %34 = vector.load %arg2[%c0_18, %c0_19, %c0_20, %c0_21] : memref<1x3x8x128xf32, #tpu.memory_space<vmem>>, vector<1x1x8x128xf32>
    %35 = vector.shape_cast %34 : vector<1x1x8x128xf32> to vector<8x128xf32>
    %cst_22 = arith.constant -1.470000e-01 : f32
    %36 = vector.broadcast %cst_22 : f32 to vector<8x128xf32>
    %37 = arith.mulf %36, %35 : vector<8x128xf32>
    %c0_23 = arith.constant 0 : index
    %c1_24 = arith.constant 1 : index
    %c0_25 = arith.constant 0 : index
    %c0_26 = arith.constant 0 : index
    %38 = vector.load %arg2[%c0_23, %c1_24, %c0_25, %c0_26] : memref<1x3x8x128xf32, #tpu.memory_space<vmem>>, vector<1x1x8x128xf32>
    %39 = vector.shape_cast %38 : vector<1x1x8x128xf32> to vector<8x128xf32>
    %cst_27 = arith.constant -2.890000e-01 : f32
    %40 = vector.broadcast %cst_27 : f32 to vector<8x128xf32>
    %41 = arith.mulf %40, %39 : vector<8x128xf32>
    %42 = arith.addf %37, %41 : vector<8x128xf32>
    %c0_28 = arith.constant 0 : index
    %c2_29 = arith.constant 2 : index
    %c0_30 = arith.constant 0 : index
    %c0_31 = arith.constant 0 : index
    %43 = vector.load %arg2[%c0_28, %c2_29, %c0_30, %c0_31] : memref<1x3x8x128xf32, #tpu.memory_space<vmem>>, vector<1x1x8x128xf32>
    %44 = vector.shape_cast %43 : vector<1x1x8x128xf32> to vector<8x128xf32>
    %cst_32 = arith.constant 4.360000e-01 : f32
    %45 = vector.broadcast %cst_32 : f32 to vector<8x128xf32>
    %46 = arith.mulf %45, %44 : vector<8x128xf32>
    %47 = arith.addf %42, %46 : vector<8x128xf32>
    %cst_33 = arith.constant 1.000000e+06 : f32
    %48 = vector.broadcast %cst_33 : f32 to vector<8x128xf32>
    %49 = arith.select %12, %47, %48 : vector<8x128xi1>, vector<8x128xf32>
    %cst_34 = arith.constant 6.400000e+02 : f32
    %50 = vector.broadcast %cst_34 : f32 to vector<8x128xf32>
    %51 = arith.mulf %49, %50 : vector<8x128xf32>
    %c0_35 = arith.constant 0 : index
    %c1_36 = arith.constant 1 : index
    %c0_37 = arith.constant 0 : index
    %c0_38 = arith.constant 0 : index
    %52 = vector.load %arg8[%c0_35, %c1_36, %c0_37, %c0_38] : memref<2x3x8x128xf32, #tpu.memory_space<vmem>>, vector<1x1x8x128xf32>
    %53 = vector.shape_cast %52 : vector<1x1x8x128xf32> to vector<8x128xf32>
    %54 = vector.shape_cast %51 : vector<8x128xf32> to vector<1x1x8x128xf32>
    tpu.vector_store %arg8[%c0_35, %c1_36, %c0_37, %c0_38], %54 {strides = array<i32>} : memref<2x3x8x128xf32, #tpu.memory_space<vmem>>, vector<1x1x8x128xf32>,
    %c0_39 = arith.constant 0 : index
    %c0_40 = arith.constant 0 : index
    %c0_41 = arith.constant 0 : index
    %c0_42 = arith.constant 0 : index
    %55 = vector.load %arg2[%c0_39, %c0_40, %c0_41, %c0_42] : memref<1x3x8x128xf32, #tpu.memory_space<vmem>>, vector<1x1x8x128xf32>
    %56 = vector.shape_cast %55 : vector<1x1x8x128xf32> to vector<8x128xf32>
    %cst_43 = arith.constant 6.150000e-01 : f32
    %57 = vector.broadcast %cst_43 : f32 to vector<8x128xf32>
    %58 = arith.mulf %57, %56 : vector<8x128xf32>
    %c0_44 = arith.constant 0 : index
    %c1_45 = arith.constant 1 : index
    %c0_46 = arith.constant 0 : index
    %c0_47 = arith.constant 0 : index
    %59 = vector.load %arg2[%c0_44, %c1_45, %c0_46, %c0_47] : memref<1x3x8x128xf32, #tpu.memory_space<vmem>>, vector<1x1x8x128xf32>
    %60 = vector.shape_cast %59 : vector<1x1x8x128xf32> to vector<8x128xf32>
    %cst_48 = arith.constant -5.150000e-01 : f32
    %61 = vector.broadcast %cst_48 : f32 to vector<8x128xf32>
    %62 = arith.mulf %61, %60 : vector<8x128xf32>
    %63 = arith.addf %58, %62 : vector<8x128xf32>
    %c0_49 = arith.constant 0 : index
    %c2_50 = arith.constant 2 : index
    %c0_51 = arith.constant 0 : index
    %c0_52 = arith.constant 0 : index
    %64 = vector.load %arg2[%c0_49, %c2_50, %c0_51, %c0_52] : memref<1x3x8x128xf32, #tpu.memory_space<vmem>>, vector<1x1x8x128xf32>
    %65 = vector.shape_cast %64 : vector<1x1x8x128xf32> to vector<8x128xf32>
    %cst_53 = arith.constant -1.000000e-01 : f32
    %66 = vector.broadcast %cst_53 : f32 to vector<8x128xf32>
    %67 = arith.mulf %66, %65 : vector<8x128xf32>
    %68 = arith.addf %63, %67 : vector<8x128xf32>
    %cst_54 = arith.constant 1.000000e+06 : f32
    %69 = vector.broadcast %cst_54 : f32 to vector<8x128xf32>
    %70 = arith.select %12, %68, %69 : vector<8x128xi1>, vector<8x128xf32>
    %cst_55 = arith.constant 6.400000e+02 : f32
    %71 = vector.broadcast %cst_55 : f32 to vector<8x128xf32>
    %72 = arith.mulf %70, %71 : vector<8x128xf32>
    %c0_56 = arith.constant 0 : index
    %c2_57 = arith.constant 2 : index
    %c0_58 = arith.constant 0 : index
    %c0_59 = arith.constant 0 : index
    %73 = vector.load %arg8[%c0_56, %c2_57, %c0_58, %c0_59] : memref<2x3x8x128xf32, #tpu.memory_space<vmem>>, vector<1x1x8x128xf32>
    %74 = vector.shape_cast %73 : vector<1x1x8x128xf32> to vector<8x128xf32>
    %75 = vector.shape_cast %72 : vector<8x128xf32> to vector<1x1x8x128xf32>
    tpu.vector_store %arg8[%c0_56, %c2_57, %c0_58, %c0_59], %75 {strides = array<i32>} : memref<2x3x8x128xf32, #tpu.memory_space<vmem>>, vector<1x1x8x128xf32>,
    %c0_60 = arith.constant 0 : index
    %c0_61 = arith.constant 0 : index
    %c0_62 = arith.constant 0 : index
    %c0_63 = arith.constant 0 : index
    %76 = vector.load %arg3[%c0_60, %c0_61, %c0_62, %c0_63] : memref<1x3x8x128xf32, #tpu.memory_space<vmem>>, vector<1x1x8x128xf32>
    %77 = vector.shape_cast %76 : vector<1x1x8x128xf32> to vector<8x128xf32>
    %cst_64 = arith.constant 2.990000e-01 : f32
    %78 = vector.broadcast %cst_64 : f32 to vector<8x128xf32>
    %79 = arith.mulf %78, %77 : vector<8x128xf32>
    %c0_65 = arith.constant 0 : index
    %c1_66 = arith.constant 1 : index
    %c0_67 = arith.constant 0 : index
    %c0_68 = arith.constant 0 : index
    %80 = vector.load %arg3[%c0_65, %c1_66, %c0_67, %c0_68] : memref<1x3x8x128xf32, #tpu.memory_space<vmem>>, vector<1x1x8x128xf32>
    %81 = vector.shape_cast %80 : vector<1x1x8x128xf32> to vector<8x128xf32>
    %cst_69 = arith.constant 5.870000e-01 : f32
    %82 = vector.broadcast %cst_69 : f32 to vector<8x128xf32>
    %83 = arith.mulf %82, %81 : vector<8x128xf32>
    %84 = arith.addf %79, %83 : vector<8x128xf32>
    %c0_70 = arith.constant 0 : index
    %c2_71 = arith.constant 2 : index
    %c0_72 = arith.constant 0 : index
    %c0_73 = arith.constant 0 : index
    %85 = vector.load %arg3[%c0_70, %c2_71, %c0_72, %c0_73] : memref<1x3x8x128xf32, #tpu.memory_space<vmem>>, vector<1x1x8x128xf32>
    %86 = vector.shape_cast %85 : vector<1x1x8x128xf32> to vector<8x128xf32>
    %cst_74 = arith.constant 1.140000e-01 : f32
    %87 = vector.broadcast %cst_74 : f32 to vector<8x128xf32>
    %88 = arith.mulf %87, %86 : vector<8x128xf32>
    %89 = arith.addf %84, %88 : vector<8x128xf32>
    %cst_75 = arith.constant 1.000000e+06 : f32
    %90 = vector.broadcast %cst_75 : f32 to vector<8x128xf32>
    %91 = arith.select %12, %89, %90 : vector<8x128xi1>, vector<8x128xf32>
    %cst_76 = arith.constant 6.400000e+02 : f32
    %92 = vector.broadcast %cst_76 : f32 to vector<8x128xf32>
    %93 = arith.mulf %91, %92 : vector<8x128xf32>
    %c1_77 = arith.constant 1 : index
    %c0_78 = arith.constant 0 : index
    %c0_79 = arith.constant 0 : index
    %c0_80 = arith.constant 0 : index
    %94 = vector.load %arg8[%c1_77, %c0_78, %c0_79, %c0_80] : memref<2x3x8x128xf32, #tpu.memory_space<vmem>>, vector<1x1x8x128xf32>
    %95 = vector.shape_cast %94 : vector<1x1x8x128xf32> to vector<8x128xf32>
    %96 = vector.shape_cast %93 : vector<8x128xf32> to vector<1x1x8x128xf32>
    tpu.vector_store %arg8[%c1_77, %c0_78, %c0_79, %c0_80], %96 {strides = array<i32>} : memref<2x3x8x128xf32, #tpu.memory_space<vmem>>, vector<1x1x8x128xf32>,
    %c0_81 = arith.constant 0 : index
    %c0_82 = arith.constant 0 : index
    %c0_83 = arith.constant 0 : index
    %c0_84 = arith.constant 0 : index
    %97 = vector.load %arg3[%c0_81, %c0_82, %c0_83, %c0_84] : memref<1x3x8x128xf32, #tpu.memory_space<vmem>>, vector<1x1x8x128xf32>
    %98 = vector.shape_cast %97 : vector<1x1x8x128xf32> to vector<8x128xf32>
    %cst_85 = arith.constant -1.470000e-01 : f32
    %99 = vector.broadcast %cst_85 : f32 to vector<8x128xf32>
    %100 = arith.mulf %99, %98 : vector<8x128xf32>
    %c0_86 = arith.constant 0 : index
    %c1_87 = arith.constant 1 : index
    %c0_88 = arith.constant 0 : index
    %c0_89 = arith.constant 0 : index
    %101 = vector.load %arg3[%c0_86, %c1_87, %c0_88, %c0_89] : memref<1x3x8x128xf32, #tpu.memory_space<vmem>>, vector<1x1x8x128xf32>
    %102 = vector.shape_cast %101 : vector<1x1x8x128xf32> to vector<8x128xf32>
    %cst_90 = arith.constant -2.890000e-01 : f32
    %103 = vector.broadcast %cst_90 : f32 to vector<8x128xf32>
    %104 = arith.mulf %103, %102 : vector<8x128xf32>
    %105 = arith.addf %100, %104 : vector<8x128xf32>
    %c0_91 = arith.constant 0 : index
    %c2_92 = arith.constant 2 : index
    %c0_93 = arith.constant 0 : index
    %c0_94 = arith.constant 0 : index
    %106 = vector.load %arg3[%c0_91, %c2_92, %c0_93, %c0_94] : memref<1x3x8x128xf32, #tpu.memory_space<vmem>>, vector<1x1x8x128xf32>
    %107 = vector.shape_cast %106 : vector<1x1x8x128xf32> to vector<8x128xf32>
    %cst_95 = arith.constant 4.360000e-01 : f32
    %108 = vector.broadcast %cst_95 : f32 to vector<8x128xf32>
    %109 = arith.mulf %108, %107 : vector<8x128xf32>
    %110 = arith.addf %105, %109 : vector<8x128xf32>
    %cst_96 = arith.constant 1.000000e+06 : f32
    %111 = vector.broadcast %cst_96 : f32 to vector<8x128xf32>
    %112 = arith.select %12, %110, %111 : vector<8x128xi1>, vector<8x128xf32>
    %cst_97 = arith.constant 6.400000e+02 : f32
    %113 = vector.broadcast %cst_97 : f32 to vector<8x128xf32>
    %114 = arith.mulf %112, %113 : vector<8x128xf32>
    %c1_98 = arith.constant 1 : index
    %c1_99 = arith.constant 1 : index
    %c0_100 = arith.constant 0 : index
    %c0_101 = arith.constant 0 : index
    %115 = vector.load %arg8[%c1_98, %c1_99, %c0_100, %c0_101] : memref<2x3x8x128xf32, #tpu.memory_space<vmem>>, vector<1x1x8x128xf32>
    %116 = vector.shape_cast %115 : vector<1x1x8x128xf32> to vector<8x128xf32>
    %117 = vector.shape_cast %114 : vector<8x128xf32> to vector<1x1x8x128xf32>
    tpu.vector_store %arg8[%c1_98, %c1_99, %c0_100, %c0_101], %117 {strides = array<i32>} : memref<2x3x8x128xf32, #tpu.memory_space<vmem>>, vector<1x1x8x128xf32>,
    %c0_102 = arith.constant 0 : index
    %c0_103 = arith.constant 0 : index
    %c0_104 = arith.constant 0 : index
    %c0_105 = arith.constant 0 : index
    %118 = vector.load %arg3[%c0_102, %c0_103, %c0_104, %c0_105] : memref<1x3x8x128xf32, #tpu.memory_space<vmem>>, vector<1x1x8x128xf32>
    %119 = vector.shape_cast %118 : vector<1x1x8x128xf32> to vector<8x128xf32>
    %cst_106 = arith.constant 6.150000e-01 : f32
    %120 = vector.broadcast %cst_106 : f32 to vector<8x128xf32>
    %121 = arith.mulf %120, %119 : vector<8x128xf32>
    %c0_107 = arith.constant 0 : index
    %c1_108 = arith.constant 1 : index
    %c0_109 = arith.constant 0 : index
    %c0_110 = arith.constant 0 : index
    %122 = vector.load %arg3[%c0_107, %c1_108, %c0_109, %c0_110] : memref<1x3x8x128xf32, #tpu.memory_space<vmem>>, vector<1x1x8x128xf32>
    %123 = vector.shape_cast %122 : vector<1x1x8x128xf32> to vector<8x128xf32>
    %cst_111 = arith.constant -5.150000e-01 : f32
    %124 = vector.broadcast %cst_111 : f32 to vector<8x128xf32>
    %125 = arith.mulf %124, %123 : vector<8x128xf32>
    %126 = arith.addf %121, %125 : vector<8x128xf32>
    %c0_112 = arith.constant 0 : index
    %c2_113 = arith.constant 2 : index
    %c0_114 = arith.constant 0 : index
    %c0_115 = arith.constant 0 : index
    %127 = vector.load %arg3[%c0_112, %c2_113, %c0_114, %c0_115] : memref<1x3x8x128xf32, #tpu.memory_space<vmem>>, vector<1x1x8x128xf32>
    %128 = vector.shape_cast %127 : vector<1x1x8x128xf32> to vector<8x128xf32>
    %cst_116 = arith.constant -1.000000e-01 : f32
    %129 = vector.broadcast %cst_116 : f32 to vector<8x128xf32>
    %130 = arith.mulf %129, %128 : vector<8x128xf32>
    %131 = arith.addf %126, %130 : vector<8x128xf32>
    %cst_117 = arith.constant 1.000000e+06 : f32
    %132 = vector.broadcast %cst_117 : f32 to vector<8x128xf32>
    %133 = arith.select %12, %131, %132 : vector<8x128xi1>, vector<8x128xf32>
    %cst_118 = arith.constant 6.400000e+02 : f32
    %134 = vector.broadcast %cst_118 : f32 to vector<8x128xf32>
    %135 = arith.mulf %133, %134 : vector<8x128xf32>
    %c1_119 = arith.constant 1 : index
    %c2_120 = arith.constant 2 : index
    %c0_121 = arith.constant 0 : index
    %c0_122 = arith.constant 0 : index
    %136 = vector.load %arg8[%c1_119, %c2_120, %c0_121, %c0_122] : memref<2x3x8x128xf32, #tpu.memory_space<vmem>>, vector<1x1x8x128xf32>
    %137 = vector.shape_cast %136 : vector<1x1x8x128xf32> to vector<8x128xf32>
    %138 = vector.shape_cast %135 : vector<8x128xf32> to vector<1x1x8x128xf32>
    tpu.vector_store %arg8[%c1_119, %c2_120, %c0_121, %c0_122], %138 {strides = array<i32>} : memref<2x3x8x128xf32, #tpu.memory_space<vmem>>, vector<1x1x8x128xf32>,
    %cst_123 = arith.constant 0.000000e+00 : f32
    %139 = vector.broadcast %cst_123 : f32 to vector<1x128xf32>
    %cst_124 = arith.constant 0.000000e+00 : f32
    %140 = vector.broadcast %cst_124 : f32 to vector<1x128xf32>
    %c0_125 = arith.constant 0 : index
    %c0_126 = arith.constant 0 : index
    %c0_127 = arith.constant 0 : index
    %c0_128 = arith.constant 0 : index
    %141 = vector.load %arg2[%c0_125, %c0_126, %c0_127, %c0_128] : memref<1x3x8x128xf32, #tpu.memory_space<vmem>>, vector<1x1x8x128xf32>
    %142 = vector.shape_cast %141 : vector<1x1x8x128xf32> to vector<8x128xf32>
    %c0_129 = arith.constant 0 : index
    %c0_130 = arith.constant 0 : index
    %c0_131 = arith.constant 0 : index
    %c0_132 = arith.constant 0 : index
    %143 = vector.load %arg3[%c0_129, %c0_130, %c0_131, %c0_132] : memref<1x3x8x128xf32, #tpu.memory_space<vmem>>, vector<1x1x8x128xf32>
    %144 = vector.shape_cast %143 : vector<1x1x8x128xf32> to vector<8x128xf32>
    %145 = arith.subf %142, %144 : vector<8x128xf32>
    %146 = math.absf %145 : vector<8x128xf32>
    %cst_133 = arith.constant dense<0.000000e+00> : vector<128xf32>
    %147 = vector.multi_reduction <add>, %146, %cst_133 [0] : vector<8x128xf32> to vector<128xf32>
    %148 = vector.shape_cast %147 : vector<128xf32> to vector<1x128xf32>
    %149 = arith.addf %139, %148 : vector<1x128xf32>
    %150 = arith.mulf %145, %145 : vector<8x128xf32>
    %cst_134 = arith.constant dense<0.000000e+00> : vector<128xf32>
    %151 = vector.multi_reduction <add>, %150, %cst_134 [0] : vector<8x128xf32> to vector<128xf32>
    %152 = vector.shape_cast %151 : vector<128xf32> to vector<1x128xf32>
    %153 = arith.addf %140, %152 : vector<1x128xf32>
    %c0_135 = arith.constant 0 : index
    %c1_136 = arith.constant 1 : index
    %c0_137 = arith.constant 0 : index
    %c0_138 = arith.constant 0 : index
    %154 = vector.load %arg2[%c0_135, %c1_136, %c0_137, %c0_138] : memref<1x3x8x128xf32, #tpu.memory_space<vmem>>, vector<1x1x8x128xf32>
    %155 = vector.shape_cast %154 : vector<1x1x8x128xf32> to vector<8x128xf32>
    %c0_139 = arith.constant 0 : index
    %c1_140 = arith.constant 1 : index
    %c0_141 = arith.constant 0 : index
    %c0_142 = arith.constant 0 : index
    %156 = vector.load %arg3[%c0_139, %c1_140, %c0_141, %c0_142] : memref<1x3x8x128xf32, #tpu.memory_space<vmem>>, vector<1x1x8x128xf32>
    %157 = vector.shape_cast %156 : vector<1x1x8x128xf32> to vector<8x128xf32>
    %158 = arith.subf %155, %157 : vector<8x128xf32>
    %159 = math.absf %158 : vector<8x128xf32>
    %cst_143 = arith.constant dense<0.000000e+00> : vector<128xf32>
    %160 = vector.multi_reduction <add>, %159, %cst_143 [0] : vector<8x128xf32> to vector<128xf32>
    %161 = vector.shape_cast %160 : vector<128xf32> to vector<1x128xf32>
    %162 = arith.addf %149, %161 : vector<1x128xf32>
    %163 = arith.mulf %158, %158 : vector<8x128xf32>
    %cst_144 = arith.constant dense<0.000000e+00> : vector<128xf32>
    %164 = vector.multi_reduction <add>, %163, %cst_144 [0] : vector<8x128xf32> to vector<128xf32>
    %165 = vector.shape_cast %164 : vector<128xf32> to vector<1x128xf32>
    %166 = arith.addf %153, %165 : vector<1x128xf32>
    %c0_145 = arith.constant 0 : index
    %c2_146 = arith.constant 2 : index
    %c0_147 = arith.constant 0 : index
    %c0_148 = arith.constant 0 : index
    %167 = vector.load %arg2[%c0_145, %c2_146, %c0_147, %c0_148] : memref<1x3x8x128xf32, #tpu.memory_space<vmem>>, vector<1x1x8x128xf32>
    %168 = vector.shape_cast %167 : vector<1x1x8x128xf32> to vector<8x128xf32>
    %c0_149 = arith.constant 0 : index
    %c2_150 = arith.constant 2 : index
    %c0_151 = arith.constant 0 : index
    %c0_152 = arith.constant 0 : index
    %169 = vector.load %arg3[%c0_149, %c2_150, %c0_151, %c0_152] : memref<1x3x8x128xf32, #tpu.memory_space<vmem>>, vector<1x1x8x128xf32>
    %170 = vector.shape_cast %169 : vector<1x1x8x128xf32> to vector<8x128xf32>
    %171 = arith.subf %168, %170 : vector<8x128xf32>
    %172 = math.absf %171 : vector<8x128xf32>
    %cst_153 = arith.constant dense<0.000000e+00> : vector<128xf32>
    %173 = vector.multi_reduction <add>, %172, %cst_153 [0] : vector<8x128xf32> to vector<128xf32>
    %174 = vector.shape_cast %173 : vector<128xf32> to vector<1x128xf32>
    %175 = arith.addf %162, %174 : vector<1x128xf32>
    %176 = arith.mulf %171, %171 : vector<8x128xf32>
    %cst_154 = arith.constant dense<0.000000e+00> : vector<128xf32>
    %177 = vector.multi_reduction <add>, %176, %cst_154 [0] : vector<8x128xf32> to vector<128xf32>
    %178 = vector.shape_cast %177 : vector<128xf32> to vector<1x128xf32>
    %179 = arith.addf %166, %178 : vector<1x128xf32>
    %c0_155 = arith.constant 0 : index
    %c0_156 = arith.constant 0 : index
    %c0_157 = arith.constant 0 : index
    %180 = vector.load %arg6[%c0_155, %c0_156, %c0_157] : memref<1x1x128xf32, #tpu.memory_space<vmem>>, vector<1x1x128xf32>
    %181 = vector.shape_cast %175 : vector<1x128xf32> to vector<1x1x128xf32>
    %182 = arith.addf %180, %181 : vector<1x1x128xf32>
    %c0_158 = arith.constant 0 : index
    %c0_159 = arith.constant 0 : index
    %c0_160 = arith.constant 0 : index
    %183 = vector.load %arg6[%c0_158, %c0_159, %c0_160] : memref<1x1x128xf32, #tpu.memory_space<vmem>>, vector<1x1x128xf32>
    tpu.vector_store %arg6[%c0_158, %c0_159, %c0_160], %182 {strides = array<i32>} : memref<1x1x128xf32, #tpu.memory_space<vmem>>, vector<1x1x128xf32>,
    %c0_161 = arith.constant 0 : index
    %c0_162 = arith.constant 0 : index
    %c0_163 = arith.constant 0 : index
    %184 = vector.load %arg7[%c0_161, %c0_162, %c0_163] : memref<1x1x128xf32, #tpu.memory_space<vmem>>, vector<1x1x128xf32>
    %185 = vector.shape_cast %179 : vector<1x128xf32> to vector<1x1x128xf32>
    %186 = arith.addf %184, %185 : vector<1x1x128xf32>
    %c0_164 = arith.constant 0 : index
    %c0_165 = arith.constant 0 : index
    %c0_166 = arith.constant 0 : index
    %187 = vector.load %arg7[%c0_164, %c0_165, %c0_166] : memref<1x1x128xf32, #tpu.memory_space<vmem>>, vector<1x1x128xf32>
    tpu.vector_store %arg7[%c0_164, %c0_165, %c0_166], %186 {strides = array<i32>} : memref<1x1x128xf32, #tpu.memory_space<vmem>>, vector<1x1x128xf32>,
    %188 = tpu.iota {dimensions = array<i32: 0>} : vector<32x128xi32>
    %189 = arith.sitofp %188 : vector<32x128xi32> to vector<32x128xf32>
    %cst_167 = arith.constant 5.000000e-01 : f32
    %190 = vector.broadcast %cst_167 : f32 to vector<32x128xf32>
    %191 = arith.addf %189, %190 : vector<32x128xf32>
    %cst_168 = arith.constant 2.500000e+00 : f32
    %192 = vector.broadcast %cst_168 : f32 to vector<32x128xf32>
    %193 = arith.mulf %191, %192 : vector<32x128xf32>
    %cst_169 = arith.constant 0.000000e+00 : f32
    %194 = vector.broadcast %cst_169 : f32 to vector<32x128xf32>
    %c0_i32_170 = arith.constant 0 : i32
    %c8_i32_171 = arith.constant 8 : i32
    %195 = arith.addi %c0_i32_170, %c8_i32_171 : i32
    %c1_i32 = arith.constant 1 : i32
    %196 = scf.for %arg9 = %c0_i32_170 to %195 step %c1_i32 iter_args(%arg10 = %194) -> (vector<32x128xf32>)  : i32 {
      %c0_799 = arith.constant 0 : index
      %c0_800 = arith.constant 0 : index
      %668 = arith.index_cast %arg9 : i32 to index
      %c0_801 = arith.constant 0 : index
      %669 = vector.load %arg8[%c0_799, %c0_800, %668, %c0_801] : memref<2x3x8x128xf32, #tpu.memory_space<vmem>>, vector<1x1x1x128xf32>
      %670 = vector.shape_cast %669 : vector<1x1x1x128xf32> to vector<1x128xf32>
      %671 = vector.broadcast %670 : vector<1x128xf32> to vector<32x128xf32>
      %672 = arith.subf %193, %671 : vector<32x128xf32>
      %cst_802 = arith.constant -4.000000e+01 : f32
      %cst_803 = arith.constant 4.000000e+01 : f32
      %673 = vector.broadcast %cst_802 : f32 to vector<32x128xf32>
      %674 = arith.maximumf %673, %672 : vector<32x128xf32>
      %675 = vector.broadcast %cst_803 : f32 to vector<32x128xf32>
      %676 = arith.minimumf %675, %674 : vector<32x128xf32>
      %677 = math.exp %676 : vector<32x128xf32>
      %cst_804 = arith.constant 3.20383811 : f32
      %678 = vector.broadcast %cst_804 : f32 to vector<32x128xf32>
      %679 = arith.mulf %678, %677 : vector<32x128xf32>
      %cst_805 = arith.constant 3.77684784 : f32
      %680 = vector.broadcast %cst_805 : f32 to vector<32x128xf32>
      %681 = arith.mulf %680, %677 : vector<32x128xf32>
      %cst_806 = arith.constant 1.000000e+00 : f32
      %682 = vector.broadcast %cst_806 : f32 to vector<32x128xf32>
      %683 = arith.addf %681, %682 : vector<32x128xf32>
      %684 = arith.mulf %677, %677 : vector<32x128xf32>
      %685 = arith.addf %683, %684 : vector<32x128xf32>
      %686 = tpu.reciprocal %685 {approx = true} : vector<32x128xf32> -> vector<32x128xf32>
      %687 = arith.mulf %685, %686 : vector<32x128xf32>
      %cst_807 = arith.constant 2.000000e+00 : f32
      %688 = vector.broadcast %cst_807 : f32 to vector<32x128xf32>
      %689 = arith.subf %688, %687 : vector<32x128xf32>
      %690 = arith.mulf %686, %689 : vector<32x128xf32>
      %691 = arith.mulf %679, %690 : vector<32x128xf32>
      %692 = arith.addf %arg10, %691 : vector<32x128xf32>
      scf.yield %692 : vector<32x128xf32>
    }
    %c8_i32_172 = arith.constant 8 : i32
    %c0_173 = arith.constant 0 : index
    %c0_174 = arith.constant 0 : index
    %c0_175 = arith.constant 0 : index
    %c0_176 = arith.constant 0 : index
    %197 = vector.load %arg4[%c0_173, %c0_174, %c0_175, %c0_176] : memref<1x3x256x128xf32, #tpu.memory_space<vmem>>, vector<1x1x32x128xf32>
    %198 = vector.shape_cast %197 : vector<1x1x32x128xf32> to vector<32x128xf32>
    %199 = arith.addf %198, %196 : vector<32x128xf32>
    %c0_177 = arith.constant 0 : index
    %c0_178 = arith.constant 0 : index
    %c0_179 = arith.constant 0 : index
    %c0_180 = arith.constant 0 : index
    %200 = vector.load %arg4[%c0_177, %c0_178, %c0_179, %c0_180] : memref<1x3x256x128xf32, #tpu.memory_space<vmem>>, vector<1x1x32x128xf32>
    %201 = vector.shape_cast %200 : vector<1x1x32x128xf32> to vector<32x128xf32>
    %202 = vector.shape_cast %199 : vector<32x128xf32> to vector<1x1x32x128xf32>
    tpu.vector_store %arg4[%c0_177, %c0_178, %c0_179, %c0_180], %202 {strides = array<i32>} : memref<1x3x256x128xf32, #tpu.memory_space<vmem>>, vector<1x1x32x128xf32>,
    %cst_181 = arith.constant 0.000000e+00 : f32
    %203 = vector.broadcast %cst_181 : f32 to vector<32x128xf32>
    %c0_i32_182 = arith.constant 0 : i32
    %c8_i32_183 = arith.constant 8 : i32
    %204 = arith.addi %c0_i32_182, %c8_i32_183 : i32
    %c1_i32_184 = arith.constant 1 : i32
    %205 = scf.for %arg9 = %c0_i32_182 to %204 step %c1_i32_184 iter_args(%arg10 = %203) -> (vector<32x128xf32>)  : i32 {
      %c0_799 = arith.constant 0 : index
      %c1_800 = arith.constant 1 : index
      %668 = arith.index_cast %arg9 : i32 to index
      %c0_801 = arith.constant 0 : index
      %669 = vector.load %arg8[%c0_799, %c1_800, %668, %c0_801] : memref<2x3x8x128xf32, #tpu.memory_space<vmem>>, vector<1x1x1x128xf32>
      %670 = vector.shape_cast %669 : vector<1x1x1x128xf32> to vector<1x128xf32>
      %671 = vector.broadcast %670 : vector<1x128xf32> to vector<32x128xf32>
      %672 = arith.subf %193, %671 : vector<32x128xf32>
      %cst_802 = arith.constant -4.000000e+01 : f32
      %cst_803 = arith.constant 4.000000e+01 : f32
      %673 = vector.broadcast %cst_802 : f32 to vector<32x128xf32>
      %674 = arith.maximumf %673, %672 : vector<32x128xf32>
      %675 = vector.broadcast %cst_803 : f32 to vector<32x128xf32>
      %676 = arith.minimumf %675, %674 : vector<32x128xf32>
      %677 = math.exp %676 : vector<32x128xf32>
      %cst_804 = arith.constant 3.20383811 : f32
      %678 = vector.broadcast %cst_804 : f32 to vector<32x128xf32>
      %679 = arith.mulf %678, %677 : vector<32x128xf32>
      %cst_805 = arith.constant 3.77684784 : f32
      %680 = vector.broadcast %cst_805 : f32 to vector<32x128xf32>
      %681 = arith.mulf %680, %677 : vector<32x128xf32>
      %cst_806 = arith.constant 1.000000e+00 : f32
      %682 = vector.broadcast %cst_806 : f32 to vector<32x128xf32>
      %683 = arith.addf %681, %682 : vector<32x128xf32>
      %684 = arith.mulf %677, %677 : vector<32x128xf32>
      %685 = arith.addf %683, %684 : vector<32x128xf32>
      %686 = tpu.reciprocal %685 {approx = true} : vector<32x128xf32> -> vector<32x128xf32>
      %687 = arith.mulf %685, %686 : vector<32x128xf32>
      %cst_807 = arith.constant 2.000000e+00 : f32
      %688 = vector.broadcast %cst_807 : f32 to vector<32x128xf32>
      %689 = arith.subf %688, %687 : vector<32x128xf32>
      %690 = arith.mulf %686, %689 : vector<32x128xf32>
      %691 = arith.mulf %679, %690 : vector<32x128xf32>
      %692 = arith.addf %arg10, %691 : vector<32x128xf32>
      scf.yield %692 : vector<32x128xf32>
    }
    %c8_i32_185 = arith.constant 8 : i32
    %c0_186 = arith.constant 0 : index
    %c1_187 = arith.constant 1 : index
    %c0_188 = arith.constant 0 : index
    %c0_189 = arith.constant 0 : index
    %206 = vector.load %arg4[%c0_186, %c1_187, %c0_188, %c0_189] : memref<1x3x256x128xf32, #tpu.memory_space<vmem>>, vector<1x1x32x128xf32>
    %207 = vector.shape_cast %206 : vector<1x1x32x128xf32> to vector<32x128xf32>
    %208 = arith.addf %207, %205 : vector<32x128xf32>
    %c0_190 = arith.constant 0 : index
    %c1_191 = arith.constant 1 : index
    %c0_192 = arith.constant 0 : index
    %c0_193 = arith.constant 0 : index
    %209 = vector.load %arg4[%c0_190, %c1_191, %c0_192, %c0_193] : memref<1x3x256x128xf32, #tpu.memory_space<vmem>>, vector<1x1x32x128xf32>
    %210 = vector.shape_cast %209 : vector<1x1x32x128xf32> to vector<32x128xf32>
    %211 = vector.shape_cast %208 : vector<32x128xf32> to vector<1x1x32x128xf32>
    tpu.vector_store %arg4[%c0_190, %c1_191, %c0_192, %c0_193], %211 {strides = array<i32>} : memref<1x3x256x128xf32, #tpu.memory_space<vmem>>, vector<1x1x32x128xf32>,
    %cst_194 = arith.constant 0.000000e+00 : f32
    %212 = vector.broadcast %cst_194 : f32 to vector<32x128xf32>
    %c0_i32_195 = arith.constant 0 : i32
    %c8_i32_196 = arith.constant 8 : i32
    %213 = arith.addi %c0_i32_195, %c8_i32_196 : i32
    %c1_i32_197 = arith.constant 1 : i32
    %214 = scf.for %arg9 = %c0_i32_195 to %213 step %c1_i32_197 iter_args(%arg10 = %212) -> (vector<32x128xf32>)  : i32 {
      %c0_799 = arith.constant 0 : index
      %c2_800 = arith.constant 2 : index
      %668 = arith.index_cast %arg9 : i32 to index
      %c0_801 = arith.constant 0 : index
      %669 = vector.load %arg8[%c0_799, %c2_800, %668, %c0_801] : memref<2x3x8x128xf32, #tpu.memory_space<vmem>>, vector<1x1x1x128xf32>
      %670 = vector.shape_cast %669 : vector<1x1x1x128xf32> to vector<1x128xf32>
      %671 = vector.broadcast %670 : vector<1x128xf32> to vector<32x128xf32>
      %672 = arith.subf %193, %671 : vector<32x128xf32>
      %cst_802 = arith.constant -4.000000e+01 : f32
      %cst_803 = arith.constant 4.000000e+01 : f32
      %673 = vector.broadcast %cst_802 : f32 to vector<32x128xf32>
      %674 = arith.maximumf %673, %672 : vector<32x128xf32>
      %675 = vector.broadcast %cst_803 : f32 to vector<32x128xf32>
      %676 = arith.minimumf %675, %674 : vector<32x128xf32>
      %677 = math.exp %676 : vector<32x128xf32>
      %cst_804 = arith.constant 3.20383811 : f32
      %678 = vector.broadcast %cst_804 : f32 to vector<32x128xf32>
      %679 = arith.mulf %678, %677 : vector<32x128xf32>
      %cst_805 = arith.constant 3.77684784 : f32
      %680 = vector.broadcast %cst_805 : f32 to vector<32x128xf32>
      %681 = arith.mulf %680, %677 : vector<32x128xf32>
      %cst_806 = arith.constant 1.000000e+00 : f32
      %682 = vector.broadcast %cst_806 : f32 to vector<32x128xf32>
      %683 = arith.addf %681, %682 : vector<32x128xf32>
      %684 = arith.mulf %677, %677 : vector<32x128xf32>
      %685 = arith.addf %683, %684 : vector<32x128xf32>
      %686 = tpu.reciprocal %685 {approx = true} : vector<32x128xf32> -> vector<32x128xf32>
      %687 = arith.mulf %685, %686 : vector<32x128xf32>
      %cst_807 = arith.constant 2.000000e+00 : f32
      %688 = vector.broadcast %cst_807 : f32 to vector<32x128xf32>
      %689 = arith.subf %688, %687 : vector<32x128xf32>
      %690 = arith.mulf %686, %689 : vector<32x128xf32>
      %691 = arith.mulf %679, %690 : vector<32x128xf32>
      %692 = arith.addf %arg10, %691 : vector<32x128xf32>
      scf.yield %692 : vector<32x128xf32>
    }
    %c8_i32_198 = arith.constant 8 : i32
    %c0_199 = arith.constant 0 : index
    %c2_200 = arith.constant 2 : index
    %c0_201 = arith.constant 0 : index
    %c0_202 = arith.constant 0 : index
    %215 = vector.load %arg4[%c0_199, %c2_200, %c0_201, %c0_202] : memref<1x3x256x128xf32, #tpu.memory_space<vmem>>, vector<1x1x32x128xf32>
    %216 = vector.shape_cast %215 : vector<1x1x32x128xf32> to vector<32x128xf32>
    %217 = arith.addf %216, %214 : vector<32x128xf32>
    %c0_203 = arith.constant 0 : index
    %c2_204 = arith.constant 2 : index
    %c0_205 = arith.constant 0 : index
    %c0_206 = arith.constant 0 : index
    %218 = vector.load %arg4[%c0_203, %c2_204, %c0_205, %c0_206] : memref<1x3x256x128xf32, #tpu.memory_space<vmem>>, vector<1x1x32x128xf32>
    %219 = vector.shape_cast %218 : vector<1x1x32x128xf32> to vector<32x128xf32>
    %220 = vector.shape_cast %217 : vector<32x128xf32> to vector<1x1x32x128xf32>
    tpu.vector_store %arg4[%c0_203, %c2_204, %c0_205, %c0_206], %220 {strides = array<i32>} : memref<1x3x256x128xf32, #tpu.memory_space<vmem>>, vector<1x1x32x128xf32>,
    %cst_207 = arith.constant 0.000000e+00 : f32
    %221 = vector.broadcast %cst_207 : f32 to vector<32x128xf32>
    %c0_i32_208 = arith.constant 0 : i32
    %c8_i32_209 = arith.constant 8 : i32
    %222 = arith.addi %c0_i32_208, %c8_i32_209 : i32
    %c1_i32_210 = arith.constant 1 : i32
    %223 = scf.for %arg9 = %c0_i32_208 to %222 step %c1_i32_210 iter_args(%arg10 = %221) -> (vector<32x128xf32>)  : i32 {
      %c1_799 = arith.constant 1 : index
      %c0_800 = arith.constant 0 : index
      %668 = arith.index_cast %arg9 : i32 to index
      %c0_801 = arith.constant 0 : index
      %669 = vector.load %arg8[%c1_799, %c0_800, %668, %c0_801] : memref<2x3x8x128xf32, #tpu.memory_space<vmem>>, vector<1x1x1x128xf32>
      %670 = vector.shape_cast %669 : vector<1x1x1x128xf32> to vector<1x128xf32>
      %671 = vector.broadcast %670 : vector<1x128xf32> to vector<32x128xf32>
      %672 = arith.subf %193, %671 : vector<32x128xf32>
      %cst_802 = arith.constant -4.000000e+01 : f32
      %cst_803 = arith.constant 4.000000e+01 : f32
      %673 = vector.broadcast %cst_802 : f32 to vector<32x128xf32>
      %674 = arith.maximumf %673, %672 : vector<32x128xf32>
      %675 = vector.broadcast %cst_803 : f32 to vector<32x128xf32>
      %676 = arith.minimumf %675, %674 : vector<32x128xf32>
      %677 = math.exp %676 : vector<32x128xf32>
      %cst_804 = arith.constant 3.20383811 : f32
      %678 = vector.broadcast %cst_804 : f32 to vector<32x128xf32>
      %679 = arith.mulf %678, %677 : vector<32x128xf32>
      %cst_805 = arith.constant 3.77684784 : f32
      %680 = vector.broadcast %cst_805 : f32 to vector<32x128xf32>
      %681 = arith.mulf %680, %677 : vector<32x128xf32>
      %cst_806 = arith.constant 1.000000e+00 : f32
      %682 = vector.broadcast %cst_806 : f32 to vector<32x128xf32>
      %683 = arith.addf %681, %682 : vector<32x128xf32>
      %684 = arith.mulf %677, %677 : vector<32x128xf32>
      %685 = arith.addf %683, %684 : vector<32x128xf32>
      %686 = tpu.reciprocal %685 {approx = true} : vector<32x128xf32> -> vector<32x128xf32>
      %687 = arith.mulf %685, %686 : vector<32x128xf32>
      %cst_807 = arith.constant 2.000000e+00 : f32
      %688 = vector.broadcast %cst_807 : f32 to vector<32x128xf32>
      %689 = arith.subf %688, %687 : vector<32x128xf32>
      %690 = arith.mulf %686, %689 : vector<32x128xf32>
      %691 = arith.mulf %679, %690 : vector<32x128xf32>
      %692 = arith.addf %arg10, %691 : vector<32x128xf32>
      scf.yield %692 : vector<32x128xf32>
    }
    %c8_i32_211 = arith.constant 8 : i32
    %c0_212 = arith.constant 0 : index
    %c0_213 = arith.constant 0 : index
    %c0_214 = arith.constant 0 : index
    %c0_215 = arith.constant 0 : index
    %224 = vector.load %arg5[%c0_212, %c0_213, %c0_214, %c0_215] : memref<1x3x256x128xf32, #tpu.memory_space<vmem>>, vector<1x1x32x128xf32>
    %225 = vector.shape_cast %224 : vector<1x1x32x128xf32> to vector<32x128xf32>
    %226 = arith.addf %225, %223 : vector<32x128xf32>
    %c0_216 = arith.constant 0 : index
    %c0_217 = arith.constant 0 : index
    %c0_218 = arith.constant 0 : index
    %c0_219 = arith.constant 0 : index
    %227 = vector.load %arg5[%c0_216, %c0_217, %c0_218, %c0_219] : memref<1x3x256x128xf32, #tpu.memory_space<vmem>>, vector<1x1x32x128xf32>
    %228 = vector.shape_cast %227 : vector<1x1x32x128xf32> to vector<32x128xf32>
    %229 = vector.shape_cast %226 : vector<32x128xf32> to vector<1x1x32x128xf32>
    tpu.vector_store %arg5[%c0_216, %c0_217, %c0_218, %c0_219], %229 {strides = array<i32>} : memref<1x3x256x128xf32, #tpu.memory_space<vmem>>, vector<1x1x32x128xf32>,
    %cst_220 = arith.constant 0.000000e+00 : f32
    %230 = vector.broadcast %cst_220 : f32 to vector<32x128xf32>
    %c0_i32_221 = arith.constant 0 : i32
    %c8_i32_222 = arith.constant 8 : i32
    %231 = arith.addi %c0_i32_221, %c8_i32_222 : i32
    %c1_i32_223 = arith.constant 1 : i32
    %232 = scf.for %arg9 = %c0_i32_221 to %231 step %c1_i32_223 iter_args(%arg10 = %230) -> (vector<32x128xf32>)  : i32 {
      %c1_799 = arith.constant 1 : index
      %c1_800 = arith.constant 1 : index
      %668 = arith.index_cast %arg9 : i32 to index
      %c0_801 = arith.constant 0 : index
      %669 = vector.load %arg8[%c1_799, %c1_800, %668, %c0_801] : memref<2x3x8x128xf32, #tpu.memory_space<vmem>>, vector<1x1x1x128xf32>
      %670 = vector.shape_cast %669 : vector<1x1x1x128xf32> to vector<1x128xf32>
      %671 = vector.broadcast %670 : vector<1x128xf32> to vector<32x128xf32>
      %672 = arith.subf %193, %671 : vector<32x128xf32>
      %cst_802 = arith.constant -4.000000e+01 : f32
      %cst_803 = arith.constant 4.000000e+01 : f32
      %673 = vector.broadcast %cst_802 : f32 to vector<32x128xf32>
      %674 = arith.maximumf %673, %672 : vector<32x128xf32>
      %675 = vector.broadcast %cst_803 : f32 to vector<32x128xf32>
      %676 = arith.minimumf %675, %674 : vector<32x128xf32>
      %677 = math.exp %676 : vector<32x128xf32>
      %cst_804 = arith.constant 3.20383811 : f32
      %678 = vector.broadcast %cst_804 : f32 to vector<32x128xf32>
      %679 = arith.mulf %678, %677 : vector<32x128xf32>
      %cst_805 = arith.constant 3.77684784 : f32
      %680 = vector.broadcast %cst_805 : f32 to vector<32x128xf32>
      %681 = arith.mulf %680, %677 : vector<32x128xf32>
      %cst_806 = arith.constant 1.000000e+00 : f32
      %682 = vector.broadcast %cst_806 : f32 to vector<32x128xf32>
      %683 = arith.addf %681, %682 : vector<32x128xf32>
      %684 = arith.mulf %677, %677 : vector<32x128xf32>
      %685 = arith.addf %683, %684 : vector<32x128xf32>
      %686 = tpu.reciprocal %685 {approx = true} : vector<32x128xf32> -> vector<32x128xf32>
      %687 = arith.mulf %685, %686 : vector<32x128xf32>
      %cst_807 = arith.constant 2.000000e+00 : f32
      %688 = vector.broadcast %cst_807 : f32 to vector<32x128xf32>
      %689 = arith.subf %688, %687 : vector<32x128xf32>
      %690 = arith.mulf %686, %689 : vector<32x128xf32>
      %691 = arith.mulf %679, %690 : vector<32x128xf32>
      %692 = arith.addf %arg10, %691 : vector<32x128xf32>
      scf.yield %692 : vector<32x128xf32>
    }
    %c8_i32_224 = arith.constant 8 : i32
    %c0_225 = arith.constant 0 : index
    %c1_226 = arith.constant 1 : index
    %c0_227 = arith.constant 0 : index
    %c0_228 = arith.constant 0 : index
    %233 = vector.load %arg5[%c0_225, %c1_226, %c0_227, %c0_228] : memref<1x3x256x128xf32, #tpu.memory_space<vmem>>, vector<1x1x32x128xf32>
    %234 = vector.shape_cast %233 : vector<1x1x32x128xf32> to vector<32x128xf32>
    %235 = arith.addf %234, %232 : vector<32x128xf32>
    %c0_229 = arith.constant 0 : index
    %c1_230 = arith.constant 1 : index
    %c0_231 = arith.constant 0 : index
    %c0_232 = arith.constant 0 : index
    %236 = vector.load %arg5[%c0_229, %c1_230, %c0_231, %c0_232] : memref<1x3x256x128xf32, #tpu.memory_space<vmem>>, vector<1x1x32x128xf32>
    %237 = vector.shape_cast %236 : vector<1x1x32x128xf32> to vector<32x128xf32>
    %238 = vector.shape_cast %235 : vector<32x128xf32> to vector<1x1x32x128xf32>
    tpu.vector_store %arg5[%c0_229, %c1_230, %c0_231, %c0_232], %238 {strides = array<i32>} : memref<1x3x256x128xf32, #tpu.memory_space<vmem>>, vector<1x1x32x128xf32>,
    %cst_233 = arith.constant 0.000000e+00 : f32
    %239 = vector.broadcast %cst_233 : f32 to vector<32x128xf32>
    %c0_i32_234 = arith.constant 0 : i32
    %c8_i32_235 = arith.constant 8 : i32
    %240 = arith.addi %c0_i32_234, %c8_i32_235 : i32
    %c1_i32_236 = arith.constant 1 : i32
    %241 = scf.for %arg9 = %c0_i32_234 to %240 step %c1_i32_236 iter_args(%arg10 = %239) -> (vector<32x128xf32>)  : i32 {
      %c1_799 = arith.constant 1 : index
      %c2_800 = arith.constant 2 : index
      %668 = arith.index_cast %arg9 : i32 to index
      %c0_801 = arith.constant 0 : index
      %669 = vector.load %arg8[%c1_799, %c2_800, %668, %c0_801] : memref<2x3x8x128xf32, #tpu.memory_space<vmem>>, vector<1x1x1x128xf32>
      %670 = vector.shape_cast %669 : vector<1x1x1x128xf32> to vector<1x128xf32>
      %671 = vector.broadcast %670 : vector<1x128xf32> to vector<32x128xf32>
      %672 = arith.subf %193, %671 : vector<32x128xf32>
      %cst_802 = arith.constant -4.000000e+01 : f32
      %cst_803 = arith.constant 4.000000e+01 : f32
      %673 = vector.broadcast %cst_802 : f32 to vector<32x128xf32>
      %674 = arith.maximumf %673, %672 : vector<32x128xf32>
      %675 = vector.broadcast %cst_803 : f32 to vector<32x128xf32>
      %676 = arith.minimumf %675, %674 : vector<32x128xf32>
      %677 = math.exp %676 : vector<32x128xf32>
      %cst_804 = arith.constant 3.20383811 : f32
      %678 = vector.broadcast %cst_804 : f32 to vector<32x128xf32>
      %679 = arith.mulf %678, %677 : vector<32x128xf32>
      %cst_805 = arith.constant 3.77684784 : f32
      %680 = vector.broadcast %cst_805 : f32 to vector<32x128xf32>
      %681 = arith.mulf %680, %677 : vector<32x128xf32>
      %cst_806 = arith.constant 1.000000e+00 : f32
      %682 = vector.broadcast %cst_806 : f32 to vector<32x128xf32>
      %683 = arith.addf %681, %682 : vector<32x128xf32>
      %684 = arith.mulf %677, %677 : vector<32x128xf32>
      %685 = arith.addf %683, %684 : vector<32x128xf32>
      %686 = tpu.reciprocal %685 {approx = true} : vector<32x128xf32> -> vector<32x128xf32>
      %687 = arith.mulf %685, %686 : vector<32x128xf32>
      %cst_807 = arith.constant 2.000000e+00 : f32
      %688 = vector.broadcast %cst_807 : f32 to vector<32x128xf32>
      %689 = arith.subf %688, %687 : vector<32x128xf32>
      %690 = arith.mulf %686, %689 : vector<32x128xf32>
      %691 = arith.mulf %679, %690 : vector<32x128xf32>
      %692 = arith.addf %arg10, %691 : vector<32x128xf32>
      scf.yield %692 : vector<32x128xf32>
    }
    %c8_i32_237 = arith.constant 8 : i32
    %c0_238 = arith.constant 0 : index
    %c2_239 = arith.constant 2 : index
    %c0_240 = arith.constant 0 : index
    %c0_241 = arith.constant 0 : index
    %242 = vector.load %arg5[%c0_238, %c2_239, %c0_240, %c0_241] : memref<1x3x256x128xf32, #tpu.memory_space<vmem>>, vector<1x1x32x128xf32>
    %243 = vector.shape_cast %242 : vector<1x1x32x128xf32> to vector<32x128xf32>
    %244 = arith.addf %243, %241 : vector<32x128xf32>
    %c0_242 = arith.constant 0 : index
    %c2_243 = arith.constant 2 : index
    %c0_244 = arith.constant 0 : index
    %c0_245 = arith.constant 0 : index
    %245 = vector.load %arg5[%c0_242, %c2_243, %c0_244, %c0_245] : memref<1x3x256x128xf32, #tpu.memory_space<vmem>>, vector<1x1x32x128xf32>
    %246 = vector.shape_cast %245 : vector<1x1x32x128xf32> to vector<32x128xf32>
    %247 = vector.shape_cast %244 : vector<32x128xf32> to vector<1x1x32x128xf32>
    tpu.vector_store %arg5[%c0_242, %c2_243, %c0_244, %c0_245], %247 {strides = array<i32>} : memref<1x3x256x128xf32, #tpu.memory_space<vmem>>, vector<1x1x32x128xf32>,
    %248 = tpu.iota {dimensions = array<i32: 0>} : vector<32x128xi32>
    %249 = arith.sitofp %248 : vector<32x128xi32> to vector<32x128xf32>
    %cst_246 = arith.constant 3.250000e+01 : f32
    %250 = vector.broadcast %cst_246 : f32 to vector<32x128xf32>
    %251 = arith.addf %249, %250 : vector<32x128xf32>
    %cst_247 = arith.constant 2.500000e+00 : f32
    %252 = vector.broadcast %cst_247 : f32 to vector<32x128xf32>
    %253 = arith.mulf %251, %252 : vector<32x128xf32>
    %cst_248 = arith.constant 0.000000e+00 : f32
    %254 = vector.broadcast %cst_248 : f32 to vector<32x128xf32>
    %c0_i32_249 = arith.constant 0 : i32
    %c8_i32_250 = arith.constant 8 : i32
    %255 = arith.addi %c0_i32_249, %c8_i32_250 : i32
    %c1_i32_251 = arith.constant 1 : i32
    %256 = scf.for %arg9 = %c0_i32_249 to %255 step %c1_i32_251 iter_args(%arg10 = %254) -> (vector<32x128xf32>)  : i32 {
      %c0_799 = arith.constant 0 : index
      %c0_800 = arith.constant 0 : index
      %668 = arith.index_cast %arg9 : i32 to index
      %c0_801 = arith.constant 0 : index
      %669 = vector.load %arg8[%c0_799, %c0_800, %668, %c0_801] : memref<2x3x8x128xf32, #tpu.memory_space<vmem>>, vector<1x1x1x128xf32>
      %670 = vector.shape_cast %669 : vector<1x1x1x128xf32> to vector<1x128xf32>
      %671 = vector.broadcast %670 : vector<1x128xf32> to vector<32x128xf32>
      %672 = arith.subf %253, %671 : vector<32x128xf32>
      %cst_802 = arith.constant -4.000000e+01 : f32
      %cst_803 = arith.constant 4.000000e+01 : f32
      %673 = vector.broadcast %cst_802 : f32 to vector<32x128xf32>
      %674 = arith.maximumf %673, %672 : vector<32x128xf32>
      %675 = vector.broadcast %cst_803 : f32 to vector<32x128xf32>
      %676 = arith.minimumf %675, %674 : vector<32x128xf32>
      %677 = math.exp %676 : vector<32x128xf32>
      %cst_804 = arith.constant 3.20383811 : f32
      %678 = vector.broadcast %cst_804 : f32 to vector<32x128xf32>
      %679 = arith.mulf %678, %677 : vector<32x128xf32>
      %cst_805 = arith.constant 3.77684784 : f32
      %680 = vector.broadcast %cst_805 : f32 to vector<32x128xf32>
      %681 = arith.mulf %680, %677 : vector<32x128xf32>
      %cst_806 = arith.constant 1.000000e+00 : f32
      %682 = vector.broadcast %cst_806 : f32 to vector<32x128xf32>
      %683 = arith.addf %681, %682 : vector<32x128xf32>
      %684 = arith.mulf %677, %677 : vector<32x128xf32>
      %685 = arith.addf %683, %684 : vector<32x128xf32>
      %686 = tpu.reciprocal %685 {approx = true} : vector<32x128xf32> -> vector<32x128xf32>
      %687 = arith.mulf %685, %686 : vector<32x128xf32>
      %cst_807 = arith.constant 2.000000e+00 : f32
      %688 = vector.broadcast %cst_807 : f32 to vector<32x128xf32>
      %689 = arith.subf %688, %687 : vector<32x128xf32>
      %690 = arith.mulf %686, %689 : vector<32x128xf32>
      %691 = arith.mulf %679, %690 : vector<32x128xf32>
      %692 = arith.addf %arg10, %691 : vector<32x128xf32>
      scf.yield %692 : vector<32x128xf32>
    }
    %c8_i32_252 = arith.constant 8 : i32
    %c0_253 = arith.constant 0 : index
    %c0_254 = arith.constant 0 : index
    %c32 = arith.constant 32 : index
    %c0_255 = arith.constant 0 : index
    %257 = vector.load %arg4[%c0_253, %c0_254, %c32, %c0_255] : memref<1x3x256x128xf32, #tpu.memory_space<vmem>>, vector<1x1x32x128xf32>
    %258 = vector.shape_cast %257 : vector<1x1x32x128xf32> to vector<32x128xf32>
    %259 = arith.addf %258, %256 : vector<32x128xf32>
    %c0_256 = arith.constant 0 : index
    %c0_257 = arith.constant 0 : index
    %c32_258 = arith.constant 32 : index
    %c0_259 = arith.constant 0 : index
    %260 = vector.load %arg4[%c0_256, %c0_257, %c32_258, %c0_259] : memref<1x3x256x128xf32, #tpu.memory_space<vmem>>, vector<1x1x32x128xf32>
    %261 = vector.shape_cast %260 : vector<1x1x32x128xf32> to vector<32x128xf32>
    %262 = vector.shape_cast %259 : vector<32x128xf32> to vector<1x1x32x128xf32>
    tpu.vector_store %arg4[%c0_256, %c0_257, %c32_258, %c0_259], %262 {strides = array<i32>} : memref<1x3x256x128xf32, #tpu.memory_space<vmem>>, vector<1x1x32x128xf32>,
    %cst_260 = arith.constant 0.000000e+00 : f32
    %263 = vector.broadcast %cst_260 : f32 to vector<32x128xf32>
    %c0_i32_261 = arith.constant 0 : i32
    %c8_i32_262 = arith.constant 8 : i32
    %264 = arith.addi %c0_i32_261, %c8_i32_262 : i32
    %c1_i32_263 = arith.constant 1 : i32
    %265 = scf.for %arg9 = %c0_i32_261 to %264 step %c1_i32_263 iter_args(%arg10 = %263) -> (vector<32x128xf32>)  : i32 {
      %c0_799 = arith.constant 0 : index
      %c1_800 = arith.constant 1 : index
      %668 = arith.index_cast %arg9 : i32 to index
      %c0_801 = arith.constant 0 : index
      %669 = vector.load %arg8[%c0_799, %c1_800, %668, %c0_801] : memref<2x3x8x128xf32, #tpu.memory_space<vmem>>, vector<1x1x1x128xf32>
      %670 = vector.shape_cast %669 : vector<1x1x1x128xf32> to vector<1x128xf32>
      %671 = vector.broadcast %670 : vector<1x128xf32> to vector<32x128xf32>
      %672 = arith.subf %253, %671 : vector<32x128xf32>
      %cst_802 = arith.constant -4.000000e+01 : f32
      %cst_803 = arith.constant 4.000000e+01 : f32
      %673 = vector.broadcast %cst_802 : f32 to vector<32x128xf32>
      %674 = arith.maximumf %673, %672 : vector<32x128xf32>
      %675 = vector.broadcast %cst_803 : f32 to vector<32x128xf32>
      %676 = arith.minimumf %675, %674 : vector<32x128xf32>
      %677 = math.exp %676 : vector<32x128xf32>
      %cst_804 = arith.constant 3.20383811 : f32
      %678 = vector.broadcast %cst_804 : f32 to vector<32x128xf32>
      %679 = arith.mulf %678, %677 : vector<32x128xf32>
      %cst_805 = arith.constant 3.77684784 : f32
      %680 = vector.broadcast %cst_805 : f32 to vector<32x128xf32>
      %681 = arith.mulf %680, %677 : vector<32x128xf32>
      %cst_806 = arith.constant 1.000000e+00 : f32
      %682 = vector.broadcast %cst_806 : f32 to vector<32x128xf32>
      %683 = arith.addf %681, %682 : vector<32x128xf32>
      %684 = arith.mulf %677, %677 : vector<32x128xf32>
      %685 = arith.addf %683, %684 : vector<32x128xf32>
      %686 = tpu.reciprocal %685 {approx = true} : vector<32x128xf32> -> vector<32x128xf32>
      %687 = arith.mulf %685, %686 : vector<32x128xf32>
      %cst_807 = arith.constant 2.000000e+00 : f32
      %688 = vector.broadcast %cst_807 : f32 to vector<32x128xf32>
      %689 = arith.subf %688, %687 : vector<32x128xf32>
      %690 = arith.mulf %686, %689 : vector<32x128xf32>
      %691 = arith.mulf %679, %690 : vector<32x128xf32>
      %692 = arith.addf %arg10, %691 : vector<32x128xf32>
      scf.yield %692 : vector<32x128xf32>
    }
    %c8_i32_264 = arith.constant 8 : i32
    %c0_265 = arith.constant 0 : index
    %c1_266 = arith.constant 1 : index
    %c32_267 = arith.constant 32 : index
    %c0_268 = arith.constant 0 : index
    %266 = vector.load %arg4[%c0_265, %c1_266, %c32_267, %c0_268] : memref<1x3x256x128xf32, #tpu.memory_space<vmem>>, vector<1x1x32x128xf32>
    %267 = vector.shape_cast %266 : vector<1x1x32x128xf32> to vector<32x128xf32>
    %268 = arith.addf %267, %265 : vector<32x128xf32>
    %c0_269 = arith.constant 0 : index
    %c1_270 = arith.constant 1 : index
    %c32_271 = arith.constant 32 : index
    %c0_272 = arith.constant 0 : index
    %269 = vector.load %arg4[%c0_269, %c1_270, %c32_271, %c0_272] : memref<1x3x256x128xf32, #tpu.memory_space<vmem>>, vector<1x1x32x128xf32>
    %270 = vector.shape_cast %269 : vector<1x1x32x128xf32> to vector<32x128xf32>
    %271 = vector.shape_cast %268 : vector<32x128xf32> to vector<1x1x32x128xf32>
    tpu.vector_store %arg4[%c0_269, %c1_270, %c32_271, %c0_272], %271 {strides = array<i32>} : memref<1x3x256x128xf32, #tpu.memory_space<vmem>>, vector<1x1x32x128xf32>,
    %cst_273 = arith.constant 0.000000e+00 : f32
    %272 = vector.broadcast %cst_273 : f32 to vector<32x128xf32>
    %c0_i32_274 = arith.constant 0 : i32
    %c8_i32_275 = arith.constant 8 : i32
    %273 = arith.addi %c0_i32_274, %c8_i32_275 : i32
    %c1_i32_276 = arith.constant 1 : i32
    %274 = scf.for %arg9 = %c0_i32_274 to %273 step %c1_i32_276 iter_args(%arg10 = %272) -> (vector<32x128xf32>)  : i32 {
      %c0_799 = arith.constant 0 : index
      %c2_800 = arith.constant 2 : index
      %668 = arith.index_cast %arg9 : i32 to index
      %c0_801 = arith.constant 0 : index
      %669 = vector.load %arg8[%c0_799, %c2_800, %668, %c0_801] : memref<2x3x8x128xf32, #tpu.memory_space<vmem>>, vector<1x1x1x128xf32>
      %670 = vector.shape_cast %669 : vector<1x1x1x128xf32> to vector<1x128xf32>
      %671 = vector.broadcast %670 : vector<1x128xf32> to vector<32x128xf32>
      %672 = arith.subf %253, %671 : vector<32x128xf32>
      %cst_802 = arith.constant -4.000000e+01 : f32
      %cst_803 = arith.constant 4.000000e+01 : f32
      %673 = vector.broadcast %cst_802 : f32 to vector<32x128xf32>
      %674 = arith.maximumf %673, %672 : vector<32x128xf32>
      %675 = vector.broadcast %cst_803 : f32 to vector<32x128xf32>
      %676 = arith.minimumf %675, %674 : vector<32x128xf32>
      %677 = math.exp %676 : vector<32x128xf32>
      %cst_804 = arith.constant 3.20383811 : f32
      %678 = vector.broadcast %cst_804 : f32 to vector<32x128xf32>
      %679 = arith.mulf %678, %677 : vector<32x128xf32>
      %cst_805 = arith.constant 3.77684784 : f32
      %680 = vector.broadcast %cst_805 : f32 to vector<32x128xf32>
      %681 = arith.mulf %680, %677 : vector<32x128xf32>
      %cst_806 = arith.constant 1.000000e+00 : f32
      %682 = vector.broadcast %cst_806 : f32 to vector<32x128xf32>
      %683 = arith.addf %681, %682 : vector<32x128xf32>
      %684 = arith.mulf %677, %677 : vector<32x128xf32>
      %685 = arith.addf %683, %684 : vector<32x128xf32>
      %686 = tpu.reciprocal %685 {approx = true} : vector<32x128xf32> -> vector<32x128xf32>
      %687 = arith.mulf %685, %686 : vector<32x128xf32>
      %cst_807 = arith.constant 2.000000e+00 : f32
      %688 = vector.broadcast %cst_807 : f32 to vector<32x128xf32>
      %689 = arith.subf %688, %687 : vector<32x128xf32>
      %690 = arith.mulf %686, %689 : vector<32x128xf32>
      %691 = arith.mulf %679, %690 : vector<32x128xf32>
      %692 = arith.addf %arg10, %691 : vector<32x128xf32>
      scf.yield %692 : vector<32x128xf32>
    }
    %c8_i32_277 = arith.constant 8 : i32
    %c0_278 = arith.constant 0 : index
    %c2_279 = arith.constant 2 : index
    %c32_280 = arith.constant 32 : index
    %c0_281 = arith.constant 0 : index
    %275 = vector.load %arg4[%c0_278, %c2_279, %c32_280, %c0_281] : memref<1x3x256x128xf32, #tpu.memory_space<vmem>>, vector<1x1x32x128xf32>
    %276 = vector.shape_cast %275 : vector<1x1x32x128xf32> to vector<32x128xf32>
    %277 = arith.addf %276, %274 : vector<32x128xf32>
    %c0_282 = arith.constant 0 : index
    %c2_283 = arith.constant 2 : index
    %c32_284 = arith.constant 32 : index
    %c0_285 = arith.constant 0 : index
    %278 = vector.load %arg4[%c0_282, %c2_283, %c32_284, %c0_285] : memref<1x3x256x128xf32, #tpu.memory_space<vmem>>, vector<1x1x32x128xf32>
    %279 = vector.shape_cast %278 : vector<1x1x32x128xf32> to vector<32x128xf32>
    %280 = vector.shape_cast %277 : vector<32x128xf32> to vector<1x1x32x128xf32>
    tpu.vector_store %arg4[%c0_282, %c2_283, %c32_284, %c0_285], %280 {strides = array<i32>} : memref<1x3x256x128xf32, #tpu.memory_space<vmem>>, vector<1x1x32x128xf32>,
    %cst_286 = arith.constant 0.000000e+00 : f32
    %281 = vector.broadcast %cst_286 : f32 to vector<32x128xf32>
    %c0_i32_287 = arith.constant 0 : i32
    %c8_i32_288 = arith.constant 8 : i32
    %282 = arith.addi %c0_i32_287, %c8_i32_288 : i32
    %c1_i32_289 = arith.constant 1 : i32
    %283 = scf.for %arg9 = %c0_i32_287 to %282 step %c1_i32_289 iter_args(%arg10 = %281) -> (vector<32x128xf32>)  : i32 {
      %c1_799 = arith.constant 1 : index
      %c0_800 = arith.constant 0 : index
      %668 = arith.index_cast %arg9 : i32 to index
      %c0_801 = arith.constant 0 : index
      %669 = vector.load %arg8[%c1_799, %c0_800, %668, %c0_801] : memref<2x3x8x128xf32, #tpu.memory_space<vmem>>, vector<1x1x1x128xf32>
      %670 = vector.shape_cast %669 : vector<1x1x1x128xf32> to vector<1x128xf32>
      %671 = vector.broadcast %670 : vector<1x128xf32> to vector<32x128xf32>
      %672 = arith.subf %253, %671 : vector<32x128xf32>
      %cst_802 = arith.constant -4.000000e+01 : f32
      %cst_803 = arith.constant 4.000000e+01 : f32
      %673 = vector.broadcast %cst_802 : f32 to vector<32x128xf32>
      %674 = arith.maximumf %673, %672 : vector<32x128xf32>
      %675 = vector.broadcast %cst_803 : f32 to vector<32x128xf32>
      %676 = arith.minimumf %675, %674 : vector<32x128xf32>
      %677 = math.exp %676 : vector<32x128xf32>
      %cst_804 = arith.constant 3.20383811 : f32
      %678 = vector.broadcast %cst_804 : f32 to vector<32x128xf32>
      %679 = arith.mulf %678, %677 : vector<32x128xf32>
      %cst_805 = arith.constant 3.77684784 : f32
      %680 = vector.broadcast %cst_805 : f32 to vector<32x128xf32>
      %681 = arith.mulf %680, %677 : vector<32x128xf32>
      %cst_806 = arith.constant 1.000000e+00 : f32
      %682 = vector.broadcast %cst_806 : f32 to vector<32x128xf32>
      %683 = arith.addf %681, %682 : vector<32x128xf32>
      %684 = arith.mulf %677, %677 : vector<32x128xf32>
      %685 = arith.addf %683, %684 : vector<32x128xf32>
      %686 = tpu.reciprocal %685 {approx = true} : vector<32x128xf32> -> vector<32x128xf32>
      %687 = arith.mulf %685, %686 : vector<32x128xf32>
      %cst_807 = arith.constant 2.000000e+00 : f32
      %688 = vector.broadcast %cst_807 : f32 to vector<32x128xf32>
      %689 = arith.subf %688, %687 : vector<32x128xf32>
      %690 = arith.mulf %686, %689 : vector<32x128xf32>
      %691 = arith.mulf %679, %690 : vector<32x128xf32>
      %692 = arith.addf %arg10, %691 : vector<32x128xf32>
      scf.yield %692 : vector<32x128xf32>
    }
    %c8_i32_290 = arith.constant 8 : i32
    %c0_291 = arith.constant 0 : index
    %c0_292 = arith.constant 0 : index
    %c32_293 = arith.constant 32 : index
    %c0_294 = arith.constant 0 : index
    %284 = vector.load %arg5[%c0_291, %c0_292, %c32_293, %c0_294] : memref<1x3x256x128xf32, #tpu.memory_space<vmem>>, vector<1x1x32x128xf32>
    %285 = vector.shape_cast %284 : vector<1x1x32x128xf32> to vector<32x128xf32>
    %286 = arith.addf %285, %283 : vector<32x128xf32>
    %c0_295 = arith.constant 0 : index
    %c0_296 = arith.constant 0 : index
    %c32_297 = arith.constant 32 : index
    %c0_298 = arith.constant 0 : index
    %287 = vector.load %arg5[%c0_295, %c0_296, %c32_297, %c0_298] : memref<1x3x256x128xf32, #tpu.memory_space<vmem>>, vector<1x1x32x128xf32>
    %288 = vector.shape_cast %287 : vector<1x1x32x128xf32> to vector<32x128xf32>
    %289 = vector.shape_cast %286 : vector<32x128xf32> to vector<1x1x32x128xf32>
    tpu.vector_store %arg5[%c0_295, %c0_296, %c32_297, %c0_298], %289 {strides = array<i32>} : memref<1x3x256x128xf32, #tpu.memory_space<vmem>>, vector<1x1x32x128xf32>,
    %cst_299 = arith.constant 0.000000e+00 : f32
    %290 = vector.broadcast %cst_299 : f32 to vector<32x128xf32>
    %c0_i32_300 = arith.constant 0 : i32
    %c8_i32_301 = arith.constant 8 : i32
    %291 = arith.addi %c0_i32_300, %c8_i32_301 : i32
    %c1_i32_302 = arith.constant 1 : i32
    %292 = scf.for %arg9 = %c0_i32_300 to %291 step %c1_i32_302 iter_args(%arg10 = %290) -> (vector<32x128xf32>)  : i32 {
      %c1_799 = arith.constant 1 : index
      %c1_800 = arith.constant 1 : index
      %668 = arith.index_cast %arg9 : i32 to index
      %c0_801 = arith.constant 0 : index
      %669 = vector.load %arg8[%c1_799, %c1_800, %668, %c0_801] : memref<2x3x8x128xf32, #tpu.memory_space<vmem>>, vector<1x1x1x128xf32>
      %670 = vector.shape_cast %669 : vector<1x1x1x128xf32> to vector<1x128xf32>
      %671 = vector.broadcast %670 : vector<1x128xf32> to vector<32x128xf32>
      %672 = arith.subf %253, %671 : vector<32x128xf32>
      %cst_802 = arith.constant -4.000000e+01 : f32
      %cst_803 = arith.constant 4.000000e+01 : f32
      %673 = vector.broadcast %cst_802 : f32 to vector<32x128xf32>
      %674 = arith.maximumf %673, %672 : vector<32x128xf32>
      %675 = vector.broadcast %cst_803 : f32 to vector<32x128xf32>
      %676 = arith.minimumf %675, %674 : vector<32x128xf32>
      %677 = math.exp %676 : vector<32x128xf32>
      %cst_804 = arith.constant 3.20383811 : f32
      %678 = vector.broadcast %cst_804 : f32 to vector<32x128xf32>
      %679 = arith.mulf %678, %677 : vector<32x128xf32>
      %cst_805 = arith.constant 3.77684784 : f32
      %680 = vector.broadcast %cst_805 : f32 to vector<32x128xf32>
      %681 = arith.mulf %680, %677 : vector<32x128xf32>
      %cst_806 = arith.constant 1.000000e+00 : f32
      %682 = vector.broadcast %cst_806 : f32 to vector<32x128xf32>
      %683 = arith.addf %681, %682 : vector<32x128xf32>
      %684 = arith.mulf %677, %677 : vector<32x128xf32>
      %685 = arith.addf %683, %684 : vector<32x128xf32>
      %686 = tpu.reciprocal %685 {approx = true} : vector<32x128xf32> -> vector<32x128xf32>
      %687 = arith.mulf %685, %686 : vector<32x128xf32>
      %cst_807 = arith.constant 2.000000e+00 : f32
      %688 = vector.broadcast %cst_807 : f32 to vector<32x128xf32>
      %689 = arith.subf %688, %687 : vector<32x128xf32>
      %690 = arith.mulf %686, %689 : vector<32x128xf32>
      %691 = arith.mulf %679, %690 : vector<32x128xf32>
      %692 = arith.addf %arg10, %691 : vector<32x128xf32>
      scf.yield %692 : vector<32x128xf32>
    }
    %c8_i32_303 = arith.constant 8 : i32
    %c0_304 = arith.constant 0 : index
    %c1_305 = arith.constant 1 : index
    %c32_306 = arith.constant 32 : index
    %c0_307 = arith.constant 0 : index
    %293 = vector.load %arg5[%c0_304, %c1_305, %c32_306, %c0_307] : memref<1x3x256x128xf32, #tpu.memory_space<vmem>>, vector<1x1x32x128xf32>
    %294 = vector.shape_cast %293 : vector<1x1x32x128xf32> to vector<32x128xf32>
    %295 = arith.addf %294, %292 : vector<32x128xf32>
    %c0_308 = arith.constant 0 : index
    %c1_309 = arith.constant 1 : index
    %c32_310 = arith.constant 32 : index
    %c0_311 = arith.constant 0 : index
    %296 = vector.load %arg5[%c0_308, %c1_309, %c32_310, %c0_311] : memref<1x3x256x128xf32, #tpu.memory_space<vmem>>, vector<1x1x32x128xf32>
    %297 = vector.shape_cast %296 : vector<1x1x32x128xf32> to vector<32x128xf32>
    %298 = vector.shape_cast %295 : vector<32x128xf32> to vector<1x1x32x128xf32>
    tpu.vector_store %arg5[%c0_308, %c1_309, %c32_310, %c0_311], %298 {strides = array<i32>} : memref<1x3x256x128xf32, #tpu.memory_space<vmem>>, vector<1x1x32x128xf32>,
    %cst_312 = arith.constant 0.000000e+00 : f32
    %299 = vector.broadcast %cst_312 : f32 to vector<32x128xf32>
    %c0_i32_313 = arith.constant 0 : i32
    %c8_i32_314 = arith.constant 8 : i32
    %300 = arith.addi %c0_i32_313, %c8_i32_314 : i32
    %c1_i32_315 = arith.constant 1 : i32
    %301 = scf.for %arg9 = %c0_i32_313 to %300 step %c1_i32_315 iter_args(%arg10 = %299) -> (vector<32x128xf32>)  : i32 {
      %c1_799 = arith.constant 1 : index
      %c2_800 = arith.constant 2 : index
      %668 = arith.index_cast %arg9 : i32 to index
      %c0_801 = arith.constant 0 : index
      %669 = vector.load %arg8[%c1_799, %c2_800, %668, %c0_801] : memref<2x3x8x128xf32, #tpu.memory_space<vmem>>, vector<1x1x1x128xf32>
      %670 = vector.shape_cast %669 : vector<1x1x1x128xf32> to vector<1x128xf32>
      %671 = vector.broadcast %670 : vector<1x128xf32> to vector<32x128xf32>
      %672 = arith.subf %253, %671 : vector<32x128xf32>
      %cst_802 = arith.constant -4.000000e+01 : f32
      %cst_803 = arith.constant 4.000000e+01 : f32
      %673 = vector.broadcast %cst_802 : f32 to vector<32x128xf32>
      %674 = arith.maximumf %673, %672 : vector<32x128xf32>
      %675 = vector.broadcast %cst_803 : f32 to vector<32x128xf32>
      %676 = arith.minimumf %675, %674 : vector<32x128xf32>
      %677 = math.exp %676 : vector<32x128xf32>
      %cst_804 = arith.constant 3.20383811 : f32
      %678 = vector.broadcast %cst_804 : f32 to vector<32x128xf32>
      %679 = arith.mulf %678, %677 : vector<32x128xf32>
      %cst_805 = arith.constant 3.77684784 : f32
      %680 = vector.broadcast %cst_805 : f32 to vector<32x128xf32>
      %681 = arith.mulf %680, %677 : vector<32x128xf32>
      %cst_806 = arith.constant 1.000000e+00 : f32
      %682 = vector.broadcast %cst_806 : f32 to vector<32x128xf32>
      %683 = arith.addf %681, %682 : vector<32x128xf32>
      %684 = arith.mulf %677, %677 : vector<32x128xf32>
      %685 = arith.addf %683, %684 : vector<32x128xf32>
      %686 = tpu.reciprocal %685 {approx = true} : vector<32x128xf32> -> vector<32x128xf32>
      %687 = arith.mulf %685, %686 : vector<32x128xf32>
      %cst_807 = arith.constant 2.000000e+00 : f32
      %688 = vector.broadcast %cst_807 : f32 to vector<32x128xf32>
      %689 = arith.subf %688, %687 : vector<32x128xf32>
      %690 = arith.mulf %686, %689 : vector<32x128xf32>
      %691 = arith.mulf %679, %690 : vector<32x128xf32>
      %692 = arith.addf %arg10, %691 : vector<32x128xf32>
      scf.yield %692 : vector<32x128xf32>
    }
    %c8_i32_316 = arith.constant 8 : i32
    %c0_317 = arith.constant 0 : index
    %c2_318 = arith.constant 2 : index
    %c32_319 = arith.constant 32 : index
    %c0_320 = arith.constant 0 : index
    %302 = vector.load %arg5[%c0_317, %c2_318, %c32_319, %c0_320] : memref<1x3x256x128xf32, #tpu.memory_space<vmem>>, vector<1x1x32x128xf32>
    %303 = vector.shape_cast %302 : vector<1x1x32x128xf32> to vector<32x128xf32>
    %304 = arith.addf %303, %301 : vector<32x128xf32>
    %c0_321 = arith.constant 0 : index
    %c2_322 = arith.constant 2 : index
    %c32_323 = arith.constant 32 : index
    %c0_324 = arith.constant 0 : index
    %305 = vector.load %arg5[%c0_321, %c2_322, %c32_323, %c0_324] : memref<1x3x256x128xf32, #tpu.memory_space<vmem>>, vector<1x1x32x128xf32>
    %306 = vector.shape_cast %305 : vector<1x1x32x128xf32> to vector<32x128xf32>
    %307 = vector.shape_cast %304 : vector<32x128xf32> to vector<1x1x32x128xf32>
    tpu.vector_store %arg5[%c0_321, %c2_322, %c32_323, %c0_324], %307 {strides = array<i32>} : memref<1x3x256x128xf32, #tpu.memory_space<vmem>>, vector<1x1x32x128xf32>,
    %308 = tpu.iota {dimensions = array<i32: 0>} : vector<32x128xi32>
    %309 = arith.sitofp %308 : vector<32x128xi32> to vector<32x128xf32>
    %cst_325 = arith.constant 6.450000e+01 : f32
    %310 = vector.broadcast %cst_325 : f32 to vector<32x128xf32>
    %311 = arith.addf %309, %310 : vector<32x128xf32>
    %cst_326 = arith.constant 2.500000e+00 : f32
    %312 = vector.broadcast %cst_326 : f32 to vector<32x128xf32>
    %313 = arith.mulf %311, %312 : vector<32x128xf32>
    %cst_327 = arith.constant 0.000000e+00 : f32
    %314 = vector.broadcast %cst_327 : f32 to vector<32x128xf32>
    %c0_i32_328 = arith.constant 0 : i32
    %c8_i32_329 = arith.constant 8 : i32
    %315 = arith.addi %c0_i32_328, %c8_i32_329 : i32
    %c1_i32_330 = arith.constant 1 : i32
    %316 = scf.for %arg9 = %c0_i32_328 to %315 step %c1_i32_330 iter_args(%arg10 = %314) -> (vector<32x128xf32>)  : i32 {
      %c0_799 = arith.constant 0 : index
      %c0_800 = arith.constant 0 : index
      %668 = arith.index_cast %arg9 : i32 to index
      %c0_801 = arith.constant 0 : index
      %669 = vector.load %arg8[%c0_799, %c0_800, %668, %c0_801] : memref<2x3x8x128xf32, #tpu.memory_space<vmem>>, vector<1x1x1x128xf32>
      %670 = vector.shape_cast %669 : vector<1x1x1x128xf32> to vector<1x128xf32>
      %671 = vector.broadcast %670 : vector<1x128xf32> to vector<32x128xf32>
      %672 = arith.subf %313, %671 : vector<32x128xf32>
      %cst_802 = arith.constant -4.000000e+01 : f32
      %cst_803 = arith.constant 4.000000e+01 : f32
      %673 = vector.broadcast %cst_802 : f32 to vector<32x128xf32>
      %674 = arith.maximumf %673, %672 : vector<32x128xf32>
      %675 = vector.broadcast %cst_803 : f32 to vector<32x128xf32>
      %676 = arith.minimumf %675, %674 : vector<32x128xf32>
      %677 = math.exp %676 : vector<32x128xf32>
      %cst_804 = arith.constant 3.20383811 : f32
      %678 = vector.broadcast %cst_804 : f32 to vector<32x128xf32>
      %679 = arith.mulf %678, %677 : vector<32x128xf32>
      %cst_805 = arith.constant 3.77684784 : f32
      %680 = vector.broadcast %cst_805 : f32 to vector<32x128xf32>
      %681 = arith.mulf %680, %677 : vector<32x128xf32>
      %cst_806 = arith.constant 1.000000e+00 : f32
      %682 = vector.broadcast %cst_806 : f32 to vector<32x128xf32>
      %683 = arith.addf %681, %682 : vector<32x128xf32>
      %684 = arith.mulf %677, %677 : vector<32x128xf32>
      %685 = arith.addf %683, %684 : vector<32x128xf32>
      %686 = tpu.reciprocal %685 {approx = true} : vector<32x128xf32> -> vector<32x128xf32>
      %687 = arith.mulf %685, %686 : vector<32x128xf32>
      %cst_807 = arith.constant 2.000000e+00 : f32
      %688 = vector.broadcast %cst_807 : f32 to vector<32x128xf32>
      %689 = arith.subf %688, %687 : vector<32x128xf32>
      %690 = arith.mulf %686, %689 : vector<32x128xf32>
      %691 = arith.mulf %679, %690 : vector<32x128xf32>
      %692 = arith.addf %arg10, %691 : vector<32x128xf32>
      scf.yield %692 : vector<32x128xf32>
    }
    %c8_i32_331 = arith.constant 8 : i32
    %c0_332 = arith.constant 0 : index
    %c0_333 = arith.constant 0 : index
    %c64 = arith.constant 64 : index
    %c0_334 = arith.constant 0 : index
    %317 = vector.load %arg4[%c0_332, %c0_333, %c64, %c0_334] : memref<1x3x256x128xf32, #tpu.memory_space<vmem>>, vector<1x1x32x128xf32>
    %318 = vector.shape_cast %317 : vector<1x1x32x128xf32> to vector<32x128xf32>
    %319 = arith.addf %318, %316 : vector<32x128xf32>
    %c0_335 = arith.constant 0 : index
    %c0_336 = arith.constant 0 : index
    %c64_337 = arith.constant 64 : index
    %c0_338 = arith.constant 0 : index
    %320 = vector.load %arg4[%c0_335, %c0_336, %c64_337, %c0_338] : memref<1x3x256x128xf32, #tpu.memory_space<vmem>>, vector<1x1x32x128xf32>
    %321 = vector.shape_cast %320 : vector<1x1x32x128xf32> to vector<32x128xf32>
    %322 = vector.shape_cast %319 : vector<32x128xf32> to vector<1x1x32x128xf32>
    tpu.vector_store %arg4[%c0_335, %c0_336, %c64_337, %c0_338], %322 {strides = array<i32>} : memref<1x3x256x128xf32, #tpu.memory_space<vmem>>, vector<1x1x32x128xf32>,
    %cst_339 = arith.constant 0.000000e+00 : f32
    %323 = vector.broadcast %cst_339 : f32 to vector<32x128xf32>
    %c0_i32_340 = arith.constant 0 : i32
    %c8_i32_341 = arith.constant 8 : i32
    %324 = arith.addi %c0_i32_340, %c8_i32_341 : i32
    %c1_i32_342 = arith.constant 1 : i32
    %325 = scf.for %arg9 = %c0_i32_340 to %324 step %c1_i32_342 iter_args(%arg10 = %323) -> (vector<32x128xf32>)  : i32 {
      %c0_799 = arith.constant 0 : index
      %c1_800 = arith.constant 1 : index
      %668 = arith.index_cast %arg9 : i32 to index
      %c0_801 = arith.constant 0 : index
      %669 = vector.load %arg8[%c0_799, %c1_800, %668, %c0_801] : memref<2x3x8x128xf32, #tpu.memory_space<vmem>>, vector<1x1x1x128xf32>
      %670 = vector.shape_cast %669 : vector<1x1x1x128xf32> to vector<1x128xf32>
      %671 = vector.broadcast %670 : vector<1x128xf32> to vector<32x128xf32>
      %672 = arith.subf %313, %671 : vector<32x128xf32>
      %cst_802 = arith.constant -4.000000e+01 : f32
      %cst_803 = arith.constant 4.000000e+01 : f32
      %673 = vector.broadcast %cst_802 : f32 to vector<32x128xf32>
      %674 = arith.maximumf %673, %672 : vector<32x128xf32>
      %675 = vector.broadcast %cst_803 : f32 to vector<32x128xf32>
      %676 = arith.minimumf %675, %674 : vector<32x128xf32>
      %677 = math.exp %676 : vector<32x128xf32>
      %cst_804 = arith.constant 3.20383811 : f32
      %678 = vector.broadcast %cst_804 : f32 to vector<32x128xf32>
      %679 = arith.mulf %678, %677 : vector<32x128xf32>
      %cst_805 = arith.constant 3.77684784 : f32
      %680 = vector.broadcast %cst_805 : f32 to vector<32x128xf32>
      %681 = arith.mulf %680, %677 : vector<32x128xf32>
      %cst_806 = arith.constant 1.000000e+00 : f32
      %682 = vector.broadcast %cst_806 : f32 to vector<32x128xf32>
      %683 = arith.addf %681, %682 : vector<32x128xf32>
      %684 = arith.mulf %677, %677 : vector<32x128xf32>
      %685 = arith.addf %683, %684 : vector<32x128xf32>
      %686 = tpu.reciprocal %685 {approx = true} : vector<32x128xf32> -> vector<32x128xf32>
      %687 = arith.mulf %685, %686 : vector<32x128xf32>
      %cst_807 = arith.constant 2.000000e+00 : f32
      %688 = vector.broadcast %cst_807 : f32 to vector<32x128xf32>
      %689 = arith.subf %688, %687 : vector<32x128xf32>
      %690 = arith.mulf %686, %689 : vector<32x128xf32>
      %691 = arith.mulf %679, %690 : vector<32x128xf32>
      %692 = arith.addf %arg10, %691 : vector<32x128xf32>
      scf.yield %692 : vector<32x128xf32>
    }
    %c8_i32_343 = arith.constant 8 : i32
    %c0_344 = arith.constant 0 : index
    %c1_345 = arith.constant 1 : index
    %c64_346 = arith.constant 64 : index
    %c0_347 = arith.constant 0 : index
    %326 = vector.load %arg4[%c0_344, %c1_345, %c64_346, %c0_347] : memref<1x3x256x128xf32, #tpu.memory_space<vmem>>, vector<1x1x32x128xf32>
    %327 = vector.shape_cast %326 : vector<1x1x32x128xf32> to vector<32x128xf32>
    %328 = arith.addf %327, %325 : vector<32x128xf32>
    %c0_348 = arith.constant 0 : index
    %c1_349 = arith.constant 1 : index
    %c64_350 = arith.constant 64 : index
    %c0_351 = arith.constant 0 : index
    %329 = vector.load %arg4[%c0_348, %c1_349, %c64_350, %c0_351] : memref<1x3x256x128xf32, #tpu.memory_space<vmem>>, vector<1x1x32x128xf32>
    %330 = vector.shape_cast %329 : vector<1x1x32x128xf32> to vector<32x128xf32>
    %331 = vector.shape_cast %328 : vector<32x128xf32> to vector<1x1x32x128xf32>
    tpu.vector_store %arg4[%c0_348, %c1_349, %c64_350, %c0_351], %331 {strides = array<i32>} : memref<1x3x256x128xf32, #tpu.memory_space<vmem>>, vector<1x1x32x128xf32>,
    %cst_352 = arith.constant 0.000000e+00 : f32
    %332 = vector.broadcast %cst_352 : f32 to vector<32x128xf32>
    %c0_i32_353 = arith.constant 0 : i32
    %c8_i32_354 = arith.constant 8 : i32
    %333 = arith.addi %c0_i32_353, %c8_i32_354 : i32
    %c1_i32_355 = arith.constant 1 : i32
    %334 = scf.for %arg9 = %c0_i32_353 to %333 step %c1_i32_355 iter_args(%arg10 = %332) -> (vector<32x128xf32>)  : i32 {
      %c0_799 = arith.constant 0 : index
      %c2_800 = arith.constant 2 : index
      %668 = arith.index_cast %arg9 : i32 to index
      %c0_801 = arith.constant 0 : index
      %669 = vector.load %arg8[%c0_799, %c2_800, %668, %c0_801] : memref<2x3x8x128xf32, #tpu.memory_space<vmem>>, vector<1x1x1x128xf32>
      %670 = vector.shape_cast %669 : vector<1x1x1x128xf32> to vector<1x128xf32>
      %671 = vector.broadcast %670 : vector<1x128xf32> to vector<32x128xf32>
      %672 = arith.subf %313, %671 : vector<32x128xf32>
      %cst_802 = arith.constant -4.000000e+01 : f32
      %cst_803 = arith.constant 4.000000e+01 : f32
      %673 = vector.broadcast %cst_802 : f32 to vector<32x128xf32>
      %674 = arith.maximumf %673, %672 : vector<32x128xf32>
      %675 = vector.broadcast %cst_803 : f32 to vector<32x128xf32>
      %676 = arith.minimumf %675, %674 : vector<32x128xf32>
      %677 = math.exp %676 : vector<32x128xf32>
      %cst_804 = arith.constant 3.20383811 : f32
      %678 = vector.broadcast %cst_804 : f32 to vector<32x128xf32>
      %679 = arith.mulf %678, %677 : vector<32x128xf32>
      %cst_805 = arith.constant 3.77684784 : f32
      %680 = vector.broadcast %cst_805 : f32 to vector<32x128xf32>
      %681 = arith.mulf %680, %677 : vector<32x128xf32>
      %cst_806 = arith.constant 1.000000e+00 : f32
      %682 = vector.broadcast %cst_806 : f32 to vector<32x128xf32>
      %683 = arith.addf %681, %682 : vector<32x128xf32>
      %684 = arith.mulf %677, %677 : vector<32x128xf32>
      %685 = arith.addf %683, %684 : vector<32x128xf32>
      %686 = tpu.reciprocal %685 {approx = true} : vector<32x128xf32> -> vector<32x128xf32>
      %687 = arith.mulf %685, %686 : vector<32x128xf32>
      %cst_807 = arith.constant 2.000000e+00 : f32
      %688 = vector.broadcast %cst_807 : f32 to vector<32x128xf32>
      %689 = arith.subf %688, %687 : vector<32x128xf32>
      %690 = arith.mulf %686, %689 : vector<32x128xf32>
      %691 = arith.mulf %679, %690 : vector<32x128xf32>
      %692 = arith.addf %arg10, %691 : vector<32x128xf32>
      scf.yield %692 : vector<32x128xf32>
    }
    %c8_i32_356 = arith.constant 8 : i32
    %c0_357 = arith.constant 0 : index
    %c2_358 = arith.constant 2 : index
    %c64_359 = arith.constant 64 : index
    %c0_360 = arith.constant 0 : index
    %335 = vector.load %arg4[%c0_357, %c2_358, %c64_359, %c0_360] : memref<1x3x256x128xf32, #tpu.memory_space<vmem>>, vector<1x1x32x128xf32>
    %336 = vector.shape_cast %335 : vector<1x1x32x128xf32> to vector<32x128xf32>
    %337 = arith.addf %336, %334 : vector<32x128xf32>
    %c0_361 = arith.constant 0 : index
    %c2_362 = arith.constant 2 : index
    %c64_363 = arith.constant 64 : index
    %c0_364 = arith.constant 0 : index
    %338 = vector.load %arg4[%c0_361, %c2_362, %c64_363, %c0_364] : memref<1x3x256x128xf32, #tpu.memory_space<vmem>>, vector<1x1x32x128xf32>
    %339 = vector.shape_cast %338 : vector<1x1x32x128xf32> to vector<32x128xf32>
    %340 = vector.shape_cast %337 : vector<32x128xf32> to vector<1x1x32x128xf32>
    tpu.vector_store %arg4[%c0_361, %c2_362, %c64_363, %c0_364], %340 {strides = array<i32>} : memref<1x3x256x128xf32, #tpu.memory_space<vmem>>, vector<1x1x32x128xf32>,
    %cst_365 = arith.constant 0.000000e+00 : f32
    %341 = vector.broadcast %cst_365 : f32 to vector<32x128xf32>
    %c0_i32_366 = arith.constant 0 : i32
    %c8_i32_367 = arith.constant 8 : i32
    %342 = arith.addi %c0_i32_366, %c8_i32_367 : i32
    %c1_i32_368 = arith.constant 1 : i32
    %343 = scf.for %arg9 = %c0_i32_366 to %342 step %c1_i32_368 iter_args(%arg10 = %341) -> (vector<32x128xf32>)  : i32 {
      %c1_799 = arith.constant 1 : index
      %c0_800 = arith.constant 0 : index
      %668 = arith.index_cast %arg9 : i32 to index
      %c0_801 = arith.constant 0 : index
      %669 = vector.load %arg8[%c1_799, %c0_800, %668, %c0_801] : memref<2x3x8x128xf32, #tpu.memory_space<vmem>>, vector<1x1x1x128xf32>
      %670 = vector.shape_cast %669 : vector<1x1x1x128xf32> to vector<1x128xf32>
      %671 = vector.broadcast %670 : vector<1x128xf32> to vector<32x128xf32>
      %672 = arith.subf %313, %671 : vector<32x128xf32>
      %cst_802 = arith.constant -4.000000e+01 : f32
      %cst_803 = arith.constant 4.000000e+01 : f32
      %673 = vector.broadcast %cst_802 : f32 to vector<32x128xf32>
      %674 = arith.maximumf %673, %672 : vector<32x128xf32>
      %675 = vector.broadcast %cst_803 : f32 to vector<32x128xf32>
      %676 = arith.minimumf %675, %674 : vector<32x128xf32>
      %677 = math.exp %676 : vector<32x128xf32>
      %cst_804 = arith.constant 3.20383811 : f32
      %678 = vector.broadcast %cst_804 : f32 to vector<32x128xf32>
      %679 = arith.mulf %678, %677 : vector<32x128xf32>
      %cst_805 = arith.constant 3.77684784 : f32
      %680 = vector.broadcast %cst_805 : f32 to vector<32x128xf32>
      %681 = arith.mulf %680, %677 : vector<32x128xf32>
      %cst_806 = arith.constant 1.000000e+00 : f32
      %682 = vector.broadcast %cst_806 : f32 to vector<32x128xf32>
      %683 = arith.addf %681, %682 : vector<32x128xf32>
      %684 = arith.mulf %677, %677 : vector<32x128xf32>
      %685 = arith.addf %683, %684 : vector<32x128xf32>
      %686 = tpu.reciprocal %685 {approx = true} : vector<32x128xf32> -> vector<32x128xf32>
      %687 = arith.mulf %685, %686 : vector<32x128xf32>
      %cst_807 = arith.constant 2.000000e+00 : f32
      %688 = vector.broadcast %cst_807 : f32 to vector<32x128xf32>
      %689 = arith.subf %688, %687 : vector<32x128xf32>
      %690 = arith.mulf %686, %689 : vector<32x128xf32>
      %691 = arith.mulf %679, %690 : vector<32x128xf32>
      %692 = arith.addf %arg10, %691 : vector<32x128xf32>
      scf.yield %692 : vector<32x128xf32>
    }
    %c8_i32_369 = arith.constant 8 : i32
    %c0_370 = arith.constant 0 : index
    %c0_371 = arith.constant 0 : index
    %c64_372 = arith.constant 64 : index
    %c0_373 = arith.constant 0 : index
    %344 = vector.load %arg5[%c0_370, %c0_371, %c64_372, %c0_373] : memref<1x3x256x128xf32, #tpu.memory_space<vmem>>, vector<1x1x32x128xf32>
    %345 = vector.shape_cast %344 : vector<1x1x32x128xf32> to vector<32x128xf32>
    %346 = arith.addf %345, %343 : vector<32x128xf32>
    %c0_374 = arith.constant 0 : index
    %c0_375 = arith.constant 0 : index
    %c64_376 = arith.constant 64 : index
    %c0_377 = arith.constant 0 : index
    %347 = vector.load %arg5[%c0_374, %c0_375, %c64_376, %c0_377] : memref<1x3x256x128xf32, #tpu.memory_space<vmem>>, vector<1x1x32x128xf32>
    %348 = vector.shape_cast %347 : vector<1x1x32x128xf32> to vector<32x128xf32>
    %349 = vector.shape_cast %346 : vector<32x128xf32> to vector<1x1x32x128xf32>
    tpu.vector_store %arg5[%c0_374, %c0_375, %c64_376, %c0_377], %349 {strides = array<i32>} : memref<1x3x256x128xf32, #tpu.memory_space<vmem>>, vector<1x1x32x128xf32>,
    %cst_378 = arith.constant 0.000000e+00 : f32
    %350 = vector.broadcast %cst_378 : f32 to vector<32x128xf32>
    %c0_i32_379 = arith.constant 0 : i32
    %c8_i32_380 = arith.constant 8 : i32
    %351 = arith.addi %c0_i32_379, %c8_i32_380 : i32
    %c1_i32_381 = arith.constant 1 : i32
    %352 = scf.for %arg9 = %c0_i32_379 to %351 step %c1_i32_381 iter_args(%arg10 = %350) -> (vector<32x128xf32>)  : i32 {
      %c1_799 = arith.constant 1 : index
      %c1_800 = arith.constant 1 : index
      %668 = arith.index_cast %arg9 : i32 to index
      %c0_801 = arith.constant 0 : index
      %669 = vector.load %arg8[%c1_799, %c1_800, %668, %c0_801] : memref<2x3x8x128xf32, #tpu.memory_space<vmem>>, vector<1x1x1x128xf32>
      %670 = vector.shape_cast %669 : vector<1x1x1x128xf32> to vector<1x128xf32>
      %671 = vector.broadcast %670 : vector<1x128xf32> to vector<32x128xf32>
      %672 = arith.subf %313, %671 : vector<32x128xf32>
      %cst_802 = arith.constant -4.000000e+01 : f32
      %cst_803 = arith.constant 4.000000e+01 : f32
      %673 = vector.broadcast %cst_802 : f32 to vector<32x128xf32>
      %674 = arith.maximumf %673, %672 : vector<32x128xf32>
      %675 = vector.broadcast %cst_803 : f32 to vector<32x128xf32>
      %676 = arith.minimumf %675, %674 : vector<32x128xf32>
      %677 = math.exp %676 : vector<32x128xf32>
      %cst_804 = arith.constant 3.20383811 : f32
      %678 = vector.broadcast %cst_804 : f32 to vector<32x128xf32>
      %679 = arith.mulf %678, %677 : vector<32x128xf32>
      %cst_805 = arith.constant 3.77684784 : f32
      %680 = vector.broadcast %cst_805 : f32 to vector<32x128xf32>
      %681 = arith.mulf %680, %677 : vector<32x128xf32>
      %cst_806 = arith.constant 1.000000e+00 : f32
      %682 = vector.broadcast %cst_806 : f32 to vector<32x128xf32>
      %683 = arith.addf %681, %682 : vector<32x128xf32>
      %684 = arith.mulf %677, %677 : vector<32x128xf32>
      %685 = arith.addf %683, %684 : vector<32x128xf32>
      %686 = tpu.reciprocal %685 {approx = true} : vector<32x128xf32> -> vector<32x128xf32>
      %687 = arith.mulf %685, %686 : vector<32x128xf32>
      %cst_807 = arith.constant 2.000000e+00 : f32
      %688 = vector.broadcast %cst_807 : f32 to vector<32x128xf32>
      %689 = arith.subf %688, %687 : vector<32x128xf32>
      %690 = arith.mulf %686, %689 : vector<32x128xf32>
      %691 = arith.mulf %679, %690 : vector<32x128xf32>
      %692 = arith.addf %arg10, %691 : vector<32x128xf32>
      scf.yield %692 : vector<32x128xf32>
    }
    %c8_i32_382 = arith.constant 8 : i32
    %c0_383 = arith.constant 0 : index
    %c1_384 = arith.constant 1 : index
    %c64_385 = arith.constant 64 : index
    %c0_386 = arith.constant 0 : index
    %353 = vector.load %arg5[%c0_383, %c1_384, %c64_385, %c0_386] : memref<1x3x256x128xf32, #tpu.memory_space<vmem>>, vector<1x1x32x128xf32>
    %354 = vector.shape_cast %353 : vector<1x1x32x128xf32> to vector<32x128xf32>
    %355 = arith.addf %354, %352 : vector<32x128xf32>
    %c0_387 = arith.constant 0 : index
    %c1_388 = arith.constant 1 : index
    %c64_389 = arith.constant 64 : index
    %c0_390 = arith.constant 0 : index
    %356 = vector.load %arg5[%c0_387, %c1_388, %c64_389, %c0_390] : memref<1x3x256x128xf32, #tpu.memory_space<vmem>>, vector<1x1x32x128xf32>
    %357 = vector.shape_cast %356 : vector<1x1x32x128xf32> to vector<32x128xf32>
    %358 = vector.shape_cast %355 : vector<32x128xf32> to vector<1x1x32x128xf32>
    tpu.vector_store %arg5[%c0_387, %c1_388, %c64_389, %c0_390], %358 {strides = array<i32>} : memref<1x3x256x128xf32, #tpu.memory_space<vmem>>, vector<1x1x32x128xf32>,
    %cst_391 = arith.constant 0.000000e+00 : f32
    %359 = vector.broadcast %cst_391 : f32 to vector<32x128xf32>
    %c0_i32_392 = arith.constant 0 : i32
    %c8_i32_393 = arith.constant 8 : i32
    %360 = arith.addi %c0_i32_392, %c8_i32_393 : i32
    %c1_i32_394 = arith.constant 1 : i32
    %361 = scf.for %arg9 = %c0_i32_392 to %360 step %c1_i32_394 iter_args(%arg10 = %359) -> (vector<32x128xf32>)  : i32 {
      %c1_799 = arith.constant 1 : index
      %c2_800 = arith.constant 2 : index
      %668 = arith.index_cast %arg9 : i32 to index
      %c0_801 = arith.constant 0 : index
      %669 = vector.load %arg8[%c1_799, %c2_800, %668, %c0_801] : memref<2x3x8x128xf32, #tpu.memory_space<vmem>>, vector<1x1x1x128xf32>
      %670 = vector.shape_cast %669 : vector<1x1x1x128xf32> to vector<1x128xf32>
      %671 = vector.broadcast %670 : vector<1x128xf32> to vector<32x128xf32>
      %672 = arith.subf %313, %671 : vector<32x128xf32>
      %cst_802 = arith.constant -4.000000e+01 : f32
      %cst_803 = arith.constant 4.000000e+01 : f32
      %673 = vector.broadcast %cst_802 : f32 to vector<32x128xf32>
      %674 = arith.maximumf %673, %672 : vector<32x128xf32>
      %675 = vector.broadcast %cst_803 : f32 to vector<32x128xf32>
      %676 = arith.minimumf %675, %674 : vector<32x128xf32>
      %677 = math.exp %676 : vector<32x128xf32>
      %cst_804 = arith.constant 3.20383811 : f32
      %678 = vector.broadcast %cst_804 : f32 to vector<32x128xf32>
      %679 = arith.mulf %678, %677 : vector<32x128xf32>
      %cst_805 = arith.constant 3.77684784 : f32
      %680 = vector.broadcast %cst_805 : f32 to vector<32x128xf32>
      %681 = arith.mulf %680, %677 : vector<32x128xf32>
      %cst_806 = arith.constant 1.000000e+00 : f32
      %682 = vector.broadcast %cst_806 : f32 to vector<32x128xf32>
      %683 = arith.addf %681, %682 : vector<32x128xf32>
      %684 = arith.mulf %677, %677 : vector<32x128xf32>
      %685 = arith.addf %683, %684 : vector<32x128xf32>
      %686 = tpu.reciprocal %685 {approx = true} : vector<32x128xf32> -> vector<32x128xf32>
      %687 = arith.mulf %685, %686 : vector<32x128xf32>
      %cst_807 = arith.constant 2.000000e+00 : f32
      %688 = vector.broadcast %cst_807 : f32 to vector<32x128xf32>
      %689 = arith.subf %688, %687 : vector<32x128xf32>
      %690 = arith.mulf %686, %689 : vector<32x128xf32>
      %691 = arith.mulf %679, %690 : vector<32x128xf32>
      %692 = arith.addf %arg10, %691 : vector<32x128xf32>
      scf.yield %692 : vector<32x128xf32>
    }
    %c8_i32_395 = arith.constant 8 : i32
    %c0_396 = arith.constant 0 : index
    %c2_397 = arith.constant 2 : index
    %c64_398 = arith.constant 64 : index
    %c0_399 = arith.constant 0 : index
    %362 = vector.load %arg5[%c0_396, %c2_397, %c64_398, %c0_399] : memref<1x3x256x128xf32, #tpu.memory_space<vmem>>, vector<1x1x32x128xf32>
    %363 = vector.shape_cast %362 : vector<1x1x32x128xf32> to vector<32x128xf32>
    %364 = arith.addf %363, %361 : vector<32x128xf32>
    %c0_400 = arith.constant 0 : index
    %c2_401 = arith.constant 2 : index
    %c64_402 = arith.constant 64 : index
    %c0_403 = arith.constant 0 : index
    %365 = vector.load %arg5[%c0_400, %c2_401, %c64_402, %c0_403] : memref<1x3x256x128xf32, #tpu.memory_space<vmem>>, vector<1x1x32x128xf32>
    %366 = vector.shape_cast %365 : vector<1x1x32x128xf32> to vector<32x128xf32>
    %367 = vector.shape_cast %364 : vector<32x128xf32> to vector<1x1x32x128xf32>
    tpu.vector_store %arg5[%c0_400, %c2_401, %c64_402, %c0_403], %367 {strides = array<i32>} : memref<1x3x256x128xf32, #tpu.memory_space<vmem>>, vector<1x1x32x128xf32>,
    %368 = tpu.iota {dimensions = array<i32: 0>} : vector<32x128xi32>
    %369 = arith.sitofp %368 : vector<32x128xi32> to vector<32x128xf32>
    %cst_404 = arith.constant 9.650000e+01 : f32
    %370 = vector.broadcast %cst_404 : f32 to vector<32x128xf32>
    %371 = arith.addf %369, %370 : vector<32x128xf32>
    %cst_405 = arith.constant 2.500000e+00 : f32
    %372 = vector.broadcast %cst_405 : f32 to vector<32x128xf32>
    %373 = arith.mulf %371, %372 : vector<32x128xf32>
    %cst_406 = arith.constant 0.000000e+00 : f32
    %374 = vector.broadcast %cst_406 : f32 to vector<32x128xf32>
    %c0_i32_407 = arith.constant 0 : i32
    %c8_i32_408 = arith.constant 8 : i32
    %375 = arith.addi %c0_i32_407, %c8_i32_408 : i32
    %c1_i32_409 = arith.constant 1 : i32
    %376 = scf.for %arg9 = %c0_i32_407 to %375 step %c1_i32_409 iter_args(%arg10 = %374) -> (vector<32x128xf32>)  : i32 {
      %c0_799 = arith.constant 0 : index
      %c0_800 = arith.constant 0 : index
      %668 = arith.index_cast %arg9 : i32 to index
      %c0_801 = arith.constant 0 : index
      %669 = vector.load %arg8[%c0_799, %c0_800, %668, %c0_801] : memref<2x3x8x128xf32, #tpu.memory_space<vmem>>, vector<1x1x1x128xf32>
      %670 = vector.shape_cast %669 : vector<1x1x1x128xf32> to vector<1x128xf32>
      %671 = vector.broadcast %670 : vector<1x128xf32> to vector<32x128xf32>
      %672 = arith.subf %373, %671 : vector<32x128xf32>
      %cst_802 = arith.constant -4.000000e+01 : f32
      %cst_803 = arith.constant 4.000000e+01 : f32
      %673 = vector.broadcast %cst_802 : f32 to vector<32x128xf32>
      %674 = arith.maximumf %673, %672 : vector<32x128xf32>
      %675 = vector.broadcast %cst_803 : f32 to vector<32x128xf32>
      %676 = arith.minimumf %675, %674 : vector<32x128xf32>
      %677 = math.exp %676 : vector<32x128xf32>
      %cst_804 = arith.constant 3.20383811 : f32
      %678 = vector.broadcast %cst_804 : f32 to vector<32x128xf32>
      %679 = arith.mulf %678, %677 : vector<32x128xf32>
      %cst_805 = arith.constant 3.77684784 : f32
      %680 = vector.broadcast %cst_805 : f32 to vector<32x128xf32>
      %681 = arith.mulf %680, %677 : vector<32x128xf32>
      %cst_806 = arith.constant 1.000000e+00 : f32
      %682 = vector.broadcast %cst_806 : f32 to vector<32x128xf32>
      %683 = arith.addf %681, %682 : vector<32x128xf32>
      %684 = arith.mulf %677, %677 : vector<32x128xf32>
      %685 = arith.addf %683, %684 : vector<32x128xf32>
      %686 = tpu.reciprocal %685 {approx = true} : vector<32x128xf32> -> vector<32x128xf32>
      %687 = arith.mulf %685, %686 : vector<32x128xf32>
      %cst_807 = arith.constant 2.000000e+00 : f32
      %688 = vector.broadcast %cst_807 : f32 to vector<32x128xf32>
      %689 = arith.subf %688, %687 : vector<32x128xf32>
      %690 = arith.mulf %686, %689 : vector<32x128xf32>
      %691 = arith.mulf %679, %690 : vector<32x128xf32>
      %692 = arith.addf %arg10, %691 : vector<32x128xf32>
      scf.yield %692 : vector<32x128xf32>
    }
    %c8_i32_410 = arith.constant 8 : i32
    %c0_411 = arith.constant 0 : index
    %c0_412 = arith.constant 0 : index
    %c96 = arith.constant 96 : index
    %c0_413 = arith.constant 0 : index
    %377 = vector.load %arg4[%c0_411, %c0_412, %c96, %c0_413] : memref<1x3x256x128xf32, #tpu.memory_space<vmem>>, vector<1x1x32x128xf32>
    %378 = vector.shape_cast %377 : vector<1x1x32x128xf32> to vector<32x128xf32>
    %379 = arith.addf %378, %376 : vector<32x128xf32>
    %c0_414 = arith.constant 0 : index
    %c0_415 = arith.constant 0 : index
    %c96_416 = arith.constant 96 : index
    %c0_417 = arith.constant 0 : index
    %380 = vector.load %arg4[%c0_414, %c0_415, %c96_416, %c0_417] : memref<1x3x256x128xf32, #tpu.memory_space<vmem>>, vector<1x1x32x128xf32>
    %381 = vector.shape_cast %380 : vector<1x1x32x128xf32> to vector<32x128xf32>
    %382 = vector.shape_cast %379 : vector<32x128xf32> to vector<1x1x32x128xf32>
    tpu.vector_store %arg4[%c0_414, %c0_415, %c96_416, %c0_417], %382 {strides = array<i32>} : memref<1x3x256x128xf32, #tpu.memory_space<vmem>>, vector<1x1x32x128xf32>,
    %cst_418 = arith.constant 0.000000e+00 : f32
    %383 = vector.broadcast %cst_418 : f32 to vector<32x128xf32>
    %c0_i32_419 = arith.constant 0 : i32
    %c8_i32_420 = arith.constant 8 : i32
    %384 = arith.addi %c0_i32_419, %c8_i32_420 : i32
    %c1_i32_421 = arith.constant 1 : i32
    %385 = scf.for %arg9 = %c0_i32_419 to %384 step %c1_i32_421 iter_args(%arg10 = %383) -> (vector<32x128xf32>)  : i32 {
      %c0_799 = arith.constant 0 : index
      %c1_800 = arith.constant 1 : index
      %668 = arith.index_cast %arg9 : i32 to index
      %c0_801 = arith.constant 0 : index
      %669 = vector.load %arg8[%c0_799, %c1_800, %668, %c0_801] : memref<2x3x8x128xf32, #tpu.memory_space<vmem>>, vector<1x1x1x128xf32>
      %670 = vector.shape_cast %669 : vector<1x1x1x128xf32> to vector<1x128xf32>
      %671 = vector.broadcast %670 : vector<1x128xf32> to vector<32x128xf32>
      %672 = arith.subf %373, %671 : vector<32x128xf32>
      %cst_802 = arith.constant -4.000000e+01 : f32
      %cst_803 = arith.constant 4.000000e+01 : f32
      %673 = vector.broadcast %cst_802 : f32 to vector<32x128xf32>
      %674 = arith.maximumf %673, %672 : vector<32x128xf32>
      %675 = vector.broadcast %cst_803 : f32 to vector<32x128xf32>
      %676 = arith.minimumf %675, %674 : vector<32x128xf32>
      %677 = math.exp %676 : vector<32x128xf32>
      %cst_804 = arith.constant 3.20383811 : f32
      %678 = vector.broadcast %cst_804 : f32 to vector<32x128xf32>
      %679 = arith.mulf %678, %677 : vector<32x128xf32>
      %cst_805 = arith.constant 3.77684784 : f32
      %680 = vector.broadcast %cst_805 : f32 to vector<32x128xf32>
      %681 = arith.mulf %680, %677 : vector<32x128xf32>
      %cst_806 = arith.constant 1.000000e+00 : f32
      %682 = vector.broadcast %cst_806 : f32 to vector<32x128xf32>
      %683 = arith.addf %681, %682 : vector<32x128xf32>
      %684 = arith.mulf %677, %677 : vector<32x128xf32>
      %685 = arith.addf %683, %684 : vector<32x128xf32>
      %686 = tpu.reciprocal %685 {approx = true} : vector<32x128xf32> -> vector<32x128xf32>
      %687 = arith.mulf %685, %686 : vector<32x128xf32>
      %cst_807 = arith.constant 2.000000e+00 : f32
      %688 = vector.broadcast %cst_807 : f32 to vector<32x128xf32>
      %689 = arith.subf %688, %687 : vector<32x128xf32>
      %690 = arith.mulf %686, %689 : vector<32x128xf32>
      %691 = arith.mulf %679, %690 : vector<32x128xf32>
      %692 = arith.addf %arg10, %691 : vector<32x128xf32>
      scf.yield %692 : vector<32x128xf32>
    }
    %c8_i32_422 = arith.constant 8 : i32
    %c0_423 = arith.constant 0 : index
    %c1_424 = arith.constant 1 : index
    %c96_425 = arith.constant 96 : index
    %c0_426 = arith.constant 0 : index
    %386 = vector.load %arg4[%c0_423, %c1_424, %c96_425, %c0_426] : memref<1x3x256x128xf32, #tpu.memory_space<vmem>>, vector<1x1x32x128xf32>
    %387 = vector.shape_cast %386 : vector<1x1x32x128xf32> to vector<32x128xf32>
    %388 = arith.addf %387, %385 : vector<32x128xf32>
    %c0_427 = arith.constant 0 : index
    %c1_428 = arith.constant 1 : index
    %c96_429 = arith.constant 96 : index
    %c0_430 = arith.constant 0 : index
    %389 = vector.load %arg4[%c0_427, %c1_428, %c96_429, %c0_430] : memref<1x3x256x128xf32, #tpu.memory_space<vmem>>, vector<1x1x32x128xf32>
    %390 = vector.shape_cast %389 : vector<1x1x32x128xf32> to vector<32x128xf32>
    %391 = vector.shape_cast %388 : vector<32x128xf32> to vector<1x1x32x128xf32>
    tpu.vector_store %arg4[%c0_427, %c1_428, %c96_429, %c0_430], %391 {strides = array<i32>} : memref<1x3x256x128xf32, #tpu.memory_space<vmem>>, vector<1x1x32x128xf32>,
    %cst_431 = arith.constant 0.000000e+00 : f32
    %392 = vector.broadcast %cst_431 : f32 to vector<32x128xf32>
    %c0_i32_432 = arith.constant 0 : i32
    %c8_i32_433 = arith.constant 8 : i32
    %393 = arith.addi %c0_i32_432, %c8_i32_433 : i32
    %c1_i32_434 = arith.constant 1 : i32
    %394 = scf.for %arg9 = %c0_i32_432 to %393 step %c1_i32_434 iter_args(%arg10 = %392) -> (vector<32x128xf32>)  : i32 {
      %c0_799 = arith.constant 0 : index
      %c2_800 = arith.constant 2 : index
      %668 = arith.index_cast %arg9 : i32 to index
      %c0_801 = arith.constant 0 : index
      %669 = vector.load %arg8[%c0_799, %c2_800, %668, %c0_801] : memref<2x3x8x128xf32, #tpu.memory_space<vmem>>, vector<1x1x1x128xf32>
      %670 = vector.shape_cast %669 : vector<1x1x1x128xf32> to vector<1x128xf32>
      %671 = vector.broadcast %670 : vector<1x128xf32> to vector<32x128xf32>
      %672 = arith.subf %373, %671 : vector<32x128xf32>
      %cst_802 = arith.constant -4.000000e+01 : f32
      %cst_803 = arith.constant 4.000000e+01 : f32
      %673 = vector.broadcast %cst_802 : f32 to vector<32x128xf32>
      %674 = arith.maximumf %673, %672 : vector<32x128xf32>
      %675 = vector.broadcast %cst_803 : f32 to vector<32x128xf32>
      %676 = arith.minimumf %675, %674 : vector<32x128xf32>
      %677 = math.exp %676 : vector<32x128xf32>
      %cst_804 = arith.constant 3.20383811 : f32
      %678 = vector.broadcast %cst_804 : f32 to vector<32x128xf32>
      %679 = arith.mulf %678, %677 : vector<32x128xf32>
      %cst_805 = arith.constant 3.77684784 : f32
      %680 = vector.broadcast %cst_805 : f32 to vector<32x128xf32>
      %681 = arith.mulf %680, %677 : vector<32x128xf32>
      %cst_806 = arith.constant 1.000000e+00 : f32
      %682 = vector.broadcast %cst_806 : f32 to vector<32x128xf32>
      %683 = arith.addf %681, %682 : vector<32x128xf32>
      %684 = arith.mulf %677, %677 : vector<32x128xf32>
      %685 = arith.addf %683, %684 : vector<32x128xf32>
      %686 = tpu.reciprocal %685 {approx = true} : vector<32x128xf32> -> vector<32x128xf32>
      %687 = arith.mulf %685, %686 : vector<32x128xf32>
      %cst_807 = arith.constant 2.000000e+00 : f32
      %688 = vector.broadcast %cst_807 : f32 to vector<32x128xf32>
      %689 = arith.subf %688, %687 : vector<32x128xf32>
      %690 = arith.mulf %686, %689 : vector<32x128xf32>
      %691 = arith.mulf %679, %690 : vector<32x128xf32>
      %692 = arith.addf %arg10, %691 : vector<32x128xf32>
      scf.yield %692 : vector<32x128xf32>
    }
    %c8_i32_435 = arith.constant 8 : i32
    %c0_436 = arith.constant 0 : index
    %c2_437 = arith.constant 2 : index
    %c96_438 = arith.constant 96 : index
    %c0_439 = arith.constant 0 : index
    %395 = vector.load %arg4[%c0_436, %c2_437, %c96_438, %c0_439] : memref<1x3x256x128xf32, #tpu.memory_space<vmem>>, vector<1x1x32x128xf32>
    %396 = vector.shape_cast %395 : vector<1x1x32x128xf32> to vector<32x128xf32>
    %397 = arith.addf %396, %394 : vector<32x128xf32>
    %c0_440 = arith.constant 0 : index
    %c2_441 = arith.constant 2 : index
    %c96_442 = arith.constant 96 : index
    %c0_443 = arith.constant 0 : index
    %398 = vector.load %arg4[%c0_440, %c2_441, %c96_442, %c0_443] : memref<1x3x256x128xf32, #tpu.memory_space<vmem>>, vector<1x1x32x128xf32>
    %399 = vector.shape_cast %398 : vector<1x1x32x128xf32> to vector<32x128xf32>
    %400 = vector.shape_cast %397 : vector<32x128xf32> to vector<1x1x32x128xf32>
    tpu.vector_store %arg4[%c0_440, %c2_441, %c96_442, %c0_443], %400 {strides = array<i32>} : memref<1x3x256x128xf32, #tpu.memory_space<vmem>>, vector<1x1x32x128xf32>,
    %cst_444 = arith.constant 0.000000e+00 : f32
    %401 = vector.broadcast %cst_444 : f32 to vector<32x128xf32>
    %c0_i32_445 = arith.constant 0 : i32
    %c8_i32_446 = arith.constant 8 : i32
    %402 = arith.addi %c0_i32_445, %c8_i32_446 : i32
    %c1_i32_447 = arith.constant 1 : i32
    %403 = scf.for %arg9 = %c0_i32_445 to %402 step %c1_i32_447 iter_args(%arg10 = %401) -> (vector<32x128xf32>)  : i32 {
      %c1_799 = arith.constant 1 : index
      %c0_800 = arith.constant 0 : index
      %668 = arith.index_cast %arg9 : i32 to index
      %c0_801 = arith.constant 0 : index
      %669 = vector.load %arg8[%c1_799, %c0_800, %668, %c0_801] : memref<2x3x8x128xf32, #tpu.memory_space<vmem>>, vector<1x1x1x128xf32>
      %670 = vector.shape_cast %669 : vector<1x1x1x128xf32> to vector<1x128xf32>
      %671 = vector.broadcast %670 : vector<1x128xf32> to vector<32x128xf32>
      %672 = arith.subf %373, %671 : vector<32x128xf32>
      %cst_802 = arith.constant -4.000000e+01 : f32
      %cst_803 = arith.constant 4.000000e+01 : f32
      %673 = vector.broadcast %cst_802 : f32 to vector<32x128xf32>
      %674 = arith.maximumf %673, %672 : vector<32x128xf32>
      %675 = vector.broadcast %cst_803 : f32 to vector<32x128xf32>
      %676 = arith.minimumf %675, %674 : vector<32x128xf32>
      %677 = math.exp %676 : vector<32x128xf32>
      %cst_804 = arith.constant 3.20383811 : f32
      %678 = vector.broadcast %cst_804 : f32 to vector<32x128xf32>
      %679 = arith.mulf %678, %677 : vector<32x128xf32>
      %cst_805 = arith.constant 3.77684784 : f32
      %680 = vector.broadcast %cst_805 : f32 to vector<32x128xf32>
      %681 = arith.mulf %680, %677 : vector<32x128xf32>
      %cst_806 = arith.constant 1.000000e+00 : f32
      %682 = vector.broadcast %cst_806 : f32 to vector<32x128xf32>
      %683 = arith.addf %681, %682 : vector<32x128xf32>
      %684 = arith.mulf %677, %677 : vector<32x128xf32>
      %685 = arith.addf %683, %684 : vector<32x128xf32>
      %686 = tpu.reciprocal %685 {approx = true} : vector<32x128xf32> -> vector<32x128xf32>
      %687 = arith.mulf %685, %686 : vector<32x128xf32>
      %cst_807 = arith.constant 2.000000e+00 : f32
      %688 = vector.broadcast %cst_807 : f32 to vector<32x128xf32>
      %689 = arith.subf %688, %687 : vector<32x128xf32>
      %690 = arith.mulf %686, %689 : vector<32x128xf32>
      %691 = arith.mulf %679, %690 : vector<32x128xf32>
      %692 = arith.addf %arg10, %691 : vector<32x128xf32>
      scf.yield %692 : vector<32x128xf32>
    }
    %c8_i32_448 = arith.constant 8 : i32
    %c0_449 = arith.constant 0 : index
    %c0_450 = arith.constant 0 : index
    %c96_451 = arith.constant 96 : index
    %c0_452 = arith.constant 0 : index
    %404 = vector.load %arg5[%c0_449, %c0_450, %c96_451, %c0_452] : memref<1x3x256x128xf32, #tpu.memory_space<vmem>>, vector<1x1x32x128xf32>
    %405 = vector.shape_cast %404 : vector<1x1x32x128xf32> to vector<32x128xf32>
    %406 = arith.addf %405, %403 : vector<32x128xf32>
    %c0_453 = arith.constant 0 : index
    %c0_454 = arith.constant 0 : index
    %c96_455 = arith.constant 96 : index
    %c0_456 = arith.constant 0 : index
    %407 = vector.load %arg5[%c0_453, %c0_454, %c96_455, %c0_456] : memref<1x3x256x128xf32, #tpu.memory_space<vmem>>, vector<1x1x32x128xf32>
    %408 = vector.shape_cast %407 : vector<1x1x32x128xf32> to vector<32x128xf32>
    %409 = vector.shape_cast %406 : vector<32x128xf32> to vector<1x1x32x128xf32>
    tpu.vector_store %arg5[%c0_453, %c0_454, %c96_455, %c0_456], %409 {strides = array<i32>} : memref<1x3x256x128xf32, #tpu.memory_space<vmem>>, vector<1x1x32x128xf32>,
    %cst_457 = arith.constant 0.000000e+00 : f32
    %410 = vector.broadcast %cst_457 : f32 to vector<32x128xf32>
    %c0_i32_458 = arith.constant 0 : i32
    %c8_i32_459 = arith.constant 8 : i32
    %411 = arith.addi %c0_i32_458, %c8_i32_459 : i32
    %c1_i32_460 = arith.constant 1 : i32
    %412 = scf.for %arg9 = %c0_i32_458 to %411 step %c1_i32_460 iter_args(%arg10 = %410) -> (vector<32x128xf32>)  : i32 {
      %c1_799 = arith.constant 1 : index
      %c1_800 = arith.constant 1 : index
      %668 = arith.index_cast %arg9 : i32 to index
      %c0_801 = arith.constant 0 : index
      %669 = vector.load %arg8[%c1_799, %c1_800, %668, %c0_801] : memref<2x3x8x128xf32, #tpu.memory_space<vmem>>, vector<1x1x1x128xf32>
      %670 = vector.shape_cast %669 : vector<1x1x1x128xf32> to vector<1x128xf32>
      %671 = vector.broadcast %670 : vector<1x128xf32> to vector<32x128xf32>
      %672 = arith.subf %373, %671 : vector<32x128xf32>
      %cst_802 = arith.constant -4.000000e+01 : f32
      %cst_803 = arith.constant 4.000000e+01 : f32
      %673 = vector.broadcast %cst_802 : f32 to vector<32x128xf32>
      %674 = arith.maximumf %673, %672 : vector<32x128xf32>
      %675 = vector.broadcast %cst_803 : f32 to vector<32x128xf32>
      %676 = arith.minimumf %675, %674 : vector<32x128xf32>
      %677 = math.exp %676 : vector<32x128xf32>
      %cst_804 = arith.constant 3.20383811 : f32
      %678 = vector.broadcast %cst_804 : f32 to vector<32x128xf32>
      %679 = arith.mulf %678, %677 : vector<32x128xf32>
      %cst_805 = arith.constant 3.77684784 : f32
      %680 = vector.broadcast %cst_805 : f32 to vector<32x128xf32>
      %681 = arith.mulf %680, %677 : vector<32x128xf32>
      %cst_806 = arith.constant 1.000000e+00 : f32
      %682 = vector.broadcast %cst_806 : f32 to vector<32x128xf32>
      %683 = arith.addf %681, %682 : vector<32x128xf32>
      %684 = arith.mulf %677, %677 : vector<32x128xf32>
      %685 = arith.addf %683, %684 : vector<32x128xf32>
      %686 = tpu.reciprocal %685 {approx = true} : vector<32x128xf32> -> vector<32x128xf32>
      %687 = arith.mulf %685, %686 : vector<32x128xf32>
      %cst_807 = arith.constant 2.000000e+00 : f32
      %688 = vector.broadcast %cst_807 : f32 to vector<32x128xf32>
      %689 = arith.subf %688, %687 : vector<32x128xf32>
      %690 = arith.mulf %686, %689 : vector<32x128xf32>
      %691 = arith.mulf %679, %690 : vector<32x128xf32>
      %692 = arith.addf %arg10, %691 : vector<32x128xf32>
      scf.yield %692 : vector<32x128xf32>
    }
    %c8_i32_461 = arith.constant 8 : i32
    %c0_462 = arith.constant 0 : index
    %c1_463 = arith.constant 1 : index
    %c96_464 = arith.constant 96 : index
    %c0_465 = arith.constant 0 : index
    %413 = vector.load %arg5[%c0_462, %c1_463, %c96_464, %c0_465] : memref<1x3x256x128xf32, #tpu.memory_space<vmem>>, vector<1x1x32x128xf32>
    %414 = vector.shape_cast %413 : vector<1x1x32x128xf32> to vector<32x128xf32>
    %415 = arith.addf %414, %412 : vector<32x128xf32>
    %c0_466 = arith.constant 0 : index
    %c1_467 = arith.constant 1 : index
    %c96_468 = arith.constant 96 : index
    %c0_469 = arith.constant 0 : index
    %416 = vector.load %arg5[%c0_466, %c1_467, %c96_468, %c0_469] : memref<1x3x256x128xf32, #tpu.memory_space<vmem>>, vector<1x1x32x128xf32>
    %417 = vector.shape_cast %416 : vector<1x1x32x128xf32> to vector<32x128xf32>
    %418 = vector.shape_cast %415 : vector<32x128xf32> to vector<1x1x32x128xf32>
    tpu.vector_store %arg5[%c0_466, %c1_467, %c96_468, %c0_469], %418 {strides = array<i32>} : memref<1x3x256x128xf32, #tpu.memory_space<vmem>>, vector<1x1x32x128xf32>,
    %cst_470 = arith.constant 0.000000e+00 : f32
    %419 = vector.broadcast %cst_470 : f32 to vector<32x128xf32>
    %c0_i32_471 = arith.constant 0 : i32
    %c8_i32_472 = arith.constant 8 : i32
    %420 = arith.addi %c0_i32_471, %c8_i32_472 : i32
    %c1_i32_473 = arith.constant 1 : i32
    %421 = scf.for %arg9 = %c0_i32_471 to %420 step %c1_i32_473 iter_args(%arg10 = %419) -> (vector<32x128xf32>)  : i32 {
      %c1_799 = arith.constant 1 : index
      %c2_800 = arith.constant 2 : index
      %668 = arith.index_cast %arg9 : i32 to index
      %c0_801 = arith.constant 0 : index
      %669 = vector.load %arg8[%c1_799, %c2_800, %668, %c0_801] : memref<2x3x8x128xf32, #tpu.memory_space<vmem>>, vector<1x1x1x128xf32>
      %670 = vector.shape_cast %669 : vector<1x1x1x128xf32> to vector<1x128xf32>
      %671 = vector.broadcast %670 : vector<1x128xf32> to vector<32x128xf32>
      %672 = arith.subf %373, %671 : vector<32x128xf32>
      %cst_802 = arith.constant -4.000000e+01 : f32
      %cst_803 = arith.constant 4.000000e+01 : f32
      %673 = vector.broadcast %cst_802 : f32 to vector<32x128xf32>
      %674 = arith.maximumf %673, %672 : vector<32x128xf32>
      %675 = vector.broadcast %cst_803 : f32 to vector<32x128xf32>
      %676 = arith.minimumf %675, %674 : vector<32x128xf32>
      %677 = math.exp %676 : vector<32x128xf32>
      %cst_804 = arith.constant 3.20383811 : f32
      %678 = vector.broadcast %cst_804 : f32 to vector<32x128xf32>
      %679 = arith.mulf %678, %677 : vector<32x128xf32>
      %cst_805 = arith.constant 3.77684784 : f32
      %680 = vector.broadcast %cst_805 : f32 to vector<32x128xf32>
      %681 = arith.mulf %680, %677 : vector<32x128xf32>
      %cst_806 = arith.constant 1.000000e+00 : f32
      %682 = vector.broadcast %cst_806 : f32 to vector<32x128xf32>
      %683 = arith.addf %681, %682 : vector<32x128xf32>
      %684 = arith.mulf %677, %677 : vector<32x128xf32>
      %685 = arith.addf %683, %684 : vector<32x128xf32>
      %686 = tpu.reciprocal %685 {approx = true} : vector<32x128xf32> -> vector<32x128xf32>
      %687 = arith.mulf %685, %686 : vector<32x128xf32>
      %cst_807 = arith.constant 2.000000e+00 : f32
      %688 = vector.broadcast %cst_807 : f32 to vector<32x128xf32>
      %689 = arith.subf %688, %687 : vector<32x128xf32>
      %690 = arith.mulf %686, %689 : vector<32x128xf32>
      %691 = arith.mulf %679, %690 : vector<32x128xf32>
      %692 = arith.addf %arg10, %691 : vector<32x128xf32>
      scf.yield %692 : vector<32x128xf32>
    }
    %c8_i32_474 = arith.constant 8 : i32
    %c0_475 = arith.constant 0 : index
    %c2_476 = arith.constant 2 : index
    %c96_477 = arith.constant 96 : index
    %c0_478 = arith.constant 0 : index
    %422 = vector.load %arg5[%c0_475, %c2_476, %c96_477, %c0_478] : memref<1x3x256x128xf32, #tpu.memory_space<vmem>>, vector<1x1x32x128xf32>
    %423 = vector.shape_cast %422 : vector<1x1x32x128xf32> to vector<32x128xf32>
    %424 = arith.addf %423, %421 : vector<32x128xf32>
    %c0_479 = arith.constant 0 : index
    %c2_480 = arith.constant 2 : index
    %c96_481 = arith.constant 96 : index
    %c0_482 = arith.constant 0 : index
    %425 = vector.load %arg5[%c0_479, %c2_480, %c96_481, %c0_482] : memref<1x3x256x128xf32, #tpu.memory_space<vmem>>, vector<1x1x32x128xf32>
    %426 = vector.shape_cast %425 : vector<1x1x32x128xf32> to vector<32x128xf32>
    %427 = vector.shape_cast %424 : vector<32x128xf32> to vector<1x1x32x128xf32>
    tpu.vector_store %arg5[%c0_479, %c2_480, %c96_481, %c0_482], %427 {strides = array<i32>} : memref<1x3x256x128xf32, #tpu.memory_space<vmem>>, vector<1x1x32x128xf32>,
    %428 = tpu.iota {dimensions = array<i32: 0>} : vector<32x128xi32>
    %429 = arith.sitofp %428 : vector<32x128xi32> to vector<32x128xf32>
    %cst_483 = arith.constant 1.285000e+02 : f32
    %430 = vector.broadcast %cst_483 : f32 to vector<32x128xf32>
    %431 = arith.addf %429, %430 : vector<32x128xf32>
    %cst_484 = arith.constant 2.500000e+00 : f32
    %432 = vector.broadcast %cst_484 : f32 to vector<32x128xf32>
    %433 = arith.mulf %431, %432 : vector<32x128xf32>
    %cst_485 = arith.constant 0.000000e+00 : f32
    %434 = vector.broadcast %cst_485 : f32 to vector<32x128xf32>
    %c0_i32_486 = arith.constant 0 : i32
    %c8_i32_487 = arith.constant 8 : i32
    %435 = arith.addi %c0_i32_486, %c8_i32_487 : i32
    %c1_i32_488 = arith.constant 1 : i32
    %436 = scf.for %arg9 = %c0_i32_486 to %435 step %c1_i32_488 iter_args(%arg10 = %434) -> (vector<32x128xf32>)  : i32 {
      %c0_799 = arith.constant 0 : index
      %c0_800 = arith.constant 0 : index
      %668 = arith.index_cast %arg9 : i32 to index
      %c0_801 = arith.constant 0 : index
      %669 = vector.load %arg8[%c0_799, %c0_800, %668, %c0_801] : memref<2x3x8x128xf32, #tpu.memory_space<vmem>>, vector<1x1x1x128xf32>
      %670 = vector.shape_cast %669 : vector<1x1x1x128xf32> to vector<1x128xf32>
      %671 = vector.broadcast %670 : vector<1x128xf32> to vector<32x128xf32>
      %672 = arith.subf %433, %671 : vector<32x128xf32>
      %cst_802 = arith.constant -4.000000e+01 : f32
      %cst_803 = arith.constant 4.000000e+01 : f32
      %673 = vector.broadcast %cst_802 : f32 to vector<32x128xf32>
      %674 = arith.maximumf %673, %672 : vector<32x128xf32>
      %675 = vector.broadcast %cst_803 : f32 to vector<32x128xf32>
      %676 = arith.minimumf %675, %674 : vector<32x128xf32>
      %677 = math.exp %676 : vector<32x128xf32>
      %cst_804 = arith.constant 3.20383811 : f32
      %678 = vector.broadcast %cst_804 : f32 to vector<32x128xf32>
      %679 = arith.mulf %678, %677 : vector<32x128xf32>
      %cst_805 = arith.constant 3.77684784 : f32
      %680 = vector.broadcast %cst_805 : f32 to vector<32x128xf32>
      %681 = arith.mulf %680, %677 : vector<32x128xf32>
      %cst_806 = arith.constant 1.000000e+00 : f32
      %682 = vector.broadcast %cst_806 : f32 to vector<32x128xf32>
      %683 = arith.addf %681, %682 : vector<32x128xf32>
      %684 = arith.mulf %677, %677 : vector<32x128xf32>
      %685 = arith.addf %683, %684 : vector<32x128xf32>
      %686 = tpu.reciprocal %685 {approx = true} : vector<32x128xf32> -> vector<32x128xf32>
      %687 = arith.mulf %685, %686 : vector<32x128xf32>
      %cst_807 = arith.constant 2.000000e+00 : f32
      %688 = vector.broadcast %cst_807 : f32 to vector<32x128xf32>
      %689 = arith.subf %688, %687 : vector<32x128xf32>
      %690 = arith.mulf %686, %689 : vector<32x128xf32>
      %691 = arith.mulf %679, %690 : vector<32x128xf32>
      %692 = arith.addf %arg10, %691 : vector<32x128xf32>
      scf.yield %692 : vector<32x128xf32>
    }
    %c8_i32_489 = arith.constant 8 : i32
    %c0_490 = arith.constant 0 : index
    %c0_491 = arith.constant 0 : index
    %c128 = arith.constant 128 : index
    %c0_492 = arith.constant 0 : index
    %437 = vector.load %arg4[%c0_490, %c0_491, %c128, %c0_492] : memref<1x3x256x128xf32, #tpu.memory_space<vmem>>, vector<1x1x32x128xf32>
    %438 = vector.shape_cast %437 : vector<1x1x32x128xf32> to vector<32x128xf32>
    %439 = arith.addf %438, %436 : vector<32x128xf32>
    %c0_493 = arith.constant 0 : index
    %c0_494 = arith.constant 0 : index
    %c128_495 = arith.constant 128 : index
    %c0_496 = arith.constant 0 : index
    %440 = vector.load %arg4[%c0_493, %c0_494, %c128_495, %c0_496] : memref<1x3x256x128xf32, #tpu.memory_space<vmem>>, vector<1x1x32x128xf32>
    %441 = vector.shape_cast %440 : vector<1x1x32x128xf32> to vector<32x128xf32>
    %442 = vector.shape_cast %439 : vector<32x128xf32> to vector<1x1x32x128xf32>
    tpu.vector_store %arg4[%c0_493, %c0_494, %c128_495, %c0_496], %442 {strides = array<i32>} : memref<1x3x256x128xf32, #tpu.memory_space<vmem>>, vector<1x1x32x128xf32>,
    %cst_497 = arith.constant 0.000000e+00 : f32
    %443 = vector.broadcast %cst_497 : f32 to vector<32x128xf32>
    %c0_i32_498 = arith.constant 0 : i32
    %c8_i32_499 = arith.constant 8 : i32
    %444 = arith.addi %c0_i32_498, %c8_i32_499 : i32
    %c1_i32_500 = arith.constant 1 : i32
    %445 = scf.for %arg9 = %c0_i32_498 to %444 step %c1_i32_500 iter_args(%arg10 = %443) -> (vector<32x128xf32>)  : i32 {
      %c0_799 = arith.constant 0 : index
      %c1_800 = arith.constant 1 : index
      %668 = arith.index_cast %arg9 : i32 to index
      %c0_801 = arith.constant 0 : index
      %669 = vector.load %arg8[%c0_799, %c1_800, %668, %c0_801] : memref<2x3x8x128xf32, #tpu.memory_space<vmem>>, vector<1x1x1x128xf32>
      %670 = vector.shape_cast %669 : vector<1x1x1x128xf32> to vector<1x128xf32>
      %671 = vector.broadcast %670 : vector<1x128xf32> to vector<32x128xf32>
      %672 = arith.subf %433, %671 : vector<32x128xf32>
      %cst_802 = arith.constant -4.000000e+01 : f32
      %cst_803 = arith.constant 4.000000e+01 : f32
      %673 = vector.broadcast %cst_802 : f32 to vector<32x128xf32>
      %674 = arith.maximumf %673, %672 : vector<32x128xf32>
      %675 = vector.broadcast %cst_803 : f32 to vector<32x128xf32>
      %676 = arith.minimumf %675, %674 : vector<32x128xf32>
      %677 = math.exp %676 : vector<32x128xf32>
      %cst_804 = arith.constant 3.20383811 : f32
      %678 = vector.broadcast %cst_804 : f32 to vector<32x128xf32>
      %679 = arith.mulf %678, %677 : vector<32x128xf32>
      %cst_805 = arith.constant 3.77684784 : f32
      %680 = vector.broadcast %cst_805 : f32 to vector<32x128xf32>
      %681 = arith.mulf %680, %677 : vector<32x128xf32>
      %cst_806 = arith.constant 1.000000e+00 : f32
      %682 = vector.broadcast %cst_806 : f32 to vector<32x128xf32>
      %683 = arith.addf %681, %682 : vector<32x128xf32>
      %684 = arith.mulf %677, %677 : vector<32x128xf32>
      %685 = arith.addf %683, %684 : vector<32x128xf32>
      %686 = tpu.reciprocal %685 {approx = true} : vector<32x128xf32> -> vector<32x128xf32>
      %687 = arith.mulf %685, %686 : vector<32x128xf32>
      %cst_807 = arith.constant 2.000000e+00 : f32
      %688 = vector.broadcast %cst_807 : f32 to vector<32x128xf32>
      %689 = arith.subf %688, %687 : vector<32x128xf32>
      %690 = arith.mulf %686, %689 : vector<32x128xf32>
      %691 = arith.mulf %679, %690 : vector<32x128xf32>
      %692 = arith.addf %arg10, %691 : vector<32x128xf32>
      scf.yield %692 : vector<32x128xf32>
    }
    %c8_i32_501 = arith.constant 8 : i32
    %c0_502 = arith.constant 0 : index
    %c1_503 = arith.constant 1 : index
    %c128_504 = arith.constant 128 : index
    %c0_505 = arith.constant 0 : index
    %446 = vector.load %arg4[%c0_502, %c1_503, %c128_504, %c0_505] : memref<1x3x256x128xf32, #tpu.memory_space<vmem>>, vector<1x1x32x128xf32>
    %447 = vector.shape_cast %446 : vector<1x1x32x128xf32> to vector<32x128xf32>
    %448 = arith.addf %447, %445 : vector<32x128xf32>
    %c0_506 = arith.constant 0 : index
    %c1_507 = arith.constant 1 : index
    %c128_508 = arith.constant 128 : index
    %c0_509 = arith.constant 0 : index
    %449 = vector.load %arg4[%c0_506, %c1_507, %c128_508, %c0_509] : memref<1x3x256x128xf32, #tpu.memory_space<vmem>>, vector<1x1x32x128xf32>
    %450 = vector.shape_cast %449 : vector<1x1x32x128xf32> to vector<32x128xf32>
    %451 = vector.shape_cast %448 : vector<32x128xf32> to vector<1x1x32x128xf32>
    tpu.vector_store %arg4[%c0_506, %c1_507, %c128_508, %c0_509], %451 {strides = array<i32>} : memref<1x3x256x128xf32, #tpu.memory_space<vmem>>, vector<1x1x32x128xf32>,
    %cst_510 = arith.constant 0.000000e+00 : f32
    %452 = vector.broadcast %cst_510 : f32 to vector<32x128xf32>
    %c0_i32_511 = arith.constant 0 : i32
    %c8_i32_512 = arith.constant 8 : i32
    %453 = arith.addi %c0_i32_511, %c8_i32_512 : i32
    %c1_i32_513 = arith.constant 1 : i32
    %454 = scf.for %arg9 = %c0_i32_511 to %453 step %c1_i32_513 iter_args(%arg10 = %452) -> (vector<32x128xf32>)  : i32 {
      %c0_799 = arith.constant 0 : index
      %c2_800 = arith.constant 2 : index
      %668 = arith.index_cast %arg9 : i32 to index
      %c0_801 = arith.constant 0 : index
      %669 = vector.load %arg8[%c0_799, %c2_800, %668, %c0_801] : memref<2x3x8x128xf32, #tpu.memory_space<vmem>>, vector<1x1x1x128xf32>
      %670 = vector.shape_cast %669 : vector<1x1x1x128xf32> to vector<1x128xf32>
      %671 = vector.broadcast %670 : vector<1x128xf32> to vector<32x128xf32>
      %672 = arith.subf %433, %671 : vector<32x128xf32>
      %cst_802 = arith.constant -4.000000e+01 : f32
      %cst_803 = arith.constant 4.000000e+01 : f32
      %673 = vector.broadcast %cst_802 : f32 to vector<32x128xf32>
      %674 = arith.maximumf %673, %672 : vector<32x128xf32>
      %675 = vector.broadcast %cst_803 : f32 to vector<32x128xf32>
      %676 = arith.minimumf %675, %674 : vector<32x128xf32>
      %677 = math.exp %676 : vector<32x128xf32>
      %cst_804 = arith.constant 3.20383811 : f32
      %678 = vector.broadcast %cst_804 : f32 to vector<32x128xf32>
      %679 = arith.mulf %678, %677 : vector<32x128xf32>
      %cst_805 = arith.constant 3.77684784 : f32
      %680 = vector.broadcast %cst_805 : f32 to vector<32x128xf32>
      %681 = arith.mulf %680, %677 : vector<32x128xf32>
      %cst_806 = arith.constant 1.000000e+00 : f32
      %682 = vector.broadcast %cst_806 : f32 to vector<32x128xf32>
      %683 = arith.addf %681, %682 : vector<32x128xf32>
      %684 = arith.mulf %677, %677 : vector<32x128xf32>
      %685 = arith.addf %683, %684 : vector<32x128xf32>
      %686 = tpu.reciprocal %685 {approx = true} : vector<32x128xf32> -> vector<32x128xf32>
      %687 = arith.mulf %685, %686 : vector<32x128xf32>
      %cst_807 = arith.constant 2.000000e+00 : f32
      %688 = vector.broadcast %cst_807 : f32 to vector<32x128xf32>
      %689 = arith.subf %688, %687 : vector<32x128xf32>
      %690 = arith.mulf %686, %689 : vector<32x128xf32>
      %691 = arith.mulf %679, %690 : vector<32x128xf32>
      %692 = arith.addf %arg10, %691 : vector<32x128xf32>
      scf.yield %692 : vector<32x128xf32>
    }
    %c8_i32_514 = arith.constant 8 : i32
    %c0_515 = arith.constant 0 : index
    %c2_516 = arith.constant 2 : index
    %c128_517 = arith.constant 128 : index
    %c0_518 = arith.constant 0 : index
    %455 = vector.load %arg4[%c0_515, %c2_516, %c128_517, %c0_518] : memref<1x3x256x128xf32, #tpu.memory_space<vmem>>, vector<1x1x32x128xf32>
    %456 = vector.shape_cast %455 : vector<1x1x32x128xf32> to vector<32x128xf32>
    %457 = arith.addf %456, %454 : vector<32x128xf32>
    %c0_519 = arith.constant 0 : index
    %c2_520 = arith.constant 2 : index
    %c128_521 = arith.constant 128 : index
    %c0_522 = arith.constant 0 : index
    %458 = vector.load %arg4[%c0_519, %c2_520, %c128_521, %c0_522] : memref<1x3x256x128xf32, #tpu.memory_space<vmem>>, vector<1x1x32x128xf32>
    %459 = vector.shape_cast %458 : vector<1x1x32x128xf32> to vector<32x128xf32>
    %460 = vector.shape_cast %457 : vector<32x128xf32> to vector<1x1x32x128xf32>
    tpu.vector_store %arg4[%c0_519, %c2_520, %c128_521, %c0_522], %460 {strides = array<i32>} : memref<1x3x256x128xf32, #tpu.memory_space<vmem>>, vector<1x1x32x128xf32>,
    %cst_523 = arith.constant 0.000000e+00 : f32
    %461 = vector.broadcast %cst_523 : f32 to vector<32x128xf32>
    %c0_i32_524 = arith.constant 0 : i32
    %c8_i32_525 = arith.constant 8 : i32
    %462 = arith.addi %c0_i32_524, %c8_i32_525 : i32
    %c1_i32_526 = arith.constant 1 : i32
    %463 = scf.for %arg9 = %c0_i32_524 to %462 step %c1_i32_526 iter_args(%arg10 = %461) -> (vector<32x128xf32>)  : i32 {
      %c1_799 = arith.constant 1 : index
      %c0_800 = arith.constant 0 : index
      %668 = arith.index_cast %arg9 : i32 to index
      %c0_801 = arith.constant 0 : index
      %669 = vector.load %arg8[%c1_799, %c0_800, %668, %c0_801] : memref<2x3x8x128xf32, #tpu.memory_space<vmem>>, vector<1x1x1x128xf32>
      %670 = vector.shape_cast %669 : vector<1x1x1x128xf32> to vector<1x128xf32>
      %671 = vector.broadcast %670 : vector<1x128xf32> to vector<32x128xf32>
      %672 = arith.subf %433, %671 : vector<32x128xf32>
      %cst_802 = arith.constant -4.000000e+01 : f32
      %cst_803 = arith.constant 4.000000e+01 : f32
      %673 = vector.broadcast %cst_802 : f32 to vector<32x128xf32>
      %674 = arith.maximumf %673, %672 : vector<32x128xf32>
      %675 = vector.broadcast %cst_803 : f32 to vector<32x128xf32>
      %676 = arith.minimumf %675, %674 : vector<32x128xf32>
      %677 = math.exp %676 : vector<32x128xf32>
      %cst_804 = arith.constant 3.20383811 : f32
      %678 = vector.broadcast %cst_804 : f32 to vector<32x128xf32>
      %679 = arith.mulf %678, %677 : vector<32x128xf32>
      %cst_805 = arith.constant 3.77684784 : f32
      %680 = vector.broadcast %cst_805 : f32 to vector<32x128xf32>
      %681 = arith.mulf %680, %677 : vector<32x128xf32>
      %cst_806 = arith.constant 1.000000e+00 : f32
      %682 = vector.broadcast %cst_806 : f32 to vector<32x128xf32>
      %683 = arith.addf %681, %682 : vector<32x128xf32>
      %684 = arith.mulf %677, %677 : vector<32x128xf32>
      %685 = arith.addf %683, %684 : vector<32x128xf32>
      %686 = tpu.reciprocal %685 {approx = true} : vector<32x128xf32> -> vector<32x128xf32>
      %687 = arith.mulf %685, %686 : vector<32x128xf32>
      %cst_807 = arith.constant 2.000000e+00 : f32
      %688 = vector.broadcast %cst_807 : f32 to vector<32x128xf32>
      %689 = arith.subf %688, %687 : vector<32x128xf32>
      %690 = arith.mulf %686, %689 : vector<32x128xf32>
      %691 = arith.mulf %679, %690 : vector<32x128xf32>
      %692 = arith.addf %arg10, %691 : vector<32x128xf32>
      scf.yield %692 : vector<32x128xf32>
    }
    %c8_i32_527 = arith.constant 8 : i32
    %c0_528 = arith.constant 0 : index
    %c0_529 = arith.constant 0 : index
    %c128_530 = arith.constant 128 : index
    %c0_531 = arith.constant 0 : index
    %464 = vector.load %arg5[%c0_528, %c0_529, %c128_530, %c0_531] : memref<1x3x256x128xf32, #tpu.memory_space<vmem>>, vector<1x1x32x128xf32>
    %465 = vector.shape_cast %464 : vector<1x1x32x128xf32> to vector<32x128xf32>
    %466 = arith.addf %465, %463 : vector<32x128xf32>
    %c0_532 = arith.constant 0 : index
    %c0_533 = arith.constant 0 : index
    %c128_534 = arith.constant 128 : index
    %c0_535 = arith.constant 0 : index
    %467 = vector.load %arg5[%c0_532, %c0_533, %c128_534, %c0_535] : memref<1x3x256x128xf32, #tpu.memory_space<vmem>>, vector<1x1x32x128xf32>
    %468 = vector.shape_cast %467 : vector<1x1x32x128xf32> to vector<32x128xf32>
    %469 = vector.shape_cast %466 : vector<32x128xf32> to vector<1x1x32x128xf32>
    tpu.vector_store %arg5[%c0_532, %c0_533, %c128_534, %c0_535], %469 {strides = array<i32>} : memref<1x3x256x128xf32, #tpu.memory_space<vmem>>, vector<1x1x32x128xf32>,
    %cst_536 = arith.constant 0.000000e+00 : f32
    %470 = vector.broadcast %cst_536 : f32 to vector<32x128xf32>
    %c0_i32_537 = arith.constant 0 : i32
    %c8_i32_538 = arith.constant 8 : i32
    %471 = arith.addi %c0_i32_537, %c8_i32_538 : i32
    %c1_i32_539 = arith.constant 1 : i32
    %472 = scf.for %arg9 = %c0_i32_537 to %471 step %c1_i32_539 iter_args(%arg10 = %470) -> (vector<32x128xf32>)  : i32 {
      %c1_799 = arith.constant 1 : index
      %c1_800 = arith.constant 1 : index
      %668 = arith.index_cast %arg9 : i32 to index
      %c0_801 = arith.constant 0 : index
      %669 = vector.load %arg8[%c1_799, %c1_800, %668, %c0_801] : memref<2x3x8x128xf32, #tpu.memory_space<vmem>>, vector<1x1x1x128xf32>
      %670 = vector.shape_cast %669 : vector<1x1x1x128xf32> to vector<1x128xf32>
      %671 = vector.broadcast %670 : vector<1x128xf32> to vector<32x128xf32>
      %672 = arith.subf %433, %671 : vector<32x128xf32>
      %cst_802 = arith.constant -4.000000e+01 : f32
      %cst_803 = arith.constant 4.000000e+01 : f32
      %673 = vector.broadcast %cst_802 : f32 to vector<32x128xf32>
      %674 = arith.maximumf %673, %672 : vector<32x128xf32>
      %675 = vector.broadcast %cst_803 : f32 to vector<32x128xf32>
      %676 = arith.minimumf %675, %674 : vector<32x128xf32>
      %677 = math.exp %676 : vector<32x128xf32>
      %cst_804 = arith.constant 3.20383811 : f32
      %678 = vector.broadcast %cst_804 : f32 to vector<32x128xf32>
      %679 = arith.mulf %678, %677 : vector<32x128xf32>
      %cst_805 = arith.constant 3.77684784 : f32
      %680 = vector.broadcast %cst_805 : f32 to vector<32x128xf32>
      %681 = arith.mulf %680, %677 : vector<32x128xf32>
      %cst_806 = arith.constant 1.000000e+00 : f32
      %682 = vector.broadcast %cst_806 : f32 to vector<32x128xf32>
      %683 = arith.addf %681, %682 : vector<32x128xf32>
      %684 = arith.mulf %677, %677 : vector<32x128xf32>
      %685 = arith.addf %683, %684 : vector<32x128xf32>
      %686 = tpu.reciprocal %685 {approx = true} : vector<32x128xf32> -> vector<32x128xf32>
      %687 = arith.mulf %685, %686 : vector<32x128xf32>
      %cst_807 = arith.constant 2.000000e+00 : f32
      %688 = vector.broadcast %cst_807 : f32 to vector<32x128xf32>
      %689 = arith.subf %688, %687 : vector<32x128xf32>
      %690 = arith.mulf %686, %689 : vector<32x128xf32>
      %691 = arith.mulf %679, %690 : vector<32x128xf32>
      %692 = arith.addf %arg10, %691 : vector<32x128xf32>
      scf.yield %692 : vector<32x128xf32>
    }
    %c8_i32_540 = arith.constant 8 : i32
    %c0_541 = arith.constant 0 : index
    %c1_542 = arith.constant 1 : index
    %c128_543 = arith.constant 128 : index
    %c0_544 = arith.constant 0 : index
    %473 = vector.load %arg5[%c0_541, %c1_542, %c128_543, %c0_544] : memref<1x3x256x128xf32, #tpu.memory_space<vmem>>, vector<1x1x32x128xf32>
    %474 = vector.shape_cast %473 : vector<1x1x32x128xf32> to vector<32x128xf32>
    %475 = arith.addf %474, %472 : vector<32x128xf32>
    %c0_545 = arith.constant 0 : index
    %c1_546 = arith.constant 1 : index
    %c128_547 = arith.constant 128 : index
    %c0_548 = arith.constant 0 : index
    %476 = vector.load %arg5[%c0_545, %c1_546, %c128_547, %c0_548] : memref<1x3x256x128xf32, #tpu.memory_space<vmem>>, vector<1x1x32x128xf32>
    %477 = vector.shape_cast %476 : vector<1x1x32x128xf32> to vector<32x128xf32>
    %478 = vector.shape_cast %475 : vector<32x128xf32> to vector<1x1x32x128xf32>
    tpu.vector_store %arg5[%c0_545, %c1_546, %c128_547, %c0_548], %478 {strides = array<i32>} : memref<1x3x256x128xf32, #tpu.memory_space<vmem>>, vector<1x1x32x128xf32>,
    %cst_549 = arith.constant 0.000000e+00 : f32
    %479 = vector.broadcast %cst_549 : f32 to vector<32x128xf32>
    %c0_i32_550 = arith.constant 0 : i32
    %c8_i32_551 = arith.constant 8 : i32
    %480 = arith.addi %c0_i32_550, %c8_i32_551 : i32
    %c1_i32_552 = arith.constant 1 : i32
    %481 = scf.for %arg9 = %c0_i32_550 to %480 step %c1_i32_552 iter_args(%arg10 = %479) -> (vector<32x128xf32>)  : i32 {
      %c1_799 = arith.constant 1 : index
      %c2_800 = arith.constant 2 : index
      %668 = arith.index_cast %arg9 : i32 to index
      %c0_801 = arith.constant 0 : index
      %669 = vector.load %arg8[%c1_799, %c2_800, %668, %c0_801] : memref<2x3x8x128xf32, #tpu.memory_space<vmem>>, vector<1x1x1x128xf32>
      %670 = vector.shape_cast %669 : vector<1x1x1x128xf32> to vector<1x128xf32>
      %671 = vector.broadcast %670 : vector<1x128xf32> to vector<32x128xf32>
      %672 = arith.subf %433, %671 : vector<32x128xf32>
      %cst_802 = arith.constant -4.000000e+01 : f32
      %cst_803 = arith.constant 4.000000e+01 : f32
      %673 = vector.broadcast %cst_802 : f32 to vector<32x128xf32>
      %674 = arith.maximumf %673, %672 : vector<32x128xf32>
      %675 = vector.broadcast %cst_803 : f32 to vector<32x128xf32>
      %676 = arith.minimumf %675, %674 : vector<32x128xf32>
      %677 = math.exp %676 : vector<32x128xf32>
      %cst_804 = arith.constant 3.20383811 : f32
      %678 = vector.broadcast %cst_804 : f32 to vector<32x128xf32>
      %679 = arith.mulf %678, %677 : vector<32x128xf32>
      %cst_805 = arith.constant 3.77684784 : f32
      %680 = vector.broadcast %cst_805 : f32 to vector<32x128xf32>
      %681 = arith.mulf %680, %677 : vector<32x128xf32>
      %cst_806 = arith.constant 1.000000e+00 : f32
      %682 = vector.broadcast %cst_806 : f32 to vector<32x128xf32>
      %683 = arith.addf %681, %682 : vector<32x128xf32>
      %684 = arith.mulf %677, %677 : vector<32x128xf32>
      %685 = arith.addf %683, %684 : vector<32x128xf32>
      %686 = tpu.reciprocal %685 {approx = true} : vector<32x128xf32> -> vector<32x128xf32>
      %687 = arith.mulf %685, %686 : vector<32x128xf32>
      %cst_807 = arith.constant 2.000000e+00 : f32
      %688 = vector.broadcast %cst_807 : f32 to vector<32x128xf32>
      %689 = arith.subf %688, %687 : vector<32x128xf32>
      %690 = arith.mulf %686, %689 : vector<32x128xf32>
      %691 = arith.mulf %679, %690 : vector<32x128xf32>
      %692 = arith.addf %arg10, %691 : vector<32x128xf32>
      scf.yield %692 : vector<32x128xf32>
    }
    %c8_i32_553 = arith.constant 8 : i32
    %c0_554 = arith.constant 0 : index
    %c2_555 = arith.constant 2 : index
    %c128_556 = arith.constant 128 : index
    %c0_557 = arith.constant 0 : index
    %482 = vector.load %arg5[%c0_554, %c2_555, %c128_556, %c0_557] : memref<1x3x256x128xf32, #tpu.memory_space<vmem>>, vector<1x1x32x128xf32>
    %483 = vector.shape_cast %482 : vector<1x1x32x128xf32> to vector<32x128xf32>
    %484 = arith.addf %483, %481 : vector<32x128xf32>
    %c0_558 = arith.constant 0 : index
    %c2_559 = arith.constant 2 : index
    %c128_560 = arith.constant 128 : index
    %c0_561 = arith.constant 0 : index
    %485 = vector.load %arg5[%c0_558, %c2_559, %c128_560, %c0_561] : memref<1x3x256x128xf32, #tpu.memory_space<vmem>>, vector<1x1x32x128xf32>
    %486 = vector.shape_cast %485 : vector<1x1x32x128xf32> to vector<32x128xf32>
    %487 = vector.shape_cast %484 : vector<32x128xf32> to vector<1x1x32x128xf32>
    tpu.vector_store %arg5[%c0_558, %c2_559, %c128_560, %c0_561], %487 {strides = array<i32>} : memref<1x3x256x128xf32, #tpu.memory_space<vmem>>, vector<1x1x32x128xf32>,
    %488 = tpu.iota {dimensions = array<i32: 0>} : vector<32x128xi32>
    %489 = arith.sitofp %488 : vector<32x128xi32> to vector<32x128xf32>
    %cst_562 = arith.constant 1.605000e+02 : f32
    %490 = vector.broadcast %cst_562 : f32 to vector<32x128xf32>
    %491 = arith.addf %489, %490 : vector<32x128xf32>
    %cst_563 = arith.constant 2.500000e+00 : f32
    %492 = vector.broadcast %cst_563 : f32 to vector<32x128xf32>
    %493 = arith.mulf %491, %492 : vector<32x128xf32>
    %cst_564 = arith.constant 0.000000e+00 : f32
    %494 = vector.broadcast %cst_564 : f32 to vector<32x128xf32>
    %c0_i32_565 = arith.constant 0 : i32
    %c8_i32_566 = arith.constant 8 : i32
    %495 = arith.addi %c0_i32_565, %c8_i32_566 : i32
    %c1_i32_567 = arith.constant 1 : i32
    %496 = scf.for %arg9 = %c0_i32_565 to %495 step %c1_i32_567 iter_args(%arg10 = %494) -> (vector<32x128xf32>)  : i32 {
      %c0_799 = arith.constant 0 : index
      %c0_800 = arith.constant 0 : index
      %668 = arith.index_cast %arg9 : i32 to index
      %c0_801 = arith.constant 0 : index
      %669 = vector.load %arg8[%c0_799, %c0_800, %668, %c0_801] : memref<2x3x8x128xf32, #tpu.memory_space<vmem>>, vector<1x1x1x128xf32>
      %670 = vector.shape_cast %669 : vector<1x1x1x128xf32> to vector<1x128xf32>
      %671 = vector.broadcast %670 : vector<1x128xf32> to vector<32x128xf32>
      %672 = arith.subf %493, %671 : vector<32x128xf32>
      %cst_802 = arith.constant -4.000000e+01 : f32
      %cst_803 = arith.constant 4.000000e+01 : f32
      %673 = vector.broadcast %cst_802 : f32 to vector<32x128xf32>
      %674 = arith.maximumf %673, %672 : vector<32x128xf32>
      %675 = vector.broadcast %cst_803 : f32 to vector<32x128xf32>
      %676 = arith.minimumf %675, %674 : vector<32x128xf32>
      %677 = math.exp %676 : vector<32x128xf32>
      %cst_804 = arith.constant 3.20383811 : f32
      %678 = vector.broadcast %cst_804 : f32 to vector<32x128xf32>
      %679 = arith.mulf %678, %677 : vector<32x128xf32>
      %cst_805 = arith.constant 3.77684784 : f32
      %680 = vector.broadcast %cst_805 : f32 to vector<32x128xf32>
      %681 = arith.mulf %680, %677 : vector<32x128xf32>
      %cst_806 = arith.constant 1.000000e+00 : f32
      %682 = vector.broadcast %cst_806 : f32 to vector<32x128xf32>
      %683 = arith.addf %681, %682 : vector<32x128xf32>
      %684 = arith.mulf %677, %677 : vector<32x128xf32>
      %685 = arith.addf %683, %684 : vector<32x128xf32>
      %686 = tpu.reciprocal %685 {approx = true} : vector<32x128xf32> -> vector<32x128xf32>
      %687 = arith.mulf %685, %686 : vector<32x128xf32>
      %cst_807 = arith.constant 2.000000e+00 : f32
      %688 = vector.broadcast %cst_807 : f32 to vector<32x128xf32>
      %689 = arith.subf %688, %687 : vector<32x128xf32>
      %690 = arith.mulf %686, %689 : vector<32x128xf32>
      %691 = arith.mulf %679, %690 : vector<32x128xf32>
      %692 = arith.addf %arg10, %691 : vector<32x128xf32>
      scf.yield %692 : vector<32x128xf32>
    }
    %c8_i32_568 = arith.constant 8 : i32
    %c0_569 = arith.constant 0 : index
    %c0_570 = arith.constant 0 : index
    %c160 = arith.constant 160 : index
    %c0_571 = arith.constant 0 : index
    %497 = vector.load %arg4[%c0_569, %c0_570, %c160, %c0_571] : memref<1x3x256x128xf32, #tpu.memory_space<vmem>>, vector<1x1x32x128xf32>
    %498 = vector.shape_cast %497 : vector<1x1x32x128xf32> to vector<32x128xf32>
    %499 = arith.addf %498, %496 : vector<32x128xf32>
    %c0_572 = arith.constant 0 : index
    %c0_573 = arith.constant 0 : index
    %c160_574 = arith.constant 160 : index
    %c0_575 = arith.constant 0 : index
    %500 = vector.load %arg4[%c0_572, %c0_573, %c160_574, %c0_575] : memref<1x3x256x128xf32, #tpu.memory_space<vmem>>, vector<1x1x32x128xf32>
    %501 = vector.shape_cast %500 : vector<1x1x32x128xf32> to vector<32x128xf32>
    %502 = vector.shape_cast %499 : vector<32x128xf32> to vector<1x1x32x128xf32>
    tpu.vector_store %arg4[%c0_572, %c0_573, %c160_574, %c0_575], %502 {strides = array<i32>} : memref<1x3x256x128xf32, #tpu.memory_space<vmem>>, vector<1x1x32x128xf32>,
    %cst_576 = arith.constant 0.000000e+00 : f32
    %503 = vector.broadcast %cst_576 : f32 to vector<32x128xf32>
    %c0_i32_577 = arith.constant 0 : i32
    %c8_i32_578 = arith.constant 8 : i32
    %504 = arith.addi %c0_i32_577, %c8_i32_578 : i32
    %c1_i32_579 = arith.constant 1 : i32
    %505 = scf.for %arg9 = %c0_i32_577 to %504 step %c1_i32_579 iter_args(%arg10 = %503) -> (vector<32x128xf32>)  : i32 {
      %c0_799 = arith.constant 0 : index
      %c1_800 = arith.constant 1 : index
      %668 = arith.index_cast %arg9 : i32 to index
      %c0_801 = arith.constant 0 : index
      %669 = vector.load %arg8[%c0_799, %c1_800, %668, %c0_801] : memref<2x3x8x128xf32, #tpu.memory_space<vmem>>, vector<1x1x1x128xf32>
      %670 = vector.shape_cast %669 : vector<1x1x1x128xf32> to vector<1x128xf32>
      %671 = vector.broadcast %670 : vector<1x128xf32> to vector<32x128xf32>
      %672 = arith.subf %493, %671 : vector<32x128xf32>
      %cst_802 = arith.constant -4.000000e+01 : f32
      %cst_803 = arith.constant 4.000000e+01 : f32
      %673 = vector.broadcast %cst_802 : f32 to vector<32x128xf32>
      %674 = arith.maximumf %673, %672 : vector<32x128xf32>
      %675 = vector.broadcast %cst_803 : f32 to vector<32x128xf32>
      %676 = arith.minimumf %675, %674 : vector<32x128xf32>
      %677 = math.exp %676 : vector<32x128xf32>
      %cst_804 = arith.constant 3.20383811 : f32
      %678 = vector.broadcast %cst_804 : f32 to vector<32x128xf32>
      %679 = arith.mulf %678, %677 : vector<32x128xf32>
      %cst_805 = arith.constant 3.77684784 : f32
      %680 = vector.broadcast %cst_805 : f32 to vector<32x128xf32>
      %681 = arith.mulf %680, %677 : vector<32x128xf32>
      %cst_806 = arith.constant 1.000000e+00 : f32
      %682 = vector.broadcast %cst_806 : f32 to vector<32x128xf32>
      %683 = arith.addf %681, %682 : vector<32x128xf32>
      %684 = arith.mulf %677, %677 : vector<32x128xf32>
      %685 = arith.addf %683, %684 : vector<32x128xf32>
      %686 = tpu.reciprocal %685 {approx = true} : vector<32x128xf32> -> vector<32x128xf32>
      %687 = arith.mulf %685, %686 : vector<32x128xf32>
      %cst_807 = arith.constant 2.000000e+00 : f32
      %688 = vector.broadcast %cst_807 : f32 to vector<32x128xf32>
      %689 = arith.subf %688, %687 : vector<32x128xf32>
      %690 = arith.mulf %686, %689 : vector<32x128xf32>
      %691 = arith.mulf %679, %690 : vector<32x128xf32>
      %692 = arith.addf %arg10, %691 : vector<32x128xf32>
      scf.yield %692 : vector<32x128xf32>
    }
    %c8_i32_580 = arith.constant 8 : i32
    %c0_581 = arith.constant 0 : index
    %c1_582 = arith.constant 1 : index
    %c160_583 = arith.constant 160 : index
    %c0_584 = arith.constant 0 : index
    %506 = vector.load %arg4[%c0_581, %c1_582, %c160_583, %c0_584] : memref<1x3x256x128xf32, #tpu.memory_space<vmem>>, vector<1x1x32x128xf32>
    %507 = vector.shape_cast %506 : vector<1x1x32x128xf32> to vector<32x128xf32>
    %508 = arith.addf %507, %505 : vector<32x128xf32>
    %c0_585 = arith.constant 0 : index
    %c1_586 = arith.constant 1 : index
    %c160_587 = arith.constant 160 : index
    %c0_588 = arith.constant 0 : index
    %509 = vector.load %arg4[%c0_585, %c1_586, %c160_587, %c0_588] : memref<1x3x256x128xf32, #tpu.memory_space<vmem>>, vector<1x1x32x128xf32>
    %510 = vector.shape_cast %509 : vector<1x1x32x128xf32> to vector<32x128xf32>
    %511 = vector.shape_cast %508 : vector<32x128xf32> to vector<1x1x32x128xf32>
    tpu.vector_store %arg4[%c0_585, %c1_586, %c160_587, %c0_588], %511 {strides = array<i32>} : memref<1x3x256x128xf32, #tpu.memory_space<vmem>>, vector<1x1x32x128xf32>,
    %cst_589 = arith.constant 0.000000e+00 : f32
    %512 = vector.broadcast %cst_589 : f32 to vector<32x128xf32>
    %c0_i32_590 = arith.constant 0 : i32
    %c8_i32_591 = arith.constant 8 : i32
    %513 = arith.addi %c0_i32_590, %c8_i32_591 : i32
    %c1_i32_592 = arith.constant 1 : i32
    %514 = scf.for %arg9 = %c0_i32_590 to %513 step %c1_i32_592 iter_args(%arg10 = %512) -> (vector<32x128xf32>)  : i32 {
      %c0_799 = arith.constant 0 : index
      %c2_800 = arith.constant 2 : index
      %668 = arith.index_cast %arg9 : i32 to index
      %c0_801 = arith.constant 0 : index
      %669 = vector.load %arg8[%c0_799, %c2_800, %668, %c0_801] : memref<2x3x8x128xf32, #tpu.memory_space<vmem>>, vector<1x1x1x128xf32>
      %670 = vector.shape_cast %669 : vector<1x1x1x128xf32> to vector<1x128xf32>
      %671 = vector.broadcast %670 : vector<1x128xf32> to vector<32x128xf32>
      %672 = arith.subf %493, %671 : vector<32x128xf32>
      %cst_802 = arith.constant -4.000000e+01 : f32
      %cst_803 = arith.constant 4.000000e+01 : f32
      %673 = vector.broadcast %cst_802 : f32 to vector<32x128xf32>
      %674 = arith.maximumf %673, %672 : vector<32x128xf32>
      %675 = vector.broadcast %cst_803 : f32 to vector<32x128xf32>
      %676 = arith.minimumf %675, %674 : vector<32x128xf32>
      %677 = math.exp %676 : vector<32x128xf32>
      %cst_804 = arith.constant 3.20383811 : f32
      %678 = vector.broadcast %cst_804 : f32 to vector<32x128xf32>
      %679 = arith.mulf %678, %677 : vector<32x128xf32>
      %cst_805 = arith.constant 3.77684784 : f32
      %680 = vector.broadcast %cst_805 : f32 to vector<32x128xf32>
      %681 = arith.mulf %680, %677 : vector<32x128xf32>
      %cst_806 = arith.constant 1.000000e+00 : f32
      %682 = vector.broadcast %cst_806 : f32 to vector<32x128xf32>
      %683 = arith.addf %681, %682 : vector<32x128xf32>
      %684 = arith.mulf %677, %677 : vector<32x128xf32>
      %685 = arith.addf %683, %684 : vector<32x128xf32>
      %686 = tpu.reciprocal %685 {approx = true} : vector<32x128xf32> -> vector<32x128xf32>
      %687 = arith.mulf %685, %686 : vector<32x128xf32>
      %cst_807 = arith.constant 2.000000e+00 : f32
      %688 = vector.broadcast %cst_807 : f32 to vector<32x128xf32>
      %689 = arith.subf %688, %687 : vector<32x128xf32>
      %690 = arith.mulf %686, %689 : vector<32x128xf32>
      %691 = arith.mulf %679, %690 : vector<32x128xf32>
      %692 = arith.addf %arg10, %691 : vector<32x128xf32>
      scf.yield %692 : vector<32x128xf32>
    }
    %c8_i32_593 = arith.constant 8 : i32
    %c0_594 = arith.constant 0 : index
    %c2_595 = arith.constant 2 : index
    %c160_596 = arith.constant 160 : index
    %c0_597 = arith.constant 0 : index
    %515 = vector.load %arg4[%c0_594, %c2_595, %c160_596, %c0_597] : memref<1x3x256x128xf32, #tpu.memory_space<vmem>>, vector<1x1x32x128xf32>
    %516 = vector.shape_cast %515 : vector<1x1x32x128xf32> to vector<32x128xf32>
    %517 = arith.addf %516, %514 : vector<32x128xf32>
    %c0_598 = arith.constant 0 : index
    %c2_599 = arith.constant 2 : index
    %c160_600 = arith.constant 160 : index
    %c0_601 = arith.constant 0 : index
    %518 = vector.load %arg4[%c0_598, %c2_599, %c160_600, %c0_601] : memref<1x3x256x128xf32, #tpu.memory_space<vmem>>, vector<1x1x32x128xf32>
    %519 = vector.shape_cast %518 : vector<1x1x32x128xf32> to vector<32x128xf32>
    %520 = vector.shape_cast %517 : vector<32x128xf32> to vector<1x1x32x128xf32>
    tpu.vector_store %arg4[%c0_598, %c2_599, %c160_600, %c0_601], %520 {strides = array<i32>} : memref<1x3x256x128xf32, #tpu.memory_space<vmem>>, vector<1x1x32x128xf32>,
    %cst_602 = arith.constant 0.000000e+00 : f32
    %521 = vector.broadcast %cst_602 : f32 to vector<32x128xf32>
    %c0_i32_603 = arith.constant 0 : i32
    %c8_i32_604 = arith.constant 8 : i32
    %522 = arith.addi %c0_i32_603, %c8_i32_604 : i32
    %c1_i32_605 = arith.constant 1 : i32
    %523 = scf.for %arg9 = %c0_i32_603 to %522 step %c1_i32_605 iter_args(%arg10 = %521) -> (vector<32x128xf32>)  : i32 {
      %c1_799 = arith.constant 1 : index
      %c0_800 = arith.constant 0 : index
      %668 = arith.index_cast %arg9 : i32 to index
      %c0_801 = arith.constant 0 : index
      %669 = vector.load %arg8[%c1_799, %c0_800, %668, %c0_801] : memref<2x3x8x128xf32, #tpu.memory_space<vmem>>, vector<1x1x1x128xf32>
      %670 = vector.shape_cast %669 : vector<1x1x1x128xf32> to vector<1x128xf32>
      %671 = vector.broadcast %670 : vector<1x128xf32> to vector<32x128xf32>
      %672 = arith.subf %493, %671 : vector<32x128xf32>
      %cst_802 = arith.constant -4.000000e+01 : f32
      %cst_803 = arith.constant 4.000000e+01 : f32
      %673 = vector.broadcast %cst_802 : f32 to vector<32x128xf32>
      %674 = arith.maximumf %673, %672 : vector<32x128xf32>
      %675 = vector.broadcast %cst_803 : f32 to vector<32x128xf32>
      %676 = arith.minimumf %675, %674 : vector<32x128xf32>
      %677 = math.exp %676 : vector<32x128xf32>
      %cst_804 = arith.constant 3.20383811 : f32
      %678 = vector.broadcast %cst_804 : f32 to vector<32x128xf32>
      %679 = arith.mulf %678, %677 : vector<32x128xf32>
      %cst_805 = arith.constant 3.77684784 : f32
      %680 = vector.broadcast %cst_805 : f32 to vector<32x128xf32>
      %681 = arith.mulf %680, %677 : vector<32x128xf32>
      %cst_806 = arith.constant 1.000000e+00 : f32
      %682 = vector.broadcast %cst_806 : f32 to vector<32x128xf32>
      %683 = arith.addf %681, %682 : vector<32x128xf32>
      %684 = arith.mulf %677, %677 : vector<32x128xf32>
      %685 = arith.addf %683, %684 : vector<32x128xf32>
      %686 = tpu.reciprocal %685 {approx = true} : vector<32x128xf32> -> vector<32x128xf32>
      %687 = arith.mulf %685, %686 : vector<32x128xf32>
      %cst_807 = arith.constant 2.000000e+00 : f32
      %688 = vector.broadcast %cst_807 : f32 to vector<32x128xf32>
      %689 = arith.subf %688, %687 : vector<32x128xf32>
      %690 = arith.mulf %686, %689 : vector<32x128xf32>
      %691 = arith.mulf %679, %690 : vector<32x128xf32>
      %692 = arith.addf %arg10, %691 : vector<32x128xf32>
      scf.yield %692 : vector<32x128xf32>
    }
    %c8_i32_606 = arith.constant 8 : i32
    %c0_607 = arith.constant 0 : index
    %c0_608 = arith.constant 0 : index
    %c160_609 = arith.constant 160 : index
    %c0_610 = arith.constant 0 : index
    %524 = vector.load %arg5[%c0_607, %c0_608, %c160_609, %c0_610] : memref<1x3x256x128xf32, #tpu.memory_space<vmem>>, vector<1x1x32x128xf32>
    %525 = vector.shape_cast %524 : vector<1x1x32x128xf32> to vector<32x128xf32>
    %526 = arith.addf %525, %523 : vector<32x128xf32>
    %c0_611 = arith.constant 0 : index
    %c0_612 = arith.constant 0 : index
    %c160_613 = arith.constant 160 : index
    %c0_614 = arith.constant 0 : index
    %527 = vector.load %arg5[%c0_611, %c0_612, %c160_613, %c0_614] : memref<1x3x256x128xf32, #tpu.memory_space<vmem>>, vector<1x1x32x128xf32>
    %528 = vector.shape_cast %527 : vector<1x1x32x128xf32> to vector<32x128xf32>
    %529 = vector.shape_cast %526 : vector<32x128xf32> to vector<1x1x32x128xf32>
    tpu.vector_store %arg5[%c0_611, %c0_612, %c160_613, %c0_614], %529 {strides = array<i32>} : memref<1x3x256x128xf32, #tpu.memory_space<vmem>>, vector<1x1x32x128xf32>,
    %cst_615 = arith.constant 0.000000e+00 : f32
    %530 = vector.broadcast %cst_615 : f32 to vector<32x128xf32>
    %c0_i32_616 = arith.constant 0 : i32
    %c8_i32_617 = arith.constant 8 : i32
    %531 = arith.addi %c0_i32_616, %c8_i32_617 : i32
    %c1_i32_618 = arith.constant 1 : i32
    %532 = scf.for %arg9 = %c0_i32_616 to %531 step %c1_i32_618 iter_args(%arg10 = %530) -> (vector<32x128xf32>)  : i32 {
      %c1_799 = arith.constant 1 : index
      %c1_800 = arith.constant 1 : index
      %668 = arith.index_cast %arg9 : i32 to index
      %c0_801 = arith.constant 0 : index
      %669 = vector.load %arg8[%c1_799, %c1_800, %668, %c0_801] : memref<2x3x8x128xf32, #tpu.memory_space<vmem>>, vector<1x1x1x128xf32>
      %670 = vector.shape_cast %669 : vector<1x1x1x128xf32> to vector<1x128xf32>
      %671 = vector.broadcast %670 : vector<1x128xf32> to vector<32x128xf32>
      %672 = arith.subf %493, %671 : vector<32x128xf32>
      %cst_802 = arith.constant -4.000000e+01 : f32
      %cst_803 = arith.constant 4.000000e+01 : f32
      %673 = vector.broadcast %cst_802 : f32 to vector<32x128xf32>
      %674 = arith.maximumf %673, %672 : vector<32x128xf32>
      %675 = vector.broadcast %cst_803 : f32 to vector<32x128xf32>
      %676 = arith.minimumf %675, %674 : vector<32x128xf32>
      %677 = math.exp %676 : vector<32x128xf32>
      %cst_804 = arith.constant 3.20383811 : f32
      %678 = vector.broadcast %cst_804 : f32 to vector<32x128xf32>
      %679 = arith.mulf %678, %677 : vector<32x128xf32>
      %cst_805 = arith.constant 3.77684784 : f32
      %680 = vector.broadcast %cst_805 : f32 to vector<32x128xf32>
      %681 = arith.mulf %680, %677 : vector<32x128xf32>
      %cst_806 = arith.constant 1.000000e+00 : f32
      %682 = vector.broadcast %cst_806 : f32 to vector<32x128xf32>
      %683 = arith.addf %681, %682 : vector<32x128xf32>
      %684 = arith.mulf %677, %677 : vector<32x128xf32>
      %685 = arith.addf %683, %684 : vector<32x128xf32>
      %686 = tpu.reciprocal %685 {approx = true} : vector<32x128xf32> -> vector<32x128xf32>
      %687 = arith.mulf %685, %686 : vector<32x128xf32>
      %cst_807 = arith.constant 2.000000e+00 : f32
      %688 = vector.broadcast %cst_807 : f32 to vector<32x128xf32>
      %689 = arith.subf %688, %687 : vector<32x128xf32>
      %690 = arith.mulf %686, %689 : vector<32x128xf32>
      %691 = arith.mulf %679, %690 : vector<32x128xf32>
      %692 = arith.addf %arg10, %691 : vector<32x128xf32>
      scf.yield %692 : vector<32x128xf32>
    }
    %c8_i32_619 = arith.constant 8 : i32
    %c0_620 = arith.constant 0 : index
    %c1_621 = arith.constant 1 : index
    %c160_622 = arith.constant 160 : index
    %c0_623 = arith.constant 0 : index
    %533 = vector.load %arg5[%c0_620, %c1_621, %c160_622, %c0_623] : memref<1x3x256x128xf32, #tpu.memory_space<vmem>>, vector<1x1x32x128xf32>
    %534 = vector.shape_cast %533 : vector<1x1x32x128xf32> to vector<32x128xf32>
    %535 = arith.addf %534, %532 : vector<32x128xf32>
    %c0_624 = arith.constant 0 : index
    %c1_625 = arith.constant 1 : index
    %c160_626 = arith.constant 160 : index
    %c0_627 = arith.constant 0 : index
    %536 = vector.load %arg5[%c0_624, %c1_625, %c160_626, %c0_627] : memref<1x3x256x128xf32, #tpu.memory_space<vmem>>, vector<1x1x32x128xf32>
    %537 = vector.shape_cast %536 : vector<1x1x32x128xf32> to vector<32x128xf32>
    %538 = vector.shape_cast %535 : vector<32x128xf32> to vector<1x1x32x128xf32>
    tpu.vector_store %arg5[%c0_624, %c1_625, %c160_626, %c0_627], %538 {strides = array<i32>} : memref<1x3x256x128xf32, #tpu.memory_space<vmem>>, vector<1x1x32x128xf32>,
    %cst_628 = arith.constant 0.000000e+00 : f32
    %539 = vector.broadcast %cst_628 : f32 to vector<32x128xf32>
    %c0_i32_629 = arith.constant 0 : i32
    %c8_i32_630 = arith.constant 8 : i32
    %540 = arith.addi %c0_i32_629, %c8_i32_630 : i32
    %c1_i32_631 = arith.constant 1 : i32
    %541 = scf.for %arg9 = %c0_i32_629 to %540 step %c1_i32_631 iter_args(%arg10 = %539) -> (vector<32x128xf32>)  : i32 {
      %c1_799 = arith.constant 1 : index
      %c2_800 = arith.constant 2 : index
      %668 = arith.index_cast %arg9 : i32 to index
      %c0_801 = arith.constant 0 : index
      %669 = vector.load %arg8[%c1_799, %c2_800, %668, %c0_801] : memref<2x3x8x128xf32, #tpu.memory_space<vmem>>, vector<1x1x1x128xf32>
      %670 = vector.shape_cast %669 : vector<1x1x1x128xf32> to vector<1x128xf32>
      %671 = vector.broadcast %670 : vector<1x128xf32> to vector<32x128xf32>
      %672 = arith.subf %493, %671 : vector<32x128xf32>
      %cst_802 = arith.constant -4.000000e+01 : f32
      %cst_803 = arith.constant 4.000000e+01 : f32
      %673 = vector.broadcast %cst_802 : f32 to vector<32x128xf32>
      %674 = arith.maximumf %673, %672 : vector<32x128xf32>
      %675 = vector.broadcast %cst_803 : f32 to vector<32x128xf32>
      %676 = arith.minimumf %675, %674 : vector<32x128xf32>
      %677 = math.exp %676 : vector<32x128xf32>
      %cst_804 = arith.constant 3.20383811 : f32
      %678 = vector.broadcast %cst_804 : f32 to vector<32x128xf32>
      %679 = arith.mulf %678, %677 : vector<32x128xf32>
      %cst_805 = arith.constant 3.77684784 : f32
      %680 = vector.broadcast %cst_805 : f32 to vector<32x128xf32>
      %681 = arith.mulf %680, %677 : vector<32x128xf32>
      %cst_806 = arith.constant 1.000000e+00 : f32
      %682 = vector.broadcast %cst_806 : f32 to vector<32x128xf32>
      %683 = arith.addf %681, %682 : vector<32x128xf32>
      %684 = arith.mulf %677, %677 : vector<32x128xf32>
      %685 = arith.addf %683, %684 : vector<32x128xf32>
      %686 = tpu.reciprocal %685 {approx = true} : vector<32x128xf32> -> vector<32x128xf32>
      %687 = arith.mulf %685, %686 : vector<32x128xf32>
      %cst_807 = arith.constant 2.000000e+00 : f32
      %688 = vector.broadcast %cst_807 : f32 to vector<32x128xf32>
      %689 = arith.subf %688, %687 : vector<32x128xf32>
      %690 = arith.mulf %686, %689 : vector<32x128xf32>
      %691 = arith.mulf %679, %690 : vector<32x128xf32>
      %692 = arith.addf %arg10, %691 : vector<32x128xf32>
      scf.yield %692 : vector<32x128xf32>
    }
    %c8_i32_632 = arith.constant 8 : i32
    %c0_633 = arith.constant 0 : index
    %c2_634 = arith.constant 2 : index
    %c160_635 = arith.constant 160 : index
    %c0_636 = arith.constant 0 : index
    %542 = vector.load %arg5[%c0_633, %c2_634, %c160_635, %c0_636] : memref<1x3x256x128xf32, #tpu.memory_space<vmem>>, vector<1x1x32x128xf32>
    %543 = vector.shape_cast %542 : vector<1x1x32x128xf32> to vector<32x128xf32>
    %544 = arith.addf %543, %541 : vector<32x128xf32>
    %c0_637 = arith.constant 0 : index
    %c2_638 = arith.constant 2 : index
    %c160_639 = arith.constant 160 : index
    %c0_640 = arith.constant 0 : index
    %545 = vector.load %arg5[%c0_637, %c2_638, %c160_639, %c0_640] : memref<1x3x256x128xf32, #tpu.memory_space<vmem>>, vector<1x1x32x128xf32>
    %546 = vector.shape_cast %545 : vector<1x1x32x128xf32> to vector<32x128xf32>
    %547 = vector.shape_cast %544 : vector<32x128xf32> to vector<1x1x32x128xf32>
    tpu.vector_store %arg5[%c0_637, %c2_638, %c160_639, %c0_640], %547 {strides = array<i32>} : memref<1x3x256x128xf32, #tpu.memory_space<vmem>>, vector<1x1x32x128xf32>,
    %548 = tpu.iota {dimensions = array<i32: 0>} : vector<32x128xi32>
    %549 = arith.sitofp %548 : vector<32x128xi32> to vector<32x128xf32>
    %cst_641 = arith.constant 1.925000e+02 : f32
    %550 = vector.broadcast %cst_641 : f32 to vector<32x128xf32>
    %551 = arith.addf %549, %550 : vector<32x128xf32>
    %cst_642 = arith.constant 2.500000e+00 : f32
    %552 = vector.broadcast %cst_642 : f32 to vector<32x128xf32>
    %553 = arith.mulf %551, %552 : vector<32x128xf32>
    %cst_643 = arith.constant 0.000000e+00 : f32
    %554 = vector.broadcast %cst_643 : f32 to vector<32x128xf32>
    %c0_i32_644 = arith.constant 0 : i32
    %c8_i32_645 = arith.constant 8 : i32
    %555 = arith.addi %c0_i32_644, %c8_i32_645 : i32
    %c1_i32_646 = arith.constant 1 : i32
    %556 = scf.for %arg9 = %c0_i32_644 to %555 step %c1_i32_646 iter_args(%arg10 = %554) -> (vector<32x128xf32>)  : i32 {
      %c0_799 = arith.constant 0 : index
      %c0_800 = arith.constant 0 : index
      %668 = arith.index_cast %arg9 : i32 to index
      %c0_801 = arith.constant 0 : index
      %669 = vector.load %arg8[%c0_799, %c0_800, %668, %c0_801] : memref<2x3x8x128xf32, #tpu.memory_space<vmem>>, vector<1x1x1x128xf32>
      %670 = vector.shape_cast %669 : vector<1x1x1x128xf32> to vector<1x128xf32>
      %671 = vector.broadcast %670 : vector<1x128xf32> to vector<32x128xf32>
      %672 = arith.subf %553, %671 : vector<32x128xf32>
      %cst_802 = arith.constant -4.000000e+01 : f32
      %cst_803 = arith.constant 4.000000e+01 : f32
      %673 = vector.broadcast %cst_802 : f32 to vector<32x128xf32>
      %674 = arith.maximumf %673, %672 : vector<32x128xf32>
      %675 = vector.broadcast %cst_803 : f32 to vector<32x128xf32>
      %676 = arith.minimumf %675, %674 : vector<32x128xf32>
      %677 = math.exp %676 : vector<32x128xf32>
      %cst_804 = arith.constant 3.20383811 : f32
      %678 = vector.broadcast %cst_804 : f32 to vector<32x128xf32>
      %679 = arith.mulf %678, %677 : vector<32x128xf32>
      %cst_805 = arith.constant 3.77684784 : f32
      %680 = vector.broadcast %cst_805 : f32 to vector<32x128xf32>
      %681 = arith.mulf %680, %677 : vector<32x128xf32>
      %cst_806 = arith.constant 1.000000e+00 : f32
      %682 = vector.broadcast %cst_806 : f32 to vector<32x128xf32>
      %683 = arith.addf %681, %682 : vector<32x128xf32>
      %684 = arith.mulf %677, %677 : vector<32x128xf32>
      %685 = arith.addf %683, %684 : vector<32x128xf32>
      %686 = tpu.reciprocal %685 {approx = true} : vector<32x128xf32> -> vector<32x128xf32>
      %687 = arith.mulf %685, %686 : vector<32x128xf32>
      %cst_807 = arith.constant 2.000000e+00 : f32
      %688 = vector.broadcast %cst_807 : f32 to vector<32x128xf32>
      %689 = arith.subf %688, %687 : vector<32x128xf32>
      %690 = arith.mulf %686, %689 : vector<32x128xf32>
      %691 = arith.mulf %679, %690 : vector<32x128xf32>
      %692 = arith.addf %arg10, %691 : vector<32x128xf32>
      scf.yield %692 : vector<32x128xf32>
    }
    %c8_i32_647 = arith.constant 8 : i32
    %c0_648 = arith.constant 0 : index
    %c0_649 = arith.constant 0 : index
    %c192 = arith.constant 192 : index
    %c0_650 = arith.constant 0 : index
    %557 = vector.load %arg4[%c0_648, %c0_649, %c192, %c0_650] : memref<1x3x256x128xf32, #tpu.memory_space<vmem>>, vector<1x1x32x128xf32>
    %558 = vector.shape_cast %557 : vector<1x1x32x128xf32> to vector<32x128xf32>
    %559 = arith.addf %558, %556 : vector<32x128xf32>
    %c0_651 = arith.constant 0 : index
    %c0_652 = arith.constant 0 : index
    %c192_653 = arith.constant 192 : index
    %c0_654 = arith.constant 0 : index
    %560 = vector.load %arg4[%c0_651, %c0_652, %c192_653, %c0_654] : memref<1x3x256x128xf32, #tpu.memory_space<vmem>>, vector<1x1x32x128xf32>
    %561 = vector.shape_cast %560 : vector<1x1x32x128xf32> to vector<32x128xf32>
    %562 = vector.shape_cast %559 : vector<32x128xf32> to vector<1x1x32x128xf32>
    tpu.vector_store %arg4[%c0_651, %c0_652, %c192_653, %c0_654], %562 {strides = array<i32>} : memref<1x3x256x128xf32, #tpu.memory_space<vmem>>, vector<1x1x32x128xf32>,
    %cst_655 = arith.constant 0.000000e+00 : f32
    %563 = vector.broadcast %cst_655 : f32 to vector<32x128xf32>
    %c0_i32_656 = arith.constant 0 : i32
    %c8_i32_657 = arith.constant 8 : i32
    %564 = arith.addi %c0_i32_656, %c8_i32_657 : i32
    %c1_i32_658 = arith.constant 1 : i32
    %565 = scf.for %arg9 = %c0_i32_656 to %564 step %c1_i32_658 iter_args(%arg10 = %563) -> (vector<32x128xf32>)  : i32 {
      %c0_799 = arith.constant 0 : index
      %c1_800 = arith.constant 1 : index
      %668 = arith.index_cast %arg9 : i32 to index
      %c0_801 = arith.constant 0 : index
      %669 = vector.load %arg8[%c0_799, %c1_800, %668, %c0_801] : memref<2x3x8x128xf32, #tpu.memory_space<vmem>>, vector<1x1x1x128xf32>
      %670 = vector.shape_cast %669 : vector<1x1x1x128xf32> to vector<1x128xf32>
      %671 = vector.broadcast %670 : vector<1x128xf32> to vector<32x128xf32>
      %672 = arith.subf %553, %671 : vector<32x128xf32>
      %cst_802 = arith.constant -4.000000e+01 : f32
      %cst_803 = arith.constant 4.000000e+01 : f32
      %673 = vector.broadcast %cst_802 : f32 to vector<32x128xf32>
      %674 = arith.maximumf %673, %672 : vector<32x128xf32>
      %675 = vector.broadcast %cst_803 : f32 to vector<32x128xf32>
      %676 = arith.minimumf %675, %674 : vector<32x128xf32>
      %677 = math.exp %676 : vector<32x128xf32>
      %cst_804 = arith.constant 3.20383811 : f32
      %678 = vector.broadcast %cst_804 : f32 to vector<32x128xf32>
      %679 = arith.mulf %678, %677 : vector<32x128xf32>
      %cst_805 = arith.constant 3.77684784 : f32
      %680 = vector.broadcast %cst_805 : f32 to vector<32x128xf32>
      %681 = arith.mulf %680, %677 : vector<32x128xf32>
      %cst_806 = arith.constant 1.000000e+00 : f32
      %682 = vector.broadcast %cst_806 : f32 to vector<32x128xf32>
      %683 = arith.addf %681, %682 : vector<32x128xf32>
      %684 = arith.mulf %677, %677 : vector<32x128xf32>
      %685 = arith.addf %683, %684 : vector<32x128xf32>
      %686 = tpu.reciprocal %685 {approx = true} : vector<32x128xf32> -> vector<32x128xf32>
      %687 = arith.mulf %685, %686 : vector<32x128xf32>
      %cst_807 = arith.constant 2.000000e+00 : f32
      %688 = vector.broadcast %cst_807 : f32 to vector<32x128xf32>
      %689 = arith.subf %688, %687 : vector<32x128xf32>
      %690 = arith.mulf %686, %689 : vector<32x128xf32>
      %691 = arith.mulf %679, %690 : vector<32x128xf32>
      %692 = arith.addf %arg10, %691 : vector<32x128xf32>
      scf.yield %692 : vector<32x128xf32>
    }
    %c8_i32_659 = arith.constant 8 : i32
    %c0_660 = arith.constant 0 : index
    %c1_661 = arith.constant 1 : index
    %c192_662 = arith.constant 192 : index
    %c0_663 = arith.constant 0 : index
    %566 = vector.load %arg4[%c0_660, %c1_661, %c192_662, %c0_663] : memref<1x3x256x128xf32, #tpu.memory_space<vmem>>, vector<1x1x32x128xf32>
    %567 = vector.shape_cast %566 : vector<1x1x32x128xf32> to vector<32x128xf32>
    %568 = arith.addf %567, %565 : vector<32x128xf32>
    %c0_664 = arith.constant 0 : index
    %c1_665 = arith.constant 1 : index
    %c192_666 = arith.constant 192 : index
    %c0_667 = arith.constant 0 : index
    %569 = vector.load %arg4[%c0_664, %c1_665, %c192_666, %c0_667] : memref<1x3x256x128xf32, #tpu.memory_space<vmem>>, vector<1x1x32x128xf32>
    %570 = vector.shape_cast %569 : vector<1x1x32x128xf32> to vector<32x128xf32>
    %571 = vector.shape_cast %568 : vector<32x128xf32> to vector<1x1x32x128xf32>
    tpu.vector_store %arg4[%c0_664, %c1_665, %c192_666, %c0_667], %571 {strides = array<i32>} : memref<1x3x256x128xf32, #tpu.memory_space<vmem>>, vector<1x1x32x128xf32>,
    %cst_668 = arith.constant 0.000000e+00 : f32
    %572 = vector.broadcast %cst_668 : f32 to vector<32x128xf32>
    %c0_i32_669 = arith.constant 0 : i32
    %c8_i32_670 = arith.constant 8 : i32
    %573 = arith.addi %c0_i32_669, %c8_i32_670 : i32
    %c1_i32_671 = arith.constant 1 : i32
    %574 = scf.for %arg9 = %c0_i32_669 to %573 step %c1_i32_671 iter_args(%arg10 = %572) -> (vector<32x128xf32>)  : i32 {
      %c0_799 = arith.constant 0 : index
      %c2_800 = arith.constant 2 : index
      %668 = arith.index_cast %arg9 : i32 to index
      %c0_801 = arith.constant 0 : index
      %669 = vector.load %arg8[%c0_799, %c2_800, %668, %c0_801] : memref<2x3x8x128xf32, #tpu.memory_space<vmem>>, vector<1x1x1x128xf32>
      %670 = vector.shape_cast %669 : vector<1x1x1x128xf32> to vector<1x128xf32>
      %671 = vector.broadcast %670 : vector<1x128xf32> to vector<32x128xf32>
      %672 = arith.subf %553, %671 : vector<32x128xf32>
      %cst_802 = arith.constant -4.000000e+01 : f32
      %cst_803 = arith.constant 4.000000e+01 : f32
      %673 = vector.broadcast %cst_802 : f32 to vector<32x128xf32>
      %674 = arith.maximumf %673, %672 : vector<32x128xf32>
      %675 = vector.broadcast %cst_803 : f32 to vector<32x128xf32>
      %676 = arith.minimumf %675, %674 : vector<32x128xf32>
      %677 = math.exp %676 : vector<32x128xf32>
      %cst_804 = arith.constant 3.20383811 : f32
      %678 = vector.broadcast %cst_804 : f32 to vector<32x128xf32>
      %679 = arith.mulf %678, %677 : vector<32x128xf32>
      %cst_805 = arith.constant 3.77684784 : f32
      %680 = vector.broadcast %cst_805 : f32 to vector<32x128xf32>
      %681 = arith.mulf %680, %677 : vector<32x128xf32>
      %cst_806 = arith.constant 1.000000e+00 : f32
      %682 = vector.broadcast %cst_806 : f32 to vector<32x128xf32>
      %683 = arith.addf %681, %682 : vector<32x128xf32>
      %684 = arith.mulf %677, %677 : vector<32x128xf32>
      %685 = arith.addf %683, %684 : vector<32x128xf32>
      %686 = tpu.reciprocal %685 {approx = true} : vector<32x128xf32> -> vector<32x128xf32>
      %687 = arith.mulf %685, %686 : vector<32x128xf32>
      %cst_807 = arith.constant 2.000000e+00 : f32
      %688 = vector.broadcast %cst_807 : f32 to vector<32x128xf32>
      %689 = arith.subf %688, %687 : vector<32x128xf32>
      %690 = arith.mulf %686, %689 : vector<32x128xf32>
      %691 = arith.mulf %679, %690 : vector<32x128xf32>
      %692 = arith.addf %arg10, %691 : vector<32x128xf32>
      scf.yield %692 : vector<32x128xf32>
    }
    %c8_i32_672 = arith.constant 8 : i32
    %c0_673 = arith.constant 0 : index
    %c2_674 = arith.constant 2 : index
    %c192_675 = arith.constant 192 : index
    %c0_676 = arith.constant 0 : index
    %575 = vector.load %arg4[%c0_673, %c2_674, %c192_675, %c0_676] : memref<1x3x256x128xf32, #tpu.memory_space<vmem>>, vector<1x1x32x128xf32>
    %576 = vector.shape_cast %575 : vector<1x1x32x128xf32> to vector<32x128xf32>
    %577 = arith.addf %576, %574 : vector<32x128xf32>
    %c0_677 = arith.constant 0 : index
    %c2_678 = arith.constant 2 : index
    %c192_679 = arith.constant 192 : index
    %c0_680 = arith.constant 0 : index
    %578 = vector.load %arg4[%c0_677, %c2_678, %c192_679, %c0_680] : memref<1x3x256x128xf32, #tpu.memory_space<vmem>>, vector<1x1x32x128xf32>
    %579 = vector.shape_cast %578 : vector<1x1x32x128xf32> to vector<32x128xf32>
    %580 = vector.shape_cast %577 : vector<32x128xf32> to vector<1x1x32x128xf32>
    tpu.vector_store %arg4[%c0_677, %c2_678, %c192_679, %c0_680], %580 {strides = array<i32>} : memref<1x3x256x128xf32, #tpu.memory_space<vmem>>, vector<1x1x32x128xf32>,
    %cst_681 = arith.constant 0.000000e+00 : f32
    %581 = vector.broadcast %cst_681 : f32 to vector<32x128xf32>
    %c0_i32_682 = arith.constant 0 : i32
    %c8_i32_683 = arith.constant 8 : i32
    %582 = arith.addi %c0_i32_682, %c8_i32_683 : i32
    %c1_i32_684 = arith.constant 1 : i32
    %583 = scf.for %arg9 = %c0_i32_682 to %582 step %c1_i32_684 iter_args(%arg10 = %581) -> (vector<32x128xf32>)  : i32 {
      %c1_799 = arith.constant 1 : index
      %c0_800 = arith.constant 0 : index
      %668 = arith.index_cast %arg9 : i32 to index
      %c0_801 = arith.constant 0 : index
      %669 = vector.load %arg8[%c1_799, %c0_800, %668, %c0_801] : memref<2x3x8x128xf32, #tpu.memory_space<vmem>>, vector<1x1x1x128xf32>
      %670 = vector.shape_cast %669 : vector<1x1x1x128xf32> to vector<1x128xf32>
      %671 = vector.broadcast %670 : vector<1x128xf32> to vector<32x128xf32>
      %672 = arith.subf %553, %671 : vector<32x128xf32>
      %cst_802 = arith.constant -4.000000e+01 : f32
      %cst_803 = arith.constant 4.000000e+01 : f32
      %673 = vector.broadcast %cst_802 : f32 to vector<32x128xf32>
      %674 = arith.maximumf %673, %672 : vector<32x128xf32>
      %675 = vector.broadcast %cst_803 : f32 to vector<32x128xf32>
      %676 = arith.minimumf %675, %674 : vector<32x128xf32>
      %677 = math.exp %676 : vector<32x128xf32>
      %cst_804 = arith.constant 3.20383811 : f32
      %678 = vector.broadcast %cst_804 : f32 to vector<32x128xf32>
      %679 = arith.mulf %678, %677 : vector<32x128xf32>
      %cst_805 = arith.constant 3.77684784 : f32
      %680 = vector.broadcast %cst_805 : f32 to vector<32x128xf32>
      %681 = arith.mulf %680, %677 : vector<32x128xf32>
      %cst_806 = arith.constant 1.000000e+00 : f32
      %682 = vector.broadcast %cst_806 : f32 to vector<32x128xf32>
      %683 = arith.addf %681, %682 : vector<32x128xf32>
      %684 = arith.mulf %677, %677 : vector<32x128xf32>
      %685 = arith.addf %683, %684 : vector<32x128xf32>
      %686 = tpu.reciprocal %685 {approx = true} : vector<32x128xf32> -> vector<32x128xf32>
      %687 = arith.mulf %685, %686 : vector<32x128xf32>
      %cst_807 = arith.constant 2.000000e+00 : f32
      %688 = vector.broadcast %cst_807 : f32 to vector<32x128xf32>
      %689 = arith.subf %688, %687 : vector<32x128xf32>
      %690 = arith.mulf %686, %689 : vector<32x128xf32>
      %691 = arith.mulf %679, %690 : vector<32x128xf32>
      %692 = arith.addf %arg10, %691 : vector<32x128xf32>
      scf.yield %692 : vector<32x128xf32>
    }
    %c8_i32_685 = arith.constant 8 : i32
    %c0_686 = arith.constant 0 : index
    %c0_687 = arith.constant 0 : index
    %c192_688 = arith.constant 192 : index
    %c0_689 = arith.constant 0 : index
    %584 = vector.load %arg5[%c0_686, %c0_687, %c192_688, %c0_689] : memref<1x3x256x128xf32, #tpu.memory_space<vmem>>, vector<1x1x32x128xf32>
    %585 = vector.shape_cast %584 : vector<1x1x32x128xf32> to vector<32x128xf32>
    %586 = arith.addf %585, %583 : vector<32x128xf32>
    %c0_690 = arith.constant 0 : index
    %c0_691 = arith.constant 0 : index
    %c192_692 = arith.constant 192 : index
    %c0_693 = arith.constant 0 : index
    %587 = vector.load %arg5[%c0_690, %c0_691, %c192_692, %c0_693] : memref<1x3x256x128xf32, #tpu.memory_space<vmem>>, vector<1x1x32x128xf32>
    %588 = vector.shape_cast %587 : vector<1x1x32x128xf32> to vector<32x128xf32>
    %589 = vector.shape_cast %586 : vector<32x128xf32> to vector<1x1x32x128xf32>
    tpu.vector_store %arg5[%c0_690, %c0_691, %c192_692, %c0_693], %589 {strides = array<i32>} : memref<1x3x256x128xf32, #tpu.memory_space<vmem>>, vector<1x1x32x128xf32>,
    %cst_694 = arith.constant 0.000000e+00 : f32
    %590 = vector.broadcast %cst_694 : f32 to vector<32x128xf32>
    %c0_i32_695 = arith.constant 0 : i32
    %c8_i32_696 = arith.constant 8 : i32
    %591 = arith.addi %c0_i32_695, %c8_i32_696 : i32
    %c1_i32_697 = arith.constant 1 : i32
    %592 = scf.for %arg9 = %c0_i32_695 to %591 step %c1_i32_697 iter_args(%arg10 = %590) -> (vector<32x128xf32>)  : i32 {
      %c1_799 = arith.constant 1 : index
      %c1_800 = arith.constant 1 : index
      %668 = arith.index_cast %arg9 : i32 to index
      %c0_801 = arith.constant 0 : index
      %669 = vector.load %arg8[%c1_799, %c1_800, %668, %c0_801] : memref<2x3x8x128xf32, #tpu.memory_space<vmem>>, vector<1x1x1x128xf32>
      %670 = vector.shape_cast %669 : vector<1x1x1x128xf32> to vector<1x128xf32>
      %671 = vector.broadcast %670 : vector<1x128xf32> to vector<32x128xf32>
      %672 = arith.subf %553, %671 : vector<32x128xf32>
      %cst_802 = arith.constant -4.000000e+01 : f32
      %cst_803 = arith.constant 4.000000e+01 : f32
      %673 = vector.broadcast %cst_802 : f32 to vector<32x128xf32>
      %674 = arith.maximumf %673, %672 : vector<32x128xf32>
      %675 = vector.broadcast %cst_803 : f32 to vector<32x128xf32>
      %676 = arith.minimumf %675, %674 : vector<32x128xf32>
      %677 = math.exp %676 : vector<32x128xf32>
      %cst_804 = arith.constant 3.20383811 : f32
      %678 = vector.broadcast %cst_804 : f32 to vector<32x128xf32>
      %679 = arith.mulf %678, %677 : vector<32x128xf32>
      %cst_805 = arith.constant 3.77684784 : f32
      %680 = vector.broadcast %cst_805 : f32 to vector<32x128xf32>
      %681 = arith.mulf %680, %677 : vector<32x128xf32>
      %cst_806 = arith.constant 1.000000e+00 : f32
      %682 = vector.broadcast %cst_806 : f32 to vector<32x128xf32>
      %683 = arith.addf %681, %682 : vector<32x128xf32>
      %684 = arith.mulf %677, %677 : vector<32x128xf32>
      %685 = arith.addf %683, %684 : vector<32x128xf32>
      %686 = tpu.reciprocal %685 {approx = true} : vector<32x128xf32> -> vector<32x128xf32>
      %687 = arith.mulf %685, %686 : vector<32x128xf32>
      %cst_807 = arith.constant 2.000000e+00 : f32
      %688 = vector.broadcast %cst_807 : f32 to vector<32x128xf32>
      %689 = arith.subf %688, %687 : vector<32x128xf32>
      %690 = arith.mulf %686, %689 : vector<32x128xf32>
      %691 = arith.mulf %679, %690 : vector<32x128xf32>
      %692 = arith.addf %arg10, %691 : vector<32x128xf32>
      scf.yield %692 : vector<32x128xf32>
    }
    %c8_i32_698 = arith.constant 8 : i32
    %c0_699 = arith.constant 0 : index
    %c1_700 = arith.constant 1 : index
    %c192_701 = arith.constant 192 : index
    %c0_702 = arith.constant 0 : index
    %593 = vector.load %arg5[%c0_699, %c1_700, %c192_701, %c0_702] : memref<1x3x256x128xf32, #tpu.memory_space<vmem>>, vector<1x1x32x128xf32>
    %594 = vector.shape_cast %593 : vector<1x1x32x128xf32> to vector<32x128xf32>
    %595 = arith.addf %594, %592 : vector<32x128xf32>
    %c0_703 = arith.constant 0 : index
    %c1_704 = arith.constant 1 : index
    %c192_705 = arith.constant 192 : index
    %c0_706 = arith.constant 0 : index
    %596 = vector.load %arg5[%c0_703, %c1_704, %c192_705, %c0_706] : memref<1x3x256x128xf32, #tpu.memory_space<vmem>>, vector<1x1x32x128xf32>
    %597 = vector.shape_cast %596 : vector<1x1x32x128xf32> to vector<32x128xf32>
    %598 = vector.shape_cast %595 : vector<32x128xf32> to vector<1x1x32x128xf32>
    tpu.vector_store %arg5[%c0_703, %c1_704, %c192_705, %c0_706], %598 {strides = array<i32>} : memref<1x3x256x128xf32, #tpu.memory_space<vmem>>, vector<1x1x32x128xf32>,
    %cst_707 = arith.constant 0.000000e+00 : f32
    %599 = vector.broadcast %cst_707 : f32 to vector<32x128xf32>
    %c0_i32_708 = arith.constant 0 : i32
    %c8_i32_709 = arith.constant 8 : i32
    %600 = arith.addi %c0_i32_708, %c8_i32_709 : i32
    %c1_i32_710 = arith.constant 1 : i32
    %601 = scf.for %arg9 = %c0_i32_708 to %600 step %c1_i32_710 iter_args(%arg10 = %599) -> (vector<32x128xf32>)  : i32 {
      %c1_799 = arith.constant 1 : index
      %c2_800 = arith.constant 2 : index
      %668 = arith.index_cast %arg9 : i32 to index
      %c0_801 = arith.constant 0 : index
      %669 = vector.load %arg8[%c1_799, %c2_800, %668, %c0_801] : memref<2x3x8x128xf32, #tpu.memory_space<vmem>>, vector<1x1x1x128xf32>
      %670 = vector.shape_cast %669 : vector<1x1x1x128xf32> to vector<1x128xf32>
      %671 = vector.broadcast %670 : vector<1x128xf32> to vector<32x128xf32>
      %672 = arith.subf %553, %671 : vector<32x128xf32>
      %cst_802 = arith.constant -4.000000e+01 : f32
      %cst_803 = arith.constant 4.000000e+01 : f32
      %673 = vector.broadcast %cst_802 : f32 to vector<32x128xf32>
      %674 = arith.maximumf %673, %672 : vector<32x128xf32>
      %675 = vector.broadcast %cst_803 : f32 to vector<32x128xf32>
      %676 = arith.minimumf %675, %674 : vector<32x128xf32>
      %677 = math.exp %676 : vector<32x128xf32>
      %cst_804 = arith.constant 3.20383811 : f32
      %678 = vector.broadcast %cst_804 : f32 to vector<32x128xf32>
      %679 = arith.mulf %678, %677 : vector<32x128xf32>
      %cst_805 = arith.constant 3.77684784 : f32
      %680 = vector.broadcast %cst_805 : f32 to vector<32x128xf32>
      %681 = arith.mulf %680, %677 : vector<32x128xf32>
      %cst_806 = arith.constant 1.000000e+00 : f32
      %682 = vector.broadcast %cst_806 : f32 to vector<32x128xf32>
      %683 = arith.addf %681, %682 : vector<32x128xf32>
      %684 = arith.mulf %677, %677 : vector<32x128xf32>
      %685 = arith.addf %683, %684 : vector<32x128xf32>
      %686 = tpu.reciprocal %685 {approx = true} : vector<32x128xf32> -> vector<32x128xf32>
      %687 = arith.mulf %685, %686 : vector<32x128xf32>
      %cst_807 = arith.constant 2.000000e+00 : f32
      %688 = vector.broadcast %cst_807 : f32 to vector<32x128xf32>
      %689 = arith.subf %688, %687 : vector<32x128xf32>
      %690 = arith.mulf %686, %689 : vector<32x128xf32>
      %691 = arith.mulf %679, %690 : vector<32x128xf32>
      %692 = arith.addf %arg10, %691 : vector<32x128xf32>
      scf.yield %692 : vector<32x128xf32>
    }
    %c8_i32_711 = arith.constant 8 : i32
    %c0_712 = arith.constant 0 : index
    %c2_713 = arith.constant 2 : index
    %c192_714 = arith.constant 192 : index
    %c0_715 = arith.constant 0 : index
    %602 = vector.load %arg5[%c0_712, %c2_713, %c192_714, %c0_715] : memref<1x3x256x128xf32, #tpu.memory_space<vmem>>, vector<1x1x32x128xf32>
    %603 = vector.shape_cast %602 : vector<1x1x32x128xf32> to vector<32x128xf32>
    %604 = arith.addf %603, %601 : vector<32x128xf32>
    %c0_716 = arith.constant 0 : index
    %c2_717 = arith.constant 2 : index
    %c192_718 = arith.constant 192 : index
    %c0_719 = arith.constant 0 : index
    %605 = vector.load %arg5[%c0_716, %c2_717, %c192_718, %c0_719] : memref<1x3x256x128xf32, #tpu.memory_space<vmem>>, vector<1x1x32x128xf32>
    %606 = vector.shape_cast %605 : vector<1x1x32x128xf32> to vector<32x128xf32>
    %607 = vector.shape_cast %604 : vector<32x128xf32> to vector<1x1x32x128xf32>
    tpu.vector_store %arg5[%c0_716, %c2_717, %c192_718, %c0_719], %607 {strides = array<i32>} : memref<1x3x256x128xf32, #tpu.memory_space<vmem>>, vector<1x1x32x128xf32>,
    %608 = tpu.iota {dimensions = array<i32: 0>} : vector<32x128xi32>
    %609 = arith.sitofp %608 : vector<32x128xi32> to vector<32x128xf32>
    %cst_720 = arith.constant 2.245000e+02 : f32
    %610 = vector.broadcast %cst_720 : f32 to vector<32x128xf32>
    %611 = arith.addf %609, %610 : vector<32x128xf32>
    %cst_721 = arith.constant 2.500000e+00 : f32
    %612 = vector.broadcast %cst_721 : f32 to vector<32x128xf32>
    %613 = arith.mulf %611, %612 : vector<32x128xf32>
    %cst_722 = arith.constant 0.000000e+00 : f32
    %614 = vector.broadcast %cst_722 : f32 to vector<32x128xf32>
    %c0_i32_723 = arith.constant 0 : i32
    %c8_i32_724 = arith.constant 8 : i32
    %615 = arith.addi %c0_i32_723, %c8_i32_724 : i32
    %c1_i32_725 = arith.constant 1 : i32
    %616 = scf.for %arg9 = %c0_i32_723 to %615 step %c1_i32_725 iter_args(%arg10 = %614) -> (vector<32x128xf32>)  : i32 {
      %c0_799 = arith.constant 0 : index
      %c0_800 = arith.constant 0 : index
      %668 = arith.index_cast %arg9 : i32 to index
      %c0_801 = arith.constant 0 : index
      %669 = vector.load %arg8[%c0_799, %c0_800, %668, %c0_801] : memref<2x3x8x128xf32, #tpu.memory_space<vmem>>, vector<1x1x1x128xf32>
      %670 = vector.shape_cast %669 : vector<1x1x1x128xf32> to vector<1x128xf32>
      %671 = vector.broadcast %670 : vector<1x128xf32> to vector<32x128xf32>
      %672 = arith.subf %613, %671 : vector<32x128xf32>
      %cst_802 = arith.constant -4.000000e+01 : f32
      %cst_803 = arith.constant 4.000000e+01 : f32
      %673 = vector.broadcast %cst_802 : f32 to vector<32x128xf32>
      %674 = arith.maximumf %673, %672 : vector<32x128xf32>
      %675 = vector.broadcast %cst_803 : f32 to vector<32x128xf32>
      %676 = arith.minimumf %675, %674 : vector<32x128xf32>
      %677 = math.exp %676 : vector<32x128xf32>
      %cst_804 = arith.constant 3.20383811 : f32
      %678 = vector.broadcast %cst_804 : f32 to vector<32x128xf32>
      %679 = arith.mulf %678, %677 : vector<32x128xf32>
      %cst_805 = arith.constant 3.77684784 : f32
      %680 = vector.broadcast %cst_805 : f32 to vector<32x128xf32>
      %681 = arith.mulf %680, %677 : vector<32x128xf32>
      %cst_806 = arith.constant 1.000000e+00 : f32
      %682 = vector.broadcast %cst_806 : f32 to vector<32x128xf32>
      %683 = arith.addf %681, %682 : vector<32x128xf32>
      %684 = arith.mulf %677, %677 : vector<32x128xf32>
      %685 = arith.addf %683, %684 : vector<32x128xf32>
      %686 = tpu.reciprocal %685 {approx = true} : vector<32x128xf32> -> vector<32x128xf32>
      %687 = arith.mulf %685, %686 : vector<32x128xf32>
      %cst_807 = arith.constant 2.000000e+00 : f32
      %688 = vector.broadcast %cst_807 : f32 to vector<32x128xf32>
      %689 = arith.subf %688, %687 : vector<32x128xf32>
      %690 = arith.mulf %686, %689 : vector<32x128xf32>
      %691 = arith.mulf %679, %690 : vector<32x128xf32>
      %692 = arith.addf %arg10, %691 : vector<32x128xf32>
      scf.yield %692 : vector<32x128xf32>
    }
    %c8_i32_726 = arith.constant 8 : i32
    %c0_727 = arith.constant 0 : index
    %c0_728 = arith.constant 0 : index
    %c224 = arith.constant 224 : index
    %c0_729 = arith.constant 0 : index
    %617 = vector.load %arg4[%c0_727, %c0_728, %c224, %c0_729] : memref<1x3x256x128xf32, #tpu.memory_space<vmem>>, vector<1x1x32x128xf32>
    %618 = vector.shape_cast %617 : vector<1x1x32x128xf32> to vector<32x128xf32>
    %619 = arith.addf %618, %616 : vector<32x128xf32>
    %c0_730 = arith.constant 0 : index
    %c0_731 = arith.constant 0 : index
    %c224_732 = arith.constant 224 : index
    %c0_733 = arith.constant 0 : index
    %620 = vector.load %arg4[%c0_730, %c0_731, %c224_732, %c0_733] : memref<1x3x256x128xf32, #tpu.memory_space<vmem>>, vector<1x1x32x128xf32>
    %621 = vector.shape_cast %620 : vector<1x1x32x128xf32> to vector<32x128xf32>
    %622 = vector.shape_cast %619 : vector<32x128xf32> to vector<1x1x32x128xf32>
    tpu.vector_store %arg4[%c0_730, %c0_731, %c224_732, %c0_733], %622 {strides = array<i32>} : memref<1x3x256x128xf32, #tpu.memory_space<vmem>>, vector<1x1x32x128xf32>,
    %cst_734 = arith.constant 0.000000e+00 : f32
    %623 = vector.broadcast %cst_734 : f32 to vector<32x128xf32>
    %c0_i32_735 = arith.constant 0 : i32
    %c8_i32_736 = arith.constant 8 : i32
    %624 = arith.addi %c0_i32_735, %c8_i32_736 : i32
    %c1_i32_737 = arith.constant 1 : i32
    %625 = scf.for %arg9 = %c0_i32_735 to %624 step %c1_i32_737 iter_args(%arg10 = %623) -> (vector<32x128xf32>)  : i32 {
      %c0_799 = arith.constant 0 : index
      %c1_800 = arith.constant 1 : index
      %668 = arith.index_cast %arg9 : i32 to index
      %c0_801 = arith.constant 0 : index
      %669 = vector.load %arg8[%c0_799, %c1_800, %668, %c0_801] : memref<2x3x8x128xf32, #tpu.memory_space<vmem>>, vector<1x1x1x128xf32>
      %670 = vector.shape_cast %669 : vector<1x1x1x128xf32> to vector<1x128xf32>
      %671 = vector.broadcast %670 : vector<1x128xf32> to vector<32x128xf32>
      %672 = arith.subf %613, %671 : vector<32x128xf32>
      %cst_802 = arith.constant -4.000000e+01 : f32
      %cst_803 = arith.constant 4.000000e+01 : f32
      %673 = vector.broadcast %cst_802 : f32 to vector<32x128xf32>
      %674 = arith.maximumf %673, %672 : vector<32x128xf32>
      %675 = vector.broadcast %cst_803 : f32 to vector<32x128xf32>
      %676 = arith.minimumf %675, %674 : vector<32x128xf32>
      %677 = math.exp %676 : vector<32x128xf32>
      %cst_804 = arith.constant 3.20383811 : f32
      %678 = vector.broadcast %cst_804 : f32 to vector<32x128xf32>
      %679 = arith.mulf %678, %677 : vector<32x128xf32>
      %cst_805 = arith.constant 3.77684784 : f32
      %680 = vector.broadcast %cst_805 : f32 to vector<32x128xf32>
      %681 = arith.mulf %680, %677 : vector<32x128xf32>
      %cst_806 = arith.constant 1.000000e+00 : f32
      %682 = vector.broadcast %cst_806 : f32 to vector<32x128xf32>
      %683 = arith.addf %681, %682 : vector<32x128xf32>
      %684 = arith.mulf %677, %677 : vector<32x128xf32>
      %685 = arith.addf %683, %684 : vector<32x128xf32>
      %686 = tpu.reciprocal %685 {approx = true} : vector<32x128xf32> -> vector<32x128xf32>
      %687 = arith.mulf %685, %686 : vector<32x128xf32>
      %cst_807 = arith.constant 2.000000e+00 : f32
      %688 = vector.broadcast %cst_807 : f32 to vector<32x128xf32>
      %689 = arith.subf %688, %687 : vector<32x128xf32>
      %690 = arith.mulf %686, %689 : vector<32x128xf32>
      %691 = arith.mulf %679, %690 : vector<32x128xf32>
      %692 = arith.addf %arg10, %691 : vector<32x128xf32>
      scf.yield %692 : vector<32x128xf32>
    }
    %c8_i32_738 = arith.constant 8 : i32
    %c0_739 = arith.constant 0 : index
    %c1_740 = arith.constant 1 : index
    %c224_741 = arith.constant 224 : index
    %c0_742 = arith.constant 0 : index
    %626 = vector.load %arg4[%c0_739, %c1_740, %c224_741, %c0_742] : memref<1x3x256x128xf32, #tpu.memory_space<vmem>>, vector<1x1x32x128xf32>
    %627 = vector.shape_cast %626 : vector<1x1x32x128xf32> to vector<32x128xf32>
    %628 = arith.addf %627, %625 : vector<32x128xf32>
    %c0_743 = arith.constant 0 : index
    %c1_744 = arith.constant 1 : index
    %c224_745 = arith.constant 224 : index
    %c0_746 = arith.constant 0 : index
    %629 = vector.load %arg4[%c0_743, %c1_744, %c224_745, %c0_746] : memref<1x3x256x128xf32, #tpu.memory_space<vmem>>, vector<1x1x32x128xf32>
    %630 = vector.shape_cast %629 : vector<1x1x32x128xf32> to vector<32x128xf32>
    %631 = vector.shape_cast %628 : vector<32x128xf32> to vector<1x1x32x128xf32>
    tpu.vector_store %arg4[%c0_743, %c1_744, %c224_745, %c0_746], %631 {strides = array<i32>} : memref<1x3x256x128xf32, #tpu.memory_space<vmem>>, vector<1x1x32x128xf32>,
    %cst_747 = arith.constant 0.000000e+00 : f32
    %632 = vector.broadcast %cst_747 : f32 to vector<32x128xf32>
    %c0_i32_748 = arith.constant 0 : i32
    %c8_i32_749 = arith.constant 8 : i32
    %633 = arith.addi %c0_i32_748, %c8_i32_749 : i32
    %c1_i32_750 = arith.constant 1 : i32
    %634 = scf.for %arg9 = %c0_i32_748 to %633 step %c1_i32_750 iter_args(%arg10 = %632) -> (vector<32x128xf32>)  : i32 {
      %c0_799 = arith.constant 0 : index
      %c2_800 = arith.constant 2 : index
      %668 = arith.index_cast %arg9 : i32 to index
      %c0_801 = arith.constant 0 : index
      %669 = vector.load %arg8[%c0_799, %c2_800, %668, %c0_801] : memref<2x3x8x128xf32, #tpu.memory_space<vmem>>, vector<1x1x1x128xf32>
      %670 = vector.shape_cast %669 : vector<1x1x1x128xf32> to vector<1x128xf32>
      %671 = vector.broadcast %670 : vector<1x128xf32> to vector<32x128xf32>
      %672 = arith.subf %613, %671 : vector<32x128xf32>
      %cst_802 = arith.constant -4.000000e+01 : f32
      %cst_803 = arith.constant 4.000000e+01 : f32
      %673 = vector.broadcast %cst_802 : f32 to vector<32x128xf32>
      %674 = arith.maximumf %673, %672 : vector<32x128xf32>
      %675 = vector.broadcast %cst_803 : f32 to vector<32x128xf32>
      %676 = arith.minimumf %675, %674 : vector<32x128xf32>
      %677 = math.exp %676 : vector<32x128xf32>
      %cst_804 = arith.constant 3.20383811 : f32
      %678 = vector.broadcast %cst_804 : f32 to vector<32x128xf32>
      %679 = arith.mulf %678, %677 : vector<32x128xf32>
      %cst_805 = arith.constant 3.77684784 : f32
      %680 = vector.broadcast %cst_805 : f32 to vector<32x128xf32>
      %681 = arith.mulf %680, %677 : vector<32x128xf32>
      %cst_806 = arith.constant 1.000000e+00 : f32
      %682 = vector.broadcast %cst_806 : f32 to vector<32x128xf32>
      %683 = arith.addf %681, %682 : vector<32x128xf32>
      %684 = arith.mulf %677, %677 : vector<32x128xf32>
      %685 = arith.addf %683, %684 : vector<32x128xf32>
      %686 = tpu.reciprocal %685 {approx = true} : vector<32x128xf32> -> vector<32x128xf32>
      %687 = arith.mulf %685, %686 : vector<32x128xf32>
      %cst_807 = arith.constant 2.000000e+00 : f32
      %688 = vector.broadcast %cst_807 : f32 to vector<32x128xf32>
      %689 = arith.subf %688, %687 : vector<32x128xf32>
      %690 = arith.mulf %686, %689 : vector<32x128xf32>
      %691 = arith.mulf %679, %690 : vector<32x128xf32>
      %692 = arith.addf %arg10, %691 : vector<32x128xf32>
      scf.yield %692 : vector<32x128xf32>
    }
    %c8_i32_751 = arith.constant 8 : i32
    %c0_752 = arith.constant 0 : index
    %c2_753 = arith.constant 2 : index
    %c224_754 = arith.constant 224 : index
    %c0_755 = arith.constant 0 : index
    %635 = vector.load %arg4[%c0_752, %c2_753, %c224_754, %c0_755] : memref<1x3x256x128xf32, #tpu.memory_space<vmem>>, vector<1x1x32x128xf32>
    %636 = vector.shape_cast %635 : vector<1x1x32x128xf32> to vector<32x128xf32>
    %637 = arith.addf %636, %634 : vector<32x128xf32>
    %c0_756 = arith.constant 0 : index
    %c2_757 = arith.constant 2 : index
    %c224_758 = arith.constant 224 : index
    %c0_759 = arith.constant 0 : index
    %638 = vector.load %arg4[%c0_756, %c2_757, %c224_758, %c0_759] : memref<1x3x256x128xf32, #tpu.memory_space<vmem>>, vector<1x1x32x128xf32>
    %639 = vector.shape_cast %638 : vector<1x1x32x128xf32> to vector<32x128xf32>
    %640 = vector.shape_cast %637 : vector<32x128xf32> to vector<1x1x32x128xf32>
    tpu.vector_store %arg4[%c0_756, %c2_757, %c224_758, %c0_759], %640 {strides = array<i32>} : memref<1x3x256x128xf32, #tpu.memory_space<vmem>>, vector<1x1x32x128xf32>,
    %cst_760 = arith.constant 0.000000e+00 : f32
    %641 = vector.broadcast %cst_760 : f32 to vector<32x128xf32>
    %c0_i32_761 = arith.constant 0 : i32
    %c8_i32_762 = arith.constant 8 : i32
    %642 = arith.addi %c0_i32_761, %c8_i32_762 : i32
    %c1_i32_763 = arith.constant 1 : i32
    %643 = scf.for %arg9 = %c0_i32_761 to %642 step %c1_i32_763 iter_args(%arg10 = %641) -> (vector<32x128xf32>)  : i32 {
      %c1_799 = arith.constant 1 : index
      %c0_800 = arith.constant 0 : index
      %668 = arith.index_cast %arg9 : i32 to index
      %c0_801 = arith.constant 0 : index
      %669 = vector.load %arg8[%c1_799, %c0_800, %668, %c0_801] : memref<2x3x8x128xf32, #tpu.memory_space<vmem>>, vector<1x1x1x128xf32>
      %670 = vector.shape_cast %669 : vector<1x1x1x128xf32> to vector<1x128xf32>
      %671 = vector.broadcast %670 : vector<1x128xf32> to vector<32x128xf32>
      %672 = arith.subf %613, %671 : vector<32x128xf32>
      %cst_802 = arith.constant -4.000000e+01 : f32
      %cst_803 = arith.constant 4.000000e+01 : f32
      %673 = vector.broadcast %cst_802 : f32 to vector<32x128xf32>
      %674 = arith.maximumf %673, %672 : vector<32x128xf32>
      %675 = vector.broadcast %cst_803 : f32 to vector<32x128xf32>
      %676 = arith.minimumf %675, %674 : vector<32x128xf32>
      %677 = math.exp %676 : vector<32x128xf32>
      %cst_804 = arith.constant 3.20383811 : f32
      %678 = vector.broadcast %cst_804 : f32 to vector<32x128xf32>
      %679 = arith.mulf %678, %677 : vector<32x128xf32>
      %cst_805 = arith.constant 3.77684784 : f32
      %680 = vector.broadcast %cst_805 : f32 to vector<32x128xf32>
      %681 = arith.mulf %680, %677 : vector<32x128xf32>
      %cst_806 = arith.constant 1.000000e+00 : f32
      %682 = vector.broadcast %cst_806 : f32 to vector<32x128xf32>
      %683 = arith.addf %681, %682 : vector<32x128xf32>
      %684 = arith.mulf %677, %677 : vector<32x128xf32>
      %685 = arith.addf %683, %684 : vector<32x128xf32>
      %686 = tpu.reciprocal %685 {approx = true} : vector<32x128xf32> -> vector<32x128xf32>
      %687 = arith.mulf %685, %686 : vector<32x128xf32>
      %cst_807 = arith.constant 2.000000e+00 : f32
      %688 = vector.broadcast %cst_807 : f32 to vector<32x128xf32>
      %689 = arith.subf %688, %687 : vector<32x128xf32>
      %690 = arith.mulf %686, %689 : vector<32x128xf32>
      %691 = arith.mulf %679, %690 : vector<32x128xf32>
      %692 = arith.addf %arg10, %691 : vector<32x128xf32>
      scf.yield %692 : vector<32x128xf32>
    }
    %c8_i32_764 = arith.constant 8 : i32
    %c0_765 = arith.constant 0 : index
    %c0_766 = arith.constant 0 : index
    %c224_767 = arith.constant 224 : index
    %c0_768 = arith.constant 0 : index
    %644 = vector.load %arg5[%c0_765, %c0_766, %c224_767, %c0_768] : memref<1x3x256x128xf32, #tpu.memory_space<vmem>>, vector<1x1x32x128xf32>
    %645 = vector.shape_cast %644 : vector<1x1x32x128xf32> to vector<32x128xf32>
    %646 = arith.addf %645, %643 : vector<32x128xf32>
    %c0_769 = arith.constant 0 : index
    %c0_770 = arith.constant 0 : index
    %c224_771 = arith.constant 224 : index
    %c0_772 = arith.constant 0 : index
    %647 = vector.load %arg5[%c0_769, %c0_770, %c224_771, %c0_772] : memref<1x3x256x128xf32, #tpu.memory_space<vmem>>, vector<1x1x32x128xf32>
    %648 = vector.shape_cast %647 : vector<1x1x32x128xf32> to vector<32x128xf32>
    %649 = vector.shape_cast %646 : vector<32x128xf32> to vector<1x1x32x128xf32>
    tpu.vector_store %arg5[%c0_769, %c0_770, %c224_771, %c0_772], %649 {strides = array<i32>} : memref<1x3x256x128xf32, #tpu.memory_space<vmem>>, vector<1x1x32x128xf32>,
    %cst_773 = arith.constant 0.000000e+00 : f32
    %650 = vector.broadcast %cst_773 : f32 to vector<32x128xf32>
    %c0_i32_774 = arith.constant 0 : i32
    %c8_i32_775 = arith.constant 8 : i32
    %651 = arith.addi %c0_i32_774, %c8_i32_775 : i32
    %c1_i32_776 = arith.constant 1 : i32
    %652 = scf.for %arg9 = %c0_i32_774 to %651 step %c1_i32_776 iter_args(%arg10 = %650) -> (vector<32x128xf32>)  : i32 {
      %c1_799 = arith.constant 1 : index
      %c1_800 = arith.constant 1 : index
      %668 = arith.index_cast %arg9 : i32 to index
      %c0_801 = arith.constant 0 : index
      %669 = vector.load %arg8[%c1_799, %c1_800, %668, %c0_801] : memref<2x3x8x128xf32, #tpu.memory_space<vmem>>, vector<1x1x1x128xf32>
      %670 = vector.shape_cast %669 : vector<1x1x1x128xf32> to vector<1x128xf32>
      %671 = vector.broadcast %670 : vector<1x128xf32> to vector<32x128xf32>
      %672 = arith.subf %613, %671 : vector<32x128xf32>
      %cst_802 = arith.constant -4.000000e+01 : f32
      %cst_803 = arith.constant 4.000000e+01 : f32
      %673 = vector.broadcast %cst_802 : f32 to vector<32x128xf32>
      %674 = arith.maximumf %673, %672 : vector<32x128xf32>
      %675 = vector.broadcast %cst_803 : f32 to vector<32x128xf32>
      %676 = arith.minimumf %675, %674 : vector<32x128xf32>
      %677 = math.exp %676 : vector<32x128xf32>
      %cst_804 = arith.constant 3.20383811 : f32
      %678 = vector.broadcast %cst_804 : f32 to vector<32x128xf32>
      %679 = arith.mulf %678, %677 : vector<32x128xf32>
      %cst_805 = arith.constant 3.77684784 : f32
      %680 = vector.broadcast %cst_805 : f32 to vector<32x128xf32>
      %681 = arith.mulf %680, %677 : vector<32x128xf32>
      %cst_806 = arith.constant 1.000000e+00 : f32
      %682 = vector.broadcast %cst_806 : f32 to vector<32x128xf32>
      %683 = arith.addf %681, %682 : vector<32x128xf32>
      %684 = arith.mulf %677, %677 : vector<32x128xf32>
      %685 = arith.addf %683, %684 : vector<32x128xf32>
      %686 = tpu.reciprocal %685 {approx = true} : vector<32x128xf32> -> vector<32x128xf32>
      %687 = arith.mulf %685, %686 : vector<32x128xf32>
      %cst_807 = arith.constant 2.000000e+00 : f32
      %688 = vector.broadcast %cst_807 : f32 to vector<32x128xf32>
      %689 = arith.subf %688, %687 : vector<32x128xf32>
      %690 = arith.mulf %686, %689 : vector<32x128xf32>
      %691 = arith.mulf %679, %690 : vector<32x128xf32>
      %692 = arith.addf %arg10, %691 : vector<32x128xf32>
      scf.yield %692 : vector<32x128xf32>
    }
    %c8_i32_777 = arith.constant 8 : i32
    %c0_778 = arith.constant 0 : index
    %c1_779 = arith.constant 1 : index
    %c224_780 = arith.constant 224 : index
    %c0_781 = arith.constant 0 : index
    %653 = vector.load %arg5[%c0_778, %c1_779, %c224_780, %c0_781] : memref<1x3x256x128xf32, #tpu.memory_space<vmem>>, vector<1x1x32x128xf32>
    %654 = vector.shape_cast %653 : vector<1x1x32x128xf32> to vector<32x128xf32>
    %655 = arith.addf %654, %652 : vector<32x128xf32>
    %c0_782 = arith.constant 0 : index
    %c1_783 = arith.constant 1 : index
    %c224_784 = arith.constant 224 : index
    %c0_785 = arith.constant 0 : index
    %656 = vector.load %arg5[%c0_782, %c1_783, %c224_784, %c0_785] : memref<1x3x256x128xf32, #tpu.memory_space<vmem>>, vector<1x1x32x128xf32>
    %657 = vector.shape_cast %656 : vector<1x1x32x128xf32> to vector<32x128xf32>
    %658 = vector.shape_cast %655 : vector<32x128xf32> to vector<1x1x32x128xf32>
    tpu.vector_store %arg5[%c0_782, %c1_783, %c224_784, %c0_785], %658 {strides = array<i32>} : memref<1x3x256x128xf32, #tpu.memory_space<vmem>>, vector<1x1x32x128xf32>,
    %cst_786 = arith.constant 0.000000e+00 : f32
    %659 = vector.broadcast %cst_786 : f32 to vector<32x128xf32>
    %c0_i32_787 = arith.constant 0 : i32
    %c8_i32_788 = arith.constant 8 : i32
    %660 = arith.addi %c0_i32_787, %c8_i32_788 : i32
    %c1_i32_789 = arith.constant 1 : i32
    %661 = scf.for %arg9 = %c0_i32_787 to %660 step %c1_i32_789 iter_args(%arg10 = %659) -> (vector<32x128xf32>)  : i32 {
      %c1_799 = arith.constant 1 : index
      %c2_800 = arith.constant 2 : index
      %668 = arith.index_cast %arg9 : i32 to index
      %c0_801 = arith.constant 0 : index
      %669 = vector.load %arg8[%c1_799, %c2_800, %668, %c0_801] : memref<2x3x8x128xf32, #tpu.memory_space<vmem>>, vector<1x1x1x128xf32>
      %670 = vector.shape_cast %669 : vector<1x1x1x128xf32> to vector<1x128xf32>
      %671 = vector.broadcast %670 : vector<1x128xf32> to vector<32x128xf32>
      %672 = arith.subf %613, %671 : vector<32x128xf32>
      %cst_802 = arith.constant -4.000000e+01 : f32
      %cst_803 = arith.constant 4.000000e+01 : f32
      %673 = vector.broadcast %cst_802 : f32 to vector<32x128xf32>
      %674 = arith.maximumf %673, %672 : vector<32x128xf32>
      %675 = vector.broadcast %cst_803 : f32 to vector<32x128xf32>
      %676 = arith.minimumf %675, %674 : vector<32x128xf32>
      %677 = math.exp %676 : vector<32x128xf32>
      %cst_804 = arith.constant 3.20383811 : f32
      %678 = vector.broadcast %cst_804 : f32 to vector<32x128xf32>
      %679 = arith.mulf %678, %677 : vector<32x128xf32>
      %cst_805 = arith.constant 3.77684784 : f32
      %680 = vector.broadcast %cst_805 : f32 to vector<32x128xf32>
      %681 = arith.mulf %680, %677 : vector<32x128xf32>
      %cst_806 = arith.constant 1.000000e+00 : f32
      %682 = vector.broadcast %cst_806 : f32 to vector<32x128xf32>
      %683 = arith.addf %681, %682 : vector<32x128xf32>
      %684 = arith.mulf %677, %677 : vector<32x128xf32>
      %685 = arith.addf %683, %684 : vector<32x128xf32>
      %686 = tpu.reciprocal %685 {approx = true} : vector<32x128xf32> -> vector<32x128xf32>
      %687 = arith.mulf %685, %686 : vector<32x128xf32>
      %cst_807 = arith.constant 2.000000e+00 : f32
      %688 = vector.broadcast %cst_807 : f32 to vector<32x128xf32>
      %689 = arith.subf %688, %687 : vector<32x128xf32>
      %690 = arith.mulf %686, %689 : vector<32x128xf32>
      %691 = arith.mulf %679, %690 : vector<32x128xf32>
      %692 = arith.addf %arg10, %691 : vector<32x128xf32>
      scf.yield %692 : vector<32x128xf32>
    }
    %c8_i32_790 = arith.constant 8 : i32
    %c0_791 = arith.constant 0 : index
    %c2_792 = arith.constant 2 : index
    %c224_793 = arith.constant 224 : index
    %c0_794 = arith.constant 0 : index
    %662 = vector.load %arg5[%c0_791, %c2_792, %c224_793, %c0_794] : memref<1x3x256x128xf32, #tpu.memory_space<vmem>>, vector<1x1x32x128xf32>
    %663 = vector.shape_cast %662 : vector<1x1x32x128xf32> to vector<32x128xf32>
    %664 = arith.addf %663, %661 : vector<32x128xf32>
    %c0_795 = arith.constant 0 : index
    %c2_796 = arith.constant 2 : index
    %c224_797 = arith.constant 224 : index
    %c0_798 = arith.constant 0 : index
    %665 = vector.load %arg5[%c0_795, %c2_796, %c224_797, %c0_798] : memref<1x3x256x128xf32, #tpu.memory_space<vmem>>, vector<1x1x32x128xf32>
    %666 = vector.shape_cast %665 : vector<1x1x32x128xf32> to vector<32x128xf32>
    %667 = vector.shape_cast %664 : vector<32x128xf32> to vector<1x1x32x128xf32>
    tpu.vector_store %arg5[%c0_795, %c2_796, %c224_797, %c0_798], %667 {strides = array<i32>} : memref<1x3x256x128xf32, #tpu.memory_space<vmem>>, vector<1x1x32x128xf32>,
    return
  }
  func.func @transform_0(%arg0: i32, %arg1: i32) -> (i32, i32, i32, i32) {
    %c0_i32 = arith.constant 0 : i32
    %c0_i32_0 = arith.constant 0 : i32
    %c0_i32_1 = arith.constant 0 : i32
    return %arg0, %c0_i32, %arg1, %c0_i32_0 : i32, i32, i32, i32
  }
  func.func @transform_1(%arg0: i32, %arg1: i32) -> (i32, i32, i32, i32) {
    %c0_i32 = arith.constant 0 : i32
    %c0_i32_0 = arith.constant 0 : i32
    %c0_i32_1 = arith.constant 0 : i32
    return %arg0, %c0_i32, %arg1, %c0_i32_0 : i32, i32, i32, i32
  }
  func.func @transform_2(%arg0: i32, %arg1: i32) -> (i32, i32, i32, i32) {
    %c0_i32 = arith.constant 0 : i32
    %c0_i32_0 = arith.constant 0 : i32
    %c0_i32_1 = arith.constant 0 : i32
    %c0_i32_2 = arith.constant 0 : i32
    return %arg0, %c0_i32, %c0_i32_0, %c0_i32_1 : i32, i32, i32, i32
  }
  func.func @transform_3(%arg0: i32, %arg1: i32) -> (i32, i32, i32, i32) {
    %c0_i32 = arith.constant 0 : i32
    %c0_i32_0 = arith.constant 0 : i32
    %c0_i32_1 = arith.constant 0 : i32
    %c0_i32_2 = arith.constant 0 : i32
    return %arg0, %c0_i32, %c0_i32_0, %c0_i32_1 : i32, i32, i32, i32
  }
  func.func @transform_4(%arg0: i32, %arg1: i32) -> (i32, i32, i32) {
    %c0_i32 = arith.constant 0 : i32
    %c0_i32_0 = arith.constant 0 : i32
    %c0_i32_1 = arith.constant 0 : i32
    return %arg0, %c0_i32, %c0_i32_0 : i32, i32, i32
  }
  func.func @transform_5(%arg0: i32, %arg1: i32) -> (i32, i32, i32) {
    %c0_i32 = arith.constant 0 : i32
    %c0_i32_0 = arith.constant 0 : i32
    %c0_i32_1 = arith.constant 0 : i32
    return %arg0, %c0_i32, %c0_i32_0 : i32, i32, i32
  }
}

</mosaic_0001>

<llo_original>
// kernel: deep_hist_l1_loss.3
$region0: #{deep_hist_l1_loss.3}
  #allocation0 [shape = 'u32[]', space=smem, size = 0x4, offset = 0x4, fixed_abs, tag = 'smem constant byte address 0x4 - core index']
  #allocation1 [shape = 'u32[144,128]{1,0:T(1,128)}', space=vmem, size = 0x12000, scoped, tag = 'internal scratch']
  %s0 = inlined_call_operand.vmem [shape: f32[8,256], index: 0, kind: input, shape index: {}]
  %s1 = inlined_call_operand.vmem [shape: f32[8,256], index: 1, kind: input, shape index: {}]
  %s2 = inlined_call_operand.vmem [shape: f32[256,256], index: 2, kind: input, shape index: {}]
  %s3 = inlined_call_operand.hbm [shape: f32[1,1], index: 3, kind: output, shape index: {}]
  %s4 = sld [smem:[#allocation0]]
  $region22: #{deep_hist_l1_loss.3} parent=0
    _
  %s6 = ssub.s32 1, %s4
  %s7 = scalar_select 0, %s6, %s4
  $region1: #{deep_hist_l1_loss.3} parent=0
    #allocation2 [shape = 'u8[512]{0}', space=smem, size = 0x200, scoped, tag = 'output window, operand 0, single buffered']
    #allocation3 [shape = 's32[1]{0}', space=sflag, size = 0x4, scoped, tag = 'scoped memory for deep_hist_l1_loss.3']
    %8 = vsyncpa [#allocation3], 0
    // Predicated region
    $region2: #{deep_hist_l1_loss.3} parent=1 // pred_check
      _
    $region3: #{deep_hist_l1_loss.3} parent=1 // pred_check_branch
      %10 = sbr.rel (0) target = $region5
    $region4: #{deep_hist_l1_loss.3} parent=1 // pred_region
      _
    $region5: #{deep_hist_l1_loss.3} parent=1 // pred_fallthru
      _
    // Predicated region
    $region6: #{deep_hist_l1_loss.3} parent=1 // pred_check
      _
    $region7: #{deep_hist_l1_loss.3} parent=1 // pred_check_branch
      %12 = sbr.rel (0) target = $region9
    $region8: #{deep_hist_l1_loss.3} parent=1 // pred_region
      _
    $region9: #{deep_hist_l1_loss.3} parent=1 // pred_fallthru
      _
    // Predicated region
    $region10: #{deep_hist_l1_loss.3} parent=1 // pred_check
      _
    $region11: #{deep_hist_l1_loss.3} parent=1 // pred_check_branch
      %14 = sbr.rel (0) target = $region13
    $region12: #{deep_hist_l1_loss.3} parent=1 // pred_region
      _
    $region13: #{deep_hist_l1_loss.3} parent=1 // pred_fallthru
      _
    %v15 = vld [vmem:[%s0] sm:$0xff]
    %v16 = vld [vmem:[%s0 + $0x8] sm:$0xff]
    %v17 = vld [vmem:[%s1] sm:$0xff]
    %v18 = vld [vmem:[%s1 + $0x8] sm:$0xff]
    %v19 = vsub.f32 %v15, %v17
    %v20 = vsub.f32 %v16, %v18
    %v21 = vpack.c.bf16 %v19, %v19
    %v22 = vpack.c.bf16 %v20, %v20
    %v23 = vunpack.c.l.bf16 %v21
    %v24 = vunpack.c.l.bf16 %v22
    %v25 = vsub.f32 %v19, %v23
    %v26 = vsub.f32 %v20, %v24
    %v27 = vld [vmem:[%s2] sm:$0xff]
    %v28 = vld [vmem:[%s2 + $0x8] sm:$0xff]
    %v29 = vld [vmem:[%s2 + $0x10] sm:$0xff]
    %v30 = vld [vmem:[%s2 + $0x18] sm:$0xff]
    %v31 = vld [vmem:[%s2 + $0x20] sm:$0xff]
    %v32 = vld [vmem:[%s2 + $0x28] sm:$0xff]
    %v33 = vld [vmem:[%s2 + $0x30] sm:$0xff]
    %v34 = vld [vmem:[%s2 + $0x38] sm:$0xff]
    %v35 = vld [vmem:[%s2 + $0x40] sm:$0xff]
    %v36 = vld [vmem:[%s2 + $0x48] sm:$0xff]
    %v37 = vld [vmem:[%s2 + $0x50] sm:$0xff]
    %v38 = vld [vmem:[%s2 + $0x58] sm:$0xff]
    %v39 = vld [vmem:[%s2 + $0x60] sm:$0xff]
    %v40 = vld [vmem:[%s2 + $0x68] sm:$0xff]
    %v41 = vld [vmem:[%s2 + $0x70] sm:$0xff]
    %v42 = vld [vmem:[%s2 + $0x78] sm:$0xff]
    %v43 = vld [vmem:[%s2 + $0x80] sm:$0xff]
    %v44 = vld [vmem:[%s2 + $0x88] sm:$0xff]
    %v45 = vld [vmem:[%s2 + $0x90] sm:$0xff]
    %v46 = vld [vmem:[%s2 + $0x98] sm:$0xff]
    %v47 = vld [vmem:[%s2 + $0xa0] sm:$0xff]
    %v48 = vld [vmem:[%s2 + $0xa8] sm:$0xff]
    %v49 = vld [vmem:[%s2 + $0xb0] sm:$0xff]
    %v50 = vld [vmem:[%s2 + $0xb8] sm:$0xff]
    %v51 = vld [vmem:[%s2 + $0xc0] sm:$0xff]
    %v52 = vld [vmem:[%s2 + $0xc8] sm:$0xff]
    %v53 = vld [vmem:[%s2 + $0xd0] sm:$0xff]
    %v54 = vld [vmem:[%s2 + $0xd8] sm:$0xff]
    %v55 = vld [vmem:[%s2 + $0xe0] sm:$0xff]
    %v56 = vld [vmem:[%s2 + $0xe8] sm:$0xff]
    %v57 = vld [vmem:[%s2 + $0xf0] sm:$0xff]
    %v58 = vld [vmem:[%s2 + $0xf8] sm:$0xff]
    %v59 = vld [vmem:[%s2 + $0x100] sm:$0xff]
    %v60 = vld [vmem:[%s2 + $0x108] sm:$0xff]
    %v61 = vld [vmem:[%s2 + $0x110] sm:$0xff]
    %v62 = vld [vmem:[%s2 + $0x118] sm:$0xff]
    %v63 = vld [vmem:[%s2 + $0x120] sm:$0xff]
    %v64 = vld [vmem:[%s2 + $0x128] sm:$0xff]
    %v65 = vld [vmem:[%s2 + $0x130] sm:$0xff]
    %v66 = vld [vmem:[%s2 + $0x138] sm:$0xff]
    %v67 = vld [vmem:[%s2 + $0x140] sm:$0xff]
    %v68 = vld [vmem:[%s2 + $0x148] sm:$0xff]
    %v69 = vld [vmem:[%s2 + $0x150] sm:$0xff]
    %v70 = vld [vmem:[%s2 + $0x158] sm:$0xff]
    %v71 = vld [vmem:[%s2 + $0x160] sm:$0xff]
    %v72 = vld [vmem:[%s2 + $0x168] sm:$0xff]
    %v73 = vld [vmem:[%s2 + $0x170] sm:$0xff]
    %v74 = vld [vmem:[%s2 + $0x178] sm:$0xff]
    %v75 = vld [vmem:[%s2 + $0x180] sm:$0xff]
    %v76 = vld [vmem:[%s2 + $0x188] sm:$0xff]
    %v77 = vld [vmem:[%s2 + $0x190] sm:$0xff]
    %v78 = vld [vmem:[%s2 + $0x198] sm:$0xff]
    %v79 = vld [vmem:[%s2 + $0x1a0] sm:$0xff]
    %v80 = vld [vmem:[%s2 + $0x1a8] sm:$0xff]
    %v81 = vld [vmem:[%s2 + $0x1b0] sm:$0xff]
    %v82 = vld [vmem:[%s2 + $0x1b8] sm:$0xff]
    %v83 = vld [vmem:[%s2 + $0x1c0] sm:$0xff]
    %v84 = vld [vmem:[%s2 + $0x1c8] sm:$0xff]
    %v85 = vld [vmem:[%s2 + $0x1d0] sm:$0xff]
    %v86 = vld [vmem:[%s2 + $0x1d8] sm:$0xff]
    %v87 = vld [vmem:[%s2 + $0x1e0] sm:$0xff]
    %v88 = vld [vmem:[%s2 + $0x1e8] sm:$0xff]
    %v89 = vld [vmem:[%s2 + $0x1f0] sm:$0xff]
    %v90 = vld [vmem:[%s2 + $0x1f8] sm:$0xff]
    %91 = vmatprep.subr.mxu0 %v28
    %92 = vmatpush1.msra.mxu0 %v27
    %93 = vmatprep.subr.mxu0 %v30
    %94 = vmatpush1.msra.mxu0 %v29
    %95 = vmatprep.subr.mxu0 %v32
    %96 = vmatpush1.msra.mxu0 %v31
    %97 = vmatprep.subr.mxu0 %v34
    %98 = vmatpush1.msra.mxu0 %v33
    %99 = vmatprep.subr.mxu0 %v36
    %100 = vmatpush1.msra.mxu0 %v35
    %101 = vmatprep.subr.mxu0 %v38
    %102 = vmatpush1.msra.mxu0 %v37
    %103 = vmatprep.subr.mxu0 %v40
    %104 = vmatpush1.msra.mxu0 %v39
    %105 = vmatprep.subr.mxu0 %v42
    %106 = vmatpush1.msra.mxu0 %v41
    %107 = vmatprep.subr.mxu0 %v44
    %108 = vmatpush1.msra.mxu0 %v43
    %109 = vmatprep.subr.mxu0 %v46
    %110 = vmatpush1.msra.mxu0 %v45
    %111 = vmatprep.subr.mxu0 %v48
    %112 = vmatpush1.msra.mxu0 %v47
    %113 = vmatprep.subr.mxu0 %v50
    %114 = vmatpush1.msra.mxu0 %v49
    %115 = vmatprep.subr.mxu0 %v52
    %116 = vmatpush1.msra.mxu0 %v51
    %117 = vmatprep.subr.mxu0 %v54
    %118 = vmatpush1.msra.mxu0 %v53
    %119 = vmatprep.subr.mxu0 %v56
    %120 = vmatpush1.msra.mxu0 %v55
    %121 = vmatprep.subr.mxu0 %v58
    %122 = vmatpush1.msra.mxu0 %v57
    %123 = vmatprep.subr.mxu0 %v60
    %124 = vmatpush1.msra.mxu0 %v59
    %125 = vmatprep.subr.mxu0 %v62
    %126 = vmatpush1.msra.mxu0 %v61
    %127 = vmatprep.subr.mxu0 %v64
    %128 = vmatpush1.msra.mxu0 %v63
    %129 = vmatprep.subr.mxu0 %v66
    %130 = vmatpush1.msra.mxu0 %v65
    %131 = vmatprep.subr.mxu0 %v68
    %132 = vmatpush1.msra.mxu0 %v67
    %133 = vmatprep.subr.mxu0 %v70
    %134 = vmatpush1.msra.mxu0 %v69
    %135 = vmatprep.subr.mxu0 %v72
    %136 = vmatpush1.msra.mxu0 %v71
    %137 = vmatprep.subr.mxu0 %v74
    %138 = vmatpush1.msra.mxu0 %v73
    %139 = vmatprep.subr.mxu0 %v76
    %140 = vmatpush1.msra.mxu0 %v75
    %141 = vmatprep.subr.mxu0 %v78
    %142 = vmatpush1.msra.mxu0 %v77
    %143 = vmatprep.subr.mxu0 %v80
    %144 = vmatpush1.msra.mxu0 %v79
    %145 = vmatprep.subr.mxu0 %v82
    %146 = vmatpush1.msra.mxu0 %v81
    %147 = vmatprep.subr.mxu0 %v84
    %148 = vmatpush1.msra.mxu0 %v83
    %149 = vmatprep.subr.mxu0 %v86
    %150 = vmatpush1.msra.mxu0 %v85
    %151 = vmatprep.subr.mxu0 %v88
    %152 = vmatpush1.msra.mxu0 %v87
    %153 = vmatprep.subr.mxu0 %v90
    %154 = vmatpush1.msra.mxu0 %v89
    %155 = vmatprep.mubr.f32.mxu0 %v26
    %156 = vmatmul.mubr.f32.gmra.mrb[0].mxu0 %v25
    %v157 = vpop.f32.mrb[0].mxu0
    %v158 = vadd.f32 0.0, %v157
    %v159 = vpop.f32.mrb[0].mxu0
    %v160 = vadd.f32 0.0, %v159
    %161 = vdwg.mxu0
    %162 = vmatprep.subr.mxu0 %v28
    %163 = vmatpush1.msra.mxu0 %v27
    %164 = vmatprep.subr.mxu0 %v30
    %165 = vmatpush1.msra.mxu0 %v29
    %166 = vmatprep.subr.mxu0 %v32
    %167 = vmatpush1.msra.mxu0 %v31
    %168 = vmatprep.subr.mxu0 %v34
    %169 = vmatpush1.msra.mxu0 %v33
    %170 = vmatprep.subr.mxu0 %v36
    %171 = vmatpush1.msra.mxu0 %v35
    %172 = vmatprep.subr.mxu0 %v38
    %173 = vmatpush1.msra.mxu0 %v37
    %174 = vmatprep.subr.mxu0 %v40
    %175 = vmatpush1.msra.mxu0 %v39
    %176 = vmatprep.subr.mxu0 %v42
    %177 = vmatpush1.msra.mxu0 %v41
    %178 = vmatprep.subr.mxu0 %v44
    %179 = vmatpush1.msra.mxu0 %v43
    %180 = vmatprep.subr.mxu0 %v46
    %181 = vmatpush1.msra.mxu0 %v45
    %182 = vmatprep.subr.mxu0 %v48
    %183 = vmatpush1.msra.mxu0 %v47
    %184 = vmatprep.subr.mxu0 %v50
    %185 = vmatpush1.msra.mxu0 %v49
    %186 = vmatprep.subr.mxu0 %v52
    %187 = vmatpush1.msra.mxu0 %v51
    %188 = vmatprep.subr.mxu0 %v54
    %189 = vmatpush1.msra.mxu0 %v53
    %190 = vmatprep.subr.mxu0 %v56
    %191 = vmatpush1.msra.mxu0 %v55
    %192 = vmatprep.subr.mxu0 %v58
    %193 = vmatpush1.msra.mxu0 %v57
    %194 = vmatprep.subr.mxu0 %v60
    %195 = vmatpush1.msra.mxu0 %v59
    %196 = vmatprep.subr.mxu0 %v62
    %197 = vmatpush1.msra.mxu0 %v61
    %198 = vmatprep.subr.mxu0 %v64
    %199 = vmatpush1.msra.mxu0 %v63
    %200 = vmatprep.subr.mxu0 %v66
    %201 = vmatpush1.msra.mxu0 %v65
    %202 = vmatprep.subr.mxu0 %v68
    %203 = vmatpush1.msra.mxu0 %v67
    %204 = vmatprep.subr.mxu0 %v70
    %205 = vmatpush1.msra.mxu0 %v69
    %206 = vmatprep.subr.mxu0 %v72
    %207 = vmatpush1.msra.mxu0 %v71
    %208 = vmatprep.subr.mxu0 %v74
    %209 = vmatpush1.msra.mxu0 %v73
    %210 = vmatprep.subr.mxu0 %v76
    %211 = vmatpush1.msra.mxu0 %v75
    %212 = vmatprep.subr.mxu0 %v78
    %213 = vmatpush1.msra.mxu0 %v77
    %214 = vmatprep.subr.mxu0 %v80
    %215 = vmatpush1.msra.mxu0 %v79
    %216 = vmatprep.subr.mxu0 %v82
    %217 = vmatpush1.msra.mxu0 %v81
    %218 = vmatprep.subr.mxu0 %v84
    %219 = vmatpush1.msra.mxu0 %v83
    %220 = vmatprep.subr.mxu0 %v86
    %221 = vmatpush1.msra.mxu0 %v85
    %222 = vmatprep.subr.mxu0 %v88
    %223 = vmatpush1.msra.mxu0 %v87
    %224 = vmatprep.subr.mxu0 %v90
    %225 = vmatpush1.msra.mxu0 %v89
    %226 = vmatprep.mubr.f32.mxu0 %v24
    %227 = vmatmul.mubr.f32.gmra.mrb[0].mxu0 %v23
    %v228 = vpop.f32.mrb[0].mxu0
    %v229 = vadd.f32 %v158, %v228
    %v230 = vpop.f32.mrb[0].mxu0
    %v231 = vadd.f32 %v160, %v230
    %232 = vdwg.mxu0
    %v233 = vmul.f32 %v229, %v229
    %v234 = vmul.f32 %v231, %v231
    %v235 = vadd.f32 %v233, %v234
    %236 = vadd.xlane.f32.xlu0 %v235
    %v237 = vpop.xlane.xlu0 %236
    %v238 = vrot.slane %v237, 4
    %v239 = vadd.f32 %v237, %v238
    %v240 = vrot.slane %v239, 2
    %v241 = vadd.f32 %v239, %v240
    %v242 = vrot.slane %v241, 1
    %v243 = vadd.f32 %v241, %v242
    %s244 = vtos %v243
    %s245 = scalar_lea.smem [#allocation2], 0
    %246 = sst [smem:[%s245]] %s244
    // Predicated region
    $region14: #{deep_hist_l1_loss.3} parent=1 // pred_check
      _
    $region15: #{deep_hist_l1_loss.3} parent=1 // pred_check_branch
      %248 = sbr.rel (0) target = $region17
    $region16: #{deep_hist_l1_loss.3} parent=1 // pred_region
      %s250 = ssub.s32 16, 16
      %251 = vsyncadd [#allocation3], %s250
      %254 = dma.smem_to_hbm [#allocation2], 16, %s3, [#allocation3]
    $region17: #{deep_hist_l1_loss.3} parent=1 // pred_fallthru
      _
    // Predicated region
    $region18: #{deep_hist_l1_loss.3} parent=1 // pred_check
      _
    $region19: #{deep_hist_l1_loss.3} parent=1 // pred_check_branch
      %256 = sbr.rel (0) target = $region21
    $region20: #{deep_hist_l1_loss.3} parent=1 // pred_region
      %257 = dma.done [#allocation3], 16
    $region21: #{deep_hist_l1_loss.3} parent=1 // pred_fallthru
      _
    %258 = sfence
    %259 = vsyncpa [#allocation3], 1

// kernel: deep_hist_l1_loss.2
$region0: #{deep_hist_l1_loss.2}
  #allocation0 [shape = 'u32[]', space=smem, size = 0x4, offset = 0x4, fixed_abs, tag = 'smem constant byte address 0x4 - core index']
  #allocation1 [shape = 'u32[144,128]{1,0:T(1,128)}', space=vmem, size = 0x12000, scoped, tag = 'internal scratch']
  #allocation2 [shape = 'f32[2,3,8,128]{3,2,1,0:T(8,128)}', space=vmem, size = 0x6000, scoped, tag = 'scratch operand']
  %s0 = inlined_call_operand.vmem [shape: f32[2,3,8,128], index: 0, kind: input, shape index: {}]
  %s1 = inlined_call_operand.vmem [shape: f32[2,3,8,128], index: 1, kind: input, shape index: {}]
  %s2 = inlined_call_operand.vmem [shape: f32[2,3,256,128], index: 2, kind: output, shape index: {0}]
  %s3 = inlined_call_operand.vmem [shape: f32[2,3,256,128], index: 3, kind: output, shape index: {1}]
  %s4 = inlined_call_operand.vmem [shape: f32[2,1,128], index: 4, kind: output, shape index: {2}]
  %s5 = inlined_call_operand.vmem [shape: f32[2,1,128], index: 5, kind: output, shape index: {3}]
  %6 = xla_tuple %s2, %s3, %s4, %s5
  %s7 = sld [smem:[#allocation0]]
  $region405: #{deep_hist_l1_loss.2} parent=0
    _
  %s9 = ssub.s32 1, %s7
  %s10 = scalar_select 0, %s9, %s7
  loop: start=0, step=1, limit=4
  $region2: #{deep_hist_l1_loss.2} parent=0 // loop_pre_header
    _
  $region3: #{deep_hist_l1_loss.2} parent=0 // loop_header
    %s12 = sphi 0, %s16
    %p13 = scmp.ge.s32.totalorder %s12, 4
    %s19 = sphi 0, %s31
    %s20 = sphi 0, %s27
    %s21 = sphi 0, %s19
    %s22 = sphi 0, %s20
    %s23 = sphi 0, %s21
    %s24 = sphi 0, %s22
    %s36 = sphi 0, %s38
    %s39 = sphi 0, %s36
    %s40 = sphi 0, %s39
    %s56 = sphi 0, %s40
    %s64 = sphi 0, %s66
    %s67 = sphi 0, %s64
    %s68 = sphi 0, %s67
    %s84 = sphi 0, %s68
    %s90 = sphi 0, %s92
    %s93 = sphi 0, %s90
    %s94 = sphi 0, %s93
    %s110 = sphi 0, %s94
    %s116 = sphi 0, %s118
    %s119 = sphi 0, %s116
    %s120 = sphi 0, %s119
    %s136 = sphi 0, %s120
    %s142 = sphi 0, %s144
    %s145 = sphi 0, %s142
    %s146 = sphi 0, %s145
    %s162 = sphi 0, %s146
    %s168 = sphi 0, %s170
    %s171 = sphi 0, %s168
    %s172 = sphi 0, %s171
    %s188 = sphi 0, %s172
  $region4: #{deep_hist_l1_loss.2} parent=0 // loop_header_branch
    %15 = sbr.rel (%p13) target = $region8
  $region5: #{deep_hist_l1_loss.2} parent=0 // loop_body
    %s17 = ssub.s32 %s12, 1
    %s18 = ssub.s32 %s12, 2
    %s25 = sadd.s32 1, %s20
    %p26 = scmp.ge.s32.totalorder %s25, 1
    %s27 = scalar_select %p26, 0, %s25
    %s28 = sadd.s32 1, %s19
    %s29 = scalar_select %p26, %s28, %s19
    %p30 = scmp.ge.s32.totalorder %s29, 2
    %s31 = scalar_select %p30, 0, %s29
    %s32 = ssub.s32 %s19, %s31
    %s33 = ssub.s32 %s20, %s27
    %s34 = sor.u32 %s32, %s33
    %p35 = scmp.eq.s32.totalorder %s34, 0
    %s37 = sadd.s32 %s36, 1
    %s38 = scalar_select %p35, %s36, %s37
    %p41 = pneg %p35
    %p42 = scmp.eq.s32.totalorder %s12, 1
    %p43 = por %p41, %p42
    %p44 = scmp.ne.s32.totalorder %s36, %s39
    %p45 = scmp.eq.s32.totalorder %s12, 0
    %p46 = por %p44, %p45
    %p47 = scmp.ne.s32.totalorder %s36, %s39
    %p48 = scmp.eq.s32.totalorder %s17, 1
    %p49 = por %p47, %p48
    %p50 = scmp.ne.s32.totalorder %s39, %s40
    %p51 = scmp.eq.s32.totalorder %s17, 0
    %p52 = por %p50, %p51
    %p53 = scmp.ne.s32.totalorder %s39, %s40
    %p54 = scmp.eq.s32.totalorder %s18, 1
    %p55 = por %p53, %p54
    %p57 = scmp.ne.s32.totalorder %s40, %s56
    %p58 = scmp.eq.s32.totalorder %s18, 0
    %p59 = por %p57, %p58
    %s60 = ssub.s32 %s19, %s31
    %s61 = ssub.s32 %s20, %s27
    %s62 = sor.u32 %s60, %s61
    %p63 = scmp.eq.s32.totalorder %s62, 0
    %s65 = sadd.s32 %s64, 1
    %s66 = scalar_select %p63, %s64, %s65
    %p69 = pneg %p63
    %p70 = scmp.eq.s32.totalorder %s12, 1
    %p71 = por %p69, %p70
    %p72 = scmp.ne.s32.totalorder %s64, %s67
    %p73 = scmp.eq.s32.totalorder %s12, 0
    %p74 = por %p72, %p73
    %p75 = scmp.ne.s32.totalorder %s64, %s67
    %p76 = scmp.eq.s32.totalorder %s17, 1
    %p77 = por %p75, %p76
    %p78 = scmp.ne.s32.totalorder %s67, %s68
    %p79 = scmp.eq.s32.totalorder %s17, 0
    %p80 = por %p78, %p79
    %p81 = scmp.ne.s32.totalorder %s67, %s68
    %p82 = scmp.eq.s32.totalorder %s18, 1
    %p83 = por %p81, %p82
    %p85 = scmp.ne.s32.totalorder %s68, %s84
    %p86 = scmp.eq.s32.totalorder %s18, 0
    %p87 = por %p85, %p86
    %s88 = ssub.s32 %s19, %s31
    %p89 = scmp.eq.s32.totalorder %s88, 0
    %s91 = sadd.s32 %s90, 1
    %s92 = scalar_select %p89, %s90, %s91
    %p95 = pneg %p89
    %p96 = scmp.eq.s32.totalorder %s12, 1
    %p97 = por %p95, %p96
    %p98 = scmp.ne.s32.totalorder %s90, %s93
    %p99 = scmp.eq.s32.totalorder %s12, 0
    %p100 = por %p98, %p99
    %p101 = scmp.ne.s32.totalorder %s90, %s93
    %p102 = scmp.eq.s32.totalorder %s17, 1
    %p103 = por %p101, %p102
    %p104 = scmp.ne.s32.totalorder %s93, %s94
    %p105 = scmp.eq.s32.totalorder %s17, 0
    %p106 = por %p104, %p105
    %p107 = scmp.ne.s32.totalorder %s93, %s94
    %p108 = scmp.eq.s32.totalorder %s18, 1
    %p109 = por %p107, %p108
    %p111 = scmp.ne.s32.totalorder %s94, %s110
    %p112 = scmp.eq.s32.totalorder %s18, 0
    %p113 = por %p111, %p112
    %s114 = ssub.s32 %s19, %s31
    %p115 = scmp.eq.s32.totalorder %s114, 0
    %s117 = sadd.s32 %s116, 1
    %s118 = scalar_select %p115, %s116, %s117
    %p121 = pneg %p115
    %p122 = scmp.eq.s32.totalorder %s12, 1
    %p123 = por %p121, %p122
    %p124 = scmp.ne.s32.totalorder %s116, %s119
    %p125 = scmp.eq.s32.totalorder %s12, 0
    %p126 = por %p124, %p125
    %p127 = scmp.ne.s32.totalorder %s116, %s119
    %p128 = scmp.eq.s32.totalorder %s17, 1
    %p129 = por %p127, %p128
    %p130 = scmp.ne.s32.totalorder %s119, %s120
    %p131 = scmp.eq.s32.totalorder %s17, 0
    %p132 = por %p130, %p131
    %p133 = scmp.ne.s32.totalorder %s119, %s120
    %p134 = scmp.eq.s32.totalorder %s18, 1
    %p135 = por %p133, %p134
    %p137 = scmp.ne.s32.totalorder %s120, %s136
    %p138 = scmp.eq.s32.totalorder %s18, 0
    %p139 = por %p137, %p138
    %s140 = ssub.s32 %s19, %s31
    %p141 = scmp.eq.s32.totalorder %s140, 0
    %s143 = sadd.s32 %s142, 1
    %s144 = scalar_select %p141, %s142, %s143
    %p147 = pneg %p141
    %p148 = scmp.eq.s32.totalorder %s12, 1
    %p149 = por %p147, %p148
    %p150 = scmp.ne.s32.totalorder %s142, %s145
    %p151 = scmp.eq.s32.totalorder %s12, 0
    %p152 = por %p150, %p151
    %p153 = scmp.ne.s32.totalorder %s142, %s145
    %p154 = scmp.eq.s32.totalorder %s17, 1
    %p155 = por %p153, %p154
    %p156 = scmp.ne.s32.totalorder %s145, %s146
    %p157 = scmp.eq.s32.totalorder %s17, 0
    %p158 = por %p156, %p157
    %p159 = scmp.ne.s32.totalorder %s145, %s146
    %p160 = scmp.eq.s32.totalorder %s18, 1
    %p161 = por %p159, %p160
    %p163 = scmp.ne.s32.totalorder %s146, %s162
    %p164 = scmp.eq.s32.totalorder %s18, 0
    %p165 = por %p163, %p164
    %s166 = ssub.s32 %s19, %s31
    %p167 = scmp.eq.s32.totalorder %s166, 0
    %s169 = sadd.s32 %s168, 1
    %s170 = scalar_select %p167, %s168, %s169
    %p173 = pneg %p167
    %p174 = scmp.eq.s32.totalorder %s12, 1
    %p175 = por %p173, %p174
    %p176 = scmp.ne.s32.totalorder %s168, %s171
    %p177 = scmp.eq.s32.totalorder %s12, 0
    %p178 = por %p176, %p177
    %p179 = scmp.ne.s32.totalorder %s168, %s171
    %p180 = scmp.eq.s32.totalorder %s17, 1
    %p181 = por %p179, %p180
    %p182 = scmp.ne.s32.totalorder %s171, %s172
    %p183 = scmp.eq.s32.totalorder %s17, 0
    %p184 = por %p182, %p183
    %p185 = scmp.ne.s32.totalorder %s171, %s172
    %p186 = scmp.eq.s32.totalorder %s18, 1
    %p187 = por %p185, %p186
    %p189 = scmp.ne.s32.totalorder %s172, %s188
    %p190 = scmp.eq.s32.totalorder %s18, 0
    %p191 = por %p189, %p190
    %p192 = scmp.le.s32.totalorder 1, %s12
    %p193 = scmp.lt.s32.totalorder %s12, 3
    %p194 = pnand %p192, %p193
    %p195 = pneg %p194
    // Predicated region
    $region9: #{deep_hist_l1_loss.2} parent=5 // pred_check
      _
    $region10: #{deep_hist_l1_loss.2} parent=5 // pred_check_branch
      %197 = sbr.rel (%p194) target = $region12
    $region11: #{deep_hist_l1_loss.2} parent=5 // pred_region
      %s198 = ssub.s32 %s12, 1
    $region12: #{deep_hist_l1_loss.2} parent=5 // pred_fallthru
      _
    %p199 = scmp.lt.s32.totalorder %s12, 2
    // Predicated region
    $region13: #{deep_hist_l1_loss.2} parent=5 // pred_check
      %p200 = pneg %p199
    $region14: #{deep_hist_l1_loss.2} parent=5 // pred_check_branch
      %202 = sbr.rel (%p200) target = $region16
    $region15: #{deep_hist_l1_loss.2} parent=5 // pred_region
      // Predicated region
      $region17: #{deep_hist_l1_loss.2} parent=15 // pred_check
        %p203 = pneg %p46
      $region18: #{deep_hist_l1_loss.2} parent=15 // pred_check_branch
        %205 = sbr.rel (%p203) target = $region20
      $region19: #{deep_hist_l1_loss.2} parent=15 // pred_region
        %p206 = scmp.lt.s32.totalorder %s19, 1
        %s207 = scalar_select %p206, %s19, 1
        %p208 = scmp.lt.s32.totalorder %s20, 0
        %s209 = scalar_select %p208, %s20, 0
        %s210 = smul.addr %s207, 3
        %s211 = sadd.s32 %s209, %s210
        %s212 = smul.addr %s211, 8
        %s213 = scalar_lea.vmem %s0, %s212
      $region20: #{deep_hist_l1_loss.2} parent=15 // pred_fallthru
        _
      // Predicated region
      $region21: #{deep_hist_l1_loss.2} parent=15 // pred_check
        %p214 = pneg %p74
      $region22: #{deep_hist_l1_loss.2} parent=15 // pred_check_branch
        %216 = sbr.rel (%p214) target = $region24
      $region23: #{deep_hist_l1_loss.2} parent=15 // pred_region
        %p217 = scmp.lt.s32.totalorder %s19, 1
        %s218 = scalar_select %p217, %s19, 1
        %p219 = scmp.lt.s32.totalorder %s20, 0
        %s220 = scalar_select %p219, %s20, 0
        %s221 = smul.addr %s218, 3
        %s222 = sadd.s32 %s220, %s221
        %s223 = smul.addr %s222, 8
        %s224 = scalar_lea.vmem %s1, %s223
      $region24: #{deep_hist_l1_loss.2} parent=15 // pred_fallthru
        _
    $region16: #{deep_hist_l1_loss.2} parent=5 // pred_fallthru
      _
    %p225 = scmp.le.s32.totalorder 1, %s12
    %p226 = scmp.lt.s32.totalorder %s12, 3
    %p227 = pnand %p225, %p226
    %p228 = pneg %p227
    // Predicated region
    $region25: #{deep_hist_l1_loss.2} parent=5 // pred_check
      _
    $region26: #{deep_hist_l1_loss.2} parent=5 // pred_check_branch
      %230 = sbr.rel (%p227) target = $region28
    $region27: #{deep_hist_l1_loss.2} parent=5 // pred_region
      %s231 = ssub.s32 %s12, 1
      %p232 = scmp.lt.s32.totalorder %s21, 1
      %s233 = scalar_select %p232, %s21, 1
      %p234 = scmp.lt.s32.totalorder %s22, 0
      %s235 = scalar_select %p234, %s22, 0
      %s236 = smul.addr %s233, 3
      %s237 = sadd.s32 %s235, %s236
      %s238 = smul.addr %s237, 8
      %s239 = scalar_lea.vmem %s0, %s238
      %p240 = pneg %p52
      %p241 = pneg %p49
      %p242 = scmp.lt.s32.totalorder %s21, 1
      %s243 = scalar_select %p242, %s21, 1
      %p244 = scmp.lt.s32.totalorder %s22, 0
      %s245 = scalar_select %p244, %s22, 0
      %s246 = smul.addr %s243, 3
      %s247 = sadd.s32 %s245, %s246
      %s248 = smul.addr %s247, 8
      %s249 = scalar_lea.vmem %s1, %s248
      %p250 = pneg %p80
      %p251 = pneg %p77
      %p252 = pneg %p106
      %p253 = pneg %p103
      %p254 = scmp.lt.s32.totalorder %s21, 1
      %s255 = scalar_select %p254, %s21, 1
      %s256 = smul.addr %s255, 96
      %s257 = smul.addr %s256, 8
      %s258 = scalar_lea.vmem %s2, %s257
      %p259 = pneg %p132
      %p260 = pneg %p129
      %p261 = scmp.lt.s32.totalorder %s21, 1
      %s262 = scalar_select %p261, %s21, 1
      %s263 = smul.addr %s262, 96
      %s264 = smul.addr %s263, 8
      %s265 = scalar_lea.vmem %s3, %s264
      %p266 = pneg %p158
      %p267 = pneg %p155
      %p268 = scmp.lt.s32.totalorder %s21, 1
      %s269 = scalar_select %p268, %s21, 1
      %s270 = scalar_lea.vmem %s4, %s269
      %p271 = pneg %p184
      %p272 = pneg %p181
      %p273 = scmp.lt.s32.totalorder %s21, 1
      %s274 = scalar_select %p273, %s21, 1
      %s275 = scalar_lea.vmem %s5, %s274
      %p276 = scmp.lt.s32.totalorder %s21, 1
      %s277 = scalar_select %p276, %s21, 1
      %p278 = scmp.lt.s32.totalorder %s22, 0
      %s279 = scalar_select %p278, %s22, 0
      %s280 = smul.addr %s277, 3
      %s281 = sadd.s32 %s279, %s280
      %s282 = smul.addr %s281, 8
      %s283 = scalar_lea.vmem %s0, %s282
      %p284 = scmp.lt.s32.totalorder %s21, 1
      %s285 = scalar_select %p284, %s21, 1
      %p286 = scmp.lt.s32.totalorder %s22, 0
      %s287 = scalar_select %p286, %s22, 0
      %s288 = smul.addr %s285, 3
      %s289 = sadd.s32 %s287, %s288
      %s290 = smul.addr %s289, 8
      %s291 = scalar_lea.vmem %s1, %s290
      %p292 = scmp.lt.s32.totalorder %s21, 1
      %s293 = scalar_select %p292, %s21, 1
      %s294 = smul.addr %s293, 96
      %s295 = smul.addr %s294, 8
      %s296 = scalar_lea.vmem %s2, %s295
      %p297 = scmp.lt.s32.totalorder %s21, 1
      %s298 = scalar_select %p297, %s21, 1
      %s299 = smul.addr %s298, 96
      %s300 = smul.addr %s299, 8
      %s301 = scalar_lea.vmem %s3, %s300
      %p302 = scmp.lt.s32.totalorder %s21, 1
      %s303 = scalar_select %p302, %s21, 1
      %s304 = scalar_lea.vmem %s4, %s303
      %p305 = scmp.lt.s32.totalorder %s21, 1
      %s306 = scalar_select %p305, %s21, 1
      %s307 = scalar_lea.vmem %s5, %s306
      %p308 = scmp.eq.s32.totalorder %s22, 0
      // Predicated region
      $region29: #{deep_hist_l1_loss.2} parent=27 // pred_check
        %p309 = pneg %p308
      $region30: #{deep_hist_l1_loss.2} parent=27 // pred_check_branch
        %311 = sbr.rel (%p309) target = $region32
      $region31: #{deep_hist_l1_loss.2} parent=27 // pred_region
        %312 = vst [vmem:[%s296] sm:$0xff] 0.0
        %313 = vst [vmem:[%s296 + $0x8] sm:$0xff] 0.0
        %314 = vst [vmem:[%s296 + $0x10] sm:$0xff] 0.0
        %315 = vst [vmem:[%s296 + $0x18] sm:$0xff] 0.0
        %316 = vst [vmem:[%s296 + $0x20] sm:$0xff] 0.0
        %317 = vst [vmem:[%s296 + $0x28] sm:$0xff] 0.0
        %318 = vst [vmem:[%s296 + $0x30] sm:$0xff] 0.0
        %319 = vst [vmem:[%s296 + $0x38] sm:$0xff] 0.0
        %320 = vst [vmem:[%s296 + $0x40] sm:$0xff] 0.0
        %321 = vst [vmem:[%s296 + $0x48] sm:$0xff] 0.0
        %322 = vst [vmem:[%s296 + $0x50] sm:$0xff] 0.0
        %323 = vst [vmem:[%s296 + $0x58] sm:$0xff] 0.0
        %324 = vst [vmem:[%s296 + $0x60] sm:$0xff] 0.0
        %325 = vst [vmem:[%s296 + $0x68] sm:$0xff] 0.0
        %326 = vst [vmem:[%s296 + $0x70] sm:$0xff] 0.0
        %327 = vst [vmem:[%s296 + $0x78] sm:$0xff] 0.0
        %328 = vst [vmem:[%s296 + $0x80] sm:$0xff] 0.0
        %329 = vst [vmem:[%s296 + $0x88] sm:$0xff] 0.0
        %330 = vst [vmem:[%s296 + $0x90] sm:$0xff] 0.0
        %331 = vst [vmem:[%s296 + $0x98] sm:$0xff] 0.0
        %332 = vst [vmem:[%s296 + $0xa0] sm:$0xff] 0.0
        %333 = vst [vmem:[%s296 + $0xa8] sm:$0xff] 0.0
        %334 = vst [vmem:[%s296 + $0xb0] sm:$0xff] 0.0
        %335 = vst [vmem:[%s296 + $0xb8] sm:$0xff] 0.0
        %336 = vst [vmem:[%s296 + $0xc0] sm:$0xff] 0.0
        %337 = vst [vmem:[%s296 + $0xc8] sm:$0xff] 0.0
        %338 = vst [vmem:[%s296 + $0xd0] sm:$0xff] 0.0
        %339 = vst [vmem:[%s296 + $0xd8] sm:$0xff] 0.0
        %340 = vst [vmem:[%s296 + $0xe0] sm:$0xff] 0.0
        %341 = vst [vmem:[%s296 + $0xe8] sm:$0xff] 0.0
        %342 = vst [vmem:[%s296 + $0xf0] sm:$0xff] 0.0
        %343 = vst [vmem:[%s296 + $0xf8] sm:$0xff] 0.0
        %344 = vst [vmem:[%s296 + $0x100] sm:$0xff] 0.0
        %345 = vst [vmem:[%s296 + $0x108] sm:$0xff] 0.0
        %346 = vst [vmem:[%s296 + $0x110] sm:$0xff] 0.0
        %347 = vst [vmem:[%s296 + $0x118] sm:$0xff] 0.0
        %348 = vst [vmem:[%s296 + $0x120] sm:$0xff] 0.0
        %349 = vst [vmem:[%s296 + $0x128] sm:$0xff] 0.0
        %350 = vst [vmem:[%s296 + $0x130] sm:$0xff] 0.0
        %351 = vst [vmem:[%s296 + $0x138] sm:$0xff] 0.0
        %352 = vst [vmem:[%s296 + $0x140] sm:$0xff] 0.0
        %353 = vst [vmem:[%s296 + $0x148] sm:$0xff] 0.0
        %354 = vst [vmem:[%s296 + $0x150] sm:$0xff] 0.0
        %355 = vst [vmem:[%s296 + $0x158] sm:$0xff] 0.0
        %356 = vst [vmem:[%s296 + $0x160] sm:$0xff] 0.0
        %357 = vst [vmem:[%s296 + $0x168] sm:$0xff] 0.0
        %358 = vst [vmem:[%s296 + $0x170] sm:$0xff] 0.0
        %359 = vst [vmem:[%s296 + $0x178] sm:$0xff] 0.0
        %360 = vst [vmem:[%s296 + $0x180] sm:$0xff] 0.0
        %361 = vst [vmem:[%s296 + $0x188] sm:$0xff] 0.0
        %362 = vst [vmem:[%s296 + $0x190] sm:$0xff] 0.0
        %363 = vst [vmem:[%s296 + $0x198] sm:$0xff] 0.0
        %364 = vst [vmem:[%s296 + $0x1a0] sm:$0xff] 0.0
        %365 = vst [vmem:[%s296 + $0x1a8] sm:$0xff] 0.0
        %366 = vst [vmem:[%s296 + $0x1b0] sm:$0xff] 0.0
        %367 = vst [vmem:[%s296 + $0x1b8] sm:$0xff] 0.0
        %368 = vst [vmem:[%s296 + $0x1c0] sm:$0xff] 0.0
        %369 = vst [vmem:[%s296 + $0x1c8] sm:$0xff] 0.0
        %370 = vst [vmem:[%s296 + $0x1d0] sm:$0xff] 0.0
        %371 = vst [vmem:[%s296 + $0x1d8] sm:$0xff] 0.0
        %372 = vst [vmem:[%s296 + $0x1e0] sm:$0xff] 0.0
        %373 = vst [vmem:[%s296 + $0x1e8] sm:$0xff] 0.0
        %374 = vst [vmem:[%s296 + $0x1f0] sm:$0xff] 0.0
        %375 = vst [vmem:[%s296 + $0x1f8] sm:$0xff] 0.0
        %376 = vst [vmem:[%s296 + $0x200] sm:$0xff] 0.0
        %377 = vst [vmem:[%s296 + $0x208] sm:$0xff] 0.0
        %378 = vst [vmem:[%s296 + $0x210] sm:$0xff] 0.0
        %379 = vst [vmem:[%s296 + $0x218] sm:$0xff] 0.0
        %380 = vst [vmem:[%s296 + $0x220] sm:$0xff] 0.0
        %381 = vst [vmem:[%s296 + $0x228] sm:$0xff] 0.0
        %382 = vst [vmem:[%s296 + $0x230] sm:$0xff] 0.0
        %383 = vst [vmem:[%s296 + $0x238] sm:$0xff] 0.0
        %384 = vst [vmem:[%s296 + $0x240] sm:$0xff] 0.0
        %385 = vst [vmem:[%s296 + $0x248] sm:$0xff] 0.0
        %386 = vst [vmem:[%s296 + $0x250] sm:$0xff] 0.0
        %387 = vst [vmem:[%s296 + $0x258] sm:$0xff] 0.0
        %388 = vst [vmem:[%s296 + $0x260] sm:$0xff] 0.0
        %389 = vst [vmem:[%s296 + $0x268] sm:$0xff] 0.0
        %390 = vst [vmem:[%s296 + $0x270] sm:$0xff] 0.0
        %391 = vst [vmem:[%s296 + $0x278] sm:$0xff] 0.0
        %392 = vst [vmem:[%s296 + $0x280] sm:$0xff] 0.0
        %393 = vst [vmem:[%s296 + $0x288] sm:$0xff] 0.0
        %394 = vst [vmem:[%s296 + $0x290] sm:$0xff] 0.0
        %395 = vst [vmem:[%s296 + $0x298] sm:$0xff] 0.0
        %396 = vst [vmem:[%s296 + $0x2a0] sm:$0xff] 0.0
        %397 = vst [vmem:[%s296 + $0x2a8] sm:$0xff] 0.0
        %398 = vst [vmem:[%s296 + $0x2b0] sm:$0xff] 0.0
        %399 = vst [vmem:[%s296 + $0x2b8] sm:$0xff] 0.0
        %400 = vst [vmem:[%s296 + $0x2c0] sm:$0xff] 0.0
        %401 = vst [vmem:[%s296 + $0x2c8] sm:$0xff] 0.0
        %402 = vst [vmem:[%s296 + $0x2d0] sm:$0xff] 0.0
        %403 = vst [vmem:[%s296 + $0x2d8] sm:$0xff] 0.0
        %404 = vst [vmem:[%s296 + $0x2e0] sm:$0xff] 0.0
        %405 = vst [vmem:[%s296 + $0x2e8] sm:$0xff] 0.0
        %406 = vst [vmem:[%s296 + $0x2f0] sm:$0xff] 0.0
        %407 = vst [vmem:[%s296 + $0x2f8] sm:$0xff] 0.0
        %408 = vst [vmem:[%s301] sm:$0xff] 0.0
        %409 = vst [vmem:[%s301 + $0x8] sm:$0xff] 0.0
        %410 = vst [vmem:[%s301 + $0x10] sm:$0xff] 0.0
        %411 = vst [vmem:[%s301 + $0x18] sm:$0xff] 0.0
        %412 = vst [vmem:[%s301 + $0x20] sm:$0xff] 0.0
        %413 = vst [vmem:[%s301 + $0x28] sm:$0xff] 0.0
        %414 = vst [vmem:[%s301 + $0x30] sm:$0xff] 0.0
        %415 = vst [vmem:[%s301 + $0x38] sm:$0xff] 0.0
        %416 = vst [vmem:[%s301 + $0x40] sm:$0xff] 0.0
        %417 = vst [vmem:[%s301 + $0x48] sm:$0xff] 0.0
        %418 = vst [vmem:[%s301 + $0x50] sm:$0xff] 0.0
        %419 = vst [vmem:[%s301 + $0x58] sm:$0xff] 0.0
        %420 = vst [vmem:[%s301 + $0x60] sm:$0xff] 0.0
        %421 = vst [vmem:[%s301 + $0x68] sm:$0xff] 0.0
        %422 = vst [vmem:[%s301 + $0x70] sm:$0xff] 0.0
        %423 = vst [vmem:[%s301 + $0x78] sm:$0xff] 0.0
        %424 = vst [vmem:[%s301 + $0x80] sm:$0xff] 0.0
        %425 = vst [vmem:[%s301 + $0x88] sm:$0xff] 0.0
        %426 = vst [vmem:[%s301 + $0x90] sm:$0xff] 0.0
        %427 = vst [vmem:[%s301 + $0x98] sm:$0xff] 0.0
        %428 = vst [vmem:[%s301 + $0xa0] sm:$0xff] 0.0
        %429 = vst [vmem:[%s301 + $0xa8] sm:$0xff] 0.0
        %430 = vst [vmem:[%s301 + $0xb0] sm:$0xff] 0.0
        %431 = vst [vmem:[%s301 + $0xb8] sm:$0xff] 0.0
        %432 = vst [vmem:[%s301 + $0xc0] sm:$0xff] 0.0
        %433 = vst [vmem:[%s301 + $0xc8] sm:$0xff] 0.0
        %434 = vst [vmem:[%s301 + $0xd0] sm:$0xff] 0.0
        %435 = vst [vmem:[%s301 + $0xd8] sm:$0xff] 0.0
        %436 = vst [vmem:[%s301 + $0xe0] sm:$0xff] 0.0
        %437 = vst [vmem:[%s301 + $0xe8] sm:$0xff] 0.0
        %438 = vst [vmem:[%s301 + $0xf0] sm:$0xff] 0.0
        %439 = vst [vmem:[%s301 + $0xf8] sm:$0xff] 0.0
        %440 = vst [vmem:[%s301 + $0x100] sm:$0xff] 0.0
        %441 = vst [vmem:[%s301 + $0x108] sm:$0xff] 0.0
        %442 = vst [vmem:[%s301 + $0x110] sm:$0xff] 0.0
        %443 = vst [vmem:[%s301 + $0x118] sm:$0xff] 0.0
        %444 = vst [vmem:[%s301 + $0x120] sm:$0xff] 0.0
        %445 = vst [vmem:[%s301 + $0x128] sm:$0xff] 0.0
        %446 = vst [vmem:[%s301 + $0x130] sm:$0xff] 0.0
        %447 = vst [vmem:[%s301 + $0x138] sm:$0xff] 0.0
        %448 = vst [vmem:[%s301 + $0x140] sm:$0xff] 0.0
        %449 = vst [vmem:[%s301 + $0x148] sm:$0xff] 0.0
        %450 = vst [vmem:[%s301 + $0x150] sm:$0xff] 0.0
        %451 = vst [vmem:[%s301 + $0x158] sm:$0xff] 0.0
        %452 = vst [vmem:[%s301 + $0x160] sm:$0xff] 0.0
        %453 = vst [vmem:[%s301 + $0x168] sm:$0xff] 0.0
        %454 = vst [vmem:[%s301 + $0x170] sm:$0xff] 0.0
        %455 = vst [vmem:[%s301 + $0x178] sm:$0xff] 0.0
        %456 = vst [vmem:[%s301 + $0x180] sm:$0xff] 0.0
        %457 = vst [vmem:[%s301 + $0x188] sm:$0xff] 0.0
        %458 = vst [vmem:[%s301 + $0x190] sm:$0xff] 0.0
        %459 = vst [vmem:[%s301 + $0x198] sm:$0xff] 0.0
        %460 = vst [vmem:[%s301 + $0x1a0] sm:$0xff] 0.0
        %461 = vst [vmem:[%s301 + $0x1a8] sm:$0xff] 0.0
        %462 = vst [vmem:[%s301 + $0x1b0] sm:$0xff] 0.0
        %463 = vst [vmem:[%s301 + $0x1b8] sm:$0xff] 0.0
        %464 = vst [vmem:[%s301 + $0x1c0] sm:$0xff] 0.0
        %465 = vst [vmem:[%s301 + $0x1c8] sm:$0xff] 0.0
        %466 = vst [vmem:[%s301 + $0x1d0] sm:$0xff] 0.0
        %467 = vst [vmem:[%s301 + $0x1d8] sm:$0xff] 0.0
        %468 = vst [vmem:[%s301 + $0x1e0] sm:$0xff] 0.0
        %469 = vst [vmem:[%s301 + $0x1e8] sm:$0xff] 0.0
        %470 = vst [vmem:[%s301 + $0x1f0] sm:$0xff] 0.0
        %471 = vst [vmem:[%s301 + $0x1f8] sm:$0xff] 0.0
        %472 = vst [vmem:[%s301 + $0x200] sm:$0xff] 0.0
        %473 = vst [vmem:[%s301 + $0x208] sm:$0xff] 0.0
        %474 = vst [vmem:[%s301 + $0x210] sm:$0xff] 0.0
        %475 = vst [vmem:[%s301 + $0x218] sm:$0xff] 0.0
        %476 = vst [vmem:[%s301 + $0x220] sm:$0xff] 0.0
        %477 = vst [vmem:[%s301 + $0x228] sm:$0xff] 0.0
        %478 = vst [vmem:[%s301 + $0x230] sm:$0xff] 0.0
        %479 = vst [vmem:[%s301 + $0x238] sm:$0xff] 0.0
        %480 = vst [vmem:[%s301 + $0x240] sm:$0xff] 0.0
        %481 = vst [vmem:[%s301 + $0x248] sm:$0xff] 0.0
        %482 = vst [vmem:[%s301 + $0x250] sm:$0xff] 0.0
        %483 = vst [vmem:[%s301 + $0x258] sm:$0xff] 0.0
        %484 = vst [vmem:[%s301 + $0x260] sm:$0xff] 0.0
        %485 = vst [vmem:[%s301 + $0x268] sm:$0xff] 0.0
        %486 = vst [vmem:[%s301 + $0x270] sm:$0xff] 0.0
        %487 = vst [vmem:[%s301 + $0x278] sm:$0xff] 0.0
        %488 = vst [vmem:[%s301 + $0x280] sm:$0xff] 0.0
        %489 = vst [vmem:[%s301 + $0x288] sm:$0xff] 0.0
        %490 = vst [vmem:[%s301 + $0x290] sm:$0xff] 0.0
        %491 = vst [vmem:[%s301 + $0x298] sm:$0xff] 0.0
        %492 = vst [vmem:[%s301 + $0x2a0] sm:$0xff] 0.0
        %493 = vst [vmem:[%s301 + $0x2a8] sm:$0xff] 0.0
        %494 = vst [vmem:[%s301 + $0x2b0] sm:$0xff] 0.0
        %495 = vst [vmem:[%s301 + $0x2b8] sm:$0xff] 0.0
        %496 = vst [vmem:[%s301 + $0x2c0] sm:$0xff] 0.0
        %497 = vst [vmem:[%s301 + $0x2c8] sm:$0xff] 0.0
        %498 = vst [vmem:[%s301 + $0x2d0] sm:$0xff] 0.0
        %499 = vst [vmem:[%s301 + $0x2d8] sm:$0xff] 0.0
        %500 = vst [vmem:[%s301 + $0x2e0] sm:$0xff] 0.0
        %501 = vst [vmem:[%s301 + $0x2e8] sm:$0xff] 0.0
        %502 = vst [vmem:[%s301 + $0x2f0] sm:$0xff] 0.0
        %503 = vst [vmem:[%s301 + $0x2f8] sm:$0xff] 0.0
        %504 = vst [vmem:[%s304] sm:$0x1] 0.0
        %505 = vst [vmem:[%s307] sm:$0x1] 0.0
      $region32: #{deep_hist_l1_loss.2} parent=27 // pred_fallthru
        _
      %v506 = vlaneseq
      %v507 = vshrl.u32 %v506, 7
      %v508 = vlaneseq
      %v509 = vand.u32 %v508, 127
      %s510 = smul.u32 %s22, 8
      %v511 = vstv %s510
      %v512 = vadd.s32 %v511, %v507
      %v513 = vmul.u32 %v512, 128
      %v514 = vadd.s32 %v513, %v509
      %vm515 = vcmp.lt.s32.totalorder %v514, 256
      %v516 = vld [vmem:[%s283] sm:$0xff]
      %v517 = vmul.f32 %v516, 0.299
      %s518 = scalar_lea.vmem %s283, 8
      %v519 = vld [vmem:[%s518] sm:$0xff]
      %v520 = vmul.f32 %v519, 0.587
      %v521 = vadd.f32 %v517, %v520
      %s522 = scalar_lea.vmem %s283, 16
      %v523 = vld [vmem:[%s522] sm:$0xff]
      %v524 = vmul.f32 %v523, 0.114
      %v525 = vadd.f32 %v521, %v524
      %v526 = vsel %vm515, %v525, 1000000.0
      %v527 = vmul.f32 %v526, 640.0
      %528 = vst [vmem:[#allocation2] sm:$0xff] %v527
      %v529 = vld [vmem:[%s283] sm:$0xff]
      %v530 = vmul.f32 %v529, -0.147
      %v531 = vld [vmem:[%s518] sm:$0xff]
      %v532 = vmul.f32 %v531, -0.289
      %v533 = vadd.f32 %v530, %v532
      %v534 = vld [vmem:[%s522] sm:$0xff]
      %v535 = vmul.f32 %v534, 0.436
      %v536 = vadd.f32 %v533, %v535
      %v537 = vsel %vm515, %v536, 1000000.0
      %v538 = vmul.f32 %v537, 640.0
      %s539 = scalar_lea.vmem [#allocation2], 8
      %540 = vst [vmem:[%s539] sm:$0xff] %v538
      %v541 = vld [vmem:[%s283] sm:$0xff]
      %v542 = vmul.f32 %v541, 0.615
      %v543 = vld [vmem:[%s518] sm:$0xff]
      %v544 = vmul.f32 %v543, -0.515
      %v545 = vadd.f32 %v542, %v544
      %v546 = vld [vmem:[%s522] sm:$0xff]
      %v547 = vmul.f32 %v546, -0.1
      %v548 = vadd.f32 %v545, %v547
      %v549 = vsel %vm515, %v548, 1000000.0
      %v550 = vmul.f32 %v549, 640.0
      %s551 = scalar_lea.vmem [#allocation2], 16
      %552 = vst [vmem:[%s551] sm:$0xff] %v550
      %v553 = vld [vmem:[%s291] sm:$0xff]
      %v554 = vmul.f32 %v553, 0.299
      %s555 = scalar_lea.vmem %s291, 8
      %v556 = vld [vmem:[%s555] sm:$0xff]
      %v557 = vmul.f32 %v556, 0.587
      %v558 = vadd.f32 %v554, %v557
      %s559 = scalar_lea.vmem %s291, 16
      %v560 = vld [vmem:[%s559] sm:$0xff]
      %v561 = vmul.f32 %v560, 0.114
      %v562 = vadd.f32 %v558, %v561
      %v563 = vsel %vm515, %v562, 1000000.0
      %v564 = vmul.f32 %v563, 640.0
      %s565 = scalar_lea.vmem [#allocation2], 24
      %566 = vst [vmem:[%s565] sm:$0xff] %v564
      %v567 = vld [vmem:[%s291] sm:$0xff]
      %v568 = vmul.f32 %v567, -0.147
      %v569 = vld [vmem:[%s555] sm:$0xff]
      %v570 = vmul.f32 %v569, -0.289
      %v571 = vadd.f32 %v568, %v570
      %v572 = vld [vmem:[%s559] sm:$0xff]
      %v573 = vmul.f32 %v572, 0.436
      %v574 = vadd.f32 %v571, %v573
      %v575 = vsel %vm515, %v574, 1000000.0
      %v576 = vmul.f32 %v575, 640.0
      %s577 = scalar_lea.vmem [#allocation2], 32
      %578 = vst [vmem:[%s577] sm:$0xff] %v576
      %v579 = vld [vmem:[%s291] sm:$0xff]
      %v580 = vmul.f32 %v579, 0.615
      %v581 = vld [vmem:[%s555] sm:$0xff]
      %v582 = vmul.f32 %v581, -0.515
      %v583 = vadd.f32 %v580, %v582
      %v584 = vld [vmem:[%s559] sm:$0xff]
      %v585 = vmul.f32 %v584, -0.1
      %v586 = vadd.f32 %v583, %v585
      %v587 = vsel %vm515, %v586, 1000000.0
      %v588 = vmul.f32 %v587, 640.0
      %s589 = scalar_lea.vmem [#allocation2], 40
      %590 = vst [vmem:[%s589] sm:$0xff] %v588
      %v591 = vld [vmem:[%s283] sm:$0xff]
      %v592 = vld [vmem:[%s291] sm:$0xff]
      %v593 = vsub.f32 %v591, %v592
      %v594 = vand.u32 2147483647, %v593
      %v595 = vrot.slane %v594, 4
      %v596 = vadd.f32 %v594, %v595
      %v597 = vrot.slane %v596, 2
      %v598 = vadd.f32 %v596, %v597
      %v599 = vrot.slane %v598, 1
      %v600 = vadd.f32 %v598, %v599
      %v601 = vadd.f32 %v600, 0.0
      %v602 = vmul.f32 %v593, %v593
      %v603 = vrot.slane %v602, 4
      %v604 = vadd.f32 %v602, %v603
      %v605 = vrot.slane %v604, 2
      %v606 = vadd.f32 %v604, %v605
      %v607 = vrot.slane %v606, 1
      %v608 = vadd.f32 %v606, %v607
      %v609 = vadd.f32 %v608, 0.0
      %v610 = vld [vmem:[%s518] sm:$0xff]
      %v611 = vld [vmem:[%s555] sm:$0xff]
      %v612 = vsub.f32 %v610, %v611
      %v613 = vand.u32 2147483647, %v612
      %v614 = vrot.slane %v613, 4
      %v615 = vadd.f32 %v613, %v614
      %v616 = vrot.slane %v615, 2
      %v617 = vadd.f32 %v615, %v616
      %v618 = vrot.slane %v617, 1
      %v619 = vadd.f32 %v617, %v618
      %v620 = vadd.f32 %v601, %v619
      %v621 = vmul.f32 %v612, %v612
      %v622 = vrot.slane %v621, 4
      %v623 = vadd.f32 %v621, %v622
      %v624 = vrot.slane %v623, 2
      %v625 = vadd.f32 %v623, %v624
      %v626 = vrot.slane %v625, 1
      %v627 = vadd.f32 %v625, %v626
      %v628 = vadd.f32 %v609, %v627
      %v629 = vld [vmem:[%s522] sm:$0xff]
      %v630 = vld [vmem:[%s559] sm:$0xff]
      %v631 = vsub.f32 %v629, %v630
      %v632 = vand.u32 2147483647, %v631
      %v633 = vrot.slane %v632, 4
      %v634 = vadd.f32 %v632, %v633
      %v635 = vrot.slane %v634, 2
      %v636 = vadd.f32 %v634, %v635
      %v637 = vrot.slane %v636, 1
      %v638 = vadd.f32 %v636, %v637
      %v639 = vadd.f32 %v620, %v638
      %v640 = vmul.f32 %v631, %v631
      %v641 = vrot.slane %v640, 4
      %v642 = vadd.f32 %v640, %v641
      %v643 = vrot.slane %v642, 2
      %v644 = vadd.f32 %v642, %v643
      %v645 = vrot.slane %v644, 1
      %v646 = vadd.f32 %v644, %v645
      %v647 = vadd.f32 %v628, %v646
      %v648 = vld [vmem:[%s304] sm:$0x1]
      %v649 = vadd.f32 %v648, %v639
      %650 = vst [vmem:[%s304] sm:$0x1] %v649
      %v651 = vld [vmem:[%s307] sm:$0x1]
      %v652 = vadd.f32 %v651, %v647
      %653 = vst [vmem:[%s307] sm:$0x1] %v652
      %v654 = vadd.s32 %v507, 8
      %v655 = vadd.s32 %v507, 16
      %v656 = vadd.s32 %v507, 24
      %v657 = vcvt.s32.f32 %v507
      %v658 = vcvt.s32.f32 %v654
      %v659 = vcvt.s32.f32 %v655
      %v660 = vcvt.s32.f32 %v656
      %v661 = vadd.f32 %v657, 0.5
      %v662 = vadd.f32 %v658, 0.5
      %v663 = vadd.f32 %v659, 0.5
      %v664 = vadd.f32 %v660, 0.5
      %v665 = vmul.f32 %v661, 2.5
      %v666 = vmul.f32 %v662, 2.5
      %v667 = vmul.f32 %v663, 2.5
      %v668 = vmul.f32 %v664, 2.5
      loop: start=0, step=1, limit=8
      $region33: #{deep_hist_l1_loss.2} parent=27 // loop_pre_header
        _
      $region34: #{deep_hist_l1_loss.2} parent=27 // loop_header
        %s670 = sphi 0, %s674
        %p671 = scmp.ge.s32.totalorder %s670, 8
        %v675 = vphi 0.0, %v745
        %v676 = vphi 0.0, %v746
        %v677 = vphi 0.0, %v747
        %v678 = vphi 0.0, %v748
      $region35: #{deep_hist_l1_loss.2} parent=27 // loop_header_branch
        %673 = sbr.rel (%p671) target = $region39
      $region36: #{deep_hist_l1_loss.2} parent=27 // loop_body
        %s679 = scalar_lea.vmem [#allocation2], %s670
        %v680 = vld [vmem:[%s679] sm:$0x1]
        %v681 = vlaneseq
        %v682 = vshrl.u32 %v681, 7
        %v683 = vsub.s32 0, %v682
        %v684 = vrot.slane %v680, %v683
        %v685 = vsub.f32 %v665, %v684
        %v686 = vsub.f32 %v666, %v684
        %v687 = vsub.f32 %v667, %v684
        %v688 = vsub.f32 %v668, %v684
        %v689 = vmax.f32 %v685, -40.0
        %v690 = vmax.f32 %v686, -40.0
        %v691 = vmax.f32 %v687, -40.0
        %v692 = vmax.f32 %v688, -40.0
        %v693 = vmin.f32 %v689, 40.0
        %v694 = vmin.f32 %v690, 40.0
        %v695 = vmin.f32 %v691, 40.0
        %v696 = vmin.f32 %v692, 40.0
        %v697 = vmul.f32 %v693, 1.442695
        %v698 = vpow.pop %v697
        %v699 = vmul.f32 %v694, 1.442695
        %v700 = vpow.pop %v699
        %v701 = vmul.f32 %v695, 1.442695
        %v702 = vpow.pop %v701
        %v703 = vmul.f32 %v696, 1.442695
        %v704 = vpow.pop %v703
        %v705 = vmul.f32 %v698, 3.203838
        %v706 = vmul.f32 %v700, 3.203838
        %v707 = vmul.f32 %v702, 3.203838
        %v708 = vmul.f32 %v704, 3.203838
        %v709 = vmul.f32 %v698, 3.7768478
        %v710 = vmul.f32 %v700, 3.7768478
        %v711 = vmul.f32 %v702, 3.7768478
        %v712 = vmul.f32 %v704, 3.7768478
        %v713 = vadd.f32 %v709, 1.0
        %v714 = vadd.f32 %v710, 1.0
        %v715 = vadd.f32 %v711, 1.0
        %v716 = vadd.f32 %v712, 1.0
        %v717 = vmul.f32 %v698, %v698
        %v718 = vmul.f32 %v700, %v700
        %v719 = vmul.f32 %v702, %v702
        %v720 = vmul.f32 %v704, %v704
        %v721 = vadd.f32 %v713, %v717
        %v722 = vadd.f32 %v714, %v718
        %v723 = vadd.f32 %v715, %v719
        %v724 = vadd.f32 %v716, %v720
        %v725 = vrcp.pop %v721
        %v726 = vrcp.pop %v722
        %v727 = vrcp.pop %v723
        %v728 = vrcp.pop %v724
        %v729 = vmul.f32 %v721, %v725
        %v730 = vmul.f32 %v722, %v726
        %v731 = vmul.f32 %v723, %v727
        %v732 = vmul.f32 %v724, %v728
        %v733 = vsub.f32 2.0, %v729
        %v734 = vsub.f32 2.0, %v730
        %v735 = vsub.f32 2.0, %v731
        %v736 = vsub.f32 2.0, %v732
        %v737 = vmul.f32 %v725, %v733
        %v738 = vmul.f32 %v726, %v734
        %v739 = vmul.f32 %v727, %v735
        %v740 = vmul.f32 %v728, %v736
        %v741 = vmul.f32 %v705, %v737
        %v742 = vmul.f32 %v706, %v738
        %v743 = vmul.f32 %v707, %v739
        %v744 = vmul.f32 %v708, %v740
        %v745 = vadd.f32 %v675, %v741
        %v746 = vadd.f32 %v676, %v742
        %v747 = vadd.f32 %v677, %v743
        %v748 = vadd.f32 %v678, %v744
      $region37: #{deep_hist_l1_loss.2} parent=27 // loop_footer
        %s674 = sadd.s32 1, %s670
      $region38: #{deep_hist_l1_loss.2} parent=27 // loop_footer_branch
        %669 = sbr.rel target = $region34
      $region39: #{deep_hist_l1_loss.2} parent=27 // loop_exit
        _
      %v749 = vld [vmem:[%s296] sm:$0xff]
      %v750 = vld [vmem:[%s296 + $0x8] sm:$0xff]
      %v751 = vld [vmem:[%s296 + $0x10] sm:$0xff]
      %v752 = vld [vmem:[%s296 + $0x18] sm:$0xff]
      %v753 = vadd.f32 %v749, %v675
      %v754 = vadd.f32 %v750, %v676
      %v755 = vadd.f32 %v751, %v677
      %v756 = vadd.f32 %v752, %v678
      %757 = vst [vmem:[%s296] sm:$0xff] %v753
      %758 = vst [vmem:[%s296 + $0x8] sm:$0xff] %v754
      %759 = vst [vmem:[%s296 + $0x10] sm:$0xff] %v755
      %760 = vst [vmem:[%s296 + $0x18] sm:$0xff] %v756
      loop: start=0, step=1, limit=8
      $region40: #{deep_hist_l1_loss.2} parent=27 // loop_pre_header
        _
      $region41: #{deep_hist_l1_loss.2} parent=27 // loop_header
        %s762 = sphi 0, %s766
        %p763 = scmp.ge.s32.totalorder %s762, 8
        %v767 = vphi 0.0, %v838
        %v768 = vphi 0.0, %v839
        %v769 = vphi 0.0, %v840
        %v770 = vphi 0.0, %v841
      $region42: #{deep_hist_l1_loss.2} parent=27 // loop_header_branch
        %765 = sbr.rel (%p763) target = $region46
      $region43: #{deep_hist_l1_loss.2} parent=27 // loop_body
        %s771 = sadd.s32 %s762, 8
        %s772 = scalar_lea.vmem [#allocation2], %s771
        %v773 = vld [vmem:[%s772] sm:$0x1]
        %v774 = vlaneseq
        %v775 = vshrl.u32 %v774, 7
        %v776 = vsub.s32 0, %v775
        %v777 = vrot.slane %v773, %v776
        %v778 = vsub.f32 %v665, %v777
        %v779 = vsub.f32 %v666, %v777
        %v780 = vsub.f32 %v667, %v777
        %v781 = vsub.f32 %v668, %v777
        %v782 = vmax.f32 %v778, -40.0
        %v783 = vmax.f32 %v779, -40.0
        %v784 = vmax.f32 %v780, -40.0
        %v785 = vmax.f32 %v781, -40.0
        %v786 = vmin.f32 %v782, 40.0
        %v787 = vmin.f32 %v783, 40.0
        %v788 = vmin.f32 %v784, 40.0
        %v789 = vmin.f32 %v785, 40.0
        %v790 = vmul.f32 %v786, 1.442695
        %v791 = vpow.pop %v790
        %v792 = vmul.f32 %v787, 1.442695
        %v793 = vpow.pop %v792
        %v794 = vmul.f32 %v788, 1.442695
        %v795 = vpow.pop %v794
        %v796 = vmul.f32 %v789, 1.442695
        %v797 = vpow.pop %v796
        %v798 = vmul.f32 %v791, 3.203838
        %v799 = vmul.f32 %v793, 3.203838
        %v800 = vmul.f32 %v795, 3.203838
        %v801 = vmul.f32 %v797, 3.203838
        %v802 = vmul.f32 %v791, 3.7768478
        %v803 = vmul.f32 %v793, 3.7768478
        %v804 = vmul.f32 %v795, 3.7768478
        %v805 = vmul.f32 %v797, 3.7768478
        %v806 = vadd.f32 %v802, 1.0
        %v807 = vadd.f32 %v803, 1.0
        %v808 = vadd.f32 %v804, 1.0
        %v809 = vadd.f32 %v805, 1.0
        %v810 = vmul.f32 %v791, %v791
        %v811 = vmul.f32 %v793, %v793
        %v812 = vmul.f32 %v795, %v795
        %v813 = vmul.f32 %v797, %v797
        %v814 = vadd.f32 %v806, %v810
        %v815 = vadd.f32 %v807, %v811
        %v816 = vadd.f32 %v808, %v812
        %v817 = vadd.f32 %v809, %v813
        %v818 = vrcp.pop %v814
        %v819 = vrcp.pop %v815
        %v820 = vrcp.pop %v816
        %v821 = vrcp.pop %v817
        %v822 = vmul.f32 %v814, %v818
        %v823 = vmul.f32 %v815, %v819
        %v824 = vmul.f32 %v816, %v820
        %v825 = vmul.f32 %v817, %v821
        %v826 = vsub.f32 2.0, %v822
        %v827 = vsub.f32 2.0, %v823
        %v828 = vsub.f32 2.0, %v824
        %v829 = vsub.f32 2.0, %v825
        %v830 = vmul.f32 %v818, %v826
        %v831 = vmul.f32 %v819, %v827
        %v832 = vmul.f32 %v820, %v828
        %v833 = vmul.f32 %v821, %v829
        %v834 = vmul.f32 %v798, %v830
        %v835 = vmul.f32 %v799, %v831
        %v836 = vmul.f32 %v800, %v832
        %v837 = vmul.f32 %v801, %v833
        %v838 = vadd.f32 %v767, %v834
        %v839 = vadd.f32 %v768, %v835
        %v840 = vadd.f32 %v769, %v836
        %v841 = vadd.f32 %v770, %v837
      $region44: #{deep_hist_l1_loss.2} parent=27 // loop_footer
        %s766 = sadd.s32 1, %s762
      $region45: #{deep_hist_l1_loss.2} parent=27 // loop_footer_branch
        %761 = sbr.rel target = $region41
      $region46: #{deep_hist_l1_loss.2} parent=27 // loop_exit
        _
      %s842 = scalar_lea.vmem %s296, 256
      %v843 = vld [vmem:[%s842] sm:$0xff]
      %v844 = vld [vmem:[%s842 + $0x8] sm:$0xff]
      %v845 = vld [vmem:[%s842 + $0x10] sm:$0xff]
      %v846 = vld [vmem:[%s842 + $0x18] sm:$0xff]
      %v847 = vadd.f32 %v843, %v767
      %v848 = vadd.f32 %v844, %v768
      %v849 = vadd.f32 %v845, %v769
      %v850 = vadd.f32 %v846, %v770
      %851 = vst [vmem:[%s842] sm:$0xff] %v847
      %852 = vst [vmem:[%s842 + $0x8] sm:$0xff] %v848
      %853 = vst [vmem:[%s842 + $0x10] sm:$0xff] %v849
      %854 = vst [vmem:[%s842 + $0x18] sm:$0xff] %v850
      loop: start=0, step=1, limit=8
      $region47: #{deep_hist_l1_loss.2} parent=27 // loop_pre_header
        _
      $region48: #{deep_hist_l1_loss.2} parent=27 // loop_header
        %s856 = sphi 0, %s860
        %p857 = scmp.ge.s32.totalorder %s856, 8
        %v861 = vphi 0.0, %v932
        %v862 = vphi 0.0, %v933
        %v863 = vphi 0.0, %v934
        %v864 = vphi 0.0, %v935
      $region49: #{deep_hist_l1_loss.2} parent=27 // loop_header_branch
        %859 = sbr.rel (%p857) target = $region53
      $region50: #{deep_hist_l1_loss.2} parent=27 // loop_body
        %s865 = sadd.s32 %s856, 16
        %s866 = scalar_lea.vmem [#allocation2], %s865
        %v867 = vld [vmem:[%s866] sm:$0x1]
        %v868 = vlaneseq
        %v869 = vshrl.u32 %v868, 7
        %v870 = vsub.s32 0, %v869
        %v871 = vrot.slane %v867, %v870
        %v872 = vsub.f32 %v665, %v871
        %v873 = vsub.f32 %v666, %v871
        %v874 = vsub.f32 %v667, %v871
        %v875 = vsub.f32 %v668, %v871
        %v876 = vmax.f32 %v872, -40.0
        %v877 = vmax.f32 %v873, -40.0
        %v878 = vmax.f32 %v874, -40.0
        %v879 = vmax.f32 %v875, -40.0
        %v880 = vmin.f32 %v876, 40.0
        %v881 = vmin.f32 %v877, 40.0
        %v882 = vmin.f32 %v878, 40.0
        %v883 = vmin.f32 %v879, 40.0
        %v884 = vmul.f32 %v880, 1.442695
        %v885 = vpow.pop %v884
        %v886 = vmul.f32 %v881, 1.442695
        %v887 = vpow.pop %v886
        %v888 = vmul.f32 %v882, 1.442695
        %v889 = vpow.pop %v888
        %v890 = vmul.f32 %v883, 1.442695
        %v891 = vpow.pop %v890
        %v892 = vmul.f32 %v885, 3.203838
        %v893 = vmul.f32 %v887, 3.203838
        %v894 = vmul.f32 %v889, 3.203838
        %v895 = vmul.f32 %v891, 3.203838
        %v896 = vmul.f32 %v885, 3.7768478
        %v897 = vmul.f32 %v887, 3.7768478
        %v898 = vmul.f32 %v889, 3.7768478
        %v899 = vmul.f32 %v891, 3.7768478
        %v900 = vadd.f32 %v896, 1.0
        %v901 = vadd.f32 %v897, 1.0
        %v902 = vadd.f32 %v898, 1.0
        %v903 = vadd.f32 %v899, 1.0
        %v904 = vmul.f32 %v885, %v885
        %v905 = vmul.f32 %v887, %v887
        %v906 = vmul.f32 %v889, %v889
        %v907 = vmul.f32 %v891, %v891
        %v908 = vadd.f32 %v900, %v904
        %v909 = vadd.f32 %v901, %v905
        %v910 = vadd.f32 %v902, %v906
        %v911 = vadd.f32 %v903, %v907
        %v912 = vrcp.pop %v908
        %v913 = vrcp.pop %v909
        %v914 = vrcp.pop %v910
        %v915 = vrcp.pop %v911
        %v916 = vmul.f32 %v908, %v912
        %v917 = vmul.f32 %v909, %v913
        %v918 = vmul.f32 %v910, %v914
        %v919 = vmul.f32 %v911, %v915
        %v920 = vsub.f32 2.0, %v916
        %v921 = vsub.f32 2.0, %v917
        %v922 = vsub.f32 2.0, %v918
        %v923 = vsub.f32 2.0, %v919
        %v924 = vmul.f32 %v912, %v920
        %v925 = vmul.f32 %v913, %v921
        %v926 = vmul.f32 %v914, %v922
        %v927 = vmul.f32 %v915, %v923
        %v928 = vmul.f32 %v892, %v924
        %v929 = vmul.f32 %v893, %v925
        %v930 = vmul.f32 %v894, %v926
        %v931 = vmul.f32 %v895, %v927
        %v932 = vadd.f32 %v861, %v928
        %v933 = vadd.f32 %v862, %v929
        %v934 = vadd.f32 %v863, %v930
        %v935 = vadd.f32 %v864, %v931
      $region51: #{deep_hist_l1_loss.2} parent=27 // loop_footer
        %s860 = sadd.s32 1, %s856
      $region52: #{deep_hist_l1_loss.2} parent=27 // loop_footer_branch
        %855 = sbr.rel target = $region48
      $region53: #{deep_hist_l1_loss.2} parent=27 // loop_exit
        _
      %s936 = scalar_lea.vmem %s296, 512
      %v937 = vld [vmem:[%s936] sm:$0xff]
      %v938 = vld [vmem:[%s936 + $0x8] sm:$0xff]
      %v939 = vld [vmem:[%s936 + $0x10] sm:$0xff]
      %v940 = vld [vmem:[%s936 + $0x18] sm:$0xff]
      %v941 = vadd.f32 %v937, %v861
      %v942 = vadd.f32 %v938, %v862
      %v943 = vadd.f32 %v939, %v863
      %v944 = vadd.f32 %v940, %v864
      %945 = vst [vmem:[%s936] sm:$0xff] %v941
      %946 = vst [vmem:[%s936 + $0x8] sm:$0xff] %v942
      %947 = vst [vmem:[%s936 + $0x10] sm:$0xff] %v943
      %948 = vst [vmem:[%s936 + $0x18] sm:$0xff] %v944
      loop: start=0, step=1, limit=8
      $region54: #{deep_hist_l1_loss.2} parent=27 // loop_pre_header
        _
      $region55: #{deep_hist_l1_loss.2} parent=27 // loop_header
        %s950 = sphi 0, %s954
        %p951 = scmp.ge.s32.totalorder %s950, 8
        %v955 = vphi 0.0, %v1026
        %v956 = vphi 0.0, %v1027
        %v957 = vphi 0.0, %v1028
        %v958 = vphi 0.0, %v1029
      $region56: #{deep_hist_l1_loss.2} parent=27 // loop_header_branch
        %953 = sbr.rel (%p951) target = $region60
      $region57: #{deep_hist_l1_loss.2} parent=27 // loop_body
        %s959 = sadd.s32 %s950, 24
        %s960 = scalar_lea.vmem [#allocation2], %s959
        %v961 = vld [vmem:[%s960] sm:$0x1]
        %v962 = vlaneseq
        %v963 = vshrl.u32 %v962, 7
        %v964 = vsub.s32 0, %v963
        %v965 = vrot.slane %v961, %v964
        %v966 = vsub.f32 %v665, %v965
        %v967 = vsub.f32 %v666, %v965
        %v968 = vsub.f32 %v667, %v965
        %v969 = vsub.f32 %v668, %v965
        %v970 = vmax.f32 %v966, -40.0
        %v971 = vmax.f32 %v967, -40.0
        %v972 = vmax.f32 %v968, -40.0
        %v973 = vmax.f32 %v969, -40.0
        %v974 = vmin.f32 %v970, 40.0
        %v975 = vmin.f32 %v971, 40.0
        %v976 = vmin.f32 %v972, 40.0
        %v977 = vmin.f32 %v973, 40.0
        %v978 = vmul.f32 %v974, 1.442695
        %v979 = vpow.pop %v978
        %v980 = vmul.f32 %v975, 1.442695
        %v981 = vpow.pop %v980
        %v982 = vmul.f32 %v976, 1.442695
        %v983 = vpow.pop %v982
        %v984 = vmul.f32 %v977, 1.442695
        %v985 = vpow.pop %v984
        %v986 = vmul.f32 %v979, 3.203838
        %v987 = vmul.f32 %v981, 3.203838
        %v988 = vmul.f32 %v983, 3.203838
        %v989 = vmul.f32 %v985, 3.203838
        %v990 = vmul.f32 %v979, 3.7768478
        %v991 = vmul.f32 %v981, 3.7768478
        %v992 = vmul.f32 %v983, 3.7768478
        %v993 = vmul.f32 %v985, 3.7768478
        %v994 = vadd.f32 %v990, 1.0
        %v995 = vadd.f32 %v991, 1.0
        %v996 = vadd.f32 %v992, 1.0
        %v997 = vadd.f32 %v993, 1.0
        %v998 = vmul.f32 %v979, %v979
        %v999 = vmul.f32 %v981, %v981
        %v1000 = vmul.f32 %v983, %v983
        %v1001 = vmul.f32 %v985, %v985
        %v1002 = vadd.f32 %v994, %v998
        %v1003 = vadd.f32 %v995, %v999
        %v1004 = vadd.f32 %v996, %v1000
        %v1005 = vadd.f32 %v997, %v1001
        %v1006 = vrcp.pop %v1002
        %v1007 = vrcp.pop %v1003
        %v1008 = vrcp.pop %v1004
        %v1009 = vrcp.pop %v1005
        %v1010 = vmul.f32 %v1002, %v1006
        %v1011 = vmul.f32 %v1003, %v1007
        %v1012 = vmul.f32 %v1004, %v1008
        %v1013 = vmul.f32 %v1005, %v1009
        %v1014 = vsub.f32 2.0, %v1010
        %v1015 = vsub.f32 2.0, %v1011
        %v1016 = vsub.f32 2.0, %v1012
        %v1017 = vsub.f32 2.0, %v1013
        %v1018 = vmul.f32 %v1006, %v1014
        %v1019 = vmul.f32 %v1007, %v1015
        %v1020 = vmul.f32 %v1008, %v1016
        %v1021 = vmul.f32 %v1009, %v1017
        %v1022 = vmul.f32 %v986, %v1018
        %v1023 = vmul.f32 %v987, %v1019
        %v1024 = vmul.f32 %v988, %v1020
        %v1025 = vmul.f32 %v989, %v1021
        %v1026 = vadd.f32 %v955, %v1022
        %v1027 = vadd.f32 %v956, %v1023
        %v1028 = vadd.f32 %v957, %v1024
        %v1029 = vadd.f32 %v958, %v1025
      $region58: #{deep_hist_l1_loss.2} parent=27 // loop_footer
        %s954 = sadd.s32 1, %s950
      $region59: #{deep_hist_l1_loss.2} parent=27 // loop_footer_branch
        %949 = sbr.rel target = $region55
      $region60: #{deep_hist_l1_loss.2} parent=27 // loop_exit
        _
      %v1030 = vld [vmem:[%s301] sm:$0xff]
      %v1031 = vld [vmem:[%s301 + $0x8] sm:$0xff]
      %v1032 = vld [vmem:[%s301 + $0x10] sm:$0xff]
      %v1033 = vld [vmem:[%s301 + $0x18] sm:$0xff]
      %v1034 = vadd.f32 %v1030, %v955
      %v1035 = vadd.f32 %v1031, %v956
      %v1036 = vadd.f32 %v1032, %v957
      %v1037 = vadd.f32 %v1033, %v958
      %1038 = vst [vmem:[%s301] sm:$0xff] %v1034
      %1039 = vst [vmem:[%s301 + $0x8] sm:$0xff] %v1035
      %1040 = vst [vmem:[%s301 + $0x10] sm:$0xff] %v1036
      %1041 = vst [vmem:[%s301 + $0x18] sm:$0xff] %v1037
      loop: start=0, step=1, limit=8
      $region61: #{deep_hist_l1_loss.2} parent=27 // loop_pre_header
        _
      $region62: #{deep_hist_l1_loss.2} parent=27 // loop_header
        %s1043 = sphi 0, %s1047
        %p1044 = scmp.ge.s32.totalorder %s1043, 8
        %v1048 = vphi 0.0, %v1120
        %v1049 = vphi 0.0, %v1121
        %v1050 = vphi 0.0, %v1122
        %v1051 = vphi 0.0, %v1123
      $region63: #{deep_hist_l1_loss.2} parent=27 // loop_header_branch
        %1046 = sbr.rel (%p1044) target = $region67
      $region64: #{deep_hist_l1_loss.2} parent=27 // loop_body
        %s1052 = sadd.s32 %s1043, 8
        %s1053 = sadd.s32 %s1052, 24
        %s1054 = scalar_lea.vmem [#allocation2], %s1053
        %v1055 = vld [vmem:[%s1054] sm:$0x1]
        %v1056 = vlaneseq
        %v1057 = vshrl.u32 %v1056, 7
        %v1058 = vsub.s32 0, %v1057
        %v1059 = vrot.slane %v1055, %v1058
        %v1060 = vsub.f32 %v665, %v1059
        %v1061 = vsub.f32 %v666, %v1059
        %v1062 = vsub.f32 %v667, %v1059
        %v1063 = vsub.f32 %v668, %v1059
        %v1064 = vmax.f32 %v1060, -40.0
        %v1065 = vmax.f32 %v1061, -40.0
        %v1066 = vmax.f32 %v1062, -40.0
        %v1067 = vmax.f32 %v1063, -40.0
        %v1068 = vmin.f32 %v1064, 40.0
        %v1069 = vmin.f32 %v1065, 40.0
        %v1070 = vmin.f32 %v1066, 40.0
        %v1071 = vmin.f32 %v1067, 40.0
        %v1072 = vmul.f32 %v1068, 1.442695
        %v1073 = vpow.pop %v1072
        %v1074 = vmul.f32 %v1069, 1.442695
        %v1075 = vpow.pop %v1074
        %v1076 = vmul.f32 %v1070, 1.442695
        %v1077 = vpow.pop %v1076
        %v1078 = vmul.f32 %v1071, 1.442695
        %v1079 = vpow.pop %v1078
        %v1080 = vmul.f32 %v1073, 3.203838
        %v1081 = vmul.f32 %v1075, 3.203838
        %v1082 = vmul.f32 %v1077, 3.203838
        %v1083 = vmul.f32 %v1079, 3.203838
        %v1084 = vmul.f32 %v1073, 3.7768478
        %v1085 = vmul.f32 %v1075, 3.7768478
        %v1086 = vmul.f32 %v1077, 3.7768478
        %v1087 = vmul.f32 %v1079, 3.7768478
        %v1088 = vadd.f32 %v1084, 1.0
        %v1089 = vadd.f32 %v1085, 1.0
        %v1090 = vadd.f32 %v1086, 1.0
        %v1091 = vadd.f32 %v1087, 1.0
        %v1092 = vmul.f32 %v1073, %v1073
        %v1093 = vmul.f32 %v1075, %v1075
        %v1094 = vmul.f32 %v1077, %v1077
        %v1095 = vmul.f32 %v1079, %v1079
        %v1096 = vadd.f32 %v1088, %v1092
        %v1097 = vadd.f32 %v1089, %v1093
        %v1098 = vadd.f32 %v1090, %v1094
        %v1099 = vadd.f32 %v1091, %v1095
        %v1100 = vrcp.pop %v1096
        %v1101 = vrcp.pop %v1097
        %v1102 = vrcp.pop %v1098
        %v1103 = vrcp.pop %v1099
        %v1104 = vmul.f32 %v1096, %v1100
        %v1105 = vmul.f32 %v1097, %v1101
        %v1106 = vmul.f32 %v1098, %v1102
        %v1107 = vmul.f32 %v1099, %v1103
        %v1108 = vsub.f32 2.0, %v1104
        %v1109 = vsub.f32 2.0, %v1105
        %v1110 = vsub.f32 2.0, %v1106
        %v1111 = vsub.f32 2.0, %v1107
        %v1112 = vmul.f32 %v1100, %v1108
        %v1113 = vmul.f32 %v1101, %v1109
        %v1114 = vmul.f32 %v1102, %v1110
        %v1115 = vmul.f32 %v1103, %v1111
        %v1116 = vmul.f32 %v1080, %v1112
        %v1117 = vmul.f32 %v1081, %v1113
        %v1118 = vmul.f32 %v1082, %v1114
        %v1119 = vmul.f32 %v1083, %v1115
        %v1120 = vadd.f32 %v1048, %v1116
        %v1121 = vadd.f32 %v1049, %v1117
        %v1122 = vadd.f32 %v1050, %v1118
        %v1123 = vadd.f32 %v1051, %v1119
      $region65: #{deep_hist_l1_loss.2} parent=27 // loop_footer
        %s1047 = sadd.s32 1, %s1043
      $region66: #{deep_hist_l1_loss.2} parent=27 // loop_footer_branch
        %1042 = sbr.rel target = $region62
      $region67: #{deep_hist_l1_loss.2} parent=27 // loop_exit
        _
      %s1124 = scalar_lea.vmem %s301, 256
      %v1125 = vld [vmem:[%s1124] sm:$0xff]
      %v1126 = vld [vmem:[%s1124 + $0x8] sm:$0xff]
      %v1127 = vld [vmem:[%s1124 + $0x10] sm:$0xff]
      %v1128 = vld [vmem:[%s1124 + $0x18] sm:$0xff]
      %v1129 = vadd.f32 %v1125, %v1048
      %v1130 = vadd.f32 %v1126, %v1049
      %v1131 = vadd.f32 %v1127, %v1050
      %v1132 = vadd.f32 %v1128, %v1051
      %1133 = vst [vmem:[%s1124] sm:$0xff] %v1129
      %1134 = vst [vmem:[%s1124 + $0x8] sm:$0xff] %v1130
      %1135 = vst [vmem:[%s1124 + $0x10] sm:$0xff] %v1131
      %1136 = vst [vmem:[%s1124 + $0x18] sm:$0xff] %v1132
      loop: start=0, step=1, limit=8
      $region68: #{deep_hist_l1_loss.2} parent=27 // loop_pre_header
        _
      $region69: #{deep_hist_l1_loss.2} parent=27 // loop_header
        %s1138 = sphi 0, %s1142
        %p1139 = scmp.ge.s32.totalorder %s1138, 8
        %v1143 = vphi 0.0, %v1215
        %v1144 = vphi 0.0, %v1216
        %v1145 = vphi 0.0, %v1217
        %v1146 = vphi 0.0, %v1218
      $region70: #{deep_hist_l1_loss.2} parent=27 // loop_header_branch
        %1141 = sbr.rel (%p1139) target = $region74
      $region71: #{deep_hist_l1_loss.2} parent=27 // loop_body
        %s1147 = sadd.s32 %s1138, 16
        %s1148 = sadd.s32 %s1147, 24
        %s1149 = scalar_lea.vmem [#allocation2], %s1148
        %v1150 = vld [vmem:[%s1149] sm:$0x1]
        %v1151 = vlaneseq
        %v1152 = vshrl.u32 %v1151, 7
        %v1153 = vsub.s32 0, %v1152
        %v1154 = vrot.slane %v1150, %v1153
        %v1155 = vsub.f32 %v665, %v1154
        %v1156 = vsub.f32 %v666, %v1154
        %v1157 = vsub.f32 %v667, %v1154
        %v1158 = vsub.f32 %v668, %v1154
        %v1159 = vmax.f32 %v1155, -40.0
        %v1160 = vmax.f32 %v1156, -40.0
        %v1161 = vmax.f32 %v1157, -40.0
        %v1162 = vmax.f32 %v1158, -40.0
        %v1163 = vmin.f32 %v1159, 40.0
        %v1164 = vmin.f32 %v1160, 40.0
        %v1165 = vmin.f32 %v1161, 40.0
        %v1166 = vmin.f32 %v1162, 40.0
        %v1167 = vmul.f32 %v1163, 1.442695
        %v1168 = vpow.pop %v1167
        %v1169 = vmul.f32 %v1164, 1.442695
        %v1170 = vpow.pop %v1169
        %v1171 = vmul.f32 %v1165, 1.442695
        %v1172 = vpow.pop %v1171
        %v1173 = vmul.f32 %v1166, 1.442695
        %v1174 = vpow.pop %v1173
        %v1175 = vmul.f32 %v1168, 3.203838
        %v1176 = vmul.f32 %v1170, 3.203838
        %v1177 = vmul.f32 %v1172, 3.203838
        %v1178 = vmul.f32 %v1174, 3.203838
        %v1179 = vmul.f32 %v1168, 3.7768478
        %v1180 = vmul.f32 %v1170, 3.7768478
        %v1181 = vmul.f32 %v1172, 3.7768478
        %v1182 = vmul.f32 %v1174, 3.7768478
        %v1183 = vadd.f32 %v1179, 1.0
        %v1184 = vadd.f32 %v1180, 1.0
        %v1185 = vadd.f32 %v1181, 1.0
        %v1186 = vadd.f32 %v1182, 1.0
        %v1187 = vmul.f32 %v1168, %v1168
        %v1188 = vmul.f32 %v1170, %v1170
        %v1189 = vmul.f32 %v1172, %v1172
        %v1190 = vmul.f32 %v1174, %v1174
        %v1191 = vadd.f32 %v1183, %v1187
        %v1192 = vadd.f32 %v1184, %v1188
        %v1193 = vadd.f32 %v1185, %v1189
        %v1194 = vadd.f32 %v1186, %v1190
        %v1195 = vrcp.pop %v1191
        %v1196 = vrcp.pop %v1192
        %v1197 = vrcp.pop %v1193
        %v1198 = vrcp.pop %v1194
        %v1199 = vmul.f32 %v1191, %v1195
        %v1200 = vmul.f32 %v1192, %v1196
        %v1201 = vmul.f32 %v1193, %v1197
        %v1202 = vmul.f32 %v1194, %v1198
        %v1203 = vsub.f32 2.0, %v1199
        %v1204 = vsub.f32 2.0, %v1200
        %v1205 = vsub.f32 2.0, %v1201
        %v1206 = vsub.f32 2.0, %v1202
        %v1207 = vmul.f32 %v1195, %v1203
        %v1208 = vmul.f32 %v1196, %v1204
        %v1209 = vmul.f32 %v1197, %v1205
        %v1210 = vmul.f32 %v1198, %v1206
        %v1211 = vmul.f32 %v1175, %v1207
        %v1212 = vmul.f32 %v1176, %v1208
        %v1213 = vmul.f32 %v1177, %v1209
        %v1214 = vmul.f32 %v1178, %v1210
        %v1215 = vadd.f32 %v1143, %v1211
        %v1216 = vadd.f32 %v1144, %v1212
        %v1217 = vadd.f32 %v1145, %v1213
        %v1218 = vadd.f32 %v1146, %v1214
      $region72: #{deep_hist_l1_loss.2} parent=27 // loop_footer
        %s1142 = sadd.s32 1, %s1138
      $region73: #{deep_hist_l1_loss.2} parent=27 // loop_footer_branch
        %1137 = sbr.rel target = $region69
      $region74: #{deep_hist_l1_loss.2} parent=27 // loop_exit
        _
      %s1219 = scalar_lea.vmem %s301, 512
      %v1220 = vld [vmem:[%s1219] sm:$0xff]
      %v1221 = vld [vmem:[%s1219 + $0x8] sm:$0xff]
      %v1222 = vld [vmem:[%s1219 + $0x10] sm:$0xff]
      %v1223 = vld [vmem:[%s1219 + $0x18] sm:$0xff]
      %v1224 = vadd.f32 %v1220, %v1143
      %v1225 = vadd.f32 %v1221, %v1144
      %v1226 = vadd.f32 %v1222, %v1145
      %v1227 = vadd.f32 %v1223, %v1146
      %1228 = vst [vmem:[%s1219] sm:$0xff] %v1224
      %1229 = vst [vmem:[%s1219 + $0x8] sm:$0xff] %v1225
      %1230 = vst [vmem:[%s1219 + $0x10] sm:$0xff] %v1226
      %1231 = vst [vmem:[%s1219 + $0x18] sm:$0xff] %v1227
      %v1232 = vadd.f32 %v657, 32.5
      %v1233 = vadd.f32 %v658, 32.5
      %v1234 = vadd.f32 %v659, 32.5
      %v1235 = vadd.f32 %v660, 32.5
      %v1236 = vmul.f32 %v1232, 2.5
      %v1237 = vmul.f32 %v1233, 2.5
      %v1238 = vmul.f32 %v1234, 2.5
      %v1239 = vmul.f32 %v1235, 2.5
      loop: start=0, step=1, limit=8
      $region75: #{deep_hist_l1_loss.2} parent=27 // loop_pre_header
        _
      $region76: #{deep_hist_l1_loss.2} parent=27 // loop_header
        %s1241 = sphi 0, %s1245
        %p1242 = scmp.ge.s32.totalorder %s1241, 8
        %v1246 = vphi 0.0, %v1316
        %v1247 = vphi 0.0, %v1317
        %v1248 = vphi 0.0, %v1318
        %v1249 = vphi 0.0, %v1319
      $region77: #{deep_hist_l1_loss.2} parent=27 // loop_header_branch
        %1244 = sbr.rel (%p1242) target = $region81
      $region78: #{deep_hist_l1_loss.2} parent=27 // loop_body
        %s1250 = scalar_lea.vmem [#allocation2], %s1241
        %v1251 = vld [vmem:[%s1250] sm:$0x1]
        %v1252 = vlaneseq
        %v1253 = vshrl.u32 %v1252, 7
        %v1254 = vsub.s32 0, %v1253
        %v1255 = vrot.slane %v1251, %v1254
        %v1256 = vsub.f32 %v1236, %v1255
        %v1257 = vsub.f32 %v1237, %v1255
        %v1258 = vsub.f32 %v1238, %v1255
        %v1259 = vsub.f32 %v1239, %v1255
        %v1260 = vmax.f32 %v1256, -40.0
        %v1261 = vmax.f32 %v1257, -40.0
        %v1262 = vmax.f32 %v1258, -40.0
        %v1263 = vmax.f32 %v1259, -40.0
        %v1264 = vmin.f32 %v1260, 40.0
        %v1265 = vmin.f32 %v1261, 40.0
        %v1266 = vmin.f32 %v1262, 40.0
        %v1267 = vmin.f32 %v1263, 40.0
        %v1268 = vmul.f32 %v1264, 1.442695
        %v1269 = vpow.pop %v1268
        %v1270 = vmul.f32 %v1265, 1.442695
        %v1271 = vpow.pop %v1270
        %v1272 = vmul.f32 %v1266, 1.442695
        %v1273 = vpow.pop %v1272
        %v1274 = vmul.f32 %v1267, 1.442695
        %v1275 = vpow.pop %v1274
        %v1276 = vmul.f32 %v1269, 3.203838
        %v1277 = vmul.f32 %v1271, 3.203838
        %v1278 = vmul.f32 %v1273, 3.203838
        %v1279 = vmul.f32 %v1275, 3.203838
        %v1280 = vmul.f32 %v1269, 3.7768478
        %v1281 = vmul.f32 %v1271, 3.7768478
        %v1282 = vmul.f32 %v1273, 3.7768478
        %v1283 = vmul.f32 %v1275, 3.7768478
        %v1284 = vadd.f32 %v1280, 1.0
        %v1285 = vadd.f32 %v1281, 1.0
        %v1286 = vadd.f32 %v1282, 1.0
        %v1287 = vadd.f32 %v1283, 1.0
        %v1288 = vmul.f32 %v1269, %v1269
        %v1289 = vmul.f32 %v1271, %v1271
        %v1290 = vmul.f32 %v1273, %v1273
        %v1291 = vmul.f32 %v1275, %v1275
        %v1292 = vadd.f32 %v1284, %v1288
        %v1293 = vadd.f32 %v1285, %v1289
        %v1294 = vadd.f32 %v1286, %v1290
        %v1295 = vadd.f32 %v1287, %v1291
        %v1296 = vrcp.pop %v1292
        %v1297 = vrcp.pop %v1293
        %v1298 = vrcp.pop %v1294
        %v1299 = vrcp.pop %v1295
        %v1300 = vmul.f32 %v1292, %v1296
        %v1301 = vmul.f32 %v1293, %v1297
        %v1302 = vmul.f32 %v1294, %v1298
        %v1303 = vmul.f32 %v1295, %v1299
        %v1304 = vsub.f32 2.0, %v1300
        %v1305 = vsub.f32 2.0, %v1301
        %v1306 = vsub.f32 2.0, %v1302
        %v1307 = vsub.f32 2.0, %v1303
        %v1308 = vmul.f32 %v1296, %v1304
        %v1309 = vmul.f32 %v1297, %v1305
        %v1310 = vmul.f32 %v1298, %v1306
        %v1311 = vmul.f32 %v1299, %v1307
        %v1312 = vmul.f32 %v1276, %v1308
        %v1313 = vmul.f32 %v1277, %v1309
        %v1314 = vmul.f32 %v1278, %v1310
        %v1315 = vmul.f32 %v1279, %v1311
        %v1316 = vadd.f32 %v1246, %v1312
        %v1317 = vadd.f32 %v1247, %v1313
        %v1318 = vadd.f32 %v1248, %v1314
        %v1319 = vadd.f32 %v1249, %v1315
      $region79: #{deep_hist_l1_loss.2} parent=27 // loop_footer
        %s1245 = sadd.s32 1, %s1241
      $region80: #{deep_hist_l1_loss.2} parent=27 // loop_footer_branch
        %1240 = sbr.rel target = $region76
      $region81: #{deep_hist_l1_loss.2} parent=27 // loop_exit
        _
      %v1320 = vld [vmem:[%s296 + $0x20] sm:$0xff]
      %v1321 = vld [vmem:[%s296 + $0x28] sm:$0xff]
      %v1322 = vld [vmem:[%s296 + $0x30] sm:$0xff]
      %v1323 = vld [vmem:[%s296 + $0x38] sm:$0xff]
      %v1324 = vadd.f32 %v1320, %v1246
      %v1325 = vadd.f32 %v1321, %v1247
      %v1326 = vadd.f32 %v1322, %v1248
      %v1327 = vadd.f32 %v1323, %v1249
      %1328 = vst [vmem:[%s296 + $0x20] sm:$0xff] %v1324
      %1329 = vst [vmem:[%s296 + $0x28] sm:$0xff] %v1325
      %1330 = vst [vmem:[%s296 + $0x30] sm:$0xff] %v1326
      %1331 = vst [vmem:[%s296 + $0x38] sm:$0xff] %v1327
      loop: start=0, step=1, limit=8
      $region82: #{deep_hist_l1_loss.2} parent=27 // loop_pre_header
        _
      $region83: #{deep_hist_l1_loss.2} parent=27 // loop_header
        %s1333 = sphi 0, %s1337
        %p1334 = scmp.ge.s32.totalorder %s1333, 8
        %v1338 = vphi 0.0, %v1409
        %v1339 = vphi 0.0, %v1410
        %v1340 = vphi 0.0, %v1411
        %v1341 = vphi 0.0, %v1412
      $region84: #{deep_hist_l1_loss.2} parent=27 // loop_header_branch
        %1336 = sbr.rel (%p1334) target = $region88
      $region85: #{deep_hist_l1_loss.2} parent=27 // loop_body
        %s1342 = sadd.s32 %s1333, 8
        %s1343 = scalar_lea.vmem [#allocation2], %s1342
        %v1344 = vld [vmem:[%s1343] sm:$0x1]
        %v1345 = vlaneseq
        %v1346 = vshrl.u32 %v1345, 7
        %v1347 = vsub.s32 0, %v1346
        %v1348 = vrot.slane %v1344, %v1347
        %v1349 = vsub.f32 %v1236, %v1348
        %v1350 = vsub.f32 %v1237, %v1348
        %v1351 = vsub.f32 %v1238, %v1348
        %v1352 = vsub.f32 %v1239, %v1348
        %v1353 = vmax.f32 %v1349, -40.0
        %v1354 = vmax.f32 %v1350, -40.0
        %v1355 = vmax.f32 %v1351, -40.0
        %v1356 = vmax.f32 %v1352, -40.0
        %v1357 = vmin.f32 %v1353, 40.0
        %v1358 = vmin.f32 %v1354, 40.0
        %v1359 = vmin.f32 %v1355, 40.0
        %v1360 = vmin.f32 %v1356, 40.0
        %v1361 = vmul.f32 %v1357, 1.442695
        %v1362 = vpow.pop %v1361
        %v1363 = vmul.f32 %v1358, 1.442695
        %v1364 = vpow.pop %v1363
        %v1365 = vmul.f32 %v1359, 1.442695
        %v1366 = vpow.pop %v1365
        %v1367 = vmul.f32 %v1360, 1.442695
        %v1368 = vpow.pop %v1367
        %v1369 = vmul.f32 %v1362, 3.203838
        %v1370 = vmul.f32 %v1364, 3.203838
        %v1371 = vmul.f32 %v1366, 3.203838
        %v1372 = vmul.f32 %v1368, 3.203838
        %v1373 = vmul.f32 %v1362, 3.7768478
        %v1374 = vmul.f32 %v1364, 3.7768478
        %v1375 = vmul.f32 %v1366, 3.7768478
        %v1376 = vmul.f32 %v1368, 3.7768478
        %v1377 = vadd.f32 %v1373, 1.0
        %v1378 = vadd.f32 %v1374, 1.0
        %v1379 = vadd.f32 %v1375, 1.0
        %v1380 = vadd.f32 %v1376, 1.0
        %v1381 = vmul.f32 %v1362, %v1362
        %v1382 = vmul.f32 %v1364, %v1364
        %v1383 = vmul.f32 %v1366, %v1366
        %v1384 = vmul.f32 %v1368, %v1368
        %v1385 = vadd.f32 %v1377, %v1381
        %v1386 = vadd.f32 %v1378, %v1382
        %v1387 = vadd.f32 %v1379, %v1383
        %v1388 = vadd.f32 %v1380, %v1384
        %v1389 = vrcp.pop %v1385
        %v1390 = vrcp.pop %v1386
        %v1391 = vrcp.pop %v1387
        %v1392 = vrcp.pop %v1388
        %v1393 = vmul.f32 %v1385, %v1389
        %v1394 = vmul.f32 %v1386, %v1390
        %v1395 = vmul.f32 %v1387, %v1391
        %v1396 = vmul.f32 %v1388, %v1392
        %v1397 = vsub.f32 2.0, %v1393
        %v1398 = vsub.f32 2.0, %v1394
        %v1399 = vsub.f32 2.0, %v1395
        %v1400 = vsub.f32 2.0, %v1396
        %v1401 = vmul.f32 %v1389, %v1397
        %v1402 = vmul.f32 %v1390, %v1398
        %v1403 = vmul.f32 %v1391, %v1399
        %v1404 = vmul.f32 %v1392, %v1400
        %v1405 = vmul.f32 %v1369, %v1401
        %v1406 = vmul.f32 %v1370, %v1402
        %v1407 = vmul.f32 %v1371, %v1403
        %v1408 = vmul.f32 %v1372, %v1404
        %v1409 = vadd.f32 %v1338, %v1405
        %v1410 = vadd.f32 %v1339, %v1406
        %v1411 = vadd.f32 %v1340, %v1407
        %v1412 = vadd.f32 %v1341, %v1408
      $region86: #{deep_hist_l1_loss.2} parent=27 // loop_footer
        %s1337 = sadd.s32 1, %s1333
      $region87: #{deep_hist_l1_loss.2} parent=27 // loop_footer_branch
        %1332 = sbr.rel target = $region83
      $region88: #{deep_hist_l1_loss.2} parent=27 // loop_exit
        _
      %v1413 = vld [vmem:[%s842 + $0x20] sm:$0xff]
      %v1414 = vld [vmem:[%s842 + $0x28] sm:$0xff]
      %v1415 = vld [vmem:[%s842 + $0x30] sm:$0xff]
      %v1416 = vld [vmem:[%s842 + $0x38] sm:$0xff]
      %v1417 = vadd.f32 %v1413, %v1338
      %v1418 = vadd.f32 %v1414, %v1339
      %v1419 = vadd.f32 %v1415, %v1340
      %v1420 = vadd.f32 %v1416, %v1341
      %1421 = vst [vmem:[%s842 + $0x20] sm:$0xff] %v1417
      %1422 = vst [vmem:[%s842 + $0x28] sm:$0xff] %v1418
      %1423 = vst [vmem:[%s842 + $0x30] sm:$0xff] %v1419
      %1424 = vst [vmem:[%s842 + $0x38] sm:$0xff] %v1420
      loop: start=0, step=1, limit=8
      $region89: #{deep_hist_l1_loss.2} parent=27 // loop_pre_header
        _
      $region90: #{deep_hist_l1_loss.2} parent=27 // loop_header
        %s1426 = sphi 0, %s1430
        %p1427 = scmp.ge.s32.totalorder %s1426, 8
        %v1431 = vphi 0.0, %v1502
        %v1432 = vphi 0.0, %v1503
        %v1433 = vphi 0.0, %v1504
        %v1434 = vphi 0.0, %v1505
      $region91: #{deep_hist_l1_loss.2} parent=27 // loop_header_branch
        %1429 = sbr.rel (%p1427) target = $region95
      $region92: #{deep_hist_l1_loss.2} parent=27 // loop_body
        %s1435 = sadd.s32 %s1426, 16
        %s1436 = scalar_lea.vmem [#allocation2], %s1435
        %v1437 = vld [vmem:[%s1436] sm:$0x1]
        %v1438 = vlaneseq
        %v1439 = vshrl.u32 %v1438, 7
        %v1440 = vsub.s32 0, %v1439
        %v1441 = vrot.slane %v1437, %v1440
        %v1442 = vsub.f32 %v1236, %v1441
        %v1443 = vsub.f32 %v1237, %v1441
        %v1444 = vsub.f32 %v1238, %v1441
        %v1445 = vsub.f32 %v1239, %v1441
        %v1446 = vmax.f32 %v1442, -40.0
        %v1447 = vmax.f32 %v1443, -40.0
        %v1448 = vmax.f32 %v1444, -40.0
        %v1449 = vmax.f32 %v1445, -40.0
        %v1450 = vmin.f32 %v1446, 40.0
        %v1451 = vmin.f32 %v1447, 40.0
        %v1452 = vmin.f32 %v1448, 40.0
        %v1453 = vmin.f32 %v1449, 40.0
        %v1454 = vmul.f32 %v1450, 1.442695
        %v1455 = vpow.pop %v1454
        %v1456 = vmul.f32 %v1451, 1.442695
        %v1457 = vpow.pop %v1456
        %v1458 = vmul.f32 %v1452, 1.442695
        %v1459 = vpow.pop %v1458
        %v1460 = vmul.f32 %v1453, 1.442695
        %v1461 = vpow.pop %v1460
        %v1462 = vmul.f32 %v1455, 3.203838
        %v1463 = vmul.f32 %v1457, 3.203838
        %v1464 = vmul.f32 %v1459, 3.203838
        %v1465 = vmul.f32 %v1461, 3.203838
        %v1466 = vmul.f32 %v1455, 3.7768478
        %v1467 = vmul.f32 %v1457, 3.7768478
        %v1468 = vmul.f32 %v1459, 3.7768478
        %v1469 = vmul.f32 %v1461, 3.7768478
        %v1470 = vadd.f32 %v1466, 1.0
        %v1471 = vadd.f32 %v1467, 1.0
        %v1472 = vadd.f32 %v1468, 1.0
        %v1473 = vadd.f32 %v1469, 1.0
        %v1474 = vmul.f32 %v1455, %v1455
        %v1475 = vmul.f32 %v1457, %v1457
        %v1476 = vmul.f32 %v1459, %v1459
        %v1477 = vmul.f32 %v1461, %v1461
        %v1478 = vadd.f32 %v1470, %v1474
        %v1479 = vadd.f32 %v1471, %v1475
        %v1480 = vadd.f32 %v1472, %v1476
        %v1481 = vadd.f32 %v1473, %v1477
        %v1482 = vrcp.pop %v1478
        %v1483 = vrcp.pop %v1479
        %v1484 = vrcp.pop %v1480
        %v1485 = vrcp.pop %v1481
        %v1486 = vmul.f32 %v1478, %v1482
        %v1487 = vmul.f32 %v1479, %v1483
        %v1488 = vmul.f32 %v1480, %v1484
        %v1489 = vmul.f32 %v1481, %v1485
        %v1490 = vsub.f32 2.0, %v1486
        %v1491 = vsub.f32 2.0, %v1487
        %v1492 = vsub.f32 2.0, %v1488
        %v1493 = vsub.f32 2.0, %v1489
        %v1494 = vmul.f32 %v1482, %v1490
        %v1495 = vmul.f32 %v1483, %v1491
        %v1496 = vmul.f32 %v1484, %v1492
        %v1497 = vmul.f32 %v1485, %v1493
        %v1498 = vmul.f32 %v1462, %v1494
        %v1499 = vmul.f32 %v1463, %v1495
        %v1500 = vmul.f32 %v1464, %v1496
        %v1501 = vmul.f32 %v1465, %v1497
        %v1502 = vadd.f32 %v1431, %v1498
        %v1503 = vadd.f32 %v1432, %v1499
        %v1504 = vadd.f32 %v1433, %v1500
        %v1505 = vadd.f32 %v1434, %v1501
      $region93: #{deep_hist_l1_loss.2} parent=27 // loop_footer
        %s1430 = sadd.s32 1, %s1426
      $region94: #{deep_hist_l1_loss.2} parent=27 // loop_footer_branch
        %1425 = sbr.rel target = $region90
      $region95: #{deep_hist_l1_loss.2} parent=27 // loop_exit
        _
      %v1506 = vld [vmem:[%s936 + $0x20] sm:$0xff]
      %v1507 = vld [vmem:[%s936 + $0x28] sm:$0xff]
      %v1508 = vld [vmem:[%s936 + $0x30] sm:$0xff]
      %v1509 = vld [vmem:[%s936 + $0x38] sm:$0xff]
      %v1510 = vadd.f32 %v1506, %v1431
      %v1511 = vadd.f32 %v1507, %v1432
      %v1512 = vadd.f32 %v1508, %v1433
      %v1513 = vadd.f32 %v1509, %v1434
      %1514 = vst [vmem:[%s936 + $0x20] sm:$0xff] %v1510
      %1515 = vst [vmem:[%s936 + $0x28] sm:$0xff] %v1511
      %1516 = vst [vmem:[%s936 + $0x30] sm:$0xff] %v1512
      %1517 = vst [vmem:[%s936 + $0x38] sm:$0xff] %v1513
      loop: start=0, step=1, limit=8
      $region96: #{deep_hist_l1_loss.2} parent=27 // loop_pre_header
        _
      $region97: #{deep_hist_l1_loss.2} parent=27 // loop_header
        %s1519 = sphi 0, %s1523
        %p1520 = scmp.ge.s32.totalorder %s1519, 8
        %v1524 = vphi 0.0, %v1595
        %v1525 = vphi 0.0, %v1596
        %v1526 = vphi 0.0, %v1597
        %v1527 = vphi 0.0, %v1598
      $region98: #{deep_hist_l1_loss.2} parent=27 // loop_header_branch
        %1522 = sbr.rel (%p1520) target = $region102
      $region99: #{deep_hist_l1_loss.2} parent=27 // loop_body
        %s1528 = sadd.s32 %s1519, 24
        %s1529 = scalar_lea.vmem [#allocation2], %s1528
        %v1530 = vld [vmem:[%s1529] sm:$0x1]
        %v1531 = vlaneseq
        %v1532 = vshrl.u32 %v1531, 7
        %v1533 = vsub.s32 0, %v1532
        %v1534 = vrot.slane %v1530, %v1533
        %v1535 = vsub.f32 %v1236, %v1534
        %v1536 = vsub.f32 %v1237, %v1534
        %v1537 = vsub.f32 %v1238, %v1534
        %v1538 = vsub.f32 %v1239, %v1534
        %v1539 = vmax.f32 %v1535, -40.0
        %v1540 = vmax.f32 %v1536, -40.0
        %v1541 = vmax.f32 %v1537, -40.0
        %v1542 = vmax.f32 %v1538, -40.0
        %v1543 = vmin.f32 %v1539, 40.0
        %v1544 = vmin.f32 %v1540, 40.0
        %v1545 = vmin.f32 %v1541, 40.0
        %v1546 = vmin.f32 %v1542, 40.0
        %v1547 = vmul.f32 %v1543, 1.442695
        %v1548 = vpow.pop %v1547
        %v1549 = vmul.f32 %v1544, 1.442695
        %v1550 = vpow.pop %v1549
        %v1551 = vmul.f32 %v1545, 1.442695
        %v1552 = vpow.pop %v1551
        %v1553 = vmul.f32 %v1546, 1.442695
        %v1554 = vpow.pop %v1553
        %v1555 = vmul.f32 %v1548, 3.203838
        %v1556 = vmul.f32 %v1550, 3.203838
        %v1557 = vmul.f32 %v1552, 3.203838
        %v1558 = vmul.f32 %v1554, 3.203838
        %v1559 = vmul.f32 %v1548, 3.7768478
        %v1560 = vmul.f32 %v1550, 3.7768478
        %v1561 = vmul.f32 %v1552, 3.7768478
        %v1562 = vmul.f32 %v1554, 3.7768478
        %v1563 = vadd.f32 %v1559, 1.0
        %v1564 = vadd.f32 %v1560, 1.0
        %v1565 = vadd.f32 %v1561, 1.0
        %v1566 = vadd.f32 %v1562, 1.0
        %v1567 = vmul.f32 %v1548, %v1548
        %v1568 = vmul.f32 %v1550, %v1550
        %v1569 = vmul.f32 %v1552, %v1552
        %v1570 = vmul.f32 %v1554, %v1554
        %v1571 = vadd.f32 %v1563, %v1567
        %v1572 = vadd.f32 %v1564, %v1568
        %v1573 = vadd.f32 %v1565, %v1569
        %v1574 = vadd.f32 %v1566, %v1570
        %v1575 = vrcp.pop %v1571
        %v1576 = vrcp.pop %v1572
        %v1577 = vrcp.pop %v1573
        %v1578 = vrcp.pop %v1574
        %v1579 = vmul.f32 %v1571, %v1575
        %v1580 = vmul.f32 %v1572, %v1576
        %v1581 = vmul.f32 %v1573, %v1577
        %v1582 = vmul.f32 %v1574, %v1578
        %v1583 = vsub.f32 2.0, %v1579
        %v1584 = vsub.f32 2.0, %v1580
        %v1585 = vsub.f32 2.0, %v1581
        %v1586 = vsub.f32 2.0, %v1582
        %v1587 = vmul.f32 %v1575, %v1583
        %v1588 = vmul.f32 %v1576, %v1584
        %v1589 = vmul.f32 %v1577, %v1585
        %v1590 = vmul.f32 %v1578, %v1586
        %v1591 = vmul.f32 %v1555, %v1587
        %v1592 = vmul.f32 %v1556, %v1588
        %v1593 = vmul.f32 %v1557, %v1589
        %v1594 = vmul.f32 %v1558, %v1590
        %v1595 = vadd.f32 %v1524, %v1591
        %v1596 = vadd.f32 %v1525, %v1592
        %v1597 = vadd.f32 %v1526, %v1593
        %v1598 = vadd.f32 %v1527, %v1594
      $region100: #{deep_hist_l1_loss.2} parent=27 // loop_footer
        %s1523 = sadd.s32 1, %s1519
      $region101: #{deep_hist_l1_loss.2} parent=27 // loop_footer_branch
        %1518 = sbr.rel target = $region97
      $region102: #{deep_hist_l1_loss.2} parent=27 // loop_exit
        _
      %v1599 = vld [vmem:[%s301 + $0x20] sm:$0xff]
      %v1600 = vld [vmem:[%s301 + $0x28] sm:$0xff]
      %v1601 = vld [vmem:[%s301 + $0x30] sm:$0xff]
      %v1602 = vld [vmem:[%s301 + $0x38] sm:$0xff]
      %v1603 = vadd.f32 %v1599, %v1524
      %v1604 = vadd.f32 %v1600, %v1525
      %v1605 = vadd.f32 %v1601, %v1526
      %v1606 = vadd.f32 %v1602, %v1527
      %1607 = vst [vmem:[%s301 + $0x20] sm:$0xff] %v1603
      %1608 = vst [vmem:[%s301 + $0x28] sm:$0xff] %v1604
      %1609 = vst [vmem:[%s301 + $0x30] sm:$0xff] %v1605
      %1610 = vst [vmem:[%s301 + $0x38] sm:$0xff] %v1606
      loop: start=0, step=1, limit=8
      $region103: #{deep_hist_l1_loss.2} parent=27 // loop_pre_header
        _
      $region104: #{deep_hist_l1_loss.2} parent=27 // loop_header
        %s1612 = sphi 0, %s1616
        %p1613 = scmp.ge.s32.totalorder %s1612, 8
        %v1617 = vphi 0.0, %v1689
        %v1618 = vphi 0.0, %v1690
        %v1619 = vphi 0.0, %v1691
        %v1620 = vphi 0.0, %v1692
      $region105: #{deep_hist_l1_loss.2} parent=27 // loop_header_branch
        %1615 = sbr.rel (%p1613) target = $region109
      $region106: #{deep_hist_l1_loss.2} parent=27 // loop_body
        %s1621 = sadd.s32 %s1612, 8
        %s1622 = sadd.s32 %s1621, 24
        %s1623 = scalar_lea.vmem [#allocation2], %s1622
        %v1624 = vld [vmem:[%s1623] sm:$0x1]
        %v1625 = vlaneseq
        %v1626 = vshrl.u32 %v1625, 7
        %v1627 = vsub.s32 0, %v1626
        %v1628 = vrot.slane %v1624, %v1627
        %v1629 = vsub.f32 %v1236, %v1628
        %v1630 = vsub.f32 %v1237, %v1628
        %v1631 = vsub.f32 %v1238, %v1628
        %v1632 = vsub.f32 %v1239, %v1628
        %v1633 = vmax.f32 %v1629, -40.0
        %v1634 = vmax.f32 %v1630, -40.0
        %v1635 = vmax.f32 %v1631, -40.0
        %v1636 = vmax.f32 %v1632, -40.0
        %v1637 = vmin.f32 %v1633, 40.0
        %v1638 = vmin.f32 %v1634, 40.0
        %v1639 = vmin.f32 %v1635, 40.0
        %v1640 = vmin.f32 %v1636, 40.0
        %v1641 = vmul.f32 %v1637, 1.442695
        %v1642 = vpow.pop %v1641
        %v1643 = vmul.f32 %v1638, 1.442695
        %v1644 = vpow.pop %v1643
        %v1645 = vmul.f32 %v1639, 1.442695
        %v1646 = vpow.pop %v1645
        %v1647 = vmul.f32 %v1640, 1.442695
        %v1648 = vpow.pop %v1647
        %v1649 = vmul.f32 %v1642, 3.203838
        %v1650 = vmul.f32 %v1644, 3.203838
        %v1651 = vmul.f32 %v1646, 3.203838
        %v1652 = vmul.f32 %v1648, 3.203838
        %v1653 = vmul.f32 %v1642, 3.7768478
        %v1654 = vmul.f32 %v1644, 3.7768478
        %v1655 = vmul.f32 %v1646, 3.7768478
        %v1656 = vmul.f32 %v1648, 3.7768478
        %v1657 = vadd.f32 %v1653, 1.0
        %v1658 = vadd.f32 %v1654, 1.0
        %v1659 = vadd.f32 %v1655, 1.0
        %v1660 = vadd.f32 %v1656, 1.0
        %v1661 = vmul.f32 %v1642, %v1642
        %v1662 = vmul.f32 %v1644, %v1644
        %v1663 = vmul.f32 %v1646, %v1646
        %v1664 = vmul.f32 %v1648, %v1648
        %v1665 = vadd.f32 %v1657, %v1661
        %v1666 = vadd.f32 %v1658, %v1662
        %v1667 = vadd.f32 %v1659, %v1663
        %v1668 = vadd.f32 %v1660, %v1664
        %v1669 = vrcp.pop %v1665
        %v1670 = vrcp.pop %v1666
        %v1671 = vrcp.pop %v1667
        %v1672 = vrcp.pop %v1668
        %v1673 = vmul.f32 %v1665, %v1669
        %v1674 = vmul.f32 %v1666, %v1670
        %v1675 = vmul.f32 %v1667, %v1671
        %v1676 = vmul.f32 %v1668, %v1672
        %v1677 = vsub.f32 2.0, %v1673
        %v1678 = vsub.f32 2.0, %v1674
        %v1679 = vsub.f32 2.0, %v1675
        %v1680 = vsub.f32 2.0, %v1676
        %v1681 = vmul.f32 %v1669, %v1677
        %v1682 = vmul.f32 %v1670, %v1678
        %v1683 = vmul.f32 %v1671, %v1679
        %v1684 = vmul.f32 %v1672, %v1680
        %v1685 = vmul.f32 %v1649, %v1681
        %v1686 = vmul.f32 %v1650, %v1682
        %v1687 = vmul.f32 %v1651, %v1683
        %v1688 = vmul.f32 %v1652, %v1684
        %v1689 = vadd.f32 %v1617, %v1685
        %v1690 = vadd.f32 %v1618, %v1686
        %v1691 = vadd.f32 %v1619, %v1687
        %v1692 = vadd.f32 %v1620, %v1688
      $region107: #{deep_hist_l1_loss.2} parent=27 // loop_footer
        %s1616 = sadd.s32 1, %s1612
      $region108: #{deep_hist_l1_loss.2} parent=27 // loop_footer_branch
        %1611 = sbr.rel target = $region104
      $region109: #{deep_hist_l1_loss.2} parent=27 // loop_exit
        _
      %v1693 = vld [vmem:[%s1124 + $0x20] sm:$0xff]
      %v1694 = vld [vmem:[%s1124 + $0x28] sm:$0xff]
      %v1695 = vld [vmem:[%s1124 + $0x30] sm:$0xff]
      %v1696 = vld [vmem:[%s1124 + $0x38] sm:$0xff]
      %v1697 = vadd.f32 %v1693, %v1617
      %v1698 = vadd.f32 %v1694, %v1618
      %v1699 = vadd.f32 %v1695, %v1619
      %v1700 = vadd.f32 %v1696, %v1620
      %1701 = vst [vmem:[%s1124 + $0x20] sm:$0xff] %v1697
      %1702 = vst [vmem:[%s1124 + $0x28] sm:$0xff] %v1698
      %1703 = vst [vmem:[%s1124 + $0x30] sm:$0xff] %v1699
      %1704 = vst [vmem:[%s1124 + $0x38] sm:$0xff] %v1700
      loop: start=0, step=1, limit=8
      $region110: #{deep_hist_l1_loss.2} parent=27 // loop_pre_header
        _
      $region111: #{deep_hist_l1_loss.2} parent=27 // loop_header
        %s1706 = sphi 0, %s1710
        %p1707 = scmp.ge.s32.totalorder %s1706, 8
        %v1711 = vphi 0.0, %v1783
        %v1712 = vphi 0.0, %v1784
        %v1713 = vphi 0.0, %v1785
        %v1714 = vphi 0.0, %v1786
      $region112: #{deep_hist_l1_loss.2} parent=27 // loop_header_branch
        %1709 = sbr.rel (%p1707) target = $region116
      $region113: #{deep_hist_l1_loss.2} parent=27 // loop_body
        %s1715 = sadd.s32 %s1706, 16
        %s1716 = sadd.s32 %s1715, 24
        %s1717 = scalar_lea.vmem [#allocation2], %s1716
        %v1718 = vld [vmem:[%s1717] sm:$0x1]
        %v1719 = vlaneseq
        %v1720 = vshrl.u32 %v1719, 7
        %v1721 = vsub.s32 0, %v1720
        %v1722 = vrot.slane %v1718, %v1721
        %v1723 = vsub.f32 %v1236, %v1722
        %v1724 = vsub.f32 %v1237, %v1722
        %v1725 = vsub.f32 %v1238, %v1722
        %v1726 = vsub.f32 %v1239, %v1722
        %v1727 = vmax.f32 %v1723, -40.0
        %v1728 = vmax.f32 %v1724, -40.0
        %v1729 = vmax.f32 %v1725, -40.0
        %v1730 = vmax.f32 %v1726, -40.0
        %v1731 = vmin.f32 %v1727, 40.0
        %v1732 = vmin.f32 %v1728, 40.0
        %v1733 = vmin.f32 %v1729, 40.0
        %v1734 = vmin.f32 %v1730, 40.0
        %v1735 = vmul.f32 %v1731, 1.442695
        %v1736 = vpow.pop %v1735
        %v1737 = vmul.f32 %v1732, 1.442695
        %v1738 = vpow.pop %v1737
        %v1739 = vmul.f32 %v1733, 1.442695
        %v1740 = vpow.pop %v1739
        %v1741 = vmul.f32 %v1734, 1.442695
        %v1742 = vpow.pop %v1741
        %v1743 = vmul.f32 %v1736, 3.203838
        %v1744 = vmul.f32 %v1738, 3.203838
        %v1745 = vmul.f32 %v1740, 3.203838
        %v1746 = vmul.f32 %v1742, 3.203838
        %v1747 = vmul.f32 %v1736, 3.7768478
        %v1748 = vmul.f32 %v1738, 3.7768478
        %v1749 = vmul.f32 %v1740, 3.7768478
        %v1750 = vmul.f32 %v1742, 3.7768478
        %v1751 = vadd.f32 %v1747, 1.0
        %v1752 = vadd.f32 %v1748, 1.0
        %v1753 = vadd.f32 %v1749, 1.0
        %v1754 = vadd.f32 %v1750, 1.0
        %v1755 = vmul.f32 %v1736, %v1736
        %v1756 = vmul.f32 %v1738, %v1738
        %v1757 = vmul.f32 %v1740, %v1740
        %v1758 = vmul.f32 %v1742, %v1742
        %v1759 = vadd.f32 %v1751, %v1755
        %v1760 = vadd.f32 %v1752, %v1756
        %v1761 = vadd.f32 %v1753, %v1757
        %v1762 = vadd.f32 %v1754, %v1758
        %v1763 = vrcp.pop %v1759
        %v1764 = vrcp.pop %v1760
        %v1765 = vrcp.pop %v1761
        %v1766 = vrcp.pop %v1762
        %v1767 = vmul.f32 %v1759, %v1763
        %v1768 = vmul.f32 %v1760, %v1764
        %v1769 = vmul.f32 %v1761, %v1765
        %v1770 = vmul.f32 %v1762, %v1766
        %v1771 = vsub.f32 2.0, %v1767
        %v1772 = vsub.f32 2.0, %v1768
        %v1773 = vsub.f32 2.0, %v1769
        %v1774 = vsub.f32 2.0, %v1770
        %v1775 = vmul.f32 %v1763, %v1771
        %v1776 = vmul.f32 %v1764, %v1772
        %v1777 = vmul.f32 %v1765, %v1773
        %v1778 = vmul.f32 %v1766, %v1774
        %v1779 = vmul.f32 %v1743, %v1775
        %v1780 = vmul.f32 %v1744, %v1776
        %v1781 = vmul.f32 %v1745, %v1777
        %v1782 = vmul.f32 %v1746, %v1778
        %v1783 = vadd.f32 %v1711, %v1779
        %v1784 = vadd.f32 %v1712, %v1780
        %v1785 = vadd.f32 %v1713, %v1781
        %v1786 = vadd.f32 %v1714, %v1782
      $region114: #{deep_hist_l1_loss.2} parent=27 // loop_footer
        %s1710 = sadd.s32 1, %s1706
      $region115: #{deep_hist_l1_loss.2} parent=27 // loop_footer_branch
        %1705 = sbr.rel target = $region111
      $region116: #{deep_hist_l1_loss.2} parent=27 // loop_exit
        _
      %v1787 = vld [vmem:[%s1219 + $0x20] sm:$0xff]
      %v1788 = vld [vmem:[%s1219 + $0x28] sm:$0xff]
      %v1789 = vld [vmem:[%s1219 + $0x30] sm:$0xff]
      %v1790 = vld [vmem:[%s1219 + $0x38] sm:$0xff]
      %v1791 = vadd.f32 %v1787, %v1711
      %v1792 = vadd.f32 %v1788, %v1712
      %v1793 = vadd.f32 %v1789, %v1713
      %v1794 = vadd.f32 %v1790, %v1714
      %1795 = vst [vmem:[%s1219 + $0x20] sm:$0xff] %v1791
      %1796 = vst [vmem:[%s1219 + $0x28] sm:$0xff] %v1792
      %1797 = vst [vmem:[%s1219 + $0x30] sm:$0xff] %v1793
      %1798 = vst [vmem:[%s1219 + $0x38] sm:$0xff] %v1794
      %v1799 = vadd.f32 %v657, 64.5
      %v1800 = vadd.f32 %v658, 64.5
      %v1801 = vadd.f32 %v659, 64.5
      %v1802 = vadd.f32 %v660, 64.5
      %v1803 = vmul.f32 %v1799, 2.5
      %v1804 = vmul.f32 %v1800, 2.5
      %v1805 = vmul.f32 %v1801, 2.5
      %v1806 = vmul.f32 %v1802, 2.5
      loop: start=0, step=1, limit=8
      $region117: #{deep_hist_l1_loss.2} parent=27 // loop_pre_header
        _
      $region118: #{deep_hist_l1_loss.2} parent=27 // loop_header
        %s1808 = sphi 0, %s1812
        %p1809 = scmp.ge.s32.totalorder %s1808, 8
        %v1813 = vphi 0.0, %v1883
        %v1814 = vphi 0.0, %v1884
        %v1815 = vphi 0.0, %v1885
        %v1816 = vphi 0.0, %v1886
      $region119: #{deep_hist_l1_loss.2} parent=27 // loop_header_branch
        %1811 = sbr.rel (%p1809) target = $region123
      $region120: #{deep_hist_l1_loss.2} parent=27 // loop_body
        %s1817 = scalar_lea.vmem [#allocation2], %s1808
        %v1818 = vld [vmem:[%s1817] sm:$0x1]
        %v1819 = vlaneseq
        %v1820 = vshrl.u32 %v1819, 7
        %v1821 = vsub.s32 0, %v1820
        %v1822 = vrot.slane %v1818, %v1821
        %v1823 = vsub.f32 %v1803, %v1822
        %v1824 = vsub.f32 %v1804, %v1822
        %v1825 = vsub.f32 %v1805, %v1822
        %v1826 = vsub.f32 %v1806, %v1822
        %v1827 = vmax.f32 %v1823, -40.0
        %v1828 = vmax.f32 %v1824, -40.0
        %v1829 = vmax.f32 %v1825, -40.0
        %v1830 = vmax.f32 %v1826, -40.0
        %v1831 = vmin.f32 %v1827, 40.0
        %v1832 = vmin.f32 %v1828, 40.0
        %v1833 = vmin.f32 %v1829, 40.0
        %v1834 = vmin.f32 %v1830, 40.0
        %v1835 = vmul.f32 %v1831, 1.442695
        %v1836 = vpow.pop %v1835
        %v1837 = vmul.f32 %v1832, 1.442695
        %v1838 = vpow.pop %v1837
        %v1839 = vmul.f32 %v1833, 1.442695
        %v1840 = vpow.pop %v1839
        %v1841 = vmul.f32 %v1834, 1.442695
        %v1842 = vpow.pop %v1841
        %v1843 = vmul.f32 %v1836, 3.203838
        %v1844 = vmul.f32 %v1838, 3.203838
        %v1845 = vmul.f32 %v1840, 3.203838
        %v1846 = vmul.f32 %v1842, 3.203838
        %v1847 = vmul.f32 %v1836, 3.7768478
        %v1848 = vmul.f32 %v1838, 3.7768478
        %v1849 = vmul.f32 %v1840, 3.7768478
        %v1850 = vmul.f32 %v1842, 3.7768478
        %v1851 = vadd.f32 %v1847, 1.0
        %v1852 = vadd.f32 %v1848, 1.0
        %v1853 = vadd.f32 %v1849, 1.0
        %v1854 = vadd.f32 %v1850, 1.0
        %v1855 = vmul.f32 %v1836, %v1836
        %v1856 = vmul.f32 %v1838, %v1838
        %v1857 = vmul.f32 %v1840, %v1840
        %v1858 = vmul.f32 %v1842, %v1842
        %v1859 = vadd.f32 %v1851, %v1855
        %v1860 = vadd.f32 %v1852, %v1856
        %v1861 = vadd.f32 %v1853, %v1857
        %v1862 = vadd.f32 %v1854, %v1858
        %v1863 = vrcp.pop %v1859
        %v1864 = vrcp.pop %v1860
        %v1865 = vrcp.pop %v1861
        %v1866 = vrcp.pop %v1862
        %v1867 = vmul.f32 %v1859, %v1863
        %v1868 = vmul.f32 %v1860, %v1864
        %v1869 = vmul.f32 %v1861, %v1865
        %v1870 = vmul.f32 %v1862, %v1866
        %v1871 = vsub.f32 2.0, %v1867
        %v1872 = vsub.f32 2.0, %v1868
        %v1873 = vsub.f32 2.0, %v1869
        %v1874 = vsub.f32 2.0, %v1870
        %v1875 = vmul.f32 %v1863, %v1871
        %v1876 = vmul.f32 %v1864, %v1872
        %v1877 = vmul.f32 %v1865, %v1873
        %v1878 = vmul.f32 %v1866, %v1874
        %v1879 = vmul.f32 %v1843, %v1875
        %v1880 = vmul.f32 %v1844, %v1876
        %v1881 = vmul.f32 %v1845, %v1877
        %v1882 = vmul.f32 %v1846, %v1878
        %v1883 = vadd.f32 %v1813, %v1879
        %v1884 = vadd.f32 %v1814, %v1880
        %v1885 = vadd.f32 %v1815, %v1881
        %v1886 = vadd.f32 %v1816, %v1882
      $region121: #{deep_hist_l1_loss.2} parent=27 // loop_footer
        %s1812 = sadd.s32 1, %s1808
      $region122: #{deep_hist_l1_loss.2} parent=27 // loop_footer_branch
        %1807 = sbr.rel target = $region118
      $region123: #{deep_hist_l1_loss.2} parent=27 // loop_exit
        _
      %v1887 = vld [vmem:[%s296 + $0x40] sm:$0xff]
      %v1888 = vld [vmem:[%s296 + $0x48] sm:$0xff]
      %v1889 = vld [vmem:[%s296 + $0x50] sm:$0xff]
      %v1890 = vld [vmem:[%s296 + $0x58] sm:$0xff]
      %v1891 = vadd.f32 %v1887, %v1813
      %v1892 = vadd.f32 %v1888, %v1814
      %v1893 = vadd.f32 %v1889, %v1815
      %v1894 = vadd.f32 %v1890, %v1816
      %1895 = vst [vmem:[%s296 + $0x40] sm:$0xff] %v1891
      %1896 = vst [vmem:[%s296 + $0x48] sm:$0xff] %v1892
      %1897 = vst [vmem:[%s296 + $0x50] sm:$0xff] %v1893
      %1898 = vst [vmem:[%s296 + $0x58] sm:$0xff] %v1894
      loop: start=0, step=1, limit=8
      $region124: #{deep_hist_l1_loss.2} parent=27 // loop_pre_header
        _
      $region125: #{deep_hist_l1_loss.2} parent=27 // loop_header
        %s1900 = sphi 0, %s1904
        %p1901 = scmp.ge.s32.totalorder %s1900, 8
        %v1905 = vphi 0.0, %v1976
        %v1906 = vphi 0.0, %v1977
        %v1907 = vphi 0.0, %v1978
        %v1908 = vphi 0.0, %v1979
      $region126: #{deep_hist_l1_loss.2} parent=27 // loop_header_branch
        %1903 = sbr.rel (%p1901) target = $region130
      $region127: #{deep_hist_l1_loss.2} parent=27 // loop_body
        %s1909 = sadd.s32 %s1900, 8
        %s1910 = scalar_lea.vmem [#allocation2], %s1909
        %v1911 = vld [vmem:[%s1910] sm:$0x1]
        %v1912 = vlaneseq
        %v1913 = vshrl.u32 %v1912, 7
        %v1914 = vsub.s32 0, %v1913
        %v1915 = vrot.slane %v1911, %v1914
        %v1916 = vsub.f32 %v1803, %v1915
        %v1917 = vsub.f32 %v1804, %v1915
        %v1918 = vsub.f32 %v1805, %v1915
        %v1919 = vsub.f32 %v1806, %v1915
        %v1920 = vmax.f32 %v1916, -40.0
        %v1921 = vmax.f32 %v1917, -40.0
        %v1922 = vmax.f32 %v1918, -40.0
        %v1923 = vmax.f32 %v1919, -40.0
        %v1924 = vmin.f32 %v1920, 40.0
        %v1925 = vmin.f32 %v1921, 40.0
        %v1926 = vmin.f32 %v1922, 40.0
        %v1927 = vmin.f32 %v1923, 40.0
        %v1928 = vmul.f32 %v1924, 1.442695
        %v1929 = vpow.pop %v1928
        %v1930 = vmul.f32 %v1925, 1.442695
        %v1931 = vpow.pop %v1930
        %v1932 = vmul.f32 %v1926, 1.442695
        %v1933 = vpow.pop %v1932
        %v1934 = vmul.f32 %v1927, 1.442695
        %v1935 = vpow.pop %v1934
        %v1936 = vmul.f32 %v1929, 3.203838
        %v1937 = vmul.f32 %v1931, 3.203838
        %v1938 = vmul.f32 %v1933, 3.203838
        %v1939 = vmul.f32 %v1935, 3.203838
        %v1940 = vmul.f32 %v1929, 3.7768478
        %v1941 = vmul.f32 %v1931, 3.7768478
        %v1942 = vmul.f32 %v1933, 3.7768478
        %v1943 = vmul.f32 %v1935, 3.7768478
        %v1944 = vadd.f32 %v1940, 1.0
        %v1945 = vadd.f32 %v1941, 1.0
        %v1946 = vadd.f32 %v1942, 1.0
        %v1947 = vadd.f32 %v1943, 1.0
        %v1948 = vmul.f32 %v1929, %v1929
        %v1949 = vmul.f32 %v1931, %v1931
        %v1950 = vmul.f32 %v1933, %v1933
        %v1951 = vmul.f32 %v1935, %v1935
        %v1952 = vadd.f32 %v1944, %v1948
        %v1953 = vadd.f32 %v1945, %v1949
        %v1954 = vadd.f32 %v1946, %v1950
        %v1955 = vadd.f32 %v1947, %v1951
        %v1956 = vrcp.pop %v1952
        %v1957 = vrcp.pop %v1953
        %v1958 = vrcp.pop %v1954
        %v1959 = vrcp.pop %v1955
        %v1960 = vmul.f32 %v1952, %v1956
        %v1961 = vmul.f32 %v1953, %v1957
        %v1962 = vmul.f32 %v1954, %v1958
        %v1963 = vmul.f32 %v1955, %v1959
        %v1964 = vsub.f32 2.0, %v1960
        %v1965 = vsub.f32 2.0, %v1961
        %v1966 = vsub.f32 2.0, %v1962
        %v1967 = vsub.f32 2.0, %v1963
        %v1968 = vmul.f32 %v1956, %v1964
        %v1969 = vmul.f32 %v1957, %v1965
        %v1970 = vmul.f32 %v1958, %v1966
        %v1971 = vmul.f32 %v1959, %v1967
        %v1972 = vmul.f32 %v1936, %v1968
        %v1973 = vmul.f32 %v1937, %v1969
        %v1974 = vmul.f32 %v1938, %v1970
        %v1975 = vmul.f32 %v1939, %v1971
        %v1976 = vadd.f32 %v1905, %v1972
        %v1977 = vadd.f32 %v1906, %v1973
        %v1978 = vadd.f32 %v1907, %v1974
        %v1979 = vadd.f32 %v1908, %v1975
      $region128: #{deep_hist_l1_loss.2} parent=27 // loop_footer
        %s1904 = sadd.s32 1, %s1900
      $region129: #{deep_hist_l1_loss.2} parent=27 // loop_footer_branch
        %1899 = sbr.rel target = $region125
      $region130: #{deep_hist_l1_loss.2} parent=27 // loop_exit
        _
      %v1980 = vld [vmem:[%s842 + $0x40] sm:$0xff]
      %v1981 = vld [vmem:[%s842 + $0x48] sm:$0xff]
      %v1982 = vld [vmem:[%s842 + $0x50] sm:$0xff]
      %v1983 = vld [vmem:[%s842 + $0x58] sm:$0xff]
      %v1984 = vadd.f32 %v1980, %v1905
      %v1985 = vadd.f32 %v1981, %v1906
      %v1986 = vadd.f32 %v1982, %v1907
      %v1987 = vadd.f32 %v1983, %v1908
      %1988 = vst [vmem:[%s842 + $0x40] sm:$0xff] %v1984
      %1989 = vst [vmem:[%s842 + $0x48] sm:$0xff] %v1985
      %1990 = vst [vmem:[%s842 + $0x50] sm:$0xff] %v1986
      %1991 = vst [vmem:[%s842 + $0x58] sm:$0xff] %v1987
      loop: start=0, step=1, limit=8
      $region131: #{deep_hist_l1_loss.2} parent=27 // loop_pre_header
        _
      $region132: #{deep_hist_l1_loss.2} parent=27 // loop_header
        %s1993 = sphi 0, %s1997
        %p1994 = scmp.ge.s32.totalorder %s1993, 8
        %v1998 = vphi 0.0, %v2069
        %v1999 = vphi 0.0, %v2070
        %v2000 = vphi 0.0, %v2071
        %v2001 = vphi 0.0, %v2072
      $region133: #{deep_hist_l1_loss.2} parent=27 // loop_header_branch
        %1996 = sbr.rel (%p1994) target = $region137
      $region134: #{deep_hist_l1_loss.2} parent=27 // loop_body
        %s2002 = sadd.s32 %s1993, 16
        %s2003 = scalar_lea.vmem [#allocation2], %s2002
        %v2004 = vld [vmem:[%s2003] sm:$0x1]
        %v2005 = vlaneseq
        %v2006 = vshrl.u32 %v2005, 7
        %v2007 = vsub.s32 0, %v2006
        %v2008 = vrot.slane %v2004, %v2007
        %v2009 = vsub.f32 %v1803, %v2008
        %v2010 = vsub.f32 %v1804, %v2008
        %v2011 = vsub.f32 %v1805, %v2008
        %v2012 = vsub.f32 %v1806, %v2008
        %v2013 = vmax.f32 %v2009, -40.0
        %v2014 = vmax.f32 %v2010, -40.0
        %v2015 = vmax.f32 %v2011, -40.0
        %v2016 = vmax.f32 %v2012, -40.0
        %v2017 = vmin.f32 %v2013, 40.0
        %v2018 = vmin.f32 %v2014, 40.0
        %v2019 = vmin.f32 %v2015, 40.0
        %v2020 = vmin.f32 %v2016, 40.0
        %v2021 = vmul.f32 %v2017, 1.442695
        %v2022 = vpow.pop %v2021
        %v2023 = vmul.f32 %v2018, 1.442695
        %v2024 = vpow.pop %v2023
        %v2025 = vmul.f32 %v2019, 1.442695
        %v2026 = vpow.pop %v2025
        %v2027 = vmul.f32 %v2020, 1.442695
        %v2028 = vpow.pop %v2027
        %v2029 = vmul.f32 %v2022, 3.203838
        %v2030 = vmul.f32 %v2024, 3.203838
        %v2031 = vmul.f32 %v2026, 3.203838
        %v2032 = vmul.f32 %v2028, 3.203838
        %v2033 = vmul.f32 %v2022, 3.7768478
        %v2034 = vmul.f32 %v2024, 3.7768478
        %v2035 = vmul.f32 %v2026, 3.7768478
        %v2036 = vmul.f32 %v2028, 3.7768478
        %v2037 = vadd.f32 %v2033, 1.0
        %v2038 = vadd.f32 %v2034, 1.0
        %v2039 = vadd.f32 %v2035, 1.0
        %v2040 = vadd.f32 %v2036, 1.0
        %v2041 = vmul.f32 %v2022, %v2022
        %v2042 = vmul.f32 %v2024, %v2024
        %v2043 = vmul.f32 %v2026, %v2026
        %v2044 = vmul.f32 %v2028, %v2028
        %v2045 = vadd.f32 %v2037, %v2041
        %v2046 = vadd.f32 %v2038, %v2042
        %v2047 = vadd.f32 %v2039, %v2043
        %v2048 = vadd.f32 %v2040, %v2044
        %v2049 = vrcp.pop %v2045
        %v2050 = vrcp.pop %v2046
        %v2051 = vrcp.pop %v2047
        %v2052 = vrcp.pop %v2048
        %v2053 = vmul.f32 %v2045, %v2049
        %v2054 = vmul.f32 %v2046, %v2050
        %v2055 = vmul.f32 %v2047, %v2051
        %v2056 = vmul.f32 %v2048, %v2052
        %v2057 = vsub.f32 2.0, %v2053
        %v2058 = vsub.f32 2.0, %v2054
        %v2059 = vsub.f32 2.0, %v2055
        %v2060 = vsub.f32 2.0, %v2056
        %v2061 = vmul.f32 %v2049, %v2057
        %v2062 = vmul.f32 %v2050, %v2058
        %v2063 = vmul.f32 %v2051, %v2059
        %v2064 = vmul.f32 %v2052, %v2060
        %v2065 = vmul.f32 %v2029, %v2061
        %v2066 = vmul.f32 %v2030, %v2062
        %v2067 = vmul.f32 %v2031, %v2063
        %v2068 = vmul.f32 %v2032, %v2064
        %v2069 = vadd.f32 %v1998, %v2065
        %v2070 = vadd.f32 %v1999, %v2066
        %v2071 = vadd.f32 %v2000, %v2067
        %v2072 = vadd.f32 %v2001, %v2068
      $region135: #{deep_hist_l1_loss.2} parent=27 // loop_footer
        %s1997 = sadd.s32 1, %s1993
      $region136: #{deep_hist_l1_loss.2} parent=27 // loop_footer_branch
        %1992 = sbr.rel target = $region132
      $region137: #{deep_hist_l1_loss.2} parent=27 // loop_exit
        _
      %v2073 = vld [vmem:[%s936 + $0x40] sm:$0xff]
      %v2074 = vld [vmem:[%s936 + $0x48] sm:$0xff]
      %v2075 = vld [vmem:[%s936 + $0x50] sm:$0xff]
      %v2076 = vld [vmem:[%s936 + $0x58] sm:$0xff]
      %v2077 = vadd.f32 %v2073, %v1998
      %v2078 = vadd.f32 %v2074, %v1999
      %v2079 = vadd.f32 %v2075, %v2000
      %v2080 = vadd.f32 %v2076, %v2001
      %2081 = vst [vmem:[%s936 + $0x40] sm:$0xff] %v2077
      %2082 = vst [vmem:[%s936 + $0x48] sm:$0xff] %v2078
      %2083 = vst [vmem:[%s936 + $0x50] sm:$0xff] %v2079
      %2084 = vst [vmem:[%s936 + $0x58] sm:$0xff] %v2080
      loop: start=0, step=1, limit=8
      $region138: #{deep_hist_l1_loss.2} parent=27 // loop_pre_header
        _
      $region139: #{deep_hist_l1_loss.2} parent=27 // loop_header
        %s2086 = sphi 0, %s2090
        %p2087 = scmp.ge.s32.totalorder %s2086, 8
        %v2091 = vphi 0.0, %v2162
        %v2092 = vphi 0.0, %v2163
        %v2093 = vphi 0.0, %v2164
        %v2094 = vphi 0.0, %v2165
      $region140: #{deep_hist_l1_loss.2} parent=27 // loop_header_branch
        %2089 = sbr.rel (%p2087) target = $region144
      $region141: #{deep_hist_l1_loss.2} parent=27 // loop_body
        %s2095 = sadd.s32 %s2086, 24
        %s2096 = scalar_lea.vmem [#allocation2], %s2095
        %v2097 = vld [vmem:[%s2096] sm:$0x1]
        %v2098 = vlaneseq
        %v2099 = vshrl.u32 %v2098, 7
        %v2100 = vsub.s32 0, %v2099
        %v2101 = vrot.slane %v2097, %v2100
        %v2102 = vsub.f32 %v1803, %v2101
        %v2103 = vsub.f32 %v1804, %v2101
        %v2104 = vsub.f32 %v1805, %v2101
        %v2105 = vsub.f32 %v1806, %v2101
        %v2106 = vmax.f32 %v2102, -40.0
        %v2107 = vmax.f32 %v2103, -40.0
        %v2108 = vmax.f32 %v2104, -40.0
        %v2109 = vmax.f32 %v2105, -40.0
        %v2110 = vmin.f32 %v2106, 40.0
        %v2111 = vmin.f32 %v2107, 40.0
        %v2112 = vmin.f32 %v2108, 40.0
        %v2113 = vmin.f32 %v2109, 40.0
        %v2114 = vmul.f32 %v2110, 1.442695
        %v2115 = vpow.pop %v2114
        %v2116 = vmul.f32 %v2111, 1.442695
        %v2117 = vpow.pop %v2116
        %v2118 = vmul.f32 %v2112, 1.442695
        %v2119 = vpow.pop %v2118
        %v2120 = vmul.f32 %v2113, 1.442695
        %v2121 = vpow.pop %v2120
        %v2122 = vmul.f32 %v2115, 3.203838
        %v2123 = vmul.f32 %v2117, 3.203838
        %v2124 = vmul.f32 %v2119, 3.203838
        %v2125 = vmul.f32 %v2121, 3.203838
        %v2126 = vmul.f32 %v2115, 3.7768478
        %v2127 = vmul.f32 %v2117, 3.7768478
        %v2128 = vmul.f32 %v2119, 3.7768478
        %v2129 = vmul.f32 %v2121, 3.7768478
        %v2130 = vadd.f32 %v2126, 1.0
        %v2131 = vadd.f32 %v2127, 1.0
        %v2132 = vadd.f32 %v2128, 1.0
        %v2133 = vadd.f32 %v2129, 1.0
        %v2134 = vmul.f32 %v2115, %v2115
        %v2135 = vmul.f32 %v2117, %v2117
        %v2136 = vmul.f32 %v2119, %v2119
        %v2137 = vmul.f32 %v2121, %v2121
        %v2138 = vadd.f32 %v2130, %v2134
        %v2139 = vadd.f32 %v2131, %v2135
        %v2140 = vadd.f32 %v2132, %v2136
        %v2141 = vadd.f32 %v2133, %v2137
        %v2142 = vrcp.pop %v2138
        %v2143 = vrcp.pop %v2139
        %v2144 = vrcp.pop %v2140
        %v2145 = vrcp.pop %v2141
        %v2146 = vmul.f32 %v2138, %v2142
        %v2147 = vmul.f32 %v2139, %v2143
        %v2148 = vmul.f32 %v2140, %v2144
        %v2149 = vmul.f32 %v2141, %v2145
        %v2150 = vsub.f32 2.0, %v2146
        %v2151 = vsub.f32 2.0, %v2147
        %v2152 = vsub.f32 2.0, %v2148
        %v2153 = vsub.f32 2.0, %v2149
        %v2154 = vmul.f32 %v2142, %v2150
        %v2155 = vmul.f32 %v2143, %v2151
        %v2156 = vmul.f32 %v2144, %v2152
        %v2157 = vmul.f32 %v2145, %v2153
        %v2158 = vmul.f32 %v2122, %v2154
        %v2159 = vmul.f32 %v2123, %v2155
        %v2160 = vmul.f32 %v2124, %v2156
        %v2161 = vmul.f32 %v2125, %v2157
        %v2162 = vadd.f32 %v2091, %v2158
        %v2163 = vadd.f32 %v2092, %v2159
        %v2164 = vadd.f32 %v2093, %v2160
        %v2165 = vadd.f32 %v2094, %v2161
      $region142: #{deep_hist_l1_loss.2} parent=27 // loop_footer
        %s2090 = sadd.s32 1, %s2086
      $region143: #{deep_hist_l1_loss.2} parent=27 // loop_footer_branch
        %2085 = sbr.rel target = $region139
      $region144: #{deep_hist_l1_loss.2} parent=27 // loop_exit
        _
      %v2166 = vld [vmem:[%s301 + $0x40] sm:$0xff]
      %v2167 = vld [vmem:[%s301 + $0x48] sm:$0xff]
      %v2168 = vld [vmem:[%s301 + $0x50] sm:$0xff]
      %v2169 = vld [vmem:[%s301 + $0x58] sm:$0xff]
      %v2170 = vadd.f32 %v2166, %v2091
      %v2171 = vadd.f32 %v2167, %v2092
      %v2172 = vadd.f32 %v2168, %v2093
      %v2173 = vadd.f32 %v2169, %v2094
      %2174 = vst [vmem:[%s301 + $0x40] sm:$0xff] %v2170
      %2175 = vst [vmem:[%s301 + $0x48] sm:$0xff] %v2171
      %2176 = vst [vmem:[%s301 + $0x50] sm:$0xff] %v2172
      %2177 = vst [vmem:[%s301 + $0x58] sm:$0xff] %v2173
      loop: start=0, step=1, limit=8
      $region145: #{deep_hist_l1_loss.2} parent=27 // loop_pre_header
        _
      $region146: #{deep_hist_l1_loss.2} parent=27 // loop_header
        %s2179 = sphi 0, %s2183
        %p2180 = scmp.ge.s32.totalorder %s2179, 8
        %v2184 = vphi 0.0, %v2256
        %v2185 = vphi 0.0, %v2257
        %v2186 = vphi 0.0, %v2258
        %v2187 = vphi 0.0, %v2259
      $region147: #{deep_hist_l1_loss.2} parent=27 // loop_header_branch
        %2182 = sbr.rel (%p2180) target = $region151
      $region148: #{deep_hist_l1_loss.2} parent=27 // loop_body
        %s2188 = sadd.s32 %s2179, 8
        %s2189 = sadd.s32 %s2188, 24
        %s2190 = scalar_lea.vmem [#allocation2], %s2189
        %v2191 = vld [vmem:[%s2190] sm:$0x1]
        %v2192 = vlaneseq
        %v2193 = vshrl.u32 %v2192, 7
        %v2194 = vsub.s32 0, %v2193
        %v2195 = vrot.slane %v2191, %v2194
        %v2196 = vsub.f32 %v1803, %v2195
        %v2197 = vsub.f32 %v1804, %v2195
        %v2198 = vsub.f32 %v1805, %v2195
        %v2199 = vsub.f32 %v1806, %v2195
        %v2200 = vmax.f32 %v2196, -40.0
        %v2201 = vmax.f32 %v2197, -40.0
        %v2202 = vmax.f32 %v2198, -40.0
        %v2203 = vmax.f32 %v2199, -40.0
        %v2204 = vmin.f32 %v2200, 40.0
        %v2205 = vmin.f32 %v2201, 40.0
        %v2206 = vmin.f32 %v2202, 40.0
        %v2207 = vmin.f32 %v2203, 40.0
        %v2208 = vmul.f32 %v2204, 1.442695
        %v2209 = vpow.pop %v2208
        %v2210 = vmul.f32 %v2205, 1.442695
        %v2211 = vpow.pop %v2210
        %v2212 = vmul.f32 %v2206, 1.442695
        %v2213 = vpow.pop %v2212
        %v2214 = vmul.f32 %v2207, 1.442695
        %v2215 = vpow.pop %v2214
        %v2216 = vmul.f32 %v2209, 3.203838
        %v2217 = vmul.f32 %v2211, 3.203838
        %v2218 = vmul.f32 %v2213, 3.203838
        %v2219 = vmul.f32 %v2215, 3.203838
        %v2220 = vmul.f32 %v2209, 3.7768478
        %v2221 = vmul.f32 %v2211, 3.7768478
        %v2222 = vmul.f32 %v2213, 3.7768478
        %v2223 = vmul.f32 %v2215, 3.7768478
        %v2224 = vadd.f32 %v2220, 1.0
        %v2225 = vadd.f32 %v2221, 1.0
        %v2226 = vadd.f32 %v2222, 1.0
        %v2227 = vadd.f32 %v2223, 1.0
        %v2228 = vmul.f32 %v2209, %v2209
        %v2229 = vmul.f32 %v2211, %v2211
        %v2230 = vmul.f32 %v2213, %v2213
        %v2231 = vmul.f32 %v2215, %v2215
        %v2232 = vadd.f32 %v2224, %v2228
        %v2233 = vadd.f32 %v2225, %v2229
        %v2234 = vadd.f32 %v2226, %v2230
        %v2235 = vadd.f32 %v2227, %v2231
        %v2236 = vrcp.pop %v2232
        %v2237 = vrcp.pop %v2233
        %v2238 = vrcp.pop %v2234
        %v2239 = vrcp.pop %v2235
        %v2240 = vmul.f32 %v2232, %v2236
        %v2241 = vmul.f32 %v2233, %v2237
        %v2242 = vmul.f32 %v2234, %v2238
        %v2243 = vmul.f32 %v2235, %v2239
        %v2244 = vsub.f32 2.0, %v2240
        %v2245 = vsub.f32 2.0, %v2241
        %v2246 = vsub.f32 2.0, %v2242
        %v2247 = vsub.f32 2.0, %v2243
        %v2248 = vmul.f32 %v2236, %v2244
        %v2249 = vmul.f32 %v2237, %v2245
        %v2250 = vmul.f32 %v2238, %v2246
        %v2251 = vmul.f32 %v2239, %v2247
        %v2252 = vmul.f32 %v2216, %v2248
        %v2253 = vmul.f32 %v2217, %v2249
        %v2254 = vmul.f32 %v2218, %v2250
        %v2255 = vmul.f32 %v2219, %v2251
        %v2256 = vadd.f32 %v2184, %v2252
        %v2257 = vadd.f32 %v2185, %v2253
        %v2258 = vadd.f32 %v2186, %v2254
        %v2259 = vadd.f32 %v2187, %v2255
      $region149: #{deep_hist_l1_loss.2} parent=27 // loop_footer
        %s2183 = sadd.s32 1, %s2179
      $region150: #{deep_hist_l1_loss.2} parent=27 // loop_footer_branch
        %2178 = sbr.rel target = $region146
      $region151: #{deep_hist_l1_loss.2} parent=27 // loop_exit
        _
      %v2260 = vld [vmem:[%s1124 + $0x40] sm:$0xff]
      %v2261 = vld [vmem:[%s1124 + $0x48] sm:$0xff]
      %v2262 = vld [vmem:[%s1124 + $0x50] sm:$0xff]
      %v2263 = vld [vmem:[%s1124 + $0x58] sm:$0xff]
      %v2264 = vadd.f32 %v2260, %v2184
      %v2265 = vadd.f32 %v2261, %v2185
      %v2266 = vadd.f32 %v2262, %v2186
      %v2267 = vadd.f32 %v2263, %v2187
      %2268 = vst [vmem:[%s1124 + $0x40] sm:$0xff] %v2264
      %2269 = vst [vmem:[%s1124 + $0x48] sm:$0xff] %v2265
      %2270 = vst [vmem:[%s1124 + $0x50] sm:$0xff] %v2266
      %2271 = vst [vmem:[%s1124 + $0x58] sm:$0xff] %v2267
      loop: start=0, step=1, limit=8
      $region152: #{deep_hist_l1_loss.2} parent=27 // loop_pre_header
        _
      $region153: #{deep_hist_l1_loss.2} parent=27 // loop_header
        %s2273 = sphi 0, %s2277
        %p2274 = scmp.ge.s32.totalorder %s2273, 8
        %v2278 = vphi 0.0, %v2350
        %v2279 = vphi 0.0, %v2351
        %v2280 = vphi 0.0, %v2352
        %v2281 = vphi 0.0, %v2353
      $region154: #{deep_hist_l1_loss.2} parent=27 // loop_header_branch
        %2276 = sbr.rel (%p2274) target = $region158
      $region155: #{deep_hist_l1_loss.2} parent=27 // loop_body
        %s2282 = sadd.s32 %s2273, 16
        %s2283 = sadd.s32 %s2282, 24
        %s2284 = scalar_lea.vmem [#allocation2], %s2283
        %v2285 = vld [vmem:[%s2284] sm:$0x1]
        %v2286 = vlaneseq
        %v2287 = vshrl.u32 %v2286, 7
        %v2288 = vsub.s32 0, %v2287
        %v2289 = vrot.slane %v2285, %v2288
        %v2290 = vsub.f32 %v1803, %v2289
        %v2291 = vsub.f32 %v1804, %v2289
        %v2292 = vsub.f32 %v1805, %v2289
        %v2293 = vsub.f32 %v1806, %v2289
        %v2294 = vmax.f32 %v2290, -40.0
        %v2295 = vmax.f32 %v2291, -40.0
        %v2296 = vmax.f32 %v2292, -40.0
        %v2297 = vmax.f32 %v2293, -40.0
        %v2298 = vmin.f32 %v2294, 40.0
        %v2299 = vmin.f32 %v2295, 40.0
        %v2300 = vmin.f32 %v2296, 40.0
        %v2301 = vmin.f32 %v2297, 40.0
        %v2302 = vmul.f32 %v2298, 1.442695
        %v2303 = vpow.pop %v2302
        %v2304 = vmul.f32 %v2299, 1.442695
        %v2305 = vpow.pop %v2304
        %v2306 = vmul.f32 %v2300, 1.442695
        %v2307 = vpow.pop %v2306
        %v2308 = vmul.f32 %v2301, 1.442695
        %v2309 = vpow.pop %v2308
        %v2310 = vmul.f32 %v2303, 3.203838
        %v2311 = vmul.f32 %v2305, 3.203838
        %v2312 = vmul.f32 %v2307, 3.203838
        %v2313 = vmul.f32 %v2309, 3.203838
        %v2314 = vmul.f32 %v2303, 3.7768478
        %v2315 = vmul.f32 %v2305, 3.7768478
        %v2316 = vmul.f32 %v2307, 3.7768478
        %v2317 = vmul.f32 %v2309, 3.7768478
        %v2318 = vadd.f32 %v2314, 1.0
        %v2319 = vadd.f32 %v2315, 1.0
        %v2320 = vadd.f32 %v2316, 1.0
        %v2321 = vadd.f32 %v2317, 1.0
        %v2322 = vmul.f32 %v2303, %v2303
        %v2323 = vmul.f32 %v2305, %v2305
        %v2324 = vmul.f32 %v2307, %v2307
        %v2325 = vmul.f32 %v2309, %v2309
        %v2326 = vadd.f32 %v2318, %v2322
        %v2327 = vadd.f32 %v2319, %v2323
        %v2328 = vadd.f32 %v2320, %v2324
        %v2329 = vadd.f32 %v2321, %v2325
        %v2330 = vrcp.pop %v2326
        %v2331 = vrcp.pop %v2327
        %v2332 = vrcp.pop %v2328
        %v2333 = vrcp.pop %v2329
        %v2334 = vmul.f32 %v2326, %v2330
        %v2335 = vmul.f32 %v2327, %v2331
        %v2336 = vmul.f32 %v2328, %v2332
        %v2337 = vmul.f32 %v2329, %v2333
        %v2338 = vsub.f32 2.0, %v2334
        %v2339 = vsub.f32 2.0, %v2335
        %v2340 = vsub.f32 2.0, %v2336
        %v2341 = vsub.f32 2.0, %v2337
        %v2342 = vmul.f32 %v2330, %v2338
        %v2343 = vmul.f32 %v2331, %v2339
        %v2344 = vmul.f32 %v2332, %v2340
        %v2345 = vmul.f32 %v2333, %v2341
        %v2346 = vmul.f32 %v2310, %v2342
        %v2347 = vmul.f32 %v2311, %v2343
        %v2348 = vmul.f32 %v2312, %v2344
        %v2349 = vmul.f32 %v2313, %v2345
        %v2350 = vadd.f32 %v2278, %v2346
        %v2351 = vadd.f32 %v2279, %v2347
        %v2352 = vadd.f32 %v2280, %v2348
        %v2353 = vadd.f32 %v2281, %v2349
      $region156: #{deep_hist_l1_loss.2} parent=27 // loop_footer
        %s2277 = sadd.s32 1, %s2273
      $region157: #{deep_hist_l1_loss.2} parent=27 // loop_footer_branch
        %2272 = sbr.rel target = $region153
      $region158: #{deep_hist_l1_loss.2} parent=27 // loop_exit
        _
      %v2354 = vld [vmem:[%s1219 + $0x40] sm:$0xff]
      %v2355 = vld [vmem:[%s1219 + $0x48] sm:$0xff]
      %v2356 = vld [vmem:[%s1219 + $0x50] sm:$0xff]
      %v2357 = vld [vmem:[%s1219 + $0x58] sm:$0xff]
      %v2358 = vadd.f32 %v2354, %v2278
      %v2359 = vadd.f32 %v2355, %v2279
      %v2360 = vadd.f32 %v2356, %v2280
      %v2361 = vadd.f32 %v2357, %v2281
      %2362 = vst [vmem:[%s1219 + $0x40] sm:$0xff] %v2358
      %2363 = vst [vmem:[%s1219 + $0x48] sm:$0xff] %v2359
      %2364 = vst [vmem:[%s1219 + $0x50] sm:$0xff] %v2360
      %2365 = vst [vmem:[%s1219 + $0x58] sm:$0xff] %v2361
      %v2366 = vadd.f32 %v657, 96.5
      %v2367 = vadd.f32 %v658, 96.5
      %v2368 = vadd.f32 %v659, 96.5
      %v2369 = vadd.f32 %v660, 96.5
      %v2370 = vmul.f32 %v2366, 2.5
      %v2371 = vmul.f32 %v2367, 2.5
      %v2372 = vmul.f32 %v2368, 2.5
      %v2373 = vmul.f32 %v2369, 2.5
      loop: start=0, step=1, limit=8
      $region159: #{deep_hist_l1_loss.2} parent=27 // loop_pre_header
        _
      $region160: #{deep_hist_l1_loss.2} parent=27 // loop_header
        %s2375 = sphi 0, %s2379
        %p2376 = scmp.ge.s32.totalorder %s2375, 8
        %v2380 = vphi 0.0, %v2450
        %v2381 = vphi 0.0, %v2451
        %v2382 = vphi 0.0, %v2452
        %v2383 = vphi 0.0, %v2453
      $region161: #{deep_hist_l1_loss.2} parent=27 // loop_header_branch
        %2378 = sbr.rel (%p2376) target = $region165
      $region162: #{deep_hist_l1_loss.2} parent=27 // loop_body
        %s2384 = scalar_lea.vmem [#allocation2], %s2375
        %v2385 = vld [vmem:[%s2384] sm:$0x1]
        %v2386 = vlaneseq
        %v2387 = vshrl.u32 %v2386, 7
        %v2388 = vsub.s32 0, %v2387
        %v2389 = vrot.slane %v2385, %v2388
        %v2390 = vsub.f32 %v2370, %v2389
        %v2391 = vsub.f32 %v2371, %v2389
        %v2392 = vsub.f32 %v2372, %v2389
        %v2393 = vsub.f32 %v2373, %v2389
        %v2394 = vmax.f32 %v2390, -40.0
        %v2395 = vmax.f32 %v2391, -40.0
        %v2396 = vmax.f32 %v2392, -40.0
        %v2397 = vmax.f32 %v2393, -40.0
        %v2398 = vmin.f32 %v2394, 40.0
        %v2399 = vmin.f32 %v2395, 40.0
        %v2400 = vmin.f32 %v2396, 40.0
        %v2401 = vmin.f32 %v2397, 40.0
        %v2402 = vmul.f32 %v2398, 1.442695
        %v2403 = vpow.pop %v2402
        %v2404 = vmul.f32 %v2399, 1.442695
        %v2405 = vpow.pop %v2404
        %v2406 = vmul.f32 %v2400, 1.442695
        %v2407 = vpow.pop %v2406
        %v2408 = vmul.f32 %v2401, 1.442695
        %v2409 = vpow.pop %v2408
        %v2410 = vmul.f32 %v2403, 3.203838
        %v2411 = vmul.f32 %v2405, 3.203838
        %v2412 = vmul.f32 %v2407, 3.203838
        %v2413 = vmul.f32 %v2409, 3.203838
        %v2414 = vmul.f32 %v2403, 3.7768478
        %v2415 = vmul.f32 %v2405, 3.7768478
        %v2416 = vmul.f32 %v2407, 3.7768478
        %v2417 = vmul.f32 %v2409, 3.7768478
        %v2418 = vadd.f32 %v2414, 1.0
        %v2419 = vadd.f32 %v2415, 1.0
        %v2420 = vadd.f32 %v2416, 1.0
        %v2421 = vadd.f32 %v2417, 1.0
        %v2422 = vmul.f32 %v2403, %v2403
        %v2423 = vmul.f32 %v2405, %v2405
        %v2424 = vmul.f32 %v2407, %v2407
        %v2425 = vmul.f32 %v2409, %v2409
        %v2426 = vadd.f32 %v2418, %v2422
        %v2427 = vadd.f32 %v2419, %v2423
        %v2428 = vadd.f32 %v2420, %v2424
        %v2429 = vadd.f32 %v2421, %v2425
        %v2430 = vrcp.pop %v2426
        %v2431 = vrcp.pop %v2427
        %v2432 = vrcp.pop %v2428
        %v2433 = vrcp.pop %v2429
        %v2434 = vmul.f32 %v2426, %v2430
        %v2435 = vmul.f32 %v2427, %v2431
        %v2436 = vmul.f32 %v2428, %v2432
        %v2437 = vmul.f32 %v2429, %v2433
        %v2438 = vsub.f32 2.0, %v2434
        %v2439 = vsub.f32 2.0, %v2435
        %v2440 = vsub.f32 2.0, %v2436
        %v2441 = vsub.f32 2.0, %v2437
        %v2442 = vmul.f32 %v2430, %v2438
        %v2443 = vmul.f32 %v2431, %v2439
        %v2444 = vmul.f32 %v2432, %v2440
        %v2445 = vmul.f32 %v2433, %v2441
        %v2446 = vmul.f32 %v2410, %v2442
        %v2447 = vmul.f32 %v2411, %v2443
        %v2448 = vmul.f32 %v2412, %v2444
        %v2449 = vmul.f32 %v2413, %v2445
        %v2450 = vadd.f32 %v2380, %v2446
        %v2451 = vadd.f32 %v2381, %v2447
        %v2452 = vadd.f32 %v2382, %v2448
        %v2453 = vadd.f32 %v2383, %v2449
      $region163: #{deep_hist_l1_loss.2} parent=27 // loop_footer
        %s2379 = sadd.s32 1, %s2375
      $region164: #{deep_hist_l1_loss.2} parent=27 // loop_footer_branch
        %2374 = sbr.rel target = $region160
      $region165: #{deep_hist_l1_loss.2} parent=27 // loop_exit
        _
      %v2454 = vld [vmem:[%s296 + $0x60] sm:$0xff]
      %v2455 = vld [vmem:[%s296 + $0x68] sm:$0xff]
      %v2456 = vld [vmem:[%s296 + $0x70] sm:$0xff]
      %v2457 = vld [vmem:[%s296 + $0x78] sm:$0xff]
      %v2458 = vadd.f32 %v2454, %v2380
      %v2459 = vadd.f32 %v2455, %v2381
      %v2460 = vadd.f32 %v2456, %v2382
      %v2461 = vadd.f32 %v2457, %v2383
      %2462 = vst [vmem:[%s296 + $0x60] sm:$0xff] %v2458
      %2463 = vst [vmem:[%s296 + $0x68] sm:$0xff] %v2459
      %2464 = vst [vmem:[%s296 + $0x70] sm:$0xff] %v2460
      %2465 = vst [vmem:[%s296 + $0x78] sm:$0xff] %v2461
      loop: start=0, step=1, limit=8
      $region166: #{deep_hist_l1_loss.2} parent=27 // loop_pre_header
        _
      $region167: #{deep_hist_l1_loss.2} parent=27 // loop_header
        %s2467 = sphi 0, %s2471
        %p2468 = scmp.ge.s32.totalorder %s2467, 8
        %v2472 = vphi 0.0, %v2543
        %v2473 = vphi 0.0, %v2544
        %v2474 = vphi 0.0, %v2545
        %v2475 = vphi 0.0, %v2546
      $region168: #{deep_hist_l1_loss.2} parent=27 // loop_header_branch
        %2470 = sbr.rel (%p2468) target = $region172
      $region169: #{deep_hist_l1_loss.2} parent=27 // loop_body
        %s2476 = sadd.s32 %s2467, 8
        %s2477 = scalar_lea.vmem [#allocation2], %s2476
        %v2478 = vld [vmem:[%s2477] sm:$0x1]
        %v2479 = vlaneseq
        %v2480 = vshrl.u32 %v2479, 7
        %v2481 = vsub.s32 0, %v2480
        %v2482 = vrot.slane %v2478, %v2481
        %v2483 = vsub.f32 %v2370, %v2482
        %v2484 = vsub.f32 %v2371, %v2482
        %v2485 = vsub.f32 %v2372, %v2482
        %v2486 = vsub.f32 %v2373, %v2482
        %v2487 = vmax.f32 %v2483, -40.0
        %v2488 = vmax.f32 %v2484, -40.0
        %v2489 = vmax.f32 %v2485, -40.0
        %v2490 = vmax.f32 %v2486, -40.0
        %v2491 = vmin.f32 %v2487, 40.0
        %v2492 = vmin.f32 %v2488, 40.0
        %v2493 = vmin.f32 %v2489, 40.0
        %v2494 = vmin.f32 %v2490, 40.0
        %v2495 = vmul.f32 %v2491, 1.442695
        %v2496 = vpow.pop %v2495
        %v2497 = vmul.f32 %v2492, 1.442695
        %v2498 = vpow.pop %v2497
        %v2499 = vmul.f32 %v2493, 1.442695
        %v2500 = vpow.pop %v2499
        %v2501 = vmul.f32 %v2494, 1.442695
        %v2502 = vpow.pop %v2501
        %v2503 = vmul.f32 %v2496, 3.203838
        %v2504 = vmul.f32 %v2498, 3.203838
        %v2505 = vmul.f32 %v2500, 3.203838
        %v2506 = vmul.f32 %v2502, 3.203838
        %v2507 = vmul.f32 %v2496, 3.7768478
        %v2508 = vmul.f32 %v2498, 3.7768478
        %v2509 = vmul.f32 %v2500, 3.7768478
        %v2510 = vmul.f32 %v2502, 3.7768478
        %v2511 = vadd.f32 %v2507, 1.0
        %v2512 = vadd.f32 %v2508, 1.0
        %v2513 = vadd.f32 %v2509, 1.0
        %v2514 = vadd.f32 %v2510, 1.0
        %v2515 = vmul.f32 %v2496, %v2496
        %v2516 = vmul.f32 %v2498, %v2498
        %v2517 = vmul.f32 %v2500, %v2500
        %v2518 = vmul.f32 %v2502, %v2502
        %v2519 = vadd.f32 %v2511, %v2515
        %v2520 = vadd.f32 %v2512, %v2516
        %v2521 = vadd.f32 %v2513, %v2517
        %v2522 = vadd.f32 %v2514, %v2518
        %v2523 = vrcp.pop %v2519
        %v2524 = vrcp.pop %v2520
        %v2525 = vrcp.pop %v2521
        %v2526 = vrcp.pop %v2522
        %v2527 = vmul.f32 %v2519, %v2523
        %v2528 = vmul.f32 %v2520, %v2524
        %v2529 = vmul.f32 %v2521, %v2525
        %v2530 = vmul.f32 %v2522, %v2526
        %v2531 = vsub.f32 2.0, %v2527
        %v2532 = vsub.f32 2.0, %v2528
        %v2533 = vsub.f32 2.0, %v2529
        %v2534 = vsub.f32 2.0, %v2530
        %v2535 = vmul.f32 %v2523, %v2531
        %v2536 = vmul.f32 %v2524, %v2532
        %v2537 = vmul.f32 %v2525, %v2533
        %v2538 = vmul.f32 %v2526, %v2534
        %v2539 = vmul.f32 %v2503, %v2535
        %v2540 = vmul.f32 %v2504, %v2536
        %v2541 = vmul.f32 %v2505, %v2537
        %v2542 = vmul.f32 %v2506, %v2538
        %v2543 = vadd.f32 %v2472, %v2539
        %v2544 = vadd.f32 %v2473, %v2540
        %v2545 = vadd.f32 %v2474, %v2541
        %v2546 = vadd.f32 %v2475, %v2542
      $region170: #{deep_hist_l1_loss.2} parent=27 // loop_footer
        %s2471 = sadd.s32 1, %s2467
      $region171: #{deep_hist_l1_loss.2} parent=27 // loop_footer_branch
        %2466 = sbr.rel target = $region167
      $region172: #{deep_hist_l1_loss.2} parent=27 // loop_exit
        _
      %v2547 = vld [vmem:[%s842 + $0x60] sm:$0xff]
      %v2548 = vld [vmem:[%s842 + $0x68] sm:$0xff]
      %v2549 = vld [vmem:[%s842 + $0x70] sm:$0xff]
      %v2550 = vld [vmem:[%s842 + $0x78] sm:$0xff]
      %v2551 = vadd.f32 %v2547, %v2472
      %v2552 = vadd.f32 %v2548, %v2473
      %v2553 = vadd.f32 %v2549, %v2474
      %v2554 = vadd.f32 %v2550, %v2475
      %2555 = vst [vmem:[%s842 + $0x60] sm:$0xff] %v2551
      %2556 = vst [vmem:[%s842 + $0x68] sm:$0xff] %v2552
      %2557 = vst [vmem:[%s842 + $0x70] sm:$0xff] %v2553
      %2558 = vst [vmem:[%s842 + $0x78] sm:$0xff] %v2554
      loop: start=0, step=1, limit=8
      $region173: #{deep_hist_l1_loss.2} parent=27 // loop_pre_header
        _
      $region174: #{deep_hist_l1_loss.2} parent=27 // loop_header
        %s2560 = sphi 0, %s2564
        %p2561 = scmp.ge.s32.totalorder %s2560, 8
        %v2565 = vphi 0.0, %v2636
        %v2566 = vphi 0.0, %v2637
        %v2567 = vphi 0.0, %v2638
        %v2568 = vphi 0.0, %v2639
      $region175: #{deep_hist_l1_loss.2} parent=27 // loop_header_branch
        %2563 = sbr.rel (%p2561) target = $region179
      $region176: #{deep_hist_l1_loss.2} parent=27 // loop_body
        %s2569 = sadd.s32 %s2560, 16
        %s2570 = scalar_lea.vmem [#allocation2], %s2569
        %v2571 = vld [vmem:[%s2570] sm:$0x1]
        %v2572 = vlaneseq
        %v2573 = vshrl.u32 %v2572, 7
        %v2574 = vsub.s32 0, %v2573
        %v2575 = vrot.slane %v2571, %v2574
        %v2576 = vsub.f32 %v2370, %v2575
        %v2577 = vsub.f32 %v2371, %v2575
        %v2578 = vsub.f32 %v2372, %v2575
        %v2579 = vsub.f32 %v2373, %v2575
        %v2580 = vmax.f32 %v2576, -40.0
        %v2581 = vmax.f32 %v2577, -40.0
        %v2582 = vmax.f32 %v2578, -40.0
        %v2583 = vmax.f32 %v2579, -40.0
        %v2584 = vmin.f32 %v2580, 40.0
        %v2585 = vmin.f32 %v2581, 40.0
        %v2586 = vmin.f32 %v2582, 40.0
        %v2587 = vmin.f32 %v2583, 40.0
        %v2588 = vmul.f32 %v2584, 1.442695
        %v2589 = vpow.pop %v2588
        %v2590 = vmul.f32 %v2585, 1.442695
        %v2591 = vpow.pop %v2590
        %v2592 = vmul.f32 %v2586, 1.442695
        %v2593 = vpow.pop %v2592
        %v2594 = vmul.f32 %v2587, 1.442695
        %v2595 = vpow.pop %v2594
        %v2596 = vmul.f32 %v2589, 3.203838
        %v2597 = vmul.f32 %v2591, 3.203838
        %v2598 = vmul.f32 %v2593, 3.203838
        %v2599 = vmul.f32 %v2595, 3.203838
        %v2600 = vmul.f32 %v2589, 3.7768478
        %v2601 = vmul.f32 %v2591, 3.7768478
        %v2602 = vmul.f32 %v2593, 3.7768478
        %v2603 = vmul.f32 %v2595, 3.7768478
        %v2604 = vadd.f32 %v2600, 1.0
        %v2605 = vadd.f32 %v2601, 1.0
        %v2606 = vadd.f32 %v2602, 1.0
        %v2607 = vadd.f32 %v2603, 1.0
        %v2608 = vmul.f32 %v2589, %v2589
        %v2609 = vmul.f32 %v2591, %v2591
        %v2610 = vmul.f32 %v2593, %v2593
        %v2611 = vmul.f32 %v2595, %v2595
        %v2612 = vadd.f32 %v2604, %v2608
        %v2613 = vadd.f32 %v2605, %v2609
        %v2614 = vadd.f32 %v2606, %v2610
        %v2615 = vadd.f32 %v2607, %v2611
        %v2616 = vrcp.pop %v2612
        %v2617 = vrcp.pop %v2613
        %v2618 = vrcp.pop %v2614
        %v2619 = vrcp.pop %v2615
        %v2620 = vmul.f32 %v2612, %v2616
        %v2621 = vmul.f32 %v2613, %v2617
        %v2622 = vmul.f32 %v2614, %v2618
        %v2623 = vmul.f32 %v2615, %v2619
        %v2624 = vsub.f32 2.0, %v2620
        %v2625 = vsub.f32 2.0, %v2621
        %v2626 = vsub.f32 2.0, %v2622
        %v2627 = vsub.f32 2.0, %v2623
        %v2628 = vmul.f32 %v2616, %v2624
        %v2629 = vmul.f32 %v2617, %v2625
        %v2630 = vmul.f32 %v2618, %v2626
        %v2631 = vmul.f32 %v2619, %v2627
        %v2632 = vmul.f32 %v2596, %v2628
        %v2633 = vmul.f32 %v2597, %v2629
        %v2634 = vmul.f32 %v2598, %v2630
        %v2635 = vmul.f32 %v2599, %v2631
        %v2636 = vadd.f32 %v2565, %v2632
        %v2637 = vadd.f32 %v2566, %v2633
        %v2638 = vadd.f32 %v2567, %v2634
        %v2639 = vadd.f32 %v2568, %v2635
      $region177: #{deep_hist_l1_loss.2} parent=27 // loop_footer
        %s2564 = sadd.s32 1, %s2560
      $region178: #{deep_hist_l1_loss.2} parent=27 // loop_footer_branch
        %2559 = sbr.rel target = $region174
      $region179: #{deep_hist_l1_loss.2} parent=27 // loop_exit
        _
      %v2640 = vld [vmem:[%s936 + $0x60] sm:$0xff]
      %v2641 = vld [vmem:[%s936 + $0x68] sm:$0xff]
      %v2642 = vld [vmem:[%s936 + $0x70] sm:$0xff]
      %v2643 = vld [vmem:[%s936 + $0x78] sm:$0xff]
      %v2644 = vadd.f32 %v2640, %v2565
      %v2645 = vadd.f32 %v2641, %v2566
      %v2646 = vadd.f32 %v2642, %v2567
      %v2647 = vadd.f32 %v2643, %v2568
      %2648 = vst [vmem:[%s936 + $0x60] sm:$0xff] %v2644
      %2649 = vst [vmem:[%s936 + $0x68] sm:$0xff] %v2645
      %2650 = vst [vmem:[%s936 + $0x70] sm:$0xff] %v2646
      %2651 = vst [vmem:[%s936 + $0x78] sm:$0xff] %v2647
      loop: start=0, step=1, limit=8
      $region180: #{deep_hist_l1_loss.2} parent=27 // loop_pre_header
        _
      $region181: #{deep_hist_l1_loss.2} parent=27 // loop_header
        %s2653 = sphi 0, %s2657
        %p2654 = scmp.ge.s32.totalorder %s2653, 8
        %v2658 = vphi 0.0, %v2729
        %v2659 = vphi 0.0, %v2730
        %v2660 = vphi 0.0, %v2731
        %v2661 = vphi 0.0, %v2732
      $region182: #{deep_hist_l1_loss.2} parent=27 // loop_header_branch
        %2656 = sbr.rel (%p2654) target = $region186
      $region183: #{deep_hist_l1_loss.2} parent=27 // loop_body
        %s2662 = sadd.s32 %s2653, 24
        %s2663 = scalar_lea.vmem [#allocation2], %s2662
        %v2664 = vld [vmem:[%s2663] sm:$0x1]
        %v2665 = vlaneseq
        %v2666 = vshrl.u32 %v2665, 7
        %v2667 = vsub.s32 0, %v2666
        %v2668 = vrot.slane %v2664, %v2667
        %v2669 = vsub.f32 %v2370, %v2668
        %v2670 = vsub.f32 %v2371, %v2668
        %v2671 = vsub.f32 %v2372, %v2668
        %v2672 = vsub.f32 %v2373, %v2668
        %v2673 = vmax.f32 %v2669, -40.0
        %v2674 = vmax.f32 %v2670, -40.0
        %v2675 = vmax.f32 %v2671, -40.0
        %v2676 = vmax.f32 %v2672, -40.0
        %v2677 = vmin.f32 %v2673, 40.0
        %v2678 = vmin.f32 %v2674, 40.0
        %v2679 = vmin.f32 %v2675, 40.0
        %v2680 = vmin.f32 %v2676, 40.0
        %v2681 = vmul.f32 %v2677, 1.442695
        %v2682 = vpow.pop %v2681
        %v2683 = vmul.f32 %v2678, 1.442695
        %v2684 = vpow.pop %v2683
        %v2685 = vmul.f32 %v2679, 1.442695
        %v2686 = vpow.pop %v2685
        %v2687 = vmul.f32 %v2680, 1.442695
        %v2688 = vpow.pop %v2687
        %v2689 = vmul.f32 %v2682, 3.203838
        %v2690 = vmul.f32 %v2684, 3.203838
        %v2691 = vmul.f32 %v2686, 3.203838
        %v2692 = vmul.f32 %v2688, 3.203838
        %v2693 = vmul.f32 %v2682, 3.7768478
        %v2694 = vmul.f32 %v2684, 3.7768478
        %v2695 = vmul.f32 %v2686, 3.7768478
        %v2696 = vmul.f32 %v2688, 3.7768478
        %v2697 = vadd.f32 %v2693, 1.0
        %v2698 = vadd.f32 %v2694, 1.0
        %v2699 = vadd.f32 %v2695, 1.0
        %v2700 = vadd.f32 %v2696, 1.0
        %v2701 = vmul.f32 %v2682, %v2682
        %v2702 = vmul.f32 %v2684, %v2684
        %v2703 = vmul.f32 %v2686, %v2686
        %v2704 = vmul.f32 %v2688, %v2688
        %v2705 = vadd.f32 %v2697, %v2701
        %v2706 = vadd.f32 %v2698, %v2702
        %v2707 = vadd.f32 %v2699, %v2703
        %v2708 = vadd.f32 %v2700, %v2704
        %v2709 = vrcp.pop %v2705
        %v2710 = vrcp.pop %v2706
        %v2711 = vrcp.pop %v2707
        %v2712 = vrcp.pop %v2708
        %v2713 = vmul.f32 %v2705, %v2709
        %v2714 = vmul.f32 %v2706, %v2710
        %v2715 = vmul.f32 %v2707, %v2711
        %v2716 = vmul.f32 %v2708, %v2712
        %v2717 = vsub.f32 2.0, %v2713
        %v2718 = vsub.f32 2.0, %v2714
        %v2719 = vsub.f32 2.0, %v2715
        %v2720 = vsub.f32 2.0, %v2716
        %v2721 = vmul.f32 %v2709, %v2717
        %v2722 = vmul.f32 %v2710, %v2718
        %v2723 = vmul.f32 %v2711, %v2719
        %v2724 = vmul.f32 %v2712, %v2720
        %v2725 = vmul.f32 %v2689, %v2721
        %v2726 = vmul.f32 %v2690, %v2722
        %v2727 = vmul.f32 %v2691, %v2723
        %v2728 = vmul.f32 %v2692, %v2724
        %v2729 = vadd.f32 %v2658, %v2725
        %v2730 = vadd.f32 %v2659, %v2726
        %v2731 = vadd.f32 %v2660, %v2727
        %v2732 = vadd.f32 %v2661, %v2728
      $region184: #{deep_hist_l1_loss.2} parent=27 // loop_footer
        %s2657 = sadd.s32 1, %s2653
      $region185: #{deep_hist_l1_loss.2} parent=27 // loop_footer_branch
        %2652 = sbr.rel target = $region181
      $region186: #{deep_hist_l1_loss.2} parent=27 // loop_exit
        _
      %v2733 = vld [vmem:[%s301 + $0x60] sm:$0xff]
      %v2734 = vld [vmem:[%s301 + $0x68] sm:$0xff]
      %v2735 = vld [vmem:[%s301 + $0x70] sm:$0xff]
      %v2736 = vld [vmem:[%s301 + $0x78] sm:$0xff]
      %v2737 = vadd.f32 %v2733, %v2658
      %v2738 = vadd.f32 %v2734, %v2659
      %v2739 = vadd.f32 %v2735, %v2660
      %v2740 = vadd.f32 %v2736, %v2661
      %2741 = vst [vmem:[%s301 + $0x60] sm:$0xff] %v2737
      %2742 = vst [vmem:[%s301 + $0x68] sm:$0xff] %v2738
      %2743 = vst [vmem:[%s301 + $0x70] sm:$0xff] %v2739
      %2744 = vst [vmem:[%s301 + $0x78] sm:$0xff] %v2740
      loop: start=0, step=1, limit=8
      $region187: #{deep_hist_l1_loss.2} parent=27 // loop_pre_header
        _
      $region188: #{deep_hist_l1_loss.2} parent=27 // loop_header
        %s2746 = sphi 0, %s2750
        %p2747 = scmp.ge.s32.totalorder %s2746, 8
        %v2751 = vphi 0.0, %v2823
        %v2752 = vphi 0.0, %v2824
        %v2753 = vphi 0.0, %v2825
        %v2754 = vphi 0.0, %v2826
      $region189: #{deep_hist_l1_loss.2} parent=27 // loop_header_branch
        %2749 = sbr.rel (%p2747) target = $region193
      $region190: #{deep_hist_l1_loss.2} parent=27 // loop_body
        %s2755 = sadd.s32 %s2746, 8
        %s2756 = sadd.s32 %s2755, 24
        %s2757 = scalar_lea.vmem [#allocation2], %s2756
        %v2758 = vld [vmem:[%s2757] sm:$0x1]
        %v2759 = vlaneseq
        %v2760 = vshrl.u32 %v2759, 7
        %v2761 = vsub.s32 0, %v2760
        %v2762 = vrot.slane %v2758, %v2761
        %v2763 = vsub.f32 %v2370, %v2762
        %v2764 = vsub.f32 %v2371, %v2762
        %v2765 = vsub.f32 %v2372, %v2762
        %v2766 = vsub.f32 %v2373, %v2762
        %v2767 = vmax.f32 %v2763, -40.0
        %v2768 = vmax.f32 %v2764, -40.0
        %v2769 = vmax.f32 %v2765, -40.0
        %v2770 = vmax.f32 %v2766, -40.0
        %v2771 = vmin.f32 %v2767, 40.0
        %v2772 = vmin.f32 %v2768, 40.0
        %v2773 = vmin.f32 %v2769, 40.0
        %v2774 = vmin.f32 %v2770, 40.0
        %v2775 = vmul.f32 %v2771, 1.442695
        %v2776 = vpow.pop %v2775
        %v2777 = vmul.f32 %v2772, 1.442695
        %v2778 = vpow.pop %v2777
        %v2779 = vmul.f32 %v2773, 1.442695
        %v2780 = vpow.pop %v2779
        %v2781 = vmul.f32 %v2774, 1.442695
        %v2782 = vpow.pop %v2781
        %v2783 = vmul.f32 %v2776, 3.203838
        %v2784 = vmul.f32 %v2778, 3.203838
        %v2785 = vmul.f32 %v2780, 3.203838
        %v2786 = vmul.f32 %v2782, 3.203838
        %v2787 = vmul.f32 %v2776, 3.7768478
        %v2788 = vmul.f32 %v2778, 3.7768478
        %v2789 = vmul.f32 %v2780, 3.7768478
        %v2790 = vmul.f32 %v2782, 3.7768478
        %v2791 = vadd.f32 %v2787, 1.0
        %v2792 = vadd.f32 %v2788, 1.0
        %v2793 = vadd.f32 %v2789, 1.0
        %v2794 = vadd.f32 %v2790, 1.0
        %v2795 = vmul.f32 %v2776, %v2776
        %v2796 = vmul.f32 %v2778, %v2778
        %v2797 = vmul.f32 %v2780, %v2780
        %v2798 = vmul.f32 %v2782, %v2782
        %v2799 = vadd.f32 %v2791, %v2795
        %v2800 = vadd.f32 %v2792, %v2796
        %v2801 = vadd.f32 %v2793, %v2797
        %v2802 = vadd.f32 %v2794, %v2798
        %v2803 = vrcp.pop %v2799
        %v2804 = vrcp.pop %v2800
        %v2805 = vrcp.pop %v2801
        %v2806 = vrcp.pop %v2802
        %v2807 = vmul.f32 %v2799, %v2803
        %v2808 = vmul.f32 %v2800, %v2804
        %v2809 = vmul.f32 %v2801, %v2805
        %v2810 = vmul.f32 %v2802, %v2806
        %v2811 = vsub.f32 2.0, %v2807
        %v2812 = vsub.f32 2.0, %v2808
        %v2813 = vsub.f32 2.0, %v2809
        %v2814 = vsub.f32 2.0, %v2810
        %v2815 = vmul.f32 %v2803, %v2811
        %v2816 = vmul.f32 %v2804, %v2812
        %v2817 = vmul.f32 %v2805, %v2813
        %v2818 = vmul.f32 %v2806, %v2814
        %v2819 = vmul.f32 %v2783, %v2815
        %v2820 = vmul.f32 %v2784, %v2816
        %v2821 = vmul.f32 %v2785, %v2817
        %v2822 = vmul.f32 %v2786, %v2818
        %v2823 = vadd.f32 %v2751, %v2819
        %v2824 = vadd.f32 %v2752, %v2820
        %v2825 = vadd.f32 %v2753, %v2821
        %v2826 = vadd.f32 %v2754, %v2822
      $region191: #{deep_hist_l1_loss.2} parent=27 // loop_footer
        %s2750 = sadd.s32 1, %s2746
      $region192: #{deep_hist_l1_loss.2} parent=27 // loop_footer_branch
        %2745 = sbr.rel target = $region188
      $region193: #{deep_hist_l1_loss.2} parent=27 // loop_exit
        _
      %v2827 = vld [vmem:[%s1124 + $0x60] sm:$0xff]
      %v2828 = vld [vmem:[%s1124 + $0x68] sm:$0xff]
      %v2829 = vld [vmem:[%s1124 + $0x70] sm:$0xff]
      %v2830 = vld [vmem:[%s1124 + $0x78] sm:$0xff]
      %v2831 = vadd.f32 %v2827, %v2751
      %v2832 = vadd.f32 %v2828, %v2752
      %v2833 = vadd.f32 %v2829, %v2753
      %v2834 = vadd.f32 %v2830, %v2754
      %2835 = vst [vmem:[%s1124 + $0x60] sm:$0xff] %v2831
      %2836 = vst [vmem:[%s1124 + $0x68] sm:$0xff] %v2832
      %2837 = vst [vmem:[%s1124 + $0x70] sm:$0xff] %v2833
      %2838 = vst [vmem:[%s1124 + $0x78] sm:$0xff] %v2834
      loop: start=0, step=1, limit=8
      $region194: #{deep_hist_l1_loss.2} parent=27 // loop_pre_header
        _
      $region195: #{deep_hist_l1_loss.2} parent=27 // loop_header
        %s2840 = sphi 0, %s2844
        %p2841 = scmp.ge.s32.totalorder %s2840, 8
        %v2845 = vphi 0.0, %v2917
        %v2846 = vphi 0.0, %v2918
        %v2847 = vphi 0.0, %v2919
        %v2848 = vphi 0.0, %v2920
      $region196: #{deep_hist_l1_loss.2} parent=27 // loop_header_branch
        %2843 = sbr.rel (%p2841) target = $region200
      $region197: #{deep_hist_l1_loss.2} parent=27 // loop_body
        %s2849 = sadd.s32 %s2840, 16
        %s2850 = sadd.s32 %s2849, 24
        %s2851 = scalar_lea.vmem [#allocation2], %s2850
        %v2852 = vld [vmem:[%s2851] sm:$0x1]
        %v2853 = vlaneseq
        %v2854 = vshrl.u32 %v2853, 7
        %v2855 = vsub.s32 0, %v2854
        %v2856 = vrot.slane %v2852, %v2855
        %v2857 = vsub.f32 %v2370, %v2856
        %v2858 = vsub.f32 %v2371, %v2856
        %v2859 = vsub.f32 %v2372, %v2856
        %v2860 = vsub.f32 %v2373, %v2856
        %v2861 = vmax.f32 %v2857, -40.0
        %v2862 = vmax.f32 %v2858, -40.0
        %v2863 = vmax.f32 %v2859, -40.0
        %v2864 = vmax.f32 %v2860, -40.0
        %v2865 = vmin.f32 %v2861, 40.0
        %v2866 = vmin.f32 %v2862, 40.0
        %v2867 = vmin.f32 %v2863, 40.0
        %v2868 = vmin.f32 %v2864, 40.0
        %v2869 = vmul.f32 %v2865, 1.442695
        %v2870 = vpow.pop %v2869
        %v2871 = vmul.f32 %v2866, 1.442695
        %v2872 = vpow.pop %v2871
        %v2873 = vmul.f32 %v2867, 1.442695
        %v2874 = vpow.pop %v2873
        %v2875 = vmul.f32 %v2868, 1.442695
        %v2876 = vpow.pop %v2875
        %v2877 = vmul.f32 %v2870, 3.203838
        %v2878 = vmul.f32 %v2872, 3.203838
        %v2879 = vmul.f32 %v2874, 3.203838
        %v2880 = vmul.f32 %v2876, 3.203838
        %v2881 = vmul.f32 %v2870, 3.7768478
        %v2882 = vmul.f32 %v2872, 3.7768478
        %v2883 = vmul.f32 %v2874, 3.7768478
        %v2884 = vmul.f32 %v2876, 3.7768478
        %v2885 = vadd.f32 %v2881, 1.0
        %v2886 = vadd.f32 %v2882, 1.0
        %v2887 = vadd.f32 %v2883, 1.0
        %v2888 = vadd.f32 %v2884, 1.0
        %v2889 = vmul.f32 %v2870, %v2870
        %v2890 = vmul.f32 %v2872, %v2872
        %v2891 = vmul.f32 %v2874, %v2874
        %v2892 = vmul.f32 %v2876, %v2876
        %v2893 = vadd.f32 %v2885, %v2889
        %v2894 = vadd.f32 %v2886, %v2890
        %v2895 = vadd.f32 %v2887, %v2891
        %v2896 = vadd.f32 %v2888, %v2892
        %v2897 = vrcp.pop %v2893
        %v2898 = vrcp.pop %v2894
        %v2899 = vrcp.pop %v2895
        %v2900 = vrcp.pop %v2896
        %v2901 = vmul.f32 %v2893, %v2897
        %v2902 = vmul.f32 %v2894, %v2898
        %v2903 = vmul.f32 %v2895, %v2899
        %v2904 = vmul.f32 %v2896, %v2900
        %v2905 = vsub.f32 2.0, %v2901
        %v2906 = vsub.f32 2.0, %v2902
        %v2907 = vsub.f32 2.0, %v2903
        %v2908 = vsub.f32 2.0, %v2904
        %v2909 = vmul.f32 %v2897, %v2905
        %v2910 = vmul.f32 %v2898, %v2906
        %v2911 = vmul.f32 %v2899, %v2907
        %v2912 = vmul.f32 %v2900, %v2908
        %v2913 = vmul.f32 %v2877, %v2909
        %v2914 = vmul.f32 %v2878, %v2910
        %v2915 = vmul.f32 %v2879, %v2911
        %v2916 = vmul.f32 %v2880, %v2912
        %v2917 = vadd.f32 %v2845, %v2913
        %v2918 = vadd.f32 %v2846, %v2914
        %v2919 = vadd.f32 %v2847, %v2915
        %v2920 = vadd.f32 %v2848, %v2916
      $region198: #{deep_hist_l1_loss.2} parent=27 // loop_footer
        %s2844 = sadd.s32 1, %s2840
      $region199: #{deep_hist_l1_loss.2} parent=27 // loop_footer_branch
        %2839 = sbr.rel target = $region195
      $region200: #{deep_hist_l1_loss.2} parent=27 // loop_exit
        _
      %v2921 = vld [vmem:[%s1219 + $0x60] sm:$0xff]
      %v2922 = vld [vmem:[%s1219 + $0x68] sm:$0xff]
      %v2923 = vld [vmem:[%s1219 + $0x70] sm:$0xff]
      %v2924 = vld [vmem:[%s1219 + $0x78] sm:$0xff]
      %v2925 = vadd.f32 %v2921, %v2845
      %v2926 = vadd.f32 %v2922, %v2846
      %v2927 = vadd.f32 %v2923, %v2847
      %v2928 = vadd.f32 %v2924, %v2848
      %2929 = vst [vmem:[%s1219 + $0x60] sm:$0xff] %v2925
      %2930 = vst [vmem:[%s1219 + $0x68] sm:$0xff] %v2926
      %2931 = vst [vmem:[%s1219 + $0x70] sm:$0xff] %v2927
      %2932 = vst [vmem:[%s1219 + $0x78] sm:$0xff] %v2928
      %v2933 = vadd.f32 %v657, 128.5
      %v2934 = vadd.f32 %v658, 128.5
      %v2935 = vadd.f32 %v659, 128.5
      %v2936 = vadd.f32 %v660, 128.5
      %v2937 = vmul.f32 %v2933, 2.5
      %v2938 = vmul.f32 %v2934, 2.5
      %v2939 = vmul.f32 %v2935, 2.5
      %v2940 = vmul.f32 %v2936, 2.5
      loop: start=0, step=1, limit=8
      $region201: #{deep_hist_l1_loss.2} parent=27 // loop_pre_header
        _
      $region202: #{deep_hist_l1_loss.2} parent=27 // loop_header
        %s2942 = sphi 0, %s2946
        %p2943 = scmp.ge.s32.totalorder %s2942, 8
        %v2947 = vphi 0.0, %v3017
        %v2948 = vphi 0.0, %v3018
        %v2949 = vphi 0.0, %v3019
        %v2950 = vphi 0.0, %v3020
      $region203: #{deep_hist_l1_loss.2} parent=27 // loop_header_branch
        %2945 = sbr.rel (%p2943) target = $region207
      $region204: #{deep_hist_l1_loss.2} parent=27 // loop_body
        %s2951 = scalar_lea.vmem [#allocation2], %s2942
        %v2952 = vld [vmem:[%s2951] sm:$0x1]
        %v2953 = vlaneseq
        %v2954 = vshrl.u32 %v2953, 7
        %v2955 = vsub.s32 0, %v2954
        %v2956 = vrot.slane %v2952, %v2955
        %v2957 = vsub.f32 %v2937, %v2956
        %v2958 = vsub.f32 %v2938, %v2956
        %v2959 = vsub.f32 %v2939, %v2956
        %v2960 = vsub.f32 %v2940, %v2956
        %v2961 = vmax.f32 %v2957, -40.0
        %v2962 = vmax.f32 %v2958, -40.0
        %v2963 = vmax.f32 %v2959, -40.0
        %v2964 = vmax.f32 %v2960, -40.0
        %v2965 = vmin.f32 %v2961, 40.0
        %v2966 = vmin.f32 %v2962, 40.0
        %v2967 = vmin.f32 %v2963, 40.0
        %v2968 = vmin.f32 %v2964, 40.0
        %v2969 = vmul.f32 %v2965, 1.442695
        %v2970 = vpow.pop %v2969
        %v2971 = vmul.f32 %v2966, 1.442695
        %v2972 = vpow.pop %v2971
        %v2973 = vmul.f32 %v2967, 1.442695
        %v2974 = vpow.pop %v2973
        %v2975 = vmul.f32 %v2968, 1.442695
        %v2976 = vpow.pop %v2975
        %v2977 = vmul.f32 %v2970, 3.203838
        %v2978 = vmul.f32 %v2972, 3.203838
        %v2979 = vmul.f32 %v2974, 3.203838
        %v2980 = vmul.f32 %v2976, 3.203838
        %v2981 = vmul.f32 %v2970, 3.7768478
        %v2982 = vmul.f32 %v2972, 3.7768478
        %v2983 = vmul.f32 %v2974, 3.7768478
        %v2984 = vmul.f32 %v2976, 3.7768478
        %v2985 = vadd.f32 %v2981, 1.0
        %v2986 = vadd.f32 %v2982, 1.0
        %v2987 = vadd.f32 %v2983, 1.0
        %v2988 = vadd.f32 %v2984, 1.0
        %v2989 = vmul.f32 %v2970, %v2970
        %v2990 = vmul.f32 %v2972, %v2972
        %v2991 = vmul.f32 %v2974, %v2974
        %v2992 = vmul.f32 %v2976, %v2976
        %v2993 = vadd.f32 %v2985, %v2989
        %v2994 = vadd.f32 %v2986, %v2990
        %v2995 = vadd.f32 %v2987, %v2991
        %v2996 = vadd.f32 %v2988, %v2992
        %v2997 = vrcp.pop %v2993
        %v2998 = vrcp.pop %v2994
        %v2999 = vrcp.pop %v2995
        %v3000 = vrcp.pop %v2996
        %v3001 = vmul.f32 %v2993, %v2997
        %v3002 = vmul.f32 %v2994, %v2998
        %v3003 = vmul.f32 %v2995, %v2999
        %v3004 = vmul.f32 %v2996, %v3000
        %v3005 = vsub.f32 2.0, %v3001
        %v3006 = vsub.f32 2.0, %v3002
        %v3007 = vsub.f32 2.0, %v3003
        %v3008 = vsub.f32 2.0, %v3004
        %v3009 = vmul.f32 %v2997, %v3005
        %v3010 = vmul.f32 %v2998, %v3006
        %v3011 = vmul.f32 %v2999, %v3007
        %v3012 = vmul.f32 %v3000, %v3008
        %v3013 = vmul.f32 %v2977, %v3009
        %v3014 = vmul.f32 %v2978, %v3010
        %v3015 = vmul.f32 %v2979, %v3011
        %v3016 = vmul.f32 %v2980, %v3012
        %v3017 = vadd.f32 %v2947, %v3013
        %v3018 = vadd.f32 %v2948, %v3014
        %v3019 = vadd.f32 %v2949, %v3015
        %v3020 = vadd.f32 %v2950, %v3016
      $region205: #{deep_hist_l1_loss.2} parent=27 // loop_footer
        %s2946 = sadd.s32 1, %s2942
      $region206: #{deep_hist_l1_loss.2} parent=27 // loop_footer_branch
        %2941 = sbr.rel target = $region202
      $region207: #{deep_hist_l1_loss.2} parent=27 // loop_exit
        _
      %v3021 = vld [vmem:[%s296 + $0x80] sm:$0xff]
      %v3022 = vld [vmem:[%s296 + $0x88] sm:$0xff]
      %v3023 = vld [vmem:[%s296 + $0x90] sm:$0xff]
      %v3024 = vld [vmem:[%s296 + $0x98] sm:$0xff]
      %v3025 = vadd.f32 %v3021, %v2947
      %v3026 = vadd.f32 %v3022, %v2948
      %v3027 = vadd.f32 %v3023, %v2949
      %v3028 = vadd.f32 %v3024, %v2950
      %3029 = vst [vmem:[%s296 + $0x80] sm:$0xff] %v3025
      %3030 = vst [vmem:[%s296 + $0x88] sm:$0xff] %v3026
      %3031 = vst [vmem:[%s296 + $0x90] sm:$0xff] %v3027
      %3032 = vst [vmem:[%s296 + $0x98] sm:$0xff] %v3028
      loop: start=0, step=1, limit=8
      $region208: #{deep_hist_l1_loss.2} parent=27 // loop_pre_header
        _
      $region209: #{deep_hist_l1_loss.2} parent=27 // loop_header
        %s3034 = sphi 0, %s3038
        %p3035 = scmp.ge.s32.totalorder %s3034, 8
        %v3039 = vphi 0.0, %v3110
        %v3040 = vphi 0.0, %v3111
        %v3041 = vphi 0.0, %v3112
        %v3042 = vphi 0.0, %v3113
      $region210: #{deep_hist_l1_loss.2} parent=27 // loop_header_branch
        %3037 = sbr.rel (%p3035) target = $region214
      $region211: #{deep_hist_l1_loss.2} parent=27 // loop_body
        %s3043 = sadd.s32 %s3034, 8
        %s3044 = scalar_lea.vmem [#allocation2], %s3043
        %v3045 = vld [vmem:[%s3044] sm:$0x1]
        %v3046 = vlaneseq
        %v3047 = vshrl.u32 %v3046, 7
        %v3048 = vsub.s32 0, %v3047
        %v3049 = vrot.slane %v3045, %v3048
        %v3050 = vsub.f32 %v2937, %v3049
        %v3051 = vsub.f32 %v2938, %v3049
        %v3052 = vsub.f32 %v2939, %v3049
        %v3053 = vsub.f32 %v2940, %v3049
        %v3054 = vmax.f32 %v3050, -40.0
        %v3055 = vmax.f32 %v3051, -40.0
        %v3056 = vmax.f32 %v3052, -40.0
        %v3057 = vmax.f32 %v3053, -40.0
        %v3058 = vmin.f32 %v3054, 40.0
        %v3059 = vmin.f32 %v3055, 40.0
        %v3060 = vmin.f32 %v3056, 40.0
        %v3061 = vmin.f32 %v3057, 40.0
        %v3062 = vmul.f32 %v3058, 1.442695
        %v3063 = vpow.pop %v3062
        %v3064 = vmul.f32 %v3059, 1.442695
        %v3065 = vpow.pop %v3064
        %v3066 = vmul.f32 %v3060, 1.442695
        %v3067 = vpow.pop %v3066
        %v3068 = vmul.f32 %v3061, 1.442695
        %v3069 = vpow.pop %v3068
        %v3070 = vmul.f32 %v3063, 3.203838
        %v3071 = vmul.f32 %v3065, 3.203838
        %v3072 = vmul.f32 %v3067, 3.203838
        %v3073 = vmul.f32 %v3069, 3.203838
        %v3074 = vmul.f32 %v3063, 3.7768478
        %v3075 = vmul.f32 %v3065, 3.7768478
        %v3076 = vmul.f32 %v3067, 3.7768478
        %v3077 = vmul.f32 %v3069, 3.7768478
        %v3078 = vadd.f32 %v3074, 1.0
        %v3079 = vadd.f32 %v3075, 1.0
        %v3080 = vadd.f32 %v3076, 1.0
        %v3081 = vadd.f32 %v3077, 1.0
        %v3082 = vmul.f32 %v3063, %v3063
        %v3083 = vmul.f32 %v3065, %v3065
        %v3084 = vmul.f32 %v3067, %v3067
        %v3085 = vmul.f32 %v3069, %v3069
        %v3086 = vadd.f32 %v3078, %v3082
        %v3087 = vadd.f32 %v3079, %v3083
        %v3088 = vadd.f32 %v3080, %v3084
        %v3089 = vadd.f32 %v3081, %v3085
        %v3090 = vrcp.pop %v3086
        %v3091 = vrcp.pop %v3087
        %v3092 = vrcp.pop %v3088
        %v3093 = vrcp.pop %v3089
        %v3094 = vmul.f32 %v3086, %v3090
        %v3095 = vmul.f32 %v3087, %v3091
        %v3096 = vmul.f32 %v3088, %v3092
        %v3097 = vmul.f32 %v3089, %v3093
        %v3098 = vsub.f32 2.0, %v3094
        %v3099 = vsub.f32 2.0, %v3095
        %v3100 = vsub.f32 2.0, %v3096
        %v3101 = vsub.f32 2.0, %v3097
        %v3102 = vmul.f32 %v3090, %v3098
        %v3103 = vmul.f32 %v3091, %v3099
        %v3104 = vmul.f32 %v3092, %v3100
        %v3105 = vmul.f32 %v3093, %v3101
        %v3106 = vmul.f32 %v3070, %v3102
        %v3107 = vmul.f32 %v3071, %v3103
        %v3108 = vmul.f32 %v3072, %v3104
        %v3109 = vmul.f32 %v3073, %v3105
        %v3110 = vadd.f32 %v3039, %v3106
        %v3111 = vadd.f32 %v3040, %v3107
        %v3112 = vadd.f32 %v3041, %v3108
        %v3113 = vadd.f32 %v3042, %v3109
      $region212: #{deep_hist_l1_loss.2} parent=27 // loop_footer
        %s3038 = sadd.s32 1, %s3034
      $region213: #{deep_hist_l1_loss.2} parent=27 // loop_footer_branch
        %3033 = sbr.rel target = $region209
      $region214: #{deep_hist_l1_loss.2} parent=27 // loop_exit
        _
      %v3114 = vld [vmem:[%s842 + $0x80] sm:$0xff]
      %v3115 = vld [vmem:[%s842 + $0x88] sm:$0xff]
      %v3116 = vld [vmem:[%s842 + $0x90] sm:$0xff]
      %v3117 = vld [vmem:[%s842 + $0x98] sm:$0xff]
      %v3118 = vadd.f32 %v3114, %v3039
      %v3119 = vadd.f32 %v3115, %v3040
      %v3120 = vadd.f32 %v3116, %v3041
      %v3121 = vadd.f32 %v3117, %v3042
      %3122 = vst [vmem:[%s842 + $0x80] sm:$0xff] %v3118
      %3123 = vst [vmem:[%s842 + $0x88] sm:$0xff] %v3119
      %3124 = vst [vmem:[%s842 + $0x90] sm:$0xff] %v3120
      %3125 = vst [vmem:[%s842 + $0x98] sm:$0xff] %v3121
      loop: start=0, step=1, limit=8
      $region215: #{deep_hist_l1_loss.2} parent=27 // loop_pre_header
        _
      $region216: #{deep_hist_l1_loss.2} parent=27 // loop_header
        %s3127 = sphi 0, %s3131
        %p3128 = scmp.ge.s32.totalorder %s3127, 8
        %v3132 = vphi 0.0, %v3203
        %v3133 = vphi 0.0, %v3204
        %v3134 = vphi 0.0, %v3205
        %v3135 = vphi 0.0, %v3206
      $region217: #{deep_hist_l1_loss.2} parent=27 // loop_header_branch
        %3130 = sbr.rel (%p3128) target = $region221
      $region218: #{deep_hist_l1_loss.2} parent=27 // loop_body
        %s3136 = sadd.s32 %s3127, 16
        %s3137 = scalar_lea.vmem [#allocation2], %s3136
        %v3138 = vld [vmem:[%s3137] sm:$0x1]
        %v3139 = vlaneseq
        %v3140 = vshrl.u32 %v3139, 7
        %v3141 = vsub.s32 0, %v3140
        %v3142 = vrot.slane %v3138, %v3141
        %v3143 = vsub.f32 %v2937, %v3142
        %v3144 = vsub.f32 %v2938, %v3142
        %v3145 = vsub.f32 %v2939, %v3142
        %v3146 = vsub.f32 %v2940, %v3142
        %v3147 = vmax.f32 %v3143, -40.0
        %v3148 = vmax.f32 %v3144, -40.0
        %v3149 = vmax.f32 %v3145, -40.0
        %v3150 = vmax.f32 %v3146, -40.0
        %v3151 = vmin.f32 %v3147, 40.0
        %v3152 = vmin.f32 %v3148, 40.0
        %v3153 = vmin.f32 %v3149, 40.0
        %v3154 = vmin.f32 %v3150, 40.0
        %v3155 = vmul.f32 %v3151, 1.442695
        %v3156 = vpow.pop %v3155
        %v3157 = vmul.f32 %v3152, 1.442695
        %v3158 = vpow.pop %v3157
        %v3159 = vmul.f32 %v3153, 1.442695
        %v3160 = vpow.pop %v3159
        %v3161 = vmul.f32 %v3154, 1.442695
        %v3162 = vpow.pop %v3161
        %v3163 = vmul.f32 %v3156, 3.203838
        %v3164 = vmul.f32 %v3158, 3.203838
        %v3165 = vmul.f32 %v3160, 3.203838
        %v3166 = vmul.f32 %v3162, 3.203838
        %v3167 = vmul.f32 %v3156, 3.7768478
        %v3168 = vmul.f32 %v3158, 3.7768478
        %v3169 = vmul.f32 %v3160, 3.7768478
        %v3170 = vmul.f32 %v3162, 3.7768478
        %v3171 = vadd.f32 %v3167, 1.0
        %v3172 = vadd.f32 %v3168, 1.0
        %v3173 = vadd.f32 %v3169, 1.0
        %v3174 = vadd.f32 %v3170, 1.0
        %v3175 = vmul.f32 %v3156, %v3156
        %v3176 = vmul.f32 %v3158, %v3158
        %v3177 = vmul.f32 %v3160, %v3160
        %v3178 = vmul.f32 %v3162, %v3162
        %v3179 = vadd.f32 %v3171, %v3175
        %v3180 = vadd.f32 %v3172, %v3176
        %v3181 = vadd.f32 %v3173, %v3177
        %v3182 = vadd.f32 %v3174, %v3178
        %v3183 = vrcp.pop %v3179
        %v3184 = vrcp.pop %v3180
        %v3185 = vrcp.pop %v3181
        %v3186 = vrcp.pop %v3182
        %v3187 = vmul.f32 %v3179, %v3183
        %v3188 = vmul.f32 %v3180, %v3184
        %v3189 = vmul.f32 %v3181, %v3185
        %v3190 = vmul.f32 %v3182, %v3186
        %v3191 = vsub.f32 2.0, %v3187
        %v3192 = vsub.f32 2.0, %v3188
        %v3193 = vsub.f32 2.0, %v3189
        %v3194 = vsub.f32 2.0, %v3190
        %v3195 = vmul.f32 %v3183, %v3191
        %v3196 = vmul.f32 %v3184, %v3192
        %v3197 = vmul.f32 %v3185, %v3193
        %v3198 = vmul.f32 %v3186, %v3194
        %v3199 = vmul.f32 %v3163, %v3195
        %v3200 = vmul.f32 %v3164, %v3196
        %v3201 = vmul.f32 %v3165, %v3197
        %v3202 = vmul.f32 %v3166, %v3198
        %v3203 = vadd.f32 %v3132, %v3199
        %v3204 = vadd.f32 %v3133, %v3200
        %v3205 = vadd.f32 %v3134, %v3201
        %v3206 = vadd.f32 %v3135, %v3202
      $region219: #{deep_hist_l1_loss.2} parent=27 // loop_footer
        %s3131 = sadd.s32 1, %s3127
      $region220: #{deep_hist_l1_loss.2} parent=27 // loop_footer_branch
        %3126 = sbr.rel target = $region216
      $region221: #{deep_hist_l1_loss.2} parent=27 // loop_exit
        _
      %v3207 = vld [vmem:[%s936 + $0x80] sm:$0xff]
      %v3208 = vld [vmem:[%s936 + $0x88] sm:$0xff]
      %v3209 = vld [vmem:[%s936 + $0x90] sm:$0xff]
      %v3210 = vld [vmem:[%s936 + $0x98] sm:$0xff]
      %v3211 = vadd.f32 %v3207, %v3132
      %v3212 = vadd.f32 %v3208, %v3133
      %v3213 = vadd.f32 %v3209, %v3134
      %v3214 = vadd.f32 %v3210, %v3135
      %3215 = vst [vmem:[%s936 + $0x80] sm:$0xff] %v3211
      %3216 = vst [vmem:[%s936 + $0x88] sm:$0xff] %v3212
      %3217 = vst [vmem:[%s936 + $0x90] sm:$0xff] %v3213
      %3218 = vst [vmem:[%s936 + $0x98] sm:$0xff] %v3214
      loop: start=0, step=1, limit=8
      $region222: #{deep_hist_l1_loss.2} parent=27 // loop_pre_header
        _
      $region223: #{deep_hist_l1_loss.2} parent=27 // loop_header
        %s3220 = sphi 0, %s3224
        %p3221 = scmp.ge.s32.totalorder %s3220, 8
        %v3225 = vphi 0.0, %v3296
        %v3226 = vphi 0.0, %v3297
        %v3227 = vphi 0.0, %v3298
        %v3228 = vphi 0.0, %v3299
      $region224: #{deep_hist_l1_loss.2} parent=27 // loop_header_branch
        %3223 = sbr.rel (%p3221) target = $region228
      $region225: #{deep_hist_l1_loss.2} parent=27 // loop_body
        %s3229 = sadd.s32 %s3220, 24
        %s3230 = scalar_lea.vmem [#allocation2], %s3229
        %v3231 = vld [vmem:[%s3230] sm:$0x1]
        %v3232 = vlaneseq
        %v3233 = vshrl.u32 %v3232, 7
        %v3234 = vsub.s32 0, %v3233
        %v3235 = vrot.slane %v3231, %v3234
        %v3236 = vsub.f32 %v2937, %v3235
        %v3237 = vsub.f32 %v2938, %v3235
        %v3238 = vsub.f32 %v2939, %v3235
        %v3239 = vsub.f32 %v2940, %v3235
        %v3240 = vmax.f32 %v3236, -40.0
        %v3241 = vmax.f32 %v3237, -40.0
        %v3242 = vmax.f32 %v3238, -40.0
        %v3243 = vmax.f32 %v3239, -40.0
        %v3244 = vmin.f32 %v3240, 40.0
        %v3245 = vmin.f32 %v3241, 40.0
        %v3246 = vmin.f32 %v3242, 40.0
        %v3247 = vmin.f32 %v3243, 40.0
        %v3248 = vmul.f32 %v3244, 1.442695
        %v3249 = vpow.pop %v3248
        %v3250 = vmul.f32 %v3245, 1.442695
        %v3251 = vpow.pop %v3250
        %v3252 = vmul.f32 %v3246, 1.442695
        %v3253 = vpow.pop %v3252
        %v3254 = vmul.f32 %v3247, 1.442695
        %v3255 = vpow.pop %v3254
        %v3256 = vmul.f32 %v3249, 3.203838
        %v3257 = vmul.f32 %v3251, 3.203838
        %v3258 = vmul.f32 %v3253, 3.203838
        %v3259 = vmul.f32 %v3255, 3.203838
        %v3260 = vmul.f32 %v3249, 3.7768478
        %v3261 = vmul.f32 %v3251, 3.7768478
        %v3262 = vmul.f32 %v3253, 3.7768478
        %v3263 = vmul.f32 %v3255, 3.7768478
        %v3264 = vadd.f32 %v3260, 1.0
        %v3265 = vadd.f32 %v3261, 1.0
        %v3266 = vadd.f32 %v3262, 1.0
        %v3267 = vadd.f32 %v3263, 1.0
        %v3268 = vmul.f32 %v3249, %v3249
        %v3269 = vmul.f32 %v3251, %v3251
        %v3270 = vmul.f32 %v3253, %v3253
        %v3271 = vmul.f32 %v3255, %v3255
        %v3272 = vadd.f32 %v3264, %v3268
        %v3273 = vadd.f32 %v3265, %v3269
        %v3274 = vadd.f32 %v3266, %v3270
        %v3275 = vadd.f32 %v3267, %v3271
        %v3276 = vrcp.pop %v3272
        %v3277 = vrcp.pop %v3273
        %v3278 = vrcp.pop %v3274
        %v3279 = vrcp.pop %v3275
        %v3280 = vmul.f32 %v3272, %v3276
        %v3281 = vmul.f32 %v3273, %v3277
        %v3282 = vmul.f32 %v3274, %v3278
        %v3283 = vmul.f32 %v3275, %v3279
        %v3284 = vsub.f32 2.0, %v3280
        %v3285 = vsub.f32 2.0, %v3281
        %v3286 = vsub.f32 2.0, %v3282
        %v3287 = vsub.f32 2.0, %v3283
        %v3288 = vmul.f32 %v3276, %v3284
        %v3289 = vmul.f32 %v3277, %v3285
        %v3290 = vmul.f32 %v3278, %v3286
        %v3291 = vmul.f32 %v3279, %v3287
        %v3292 = vmul.f32 %v3256, %v3288
        %v3293 = vmul.f32 %v3257, %v3289
        %v3294 = vmul.f32 %v3258, %v3290
        %v3295 = vmul.f32 %v3259, %v3291
        %v3296 = vadd.f32 %v3225, %v3292
        %v3297 = vadd.f32 %v3226, %v3293
        %v3298 = vadd.f32 %v3227, %v3294
        %v3299 = vadd.f32 %v3228, %v3295
      $region226: #{deep_hist_l1_loss.2} parent=27 // loop_footer
        %s3224 = sadd.s32 1, %s3220
      $region227: #{deep_hist_l1_loss.2} parent=27 // loop_footer_branch
        %3219 = sbr.rel target = $region223
      $region228: #{deep_hist_l1_loss.2} parent=27 // loop_exit
        _
      %v3300 = vld [vmem:[%s301 + $0x80] sm:$0xff]
      %v3301 = vld [vmem:[%s301 + $0x88] sm:$0xff]
      %v3302 = vld [vmem:[%s301 + $0x90] sm:$0xff]
      %v3303 = vld [vmem:[%s301 + $0x98] sm:$0xff]
      %v3304 = vadd.f32 %v3300, %v3225
      %v3305 = vadd.f32 %v3301, %v3226
      %v3306 = vadd.f32 %v3302, %v3227
      %v3307 = vadd.f32 %v3303, %v3228
      %3308 = vst [vmem:[%s301 + $0x80] sm:$0xff] %v3304
      %3309 = vst [vmem:[%s301 + $0x88] sm:$0xff] %v3305
      %3310 = vst [vmem:[%s301 + $0x90] sm:$0xff] %v3306
      %3311 = vst [vmem:[%s301 + $0x98] sm:$0xff] %v3307
      loop: start=0, step=1, limit=8
      $region229: #{deep_hist_l1_loss.2} parent=27 // loop_pre_header
        _
      $region230: #{deep_hist_l1_loss.2} parent=27 // loop_header
        %s3313 = sphi 0, %s3317
        %p3314 = scmp.ge.s32.totalorder %s3313, 8
        %v3318 = vphi 0.0, %v3390
        %v3319 = vphi 0.0, %v3391
        %v3320 = vphi 0.0, %v3392
        %v3321 = vphi 0.0, %v3393
      $region231: #{deep_hist_l1_loss.2} parent=27 // loop_header_branch
        %3316 = sbr.rel (%p3314) target = $region235
      $region232: #{deep_hist_l1_loss.2} parent=27 // loop_body
        %s3322 = sadd.s32 %s3313, 8
        %s3323 = sadd.s32 %s3322, 24
        %s3324 = scalar_lea.vmem [#allocation2], %s3323
        %v3325 = vld [vmem:[%s3324] sm:$0x1]
        %v3326 = vlaneseq
        %v3327 = vshrl.u32 %v3326, 7
        %v3328 = vsub.s32 0, %v3327
        %v3329 = vrot.slane %v3325, %v3328
        %v3330 = vsub.f32 %v2937, %v3329
        %v3331 = vsub.f32 %v2938, %v3329
        %v3332 = vsub.f32 %v2939, %v3329
        %v3333 = vsub.f32 %v2940, %v3329
        %v3334 = vmax.f32 %v3330, -40.0
        %v3335 = vmax.f32 %v3331, -40.0
        %v3336 = vmax.f32 %v3332, -40.0
        %v3337 = vmax.f32 %v3333, -40.0
        %v3338 = vmin.f32 %v3334, 40.0
        %v3339 = vmin.f32 %v3335, 40.0
        %v3340 = vmin.f32 %v3336, 40.0
        %v3341 = vmin.f32 %v3337, 40.0
        %v3342 = vmul.f32 %v3338, 1.442695
        %v3343 = vpow.pop %v3342
        %v3344 = vmul.f32 %v3339, 1.442695
        %v3345 = vpow.pop %v3344
        %v3346 = vmul.f32 %v3340, 1.442695
        %v3347 = vpow.pop %v3346
        %v3348 = vmul.f32 %v3341, 1.442695
        %v3349 = vpow.pop %v3348
        %v3350 = vmul.f32 %v3343, 3.203838
        %v3351 = vmul.f32 %v3345, 3.203838
        %v3352 = vmul.f32 %v3347, 3.203838
        %v3353 = vmul.f32 %v3349, 3.203838
        %v3354 = vmul.f32 %v3343, 3.7768478
        %v3355 = vmul.f32 %v3345, 3.7768478
        %v3356 = vmul.f32 %v3347, 3.7768478
        %v3357 = vmul.f32 %v3349, 3.7768478
        %v3358 = vadd.f32 %v3354, 1.0
        %v3359 = vadd.f32 %v3355, 1.0
        %v3360 = vadd.f32 %v3356, 1.0
        %v3361 = vadd.f32 %v3357, 1.0
        %v3362 = vmul.f32 %v3343, %v3343
        %v3363 = vmul.f32 %v3345, %v3345
        %v3364 = vmul.f32 %v3347, %v3347
        %v3365 = vmul.f32 %v3349, %v3349
        %v3366 = vadd.f32 %v3358, %v3362
        %v3367 = vadd.f32 %v3359, %v3363
        %v3368 = vadd.f32 %v3360, %v3364
        %v3369 = vadd.f32 %v3361, %v3365
        %v3370 = vrcp.pop %v3366
        %v3371 = vrcp.pop %v3367
        %v3372 = vrcp.pop %v3368
        %v3373 = vrcp.pop %v3369
        %v3374 = vmul.f32 %v3366, %v3370
        %v3375 = vmul.f32 %v3367, %v3371
        %v3376 = vmul.f32 %v3368, %v3372
        %v3377 = vmul.f32 %v3369, %v3373
        %v3378 = vsub.f32 2.0, %v3374
        %v3379 = vsub.f32 2.0, %v3375
        %v3380 = vsub.f32 2.0, %v3376
        %v3381 = vsub.f32 2.0, %v3377
        %v3382 = vmul.f32 %v3370, %v3378
        %v3383 = vmul.f32 %v3371, %v3379
        %v3384 = vmul.f32 %v3372, %v3380
        %v3385 = vmul.f32 %v3373, %v3381
        %v3386 = vmul.f32 %v3350, %v3382
        %v3387 = vmul.f32 %v3351, %v3383
        %v3388 = vmul.f32 %v3352, %v3384
        %v3389 = vmul.f32 %v3353, %v3385
        %v3390 = vadd.f32 %v3318, %v3386
        %v3391 = vadd.f32 %v3319, %v3387
        %v3392 = vadd.f32 %v3320, %v3388
        %v3393 = vadd.f32 %v3321, %v3389
      $region233: #{deep_hist_l1_loss.2} parent=27 // loop_footer
        %s3317 = sadd.s32 1, %s3313
      $region234: #{deep_hist_l1_loss.2} parent=27 // loop_footer_branch
        %3312 = sbr.rel target = $region230
      $region235: #{deep_hist_l1_loss.2} parent=27 // loop_exit
        _
      %v3394 = vld [vmem:[%s1124 + $0x80] sm:$0xff]
      %v3395 = vld [vmem:[%s1124 + $0x88] sm:$0xff]
      %v3396 = vld [vmem:[%s1124 + $0x90] sm:$0xff]
      %v3397 = vld [vmem:[%s1124 + $0x98] sm:$0xff]
      %v3398 = vadd.f32 %v3394, %v3318
      %v3399 = vadd.f32 %v3395, %v3319
      %v3400 = vadd.f32 %v3396, %v3320
      %v3401 = vadd.f32 %v3397, %v3321
      %3402 = vst [vmem:[%s1124 + $0x80] sm:$0xff] %v3398
      %3403 = vst [vmem:[%s1124 + $0x88] sm:$0xff] %v3399
      %3404 = vst [vmem:[%s1124 + $0x90] sm:$0xff] %v3400
      %3405 = vst [vmem:[%s1124 + $0x98] sm:$0xff] %v3401
      loop: start=0, step=1, limit=8
      $region236: #{deep_hist_l1_loss.2} parent=27 // loop_pre_header
        _
      $region237: #{deep_hist_l1_loss.2} parent=27 // loop_header
        %s3407 = sphi 0, %s3411
        %p3408 = scmp.ge.s32.totalorder %s3407, 8
        %v3412 = vphi 0.0, %v3484
        %v3413 = vphi 0.0, %v3485
        %v3414 = vphi 0.0, %v3486
        %v3415 = vphi 0.0, %v3487
      $region238: #{deep_hist_l1_loss.2} parent=27 // loop_header_branch
        %3410 = sbr.rel (%p3408) target = $region242
      $region239: #{deep_hist_l1_loss.2} parent=27 // loop_body
        %s3416 = sadd.s32 %s3407, 16
        %s3417 = sadd.s32 %s3416, 24
        %s3418 = scalar_lea.vmem [#allocation2], %s3417
        %v3419 = vld [vmem:[%s3418] sm:$0x1]
        %v3420 = vlaneseq
        %v3421 = vshrl.u32 %v3420, 7
        %v3422 = vsub.s32 0, %v3421
        %v3423 = vrot.slane %v3419, %v3422
        %v3424 = vsub.f32 %v2937, %v3423
        %v3425 = vsub.f32 %v2938, %v3423
        %v3426 = vsub.f32 %v2939, %v3423
        %v3427 = vsub.f32 %v2940, %v3423
        %v3428 = vmax.f32 %v3424, -40.0
        %v3429 = vmax.f32 %v3425, -40.0
        %v3430 = vmax.f32 %v3426, -40.0
        %v3431 = vmax.f32 %v3427, -40.0
        %v3432 = vmin.f32 %v3428, 40.0
        %v3433 = vmin.f32 %v3429, 40.0
        %v3434 = vmin.f32 %v3430, 40.0
        %v3435 = vmin.f32 %v3431, 40.0
        %v3436 = vmul.f32 %v3432, 1.442695
        %v3437 = vpow.pop %v3436
        %v3438 = vmul.f32 %v3433, 1.442695
        %v3439 = vpow.pop %v3438
        %v3440 = vmul.f32 %v3434, 1.442695
        %v3441 = vpow.pop %v3440
        %v3442 = vmul.f32 %v3435, 1.442695
        %v3443 = vpow.pop %v3442
        %v3444 = vmul.f32 %v3437, 3.203838
        %v3445 = vmul.f32 %v3439, 3.203838
        %v3446 = vmul.f32 %v3441, 3.203838
        %v3447 = vmul.f32 %v3443, 3.203838
        %v3448 = vmul.f32 %v3437, 3.7768478
        %v3449 = vmul.f32 %v3439, 3.7768478
        %v3450 = vmul.f32 %v3441, 3.7768478
        %v3451 = vmul.f32 %v3443, 3.7768478
        %v3452 = vadd.f32 %v3448, 1.0
        %v3453 = vadd.f32 %v3449, 1.0
        %v3454 = vadd.f32 %v3450, 1.0
        %v3455 = vadd.f32 %v3451, 1.0
        %v3456 = vmul.f32 %v3437, %v3437
        %v3457 = vmul.f32 %v3439, %v3439
        %v3458 = vmul.f32 %v3441, %v3441
        %v3459 = vmul.f32 %v3443, %v3443
        %v3460 = vadd.f32 %v3452, %v3456
        %v3461 = vadd.f32 %v3453, %v3457
        %v3462 = vadd.f32 %v3454, %v3458
        %v3463 = vadd.f32 %v3455, %v3459
        %v3464 = vrcp.pop %v3460
        %v3465 = vrcp.pop %v3461
        %v3466 = vrcp.pop %v3462
        %v3467 = vrcp.pop %v3463
        %v3468 = vmul.f32 %v3460, %v3464
        %v3469 = vmul.f32 %v3461, %v3465
        %v3470 = vmul.f32 %v3462, %v3466
        %v3471 = vmul.f32 %v3463, %v3467
        %v3472 = vsub.f32 2.0, %v3468
        %v3473 = vsub.f32 2.0, %v3469
        %v3474 = vsub.f32 2.0, %v3470
        %v3475 = vsub.f32 2.0, %v3471
        %v3476 = vmul.f32 %v3464, %v3472
        %v3477 = vmul.f32 %v3465, %v3473
        %v3478 = vmul.f32 %v3466, %v3474
        %v3479 = vmul.f32 %v3467, %v3475
        %v3480 = vmul.f32 %v3444, %v3476
        %v3481 = vmul.f32 %v3445, %v3477
        %v3482 = vmul.f32 %v3446, %v3478
        %v3483 = vmul.f32 %v3447, %v3479
        %v3484 = vadd.f32 %v3412, %v3480
        %v3485 = vadd.f32 %v3413, %v3481
        %v3486 = vadd.f32 %v3414, %v3482
        %v3487 = vadd.f32 %v3415, %v3483
      $region240: #{deep_hist_l1_loss.2} parent=27 // loop_footer
        %s3411 = sadd.s32 1, %s3407
      $region241: #{deep_hist_l1_loss.2} parent=27 // loop_footer_branch
        %3406 = sbr.rel target = $region237
      $region242: #{deep_hist_l1_loss.2} parent=27 // loop_exit
        _
      %v3488 = vld [vmem:[%s1219 + $0x80] sm:$0xff]
      %v3489 = vld [vmem:[%s1219 + $0x88] sm:$0xff]
      %v3490 = vld [vmem:[%s1219 + $0x90] sm:$0xff]
      %v3491 = vld [vmem:[%s1219 + $0x98] sm:$0xff]
      %v3492 = vadd.f32 %v3488, %v3412
      %v3493 = vadd.f32 %v3489, %v3413
      %v3494 = vadd.f32 %v3490, %v3414
      %v3495 = vadd.f32 %v3491, %v3415
      %3496 = vst [vmem:[%s1219 + $0x80] sm:$0xff] %v3492
      %3497 = vst [vmem:[%s1219 + $0x88] sm:$0xff] %v3493
      %3498 = vst [vmem:[%s1219 + $0x90] sm:$0xff] %v3494
      %3499 = vst [vmem:[%s1219 + $0x98] sm:$0xff] %v3495
      %v3500 = vadd.f32 %v657, 160.5
      %v3501 = vadd.f32 %v658, 160.5
      %v3502 = vadd.f32 %v659, 160.5
      %v3503 = vadd.f32 %v660, 160.5
      %v3504 = vmul.f32 %v3500, 2.5
      %v3505 = vmul.f32 %v3501, 2.5
      %v3506 = vmul.f32 %v3502, 2.5
      %v3507 = vmul.f32 %v3503, 2.5
      loop: start=0, step=1, limit=8
      $region243: #{deep_hist_l1_loss.2} parent=27 // loop_pre_header
        _
      $region244: #{deep_hist_l1_loss.2} parent=27 // loop_header
        %s3509 = sphi 0, %s3513
        %p3510 = scmp.ge.s32.totalorder %s3509, 8
        %v3514 = vphi 0.0, %v3584
        %v3515 = vphi 0.0, %v3585
        %v3516 = vphi 0.0, %v3586
        %v3517 = vphi 0.0, %v3587
      $region245: #{deep_hist_l1_loss.2} parent=27 // loop_header_branch
        %3512 = sbr.rel (%p3510) target = $region249
      $region246: #{deep_hist_l1_loss.2} parent=27 // loop_body
        %s3518 = scalar_lea.vmem [#allocation2], %s3509
        %v3519 = vld [vmem:[%s3518] sm:$0x1]
        %v3520 = vlaneseq
        %v3521 = vshrl.u32 %v3520, 7
        %v3522 = vsub.s32 0, %v3521
        %v3523 = vrot.slane %v3519, %v3522
        %v3524 = vsub.f32 %v3504, %v3523
        %v3525 = vsub.f32 %v3505, %v3523
        %v3526 = vsub.f32 %v3506, %v3523
        %v3527 = vsub.f32 %v3507, %v3523
        %v3528 = vmax.f32 %v3524, -40.0
        %v3529 = vmax.f32 %v3525, -40.0
        %v3530 = vmax.f32 %v3526, -40.0
        %v3531 = vmax.f32 %v3527, -40.0
        %v3532 = vmin.f32 %v3528, 40.0
        %v3533 = vmin.f32 %v3529, 40.0
        %v3534 = vmin.f32 %v3530, 40.0
        %v3535 = vmin.f32 %v3531, 40.0
        %v3536 = vmul.f32 %v3532, 1.442695
        %v3537 = vpow.pop %v3536
        %v3538 = vmul.f32 %v3533, 1.442695
        %v3539 = vpow.pop %v3538
        %v3540 = vmul.f32 %v3534, 1.442695
        %v3541 = vpow.pop %v3540
        %v3542 = vmul.f32 %v3535, 1.442695
        %v3543 = vpow.pop %v3542
        %v3544 = vmul.f32 %v3537, 3.203838
        %v3545 = vmul.f32 %v3539, 3.203838
        %v3546 = vmul.f32 %v3541, 3.203838
        %v3547 = vmul.f32 %v3543, 3.203838
        %v3548 = vmul.f32 %v3537, 3.7768478
        %v3549 = vmul.f32 %v3539, 3.7768478
        %v3550 = vmul.f32 %v3541, 3.7768478
        %v3551 = vmul.f32 %v3543, 3.7768478
        %v3552 = vadd.f32 %v3548, 1.0
        %v3553 = vadd.f32 %v3549, 1.0
        %v3554 = vadd.f32 %v3550, 1.0
        %v3555 = vadd.f32 %v3551, 1.0
        %v3556 = vmul.f32 %v3537, %v3537
        %v3557 = vmul.f32 %v3539, %v3539
        %v3558 = vmul.f32 %v3541, %v3541
        %v3559 = vmul.f32 %v3543, %v3543
        %v3560 = vadd.f32 %v3552, %v3556
        %v3561 = vadd.f32 %v3553, %v3557
        %v3562 = vadd.f32 %v3554, %v3558
        %v3563 = vadd.f32 %v3555, %v3559
        %v3564 = vrcp.pop %v3560
        %v3565 = vrcp.pop %v3561
        %v3566 = vrcp.pop %v3562
        %v3567 = vrcp.pop %v3563
        %v3568 = vmul.f32 %v3560, %v3564
        %v3569 = vmul.f32 %v3561, %v3565
        %v3570 = vmul.f32 %v3562, %v3566
        %v3571 = vmul.f32 %v3563, %v3567
        %v3572 = vsub.f32 2.0, %v3568
        %v3573 = vsub.f32 2.0, %v3569
        %v3574 = vsub.f32 2.0, %v3570
        %v3575 = vsub.f32 2.0, %v3571
        %v3576 = vmul.f32 %v3564, %v3572
        %v3577 = vmul.f32 %v3565, %v3573
        %v3578 = vmul.f32 %v3566, %v3574
        %v3579 = vmul.f32 %v3567, %v3575
        %v3580 = vmul.f32 %v3544, %v3576
        %v3581 = vmul.f32 %v3545, %v3577
        %v3582 = vmul.f32 %v3546, %v3578
        %v3583 = vmul.f32 %v3547, %v3579
        %v3584 = vadd.f32 %v3514, %v3580
        %v3585 = vadd.f32 %v3515, %v3581
        %v3586 = vadd.f32 %v3516, %v3582
        %v3587 = vadd.f32 %v3517, %v3583
      $region247: #{deep_hist_l1_loss.2} parent=27 // loop_footer
        %s3513 = sadd.s32 1, %s3509
      $region248: #{deep_hist_l1_loss.2} parent=27 // loop_footer_branch
        %3508 = sbr.rel target = $region244
      $region249: #{deep_hist_l1_loss.2} parent=27 // loop_exit
        _
      %v3588 = vld [vmem:[%s296 + $0xa0] sm:$0xff]
      %v3589 = vld [vmem:[%s296 + $0xa8] sm:$0xff]
      %v3590 = vld [vmem:[%s296 + $0xb0] sm:$0xff]
      %v3591 = vld [vmem:[%s296 + $0xb8] sm:$0xff]
      %v3592 = vadd.f32 %v3588, %v3514
      %v3593 = vadd.f32 %v3589, %v3515
      %v3594 = vadd.f32 %v3590, %v3516
      %v3595 = vadd.f32 %v3591, %v3517
      %3596 = vst [vmem:[%s296 + $0xa0] sm:$0xff] %v3592
      %3597 = vst [vmem:[%s296 + $0xa8] sm:$0xff] %v3593
      %3598 = vst [vmem:[%s296 + $0xb0] sm:$0xff] %v3594
      %3599 = vst [vmem:[%s296 + $0xb8] sm:$0xff] %v3595
      loop: start=0, step=1, limit=8
      $region250: #{deep_hist_l1_loss.2} parent=27 // loop_pre_header
        _
      $region251: #{deep_hist_l1_loss.2} parent=27 // loop_header
        %s3601 = sphi 0, %s3605
        %p3602 = scmp.ge.s32.totalorder %s3601, 8
        %v3606 = vphi 0.0, %v3677
        %v3607 = vphi 0.0, %v3678
        %v3608 = vphi 0.0, %v3679
        %v3609 = vphi 0.0, %v3680
      $region252: #{deep_hist_l1_loss.2} parent=27 // loop_header_branch
        %3604 = sbr.rel (%p3602) target = $region256
      $region253: #{deep_hist_l1_loss.2} parent=27 // loop_body
        %s3610 = sadd.s32 %s3601, 8
        %s3611 = scalar_lea.vmem [#allocation2], %s3610
        %v3612 = vld [vmem:[%s3611] sm:$0x1]
        %v3613 = vlaneseq
        %v3614 = vshrl.u32 %v3613, 7
        %v3615 = vsub.s32 0, %v3614
        %v3616 = vrot.slane %v3612, %v3615
        %v3617 = vsub.f32 %v3504, %v3616
        %v3618 = vsub.f32 %v3505, %v3616
        %v3619 = vsub.f32 %v3506, %v3616
        %v3620 = vsub.f32 %v3507, %v3616
        %v3621 = vmax.f32 %v3617, -40.0
        %v3622 = vmax.f32 %v3618, -40.0
        %v3623 = vmax.f32 %v3619, -40.0
        %v3624 = vmax.f32 %v3620, -40.0
        %v3625 = vmin.f32 %v3621, 40.0
        %v3626 = vmin.f32 %v3622, 40.0
        %v3627 = vmin.f32 %v3623, 40.0
        %v3628 = vmin.f32 %v3624, 40.0
        %v3629 = vmul.f32 %v3625, 1.442695
        %v3630 = vpow.pop %v3629
        %v3631 = vmul.f32 %v3626, 1.442695
        %v3632 = vpow.pop %v3631
        %v3633 = vmul.f32 %v3627, 1.442695
        %v3634 = vpow.pop %v3633
        %v3635 = vmul.f32 %v3628, 1.442695
        %v3636 = vpow.pop %v3635
        %v3637 = vmul.f32 %v3630, 3.203838
        %v3638 = vmul.f32 %v3632, 3.203838
        %v3639 = vmul.f32 %v3634, 3.203838
        %v3640 = vmul.f32 %v3636, 3.203838
        %v3641 = vmul.f32 %v3630, 3.7768478
        %v3642 = vmul.f32 %v3632, 3.7768478
        %v3643 = vmul.f32 %v3634, 3.7768478
        %v3644 = vmul.f32 %v3636, 3.7768478
        %v3645 = vadd.f32 %v3641, 1.0
        %v3646 = vadd.f32 %v3642, 1.0
        %v3647 = vadd.f32 %v3643, 1.0
        %v3648 = vadd.f32 %v3644, 1.0
        %v3649 = vmul.f32 %v3630, %v3630
        %v3650 = vmul.f32 %v3632, %v3632
        %v3651 = vmul.f32 %v3634, %v3634
        %v3652 = vmul.f32 %v3636, %v3636
        %v3653 = vadd.f32 %v3645, %v3649
        %v3654 = vadd.f32 %v3646, %v3650
        %v3655 = vadd.f32 %v3647, %v3651
        %v3656 = vadd.f32 %v3648, %v3652
        %v3657 = vrcp.pop %v3653
        %v3658 = vrcp.pop %v3654
        %v3659 = vrcp.pop %v3655
        %v3660 = vrcp.pop %v3656
        %v3661 = vmul.f32 %v3653, %v3657
        %v3662 = vmul.f32 %v3654, %v3658
        %v3663 = vmul.f32 %v3655, %v3659
        %v3664 = vmul.f32 %v3656, %v3660
        %v3665 = vsub.f32 2.0, %v3661
        %v3666 = vsub.f32 2.0, %v3662
        %v3667 = vsub.f32 2.0, %v3663
        %v3668 = vsub.f32 2.0, %v3664
        %v3669 = vmul.f32 %v3657, %v3665
        %v3670 = vmul.f32 %v3658, %v3666
        %v3671 = vmul.f32 %v3659, %v3667
        %v3672 = vmul.f32 %v3660, %v3668
        %v3673 = vmul.f32 %v3637, %v3669
        %v3674 = vmul.f32 %v3638, %v3670
        %v3675 = vmul.f32 %v3639, %v3671
        %v3676 = vmul.f32 %v3640, %v3672
        %v3677 = vadd.f32 %v3606, %v3673
        %v3678 = vadd.f32 %v3607, %v3674
        %v3679 = vadd.f32 %v3608, %v3675
        %v3680 = vadd.f32 %v3609, %v3676
      $region254: #{deep_hist_l1_loss.2} parent=27 // loop_footer
        %s3605 = sadd.s32 1, %s3601
      $region255: #{deep_hist_l1_loss.2} parent=27 // loop_footer_branch
        %3600 = sbr.rel target = $region251
      $region256: #{deep_hist_l1_loss.2} parent=27 // loop_exit
        _
      %v3681 = vld [vmem:[%s842 + $0xa0] sm:$0xff]
      %v3682 = vld [vmem:[%s842 + $0xa8] sm:$0xff]
      %v3683 = vld [vmem:[%s842 + $0xb0] sm:$0xff]
      %v3684 = vld [vmem:[%s842 + $0xb8] sm:$0xff]
      %v3685 = vadd.f32 %v3681, %v3606
      %v3686 = vadd.f32 %v3682, %v3607
      %v3687 = vadd.f32 %v3683, %v3608
      %v3688 = vadd.f32 %v3684, %v3609
      %3689 = vst [vmem:[%s842 + $0xa0] sm:$0xff] %v3685
      %3690 = vst [vmem:[%s842 + $0xa8] sm:$0xff] %v3686
      %3691 = vst [vmem:[%s842 + $0xb0] sm:$0xff] %v3687
      %3692 = vst [vmem:[%s842 + $0xb8] sm:$0xff] %v3688
      loop: start=0, step=1, limit=8
      $region257: #{deep_hist_l1_loss.2} parent=27 // loop_pre_header
        _
      $region258: #{deep_hist_l1_loss.2} parent=27 // loop_header
        %s3694 = sphi 0, %s3698
        %p3695 = scmp.ge.s32.totalorder %s3694, 8
        %v3699 = vphi 0.0, %v3770
        %v3700 = vphi 0.0, %v3771
        %v3701 = vphi 0.0, %v3772
        %v3702 = vphi 0.0, %v3773
      $region259: #{deep_hist_l1_loss.2} parent=27 // loop_header_branch
        %3697 = sbr.rel (%p3695) target = $region263
      $region260: #{deep_hist_l1_loss.2} parent=27 // loop_body
        %s3703 = sadd.s32 %s3694, 16
        %s3704 = scalar_lea.vmem [#allocation2], %s3703
        %v3705 = vld [vmem:[%s3704] sm:$0x1]
        %v3706 = vlaneseq
        %v3707 = vshrl.u32 %v3706, 7
        %v3708 = vsub.s32 0, %v3707
        %v3709 = vrot.slane %v3705, %v3708
        %v3710 = vsub.f32 %v3504, %v3709
        %v3711 = vsub.f32 %v3505, %v3709
        %v3712 = vsub.f32 %v3506, %v3709
        %v3713 = vsub.f32 %v3507, %v3709
        %v3714 = vmax.f32 %v3710, -40.0
        %v3715 = vmax.f32 %v3711, -40.0
        %v3716 = vmax.f32 %v3712, -40.0
        %v3717 = vmax.f32 %v3713, -40.0
        %v3718 = vmin.f32 %v3714, 40.0
        %v3719 = vmin.f32 %v3715, 40.0
        %v3720 = vmin.f32 %v3716, 40.0
        %v3721 = vmin.f32 %v3717, 40.0
        %v3722 = vmul.f32 %v3718, 1.442695
        %v3723 = vpow.pop %v3722
        %v3724 = vmul.f32 %v3719, 1.442695
        %v3725 = vpow.pop %v3724
        %v3726 = vmul.f32 %v3720, 1.442695
        %v3727 = vpow.pop %v3726
        %v3728 = vmul.f32 %v3721, 1.442695
        %v3729 = vpow.pop %v3728
        %v3730 = vmul.f32 %v3723, 3.203838
        %v3731 = vmul.f32 %v3725, 3.203838
        %v3732 = vmul.f32 %v3727, 3.203838
        %v3733 = vmul.f32 %v3729, 3.203838
        %v3734 = vmul.f32 %v3723, 3.7768478
        %v3735 = vmul.f32 %v3725, 3.7768478
        %v3736 = vmul.f32 %v3727, 3.7768478
        %v3737 = vmul.f32 %v3729, 3.7768478
        %v3738 = vadd.f32 %v3734, 1.0
        %v3739 = vadd.f32 %v3735, 1.0
        %v3740 = vadd.f32 %v3736, 1.0
        %v3741 = vadd.f32 %v3737, 1.0
        %v3742 = vmul.f32 %v3723, %v3723
        %v3743 = vmul.f32 %v3725, %v3725
        %v3744 = vmul.f32 %v3727, %v3727
        %v3745 = vmul.f32 %v3729, %v3729
        %v3746 = vadd.f32 %v3738, %v3742
        %v3747 = vadd.f32 %v3739, %v3743
        %v3748 = vadd.f32 %v3740, %v3744
        %v3749 = vadd.f32 %v3741, %v3745
        %v3750 = vrcp.pop %v3746
        %v3751 = vrcp.pop %v3747
        %v3752 = vrcp.pop %v3748
        %v3753 = vrcp.pop %v3749
        %v3754 = vmul.f32 %v3746, %v3750
        %v3755 = vmul.f32 %v3747, %v3751
        %v3756 = vmul.f32 %v3748, %v3752
        %v3757 = vmul.f32 %v3749, %v3753
        %v3758 = vsub.f32 2.0, %v3754
        %v3759 = vsub.f32 2.0, %v3755
        %v3760 = vsub.f32 2.0, %v3756
        %v3761 = vsub.f32 2.0, %v3757
        %v3762 = vmul.f32 %v3750, %v3758
        %v3763 = vmul.f32 %v3751, %v3759
        %v3764 = vmul.f32 %v3752, %v3760
        %v3765 = vmul.f32 %v3753, %v3761
        %v3766 = vmul.f32 %v3730, %v3762
        %v3767 = vmul.f32 %v3731, %v3763
        %v3768 = vmul.f32 %v3732, %v3764
        %v3769 = vmul.f32 %v3733, %v3765
        %v3770 = vadd.f32 %v3699, %v3766
        %v3771 = vadd.f32 %v3700, %v3767
        %v3772 = vadd.f32 %v3701, %v3768
        %v3773 = vadd.f32 %v3702, %v3769
      $region261: #{deep_hist_l1_loss.2} parent=27 // loop_footer
        %s3698 = sadd.s32 1, %s3694
      $region262: #{deep_hist_l1_loss.2} parent=27 // loop_footer_branch
        %3693 = sbr.rel target = $region258
      $region263: #{deep_hist_l1_loss.2} parent=27 // loop_exit
        _
      %v3774 = vld [vmem:[%s936 + $0xa0] sm:$0xff]
      %v3775 = vld [vmem:[%s936 + $0xa8] sm:$0xff]
      %v3776 = vld [vmem:[%s936 + $0xb0] sm:$0xff]
      %v3777 = vld [vmem:[%s936 + $0xb8] sm:$0xff]
      %v3778 = vadd.f32 %v3774, %v3699
      %v3779 = vadd.f32 %v3775, %v3700
      %v3780 = vadd.f32 %v3776, %v3701
      %v3781 = vadd.f32 %v3777, %v3702
      %3782 = vst [vmem:[%s936 + $0xa0] sm:$0xff] %v3778
      %3783 = vst [vmem:[%s936 + $0xa8] sm:$0xff] %v3779
      %3784 = vst [vmem:[%s936 + $0xb0] sm:$0xff] %v3780
      %3785 = vst [vmem:[%s936 + $0xb8] sm:$0xff] %v3781
      loop: start=0, step=1, limit=8
      $region264: #{deep_hist_l1_loss.2} parent=27 // loop_pre_header
        _
      $region265: #{deep_hist_l1_loss.2} parent=27 // loop_header
        %s3787 = sphi 0, %s3791
        %p3788 = scmp.ge.s32.totalorder %s3787, 8
        %v3792 = vphi 0.0, %v3863
        %v3793 = vphi 0.0, %v3864
        %v3794 = vphi 0.0, %v3865
        %v3795 = vphi 0.0, %v3866
      $region266: #{deep_hist_l1_loss.2} parent=27 // loop_header_branch
        %3790 = sbr.rel (%p3788) target = $region270
      $region267: #{deep_hist_l1_loss.2} parent=27 // loop_body
        %s3796 = sadd.s32 %s3787, 24
        %s3797 = scalar_lea.vmem [#allocation2], %s3796
        %v3798 = vld [vmem:[%s3797] sm:$0x1]
        %v3799 = vlaneseq
        %v3800 = vshrl.u32 %v3799, 7
        %v3801 = vsub.s32 0, %v3800
        %v3802 = vrot.slane %v3798, %v3801
        %v3803 = vsub.f32 %v3504, %v3802
        %v3804 = vsub.f32 %v3505, %v3802
        %v3805 = vsub.f32 %v3506, %v3802
        %v3806 = vsub.f32 %v3507, %v3802
        %v3807 = vmax.f32 %v3803, -40.0
        %v3808 = vmax.f32 %v3804, -40.0
        %v3809 = vmax.f32 %v3805, -40.0
        %v3810 = vmax.f32 %v3806, -40.0
        %v3811 = vmin.f32 %v3807, 40.0
        %v3812 = vmin.f32 %v3808, 40.0
        %v3813 = vmin.f32 %v3809, 40.0
        %v3814 = vmin.f32 %v3810, 40.0
        %v3815 = vmul.f32 %v3811, 1.442695
        %v3816 = vpow.pop %v3815
        %v3817 = vmul.f32 %v3812, 1.442695
        %v3818 = vpow.pop %v3817
        %v3819 = vmul.f32 %v3813, 1.442695
        %v3820 = vpow.pop %v3819
        %v3821 = vmul.f32 %v3814, 1.442695
        %v3822 = vpow.pop %v3821
        %v3823 = vmul.f32 %v3816, 3.203838
        %v3824 = vmul.f32 %v3818, 3.203838
        %v3825 = vmul.f32 %v3820, 3.203838
        %v3826 = vmul.f32 %v3822, 3.203838
        %v3827 = vmul.f32 %v3816, 3.7768478
        %v3828 = vmul.f32 %v3818, 3.7768478
        %v3829 = vmul.f32 %v3820, 3.7768478
        %v3830 = vmul.f32 %v3822, 3.7768478
        %v3831 = vadd.f32 %v3827, 1.0
        %v3832 = vadd.f32 %v3828, 1.0
        %v3833 = vadd.f32 %v3829, 1.0
        %v3834 = vadd.f32 %v3830, 1.0
        %v3835 = vmul.f32 %v3816, %v3816
        %v3836 = vmul.f32 %v3818, %v3818
        %v3837 = vmul.f32 %v3820, %v3820
        %v3838 = vmul.f32 %v3822, %v3822
        %v3839 = vadd.f32 %v3831, %v3835
        %v3840 = vadd.f32 %v3832, %v3836
        %v3841 = vadd.f32 %v3833, %v3837
        %v3842 = vadd.f32 %v3834, %v3838
        %v3843 = vrcp.pop %v3839
        %v3844 = vrcp.pop %v3840
        %v3845 = vrcp.pop %v3841
        %v3846 = vrcp.pop %v3842
        %v3847 = vmul.f32 %v3839, %v3843
        %v3848 = vmul.f32 %v3840, %v3844
        %v3849 = vmul.f32 %v3841, %v3845
        %v3850 = vmul.f32 %v3842, %v3846
        %v3851 = vsub.f32 2.0, %v3847
        %v3852 = vsub.f32 2.0, %v3848
        %v3853 = vsub.f32 2.0, %v3849
        %v3854 = vsub.f32 2.0, %v3850
        %v3855 = vmul.f32 %v3843, %v3851
        %v3856 = vmul.f32 %v3844, %v3852
        %v3857 = vmul.f32 %v3845, %v3853
        %v3858 = vmul.f32 %v3846, %v3854
        %v3859 = vmul.f32 %v3823, %v3855
        %v3860 = vmul.f32 %v3824, %v3856
        %v3861 = vmul.f32 %v3825, %v3857
        %v3862 = vmul.f32 %v3826, %v3858
        %v3863 = vadd.f32 %v3792, %v3859
        %v3864 = vadd.f32 %v3793, %v3860
        %v3865 = vadd.f32 %v3794, %v3861
        %v3866 = vadd.f32 %v3795, %v3862
      $region268: #{deep_hist_l1_loss.2} parent=27 // loop_footer
        %s3791 = sadd.s32 1, %s3787
      $region269: #{deep_hist_l1_loss.2} parent=27 // loop_footer_branch
        %3786 = sbr.rel target = $region265
      $region270: #{deep_hist_l1_loss.2} parent=27 // loop_exit
        _
      %v3867 = vld [vmem:[%s301 + $0xa0] sm:$0xff]
      %v3868 = vld [vmem:[%s301 + $0xa8] sm:$0xff]
      %v3869 = vld [vmem:[%s301 + $0xb0] sm:$0xff]
      %v3870 = vld [vmem:[%s301 + $0xb8] sm:$0xff]
      %v3871 = vadd.f32 %v3867, %v3792
      %v3872 = vadd.f32 %v3868, %v3793
      %v3873 = vadd.f32 %v3869, %v3794
      %v3874 = vadd.f32 %v3870, %v3795
      %3875 = vst [vmem:[%s301 + $0xa0] sm:$0xff] %v3871
      %3876 = vst [vmem:[%s301 + $0xa8] sm:$0xff] %v3872
      %3877 = vst [vmem:[%s301 + $0xb0] sm:$0xff] %v3873
      %3878 = vst [vmem:[%s301 + $0xb8] sm:$0xff] %v3874
      loop: start=0, step=1, limit=8
      $region271: #{deep_hist_l1_loss.2} parent=27 // loop_pre_header
        _
      $region272: #{deep_hist_l1_loss.2} parent=27 // loop_header
        %s3880 = sphi 0, %s3884
        %p3881 = scmp.ge.s32.totalorder %s3880, 8
        %v3885 = vphi 0.0, %v3957
        %v3886 = vphi 0.0, %v3958
        %v3887 = vphi 0.0, %v3959
        %v3888 = vphi 0.0, %v3960
      $region273: #{deep_hist_l1_loss.2} parent=27 // loop_header_branch
        %3883 = sbr.rel (%p3881) target = $region277
      $region274: #{deep_hist_l1_loss.2} parent=27 // loop_body
        %s3889 = sadd.s32 %s3880, 8
        %s3890 = sadd.s32 %s3889, 24
        %s3891 = scalar_lea.vmem [#allocation2], %s3890
        %v3892 = vld [vmem:[%s3891] sm:$0x1]
        %v3893 = vlaneseq
        %v3894 = vshrl.u32 %v3893, 7
        %v3895 = vsub.s32 0, %v3894
        %v3896 = vrot.slane %v3892, %v3895
        %v3897 = vsub.f32 %v3504, %v3896
        %v3898 = vsub.f32 %v3505, %v3896
        %v3899 = vsub.f32 %v3506, %v3896
        %v3900 = vsub.f32 %v3507, %v3896
        %v3901 = vmax.f32 %v3897, -40.0
        %v3902 = vmax.f32 %v3898, -40.0
        %v3903 = vmax.f32 %v3899, -40.0
        %v3904 = vmax.f32 %v3900, -40.0
        %v3905 = vmin.f32 %v3901, 40.0
        %v3906 = vmin.f32 %v3902, 40.0
        %v3907 = vmin.f32 %v3903, 40.0
        %v3908 = vmin.f32 %v3904, 40.0
        %v3909 = vmul.f32 %v3905, 1.442695
        %v3910 = vpow.pop %v3909
        %v3911 = vmul.f32 %v3906, 1.442695
        %v3912 = vpow.pop %v3911
        %v3913 = vmul.f32 %v3907, 1.442695
        %v3914 = vpow.pop %v3913
        %v3915 = vmul.f32 %v3908, 1.442695
        %v3916 = vpow.pop %v3915
        %v3917 = vmul.f32 %v3910, 3.203838
        %v3918 = vmul.f32 %v3912, 3.203838
        %v3919 = vmul.f32 %v3914, 3.203838
        %v3920 = vmul.f32 %v3916, 3.203838
        %v3921 = vmul.f32 %v3910, 3.7768478
        %v3922 = vmul.f32 %v3912, 3.7768478
        %v3923 = vmul.f32 %v3914, 3.7768478
        %v3924 = vmul.f32 %v3916, 3.7768478
        %v3925 = vadd.f32 %v3921, 1.0
        %v3926 = vadd.f32 %v3922, 1.0
        %v3927 = vadd.f32 %v3923, 1.0
        %v3928 = vadd.f32 %v3924, 1.0
        %v3929 = vmul.f32 %v3910, %v3910
        %v3930 = vmul.f32 %v3912, %v3912
        %v3931 = vmul.f32 %v3914, %v3914
        %v3932 = vmul.f32 %v3916, %v3916
        %v3933 = vadd.f32 %v3925, %v3929
        %v3934 = vadd.f32 %v3926, %v3930
        %v3935 = vadd.f32 %v3927, %v3931
        %v3936 = vadd.f32 %v3928, %v3932
        %v3937 = vrcp.pop %v3933
        %v3938 = vrcp.pop %v3934
        %v3939 = vrcp.pop %v3935
        %v3940 = vrcp.pop %v3936
        %v3941 = vmul.f32 %v3933, %v3937
        %v3942 = vmul.f32 %v3934, %v3938
        %v3943 = vmul.f32 %v3935, %v3939
        %v3944 = vmul.f32 %v3936, %v3940
        %v3945 = vsub.f32 2.0, %v3941
        %v3946 = vsub.f32 2.0, %v3942
        %v3947 = vsub.f32 2.0, %v3943
        %v3948 = vsub.f32 2.0, %v3944
        %v3949 = vmul.f32 %v3937, %v3945
        %v3950 = vmul.f32 %v3938, %v3946
        %v3951 = vmul.f32 %v3939, %v3947
        %v3952 = vmul.f32 %v3940, %v3948
        %v3953 = vmul.f32 %v3917, %v3949
        %v3954 = vmul.f32 %v3918, %v3950
        %v3955 = vmul.f32 %v3919, %v3951
        %v3956 = vmul.f32 %v3920, %v3952
        %v3957 = vadd.f32 %v3885, %v3953
        %v3958 = vadd.f32 %v3886, %v3954
        %v3959 = vadd.f32 %v3887, %v3955
        %v3960 = vadd.f32 %v3888, %v3956
      $region275: #{deep_hist_l1_loss.2} parent=27 // loop_footer
        %s3884 = sadd.s32 1, %s3880
      $region276: #{deep_hist_l1_loss.2} parent=27 // loop_footer_branch
        %3879 = sbr.rel target = $region272
      $region277: #{deep_hist_l1_loss.2} parent=27 // loop_exit
        _
      %v3961 = vld [vmem:[%s1124 + $0xa0] sm:$0xff]
      %v3962 = vld [vmem:[%s1124 + $0xa8] sm:$0xff]
      %v3963 = vld [vmem:[%s1124 + $0xb0] sm:$0xff]
      %v3964 = vld [vmem:[%s1124 + $0xb8] sm:$0xff]
      %v3965 = vadd.f32 %v3961, %v3885
      %v3966 = vadd.f32 %v3962, %v3886
      %v3967 = vadd.f32 %v3963, %v3887
      %v3968 = vadd.f32 %v3964, %v3888
      %3969 = vst [vmem:[%s1124 + $0xa0] sm:$0xff] %v3965
      %3970 = vst [vmem:[%s1124 + $0xa8] sm:$0xff] %v3966
      %3971 = vst [vmem:[%s1124 + $0xb0] sm:$0xff] %v3967
      %3972 = vst [vmem:[%s1124 + $0xb8] sm:$0xff] %v3968
      loop: start=0, step=1, limit=8
      $region278: #{deep_hist_l1_loss.2} parent=27 // loop_pre_header
        _
      $region279: #{deep_hist_l1_loss.2} parent=27 // loop_header
        %s3974 = sphi 0, %s3978
        %p3975 = scmp.ge.s32.totalorder %s3974, 8
        %v3979 = vphi 0.0, %v4051
        %v3980 = vphi 0.0, %v4052
        %v3981 = vphi 0.0, %v4053
        %v3982 = vphi 0.0, %v4054
      $region280: #{deep_hist_l1_loss.2} parent=27 // loop_header_branch
        %3977 = sbr.rel (%p3975) target = $region284
      $region281: #{deep_hist_l1_loss.2} parent=27 // loop_body
        %s3983 = sadd.s32 %s3974, 16
        %s3984 = sadd.s32 %s3983, 24
        %s3985 = scalar_lea.vmem [#allocation2], %s3984
        %v3986 = vld [vmem:[%s3985] sm:$0x1]
        %v3987 = vlaneseq
        %v3988 = vshrl.u32 %v3987, 7
        %v3989 = vsub.s32 0, %v3988
        %v3990 = vrot.slane %v3986, %v3989
        %v3991 = vsub.f32 %v3504, %v3990
        %v3992 = vsub.f32 %v3505, %v3990
        %v3993 = vsub.f32 %v3506, %v3990
        %v3994 = vsub.f32 %v3507, %v3990
        %v3995 = vmax.f32 %v3991, -40.0
        %v3996 = vmax.f32 %v3992, -40.0
        %v3997 = vmax.f32 %v3993, -40.0
        %v3998 = vmax.f32 %v3994, -40.0
        %v3999 = vmin.f32 %v3995, 40.0
        %v4000 = vmin.f32 %v3996, 40.0
        %v4001 = vmin.f32 %v3997, 40.0
        %v4002 = vmin.f32 %v3998, 40.0
        %v4003 = vmul.f32 %v3999, 1.442695
        %v4004 = vpow.pop %v4003
        %v4005 = vmul.f32 %v4000, 1.442695
        %v4006 = vpow.pop %v4005
        %v4007 = vmul.f32 %v4001, 1.442695
        %v4008 = vpow.pop %v4007
        %v4009 = vmul.f32 %v4002, 1.442695
        %v4010 = vpow.pop %v4009
        %v4011 = vmul.f32 %v4004, 3.203838
        %v4012 = vmul.f32 %v4006, 3.203838
        %v4013 = vmul.f32 %v4008, 3.203838
        %v4014 = vmul.f32 %v4010, 3.203838
        %v4015 = vmul.f32 %v4004, 3.7768478
        %v4016 = vmul.f32 %v4006, 3.7768478
        %v4017 = vmul.f32 %v4008, 3.7768478
        %v4018 = vmul.f32 %v4010, 3.7768478
        %v4019 = vadd.f32 %v4015, 1.0
        %v4020 = vadd.f32 %v4016, 1.0
        %v4021 = vadd.f32 %v4017, 1.0
        %v4022 = vadd.f32 %v4018, 1.0
        %v4023 = vmul.f32 %v4004, %v4004
        %v4024 = vmul.f32 %v4006, %v4006
        %v4025 = vmul.f32 %v4008, %v4008
        %v4026 = vmul.f32 %v4010, %v4010
        %v4027 = vadd.f32 %v4019, %v4023
        %v4028 = vadd.f32 %v4020, %v4024
        %v4029 = vadd.f32 %v4021, %v4025
        %v4030 = vadd.f32 %v4022, %v4026
        %v4031 = vrcp.pop %v4027
        %v4032 = vrcp.pop %v4028
        %v4033 = vrcp.pop %v4029
        %v4034 = vrcp.pop %v4030
        %v4035 = vmul.f32 %v4027, %v4031
        %v4036 = vmul.f32 %v4028, %v4032
        %v4037 = vmul.f32 %v4029, %v4033
        %v4038 = vmul.f32 %v4030, %v4034
        %v4039 = vsub.f32 2.0, %v4035
        %v4040 = vsub.f32 2.0, %v4036
        %v4041 = vsub.f32 2.0, %v4037
        %v4042 = vsub.f32 2.0, %v4038
        %v4043 = vmul.f32 %v4031, %v4039
        %v4044 = vmul.f32 %v4032, %v4040
        %v4045 = vmul.f32 %v4033, %v4041
        %v4046 = vmul.f32 %v4034, %v4042
        %v4047 = vmul.f32 %v4011, %v4043
        %v4048 = vmul.f32 %v4012, %v4044
        %v4049 = vmul.f32 %v4013, %v4045
        %v4050 = vmul.f32 %v4014, %v4046
        %v4051 = vadd.f32 %v3979, %v4047
        %v4052 = vadd.f32 %v3980, %v4048
        %v4053 = vadd.f32 %v3981, %v4049
        %v4054 = vadd.f32 %v3982, %v4050
      $region282: #{deep_hist_l1_loss.2} parent=27 // loop_footer
        %s3978 = sadd.s32 1, %s3974
      $region283: #{deep_hist_l1_loss.2} parent=27 // loop_footer_branch
        %3973 = sbr.rel target = $region279
      $region284: #{deep_hist_l1_loss.2} parent=27 // loop_exit
        _
      %v4055 = vld [vmem:[%s1219 + $0xa0] sm:$0xff]
      %v4056 = vld [vmem:[%s1219 + $0xa8] sm:$0xff]
      %v4057 = vld [vmem:[%s1219 + $0xb0] sm:$0xff]
      %v4058 = vld [vmem:[%s1219 + $0xb8] sm:$0xff]
      %v4059 = vadd.f32 %v4055, %v3979
      %v4060 = vadd.f32 %v4056, %v3980
      %v4061 = vadd.f32 %v4057, %v3981
      %v4062 = vadd.f32 %v4058, %v3982
      %4063 = vst [vmem:[%s1219 + $0xa0] sm:$0xff] %v4059
      %4064 = vst [vmem:[%s1219 + $0xa8] sm:$0xff] %v4060
      %4065 = vst [vmem:[%s1219 + $0xb0] sm:$0xff] %v4061
      %4066 = vst [vmem:[%s1219 + $0xb8] sm:$0xff] %v4062
      %v4067 = vadd.f32 %v657, 192.5
      %v4068 = vadd.f32 %v658, 192.5
      %v4069 = vadd.f32 %v659, 192.5
      %v4070 = vadd.f32 %v660, 192.5
      %v4071 = vmul.f32 %v4067, 2.5
      %v4072 = vmul.f32 %v4068, 2.5
      %v4073 = vmul.f32 %v4069, 2.5
      %v4074 = vmul.f32 %v4070, 2.5
      loop: start=0, step=1, limit=8
      $region285: #{deep_hist_l1_loss.2} parent=27 // loop_pre_header
        _
      $region286: #{deep_hist_l1_loss.2} parent=27 // loop_header
        %s4076 = sphi 0, %s4080
        %p4077 = scmp.ge.s32.totalorder %s4076, 8
        %v4081 = vphi 0.0, %v4151
        %v4082 = vphi 0.0, %v4152
        %v4083 = vphi 0.0, %v4153
        %v4084 = vphi 0.0, %v4154
      $region287: #{deep_hist_l1_loss.2} parent=27 // loop_header_branch
        %4079 = sbr.rel (%p4077) target = $region291
      $region288: #{deep_hist_l1_loss.2} parent=27 // loop_body
        %s4085 = scalar_lea.vmem [#allocation2], %s4076
        %v4086 = vld [vmem:[%s4085] sm:$0x1]
        %v4087 = vlaneseq
        %v4088 = vshrl.u32 %v4087, 7
        %v4089 = vsub.s32 0, %v4088
        %v4090 = vrot.slane %v4086, %v4089
        %v4091 = vsub.f32 %v4071, %v4090
        %v4092 = vsub.f32 %v4072, %v4090
        %v4093 = vsub.f32 %v4073, %v4090
        %v4094 = vsub.f32 %v4074, %v4090
        %v4095 = vmax.f32 %v4091, -40.0
        %v4096 = vmax.f32 %v4092, -40.0
        %v4097 = vmax.f32 %v4093, -40.0
        %v4098 = vmax.f32 %v4094, -40.0
        %v4099 = vmin.f32 %v4095, 40.0
        %v4100 = vmin.f32 %v4096, 40.0
        %v4101 = vmin.f32 %v4097, 40.0
        %v4102 = vmin.f32 %v4098, 40.0
        %v4103 = vmul.f32 %v4099, 1.442695
        %v4104 = vpow.pop %v4103
        %v4105 = vmul.f32 %v4100, 1.442695
        %v4106 = vpow.pop %v4105
        %v4107 = vmul.f32 %v4101, 1.442695
        %v4108 = vpow.pop %v4107
        %v4109 = vmul.f32 %v4102, 1.442695
        %v4110 = vpow.pop %v4109
        %v4111 = vmul.f32 %v4104, 3.203838
        %v4112 = vmul.f32 %v4106, 3.203838
        %v4113 = vmul.f32 %v4108, 3.203838
        %v4114 = vmul.f32 %v4110, 3.203838
        %v4115 = vmul.f32 %v4104, 3.7768478
        %v4116 = vmul.f32 %v4106, 3.7768478
        %v4117 = vmul.f32 %v4108, 3.7768478
        %v4118 = vmul.f32 %v4110, 3.7768478
        %v4119 = vadd.f32 %v4115, 1.0
        %v4120 = vadd.f32 %v4116, 1.0
        %v4121 = vadd.f32 %v4117, 1.0
        %v4122 = vadd.f32 %v4118, 1.0
        %v4123 = vmul.f32 %v4104, %v4104
        %v4124 = vmul.f32 %v4106, %v4106
        %v4125 = vmul.f32 %v4108, %v4108
        %v4126 = vmul.f32 %v4110, %v4110
        %v4127 = vadd.f32 %v4119, %v4123
        %v4128 = vadd.f32 %v4120, %v4124
        %v4129 = vadd.f32 %v4121, %v4125
        %v4130 = vadd.f32 %v4122, %v4126
        %v4131 = vrcp.pop %v4127
        %v4132 = vrcp.pop %v4128
        %v4133 = vrcp.pop %v4129
        %v4134 = vrcp.pop %v4130
        %v4135 = vmul.f32 %v4127, %v4131
        %v4136 = vmul.f32 %v4128, %v4132
        %v4137 = vmul.f32 %v4129, %v4133
        %v4138 = vmul.f32 %v4130, %v4134
        %v4139 = vsub.f32 2.0, %v4135
        %v4140 = vsub.f32 2.0, %v4136
        %v4141 = vsub.f32 2.0, %v4137
        %v4142 = vsub.f32 2.0, %v4138
        %v4143 = vmul.f32 %v4131, %v4139
        %v4144 = vmul.f32 %v4132, %v4140
        %v4145 = vmul.f32 %v4133, %v4141
        %v4146 = vmul.f32 %v4134, %v4142
        %v4147 = vmul.f32 %v4111, %v4143
        %v4148 = vmul.f32 %v4112, %v4144
        %v4149 = vmul.f32 %v4113, %v4145
        %v4150 = vmul.f32 %v4114, %v4146
        %v4151 = vadd.f32 %v4081, %v4147
        %v4152 = vadd.f32 %v4082, %v4148
        %v4153 = vadd.f32 %v4083, %v4149
        %v4154 = vadd.f32 %v4084, %v4150
      $region289: #{deep_hist_l1_loss.2} parent=27 // loop_footer
        %s4080 = sadd.s32 1, %s4076
      $region290: #{deep_hist_l1_loss.2} parent=27 // loop_footer_branch
        %4075 = sbr.rel target = $region286
      $region291: #{deep_hist_l1_loss.2} parent=27 // loop_exit
        _
      %v4155 = vld [vmem:[%s296 + $0xc0] sm:$0xff]
      %v4156 = vld [vmem:[%s296 + $0xc8] sm:$0xff]
      %v4157 = vld [vmem:[%s296 + $0xd0] sm:$0xff]
      %v4158 = vld [vmem:[%s296 + $0xd8] sm:$0xff]
      %v4159 = vadd.f32 %v4155, %v4081
      %v4160 = vadd.f32 %v4156, %v4082
      %v4161 = vadd.f32 %v4157, %v4083
      %v4162 = vadd.f32 %v4158, %v4084
      %4163 = vst [vmem:[%s296 + $0xc0] sm:$0xff] %v4159
      %4164 = vst [vmem:[%s296 + $0xc8] sm:$0xff] %v4160
      %4165 = vst [vmem:[%s296 + $0xd0] sm:$0xff] %v4161
      %4166 = vst [vmem:[%s296 + $0xd8] sm:$0xff] %v4162
      loop: start=0, step=1, limit=8
      $region292: #{deep_hist_l1_loss.2} parent=27 // loop_pre_header
        _
      $region293: #{deep_hist_l1_loss.2} parent=27 // loop_header
        %s4168 = sphi 0, %s4172
        %p4169 = scmp.ge.s32.totalorder %s4168, 8
        %v4173 = vphi 0.0, %v4244
        %v4174 = vphi 0.0, %v4245
        %v4175 = vphi 0.0, %v4246
        %v4176 = vphi 0.0, %v4247
      $region294: #{deep_hist_l1_loss.2} parent=27 // loop_header_branch
        %4171 = sbr.rel (%p4169) target = $region298
      $region295: #{deep_hist_l1_loss.2} parent=27 // loop_body
        %s4177 = sadd.s32 %s4168, 8
        %s4178 = scalar_lea.vmem [#allocation2], %s4177
        %v4179 = vld [vmem:[%s4178] sm:$0x1]
        %v4180 = vlaneseq
        %v4181 = vshrl.u32 %v4180, 7
        %v4182 = vsub.s32 0, %v4181
        %v4183 = vrot.slane %v4179, %v4182
        %v4184 = vsub.f32 %v4071, %v4183
        %v4185 = vsub.f32 %v4072, %v4183
        %v4186 = vsub.f32 %v4073, %v4183
        %v4187 = vsub.f32 %v4074, %v4183
        %v4188 = vmax.f32 %v4184, -40.0
        %v4189 = vmax.f32 %v4185, -40.0
        %v4190 = vmax.f32 %v4186, -40.0
        %v4191 = vmax.f32 %v4187, -40.0
        %v4192 = vmin.f32 %v4188, 40.0
        %v4193 = vmin.f32 %v4189, 40.0
        %v4194 = vmin.f32 %v4190, 40.0
        %v4195 = vmin.f32 %v4191, 40.0
        %v4196 = vmul.f32 %v4192, 1.442695
        %v4197 = vpow.pop %v4196
        %v4198 = vmul.f32 %v4193, 1.442695
        %v4199 = vpow.pop %v4198
        %v4200 = vmul.f32 %v4194, 1.442695
        %v4201 = vpow.pop %v4200
        %v4202 = vmul.f32 %v4195, 1.442695
        %v4203 = vpow.pop %v4202
        %v4204 = vmul.f32 %v4197, 3.203838
        %v4205 = vmul.f32 %v4199, 3.203838
        %v4206 = vmul.f32 %v4201, 3.203838
        %v4207 = vmul.f32 %v4203, 3.203838
        %v4208 = vmul.f32 %v4197, 3.7768478
        %v4209 = vmul.f32 %v4199, 3.7768478
        %v4210 = vmul.f32 %v4201, 3.7768478
        %v4211 = vmul.f32 %v4203, 3.7768478
        %v4212 = vadd.f32 %v4208, 1.0
        %v4213 = vadd.f32 %v4209, 1.0
        %v4214 = vadd.f32 %v4210, 1.0
        %v4215 = vadd.f32 %v4211, 1.0
        %v4216 = vmul.f32 %v4197, %v4197
        %v4217 = vmul.f32 %v4199, %v4199
        %v4218 = vmul.f32 %v4201, %v4201
        %v4219 = vmul.f32 %v4203, %v4203
        %v4220 = vadd.f32 %v4212, %v4216
        %v4221 = vadd.f32 %v4213, %v4217
        %v4222 = vadd.f32 %v4214, %v4218
        %v4223 = vadd.f32 %v4215, %v4219
        %v4224 = vrcp.pop %v4220
        %v4225 = vrcp.pop %v4221
        %v4226 = vrcp.pop %v4222
        %v4227 = vrcp.pop %v4223
        %v4228 = vmul.f32 %v4220, %v4224
        %v4229 = vmul.f32 %v4221, %v4225
        %v4230 = vmul.f32 %v4222, %v4226
        %v4231 = vmul.f32 %v4223, %v4227
        %v4232 = vsub.f32 2.0, %v4228
        %v4233 = vsub.f32 2.0, %v4229
        %v4234 = vsub.f32 2.0, %v4230
        %v4235 = vsub.f32 2.0, %v4231
        %v4236 = vmul.f32 %v4224, %v4232
        %v4237 = vmul.f32 %v4225, %v4233
        %v4238 = vmul.f32 %v4226, %v4234
        %v4239 = vmul.f32 %v4227, %v4235
        %v4240 = vmul.f32 %v4204, %v4236
        %v4241 = vmul.f32 %v4205, %v4237
        %v4242 = vmul.f32 %v4206, %v4238
        %v4243 = vmul.f32 %v4207, %v4239
        %v4244 = vadd.f32 %v4173, %v4240
        %v4245 = vadd.f32 %v4174, %v4241
        %v4246 = vadd.f32 %v4175, %v4242
        %v4247 = vadd.f32 %v4176, %v4243
      $region296: #{deep_hist_l1_loss.2} parent=27 // loop_footer
        %s4172 = sadd.s32 1, %s4168
      $region297: #{deep_hist_l1_loss.2} parent=27 // loop_footer_branch
        %4167 = sbr.rel target = $region293
      $region298: #{deep_hist_l1_loss.2} parent=27 // loop_exit
        _
      %v4248 = vld [vmem:[%s842 + $0xc0] sm:$0xff]
      %v4249 = vld [vmem:[%s842 + $0xc8] sm:$0xff]
      %v4250 = vld [vmem:[%s842 + $0xd0] sm:$0xff]
      %v4251 = vld [vmem:[%s842 + $0xd8] sm:$0xff]
      %v4252 = vadd.f32 %v4248, %v4173
      %v4253 = vadd.f32 %v4249, %v4174
      %v4254 = vadd.f32 %v4250, %v4175
      %v4255 = vadd.f32 %v4251, %v4176
      %4256 = vst [vmem:[%s842 + $0xc0] sm:$0xff] %v4252
      %4257 = vst [vmem:[%s842 + $0xc8] sm:$0xff] %v4253
      %4258 = vst [vmem:[%s842 + $0xd0] sm:$0xff] %v4254
      %4259 = vst [vmem:[%s842 + $0xd8] sm:$0xff] %v4255
      loop: start=0, step=1, limit=8
      $region299: #{deep_hist_l1_loss.2} parent=27 // loop_pre_header
        _
      $region300: #{deep_hist_l1_loss.2} parent=27 // loop_header
        %s4261 = sphi 0, %s4265
        %p4262 = scmp.ge.s32.totalorder %s4261, 8
        %v4266 = vphi 0.0, %v4337
        %v4267 = vphi 0.0, %v4338
        %v4268 = vphi 0.0, %v4339
        %v4269 = vphi 0.0, %v4340
      $region301: #{deep_hist_l1_loss.2} parent=27 // loop_header_branch
        %4264 = sbr.rel (%p4262) target = $region305
      $region302: #{deep_hist_l1_loss.2} parent=27 // loop_body
        %s4270 = sadd.s32 %s4261, 16
        %s4271 = scalar_lea.vmem [#allocation2], %s4270
        %v4272 = vld [vmem:[%s4271] sm:$0x1]
        %v4273 = vlaneseq
        %v4274 = vshrl.u32 %v4273, 7
        %v4275 = vsub.s32 0, %v4274
        %v4276 = vrot.slane %v4272, %v4275
        %v4277 = vsub.f32 %v4071, %v4276
        %v4278 = vsub.f32 %v4072, %v4276
        %v4279 = vsub.f32 %v4073, %v4276
        %v4280 = vsub.f32 %v4074, %v4276
        %v4281 = vmax.f32 %v4277, -40.0
        %v4282 = vmax.f32 %v4278, -40.0
        %v4283 = vmax.f32 %v4279, -40.0
        %v4284 = vmax.f32 %v4280, -40.0
        %v4285 = vmin.f32 %v4281, 40.0
        %v4286 = vmin.f32 %v4282, 40.0
        %v4287 = vmin.f32 %v4283, 40.0
        %v4288 = vmin.f32 %v4284, 40.0
        %v4289 = vmul.f32 %v4285, 1.442695
        %v4290 = vpow.pop %v4289
        %v4291 = vmul.f32 %v4286, 1.442695
        %v4292 = vpow.pop %v4291
        %v4293 = vmul.f32 %v4287, 1.442695
        %v4294 = vpow.pop %v4293
        %v4295 = vmul.f32 %v4288, 1.442695
        %v4296 = vpow.pop %v4295
        %v4297 = vmul.f32 %v4290, 3.203838
        %v4298 = vmul.f32 %v4292, 3.203838
        %v4299 = vmul.f32 %v4294, 3.203838
        %v4300 = vmul.f32 %v4296, 3.203838
        %v4301 = vmul.f32 %v4290, 3.7768478
        %v4302 = vmul.f32 %v4292, 3.7768478
        %v4303 = vmul.f32 %v4294, 3.7768478
        %v4304 = vmul.f32 %v4296, 3.7768478
        %v4305 = vadd.f32 %v4301, 1.0
        %v4306 = vadd.f32 %v4302, 1.0
        %v4307 = vadd.f32 %v4303, 1.0
        %v4308 = vadd.f32 %v4304, 1.0
        %v4309 = vmul.f32 %v4290, %v4290
        %v4310 = vmul.f32 %v4292, %v4292
        %v4311 = vmul.f32 %v4294, %v4294
        %v4312 = vmul.f32 %v4296, %v4296
        %v4313 = vadd.f32 %v4305, %v4309
        %v4314 = vadd.f32 %v4306, %v4310
        %v4315 = vadd.f32 %v4307, %v4311
        %v4316 = vadd.f32 %v4308, %v4312
        %v4317 = vrcp.pop %v4313
        %v4318 = vrcp.pop %v4314
        %v4319 = vrcp.pop %v4315
        %v4320 = vrcp.pop %v4316
        %v4321 = vmul.f32 %v4313, %v4317
        %v4322 = vmul.f32 %v4314, %v4318
        %v4323 = vmul.f32 %v4315, %v4319
        %v4324 = vmul.f32 %v4316, %v4320
        %v4325 = vsub.f32 2.0, %v4321
        %v4326 = vsub.f32 2.0, %v4322
        %v4327 = vsub.f32 2.0, %v4323
        %v4328 = vsub.f32 2.0, %v4324
        %v4329 = vmul.f32 %v4317, %v4325
        %v4330 = vmul.f32 %v4318, %v4326
        %v4331 = vmul.f32 %v4319, %v4327
        %v4332 = vmul.f32 %v4320, %v4328
        %v4333 = vmul.f32 %v4297, %v4329
        %v4334 = vmul.f32 %v4298, %v4330
        %v4335 = vmul.f32 %v4299, %v4331
        %v4336 = vmul.f32 %v4300, %v4332
        %v4337 = vadd.f32 %v4266, %v4333
        %v4338 = vadd.f32 %v4267, %v4334
        %v4339 = vadd.f32 %v4268, %v4335
        %v4340 = vadd.f32 %v4269, %v4336
      $region303: #{deep_hist_l1_loss.2} parent=27 // loop_footer
        %s4265 = sadd.s32 1, %s4261
      $region304: #{deep_hist_l1_loss.2} parent=27 // loop_footer_branch
        %4260 = sbr.rel target = $region300
      $region305: #{deep_hist_l1_loss.2} parent=27 // loop_exit
        _
      %v4341 = vld [vmem:[%s936 + $0xc0] sm:$0xff]
      %v4342 = vld [vmem:[%s936 + $0xc8] sm:$0xff]
      %v4343 = vld [vmem:[%s936 + $0xd0] sm:$0xff]
      %v4344 = vld [vmem:[%s936 + $0xd8] sm:$0xff]
      %v4345 = vadd.f32 %v4341, %v4266
      %v4346 = vadd.f32 %v4342, %v4267
      %v4347 = vadd.f32 %v4343, %v4268
      %v4348 = vadd.f32 %v4344, %v4269
      %4349 = vst [vmem:[%s936 + $0xc0] sm:$0xff] %v4345
      %4350 = vst [vmem:[%s936 + $0xc8] sm:$0xff] %v4346
      %4351 = vst [vmem:[%s936 + $0xd0] sm:$0xff] %v4347
      %4352 = vst [vmem:[%s936 + $0xd8] sm:$0xff] %v4348
      loop: start=0, step=1, limit=8
      $region306: #{deep_hist_l1_loss.2} parent=27 // loop_pre_header
        _
      $region307: #{deep_hist_l1_loss.2} parent=27 // loop_header
        %s4354 = sphi 0, %s4358
        %p4355 = scmp.ge.s32.totalorder %s4354, 8
        %v4359 = vphi 0.0, %v4430
        %v4360 = vphi 0.0, %v4431
        %v4361 = vphi 0.0, %v4432
        %v4362 = vphi 0.0, %v4433
      $region308: #{deep_hist_l1_loss.2} parent=27 // loop_header_branch
        %4357 = sbr.rel (%p4355) target = $region312
      $region309: #{deep_hist_l1_loss.2} parent=27 // loop_body
        %s4363 = sadd.s32 %s4354, 24
        %s4364 = scalar_lea.vmem [#allocation2], %s4363
        %v4365 = vld [vmem:[%s4364] sm:$0x1]
        %v4366 = vlaneseq
        %v4367 = vshrl.u32 %v4366, 7
        %v4368 = vsub.s32 0, %v4367
        %v4369 = vrot.slane %v4365, %v4368
        %v4370 = vsub.f32 %v4071, %v4369
        %v4371 = vsub.f32 %v4072, %v4369
        %v4372 = vsub.f32 %v4073, %v4369
        %v4373 = vsub.f32 %v4074, %v4369
        %v4374 = vmax.f32 %v4370, -40.0
        %v4375 = vmax.f32 %v4371, -40.0
        %v4376 = vmax.f32 %v4372, -40.0
        %v4377 = vmax.f32 %v4373, -40.0
        %v4378 = vmin.f32 %v4374, 40.0
        %v4379 = vmin.f32 %v4375, 40.0
        %v4380 = vmin.f32 %v4376, 40.0
        %v4381 = vmin.f32 %v4377, 40.0
        %v4382 = vmul.f32 %v4378, 1.442695
        %v4383 = vpow.pop %v4382
        %v4384 = vmul.f32 %v4379, 1.442695
        %v4385 = vpow.pop %v4384
        %v4386 = vmul.f32 %v4380, 1.442695
        %v4387 = vpow.pop %v4386
        %v4388 = vmul.f32 %v4381, 1.442695
        %v4389 = vpow.pop %v4388
        %v4390 = vmul.f32 %v4383, 3.203838
        %v4391 = vmul.f32 %v4385, 3.203838
        %v4392 = vmul.f32 %v4387, 3.203838
        %v4393 = vmul.f32 %v4389, 3.203838
        %v4394 = vmul.f32 %v4383, 3.7768478
        %v4395 = vmul.f32 %v4385, 3.7768478
        %v4396 = vmul.f32 %v4387, 3.7768478
        %v4397 = vmul.f32 %v4389, 3.7768478
        %v4398 = vadd.f32 %v4394, 1.0
        %v4399 = vadd.f32 %v4395, 1.0
        %v4400 = vadd.f32 %v4396, 1.0
        %v4401 = vadd.f32 %v4397, 1.0
        %v4402 = vmul.f32 %v4383, %v4383
        %v4403 = vmul.f32 %v4385, %v4385
        %v4404 = vmul.f32 %v4387, %v4387
        %v4405 = vmul.f32 %v4389, %v4389
        %v4406 = vadd.f32 %v4398, %v4402
        %v4407 = vadd.f32 %v4399, %v4403
        %v4408 = vadd.f32 %v4400, %v4404
        %v4409 = vadd.f32 %v4401, %v4405
        %v4410 = vrcp.pop %v4406
        %v4411 = vrcp.pop %v4407
        %v4412 = vrcp.pop %v4408
        %v4413 = vrcp.pop %v4409
        %v4414 = vmul.f32 %v4406, %v4410
        %v4415 = vmul.f32 %v4407, %v4411
        %v4416 = vmul.f32 %v4408, %v4412
        %v4417 = vmul.f32 %v4409, %v4413
        %v4418 = vsub.f32 2.0, %v4414
        %v4419 = vsub.f32 2.0, %v4415
        %v4420 = vsub.f32 2.0, %v4416
        %v4421 = vsub.f32 2.0, %v4417
        %v4422 = vmul.f32 %v4410, %v4418
        %v4423 = vmul.f32 %v4411, %v4419
        %v4424 = vmul.f32 %v4412, %v4420
        %v4425 = vmul.f32 %v4413, %v4421
        %v4426 = vmul.f32 %v4390, %v4422
        %v4427 = vmul.f32 %v4391, %v4423
        %v4428 = vmul.f32 %v4392, %v4424
        %v4429 = vmul.f32 %v4393, %v4425
        %v4430 = vadd.f32 %v4359, %v4426
        %v4431 = vadd.f32 %v4360, %v4427
        %v4432 = vadd.f32 %v4361, %v4428
        %v4433 = vadd.f32 %v4362, %v4429
      $region310: #{deep_hist_l1_loss.2} parent=27 // loop_footer
        %s4358 = sadd.s32 1, %s4354
      $region311: #{deep_hist_l1_loss.2} parent=27 // loop_footer_branch
        %4353 = sbr.rel target = $region307
      $region312: #{deep_hist_l1_loss.2} parent=27 // loop_exit
        _
      %v4434 = vld [vmem:[%s301 + $0xc0] sm:$0xff]
      %v4435 = vld [vmem:[%s301 + $0xc8] sm:$0xff]
      %v4436 = vld [vmem:[%s301 + $0xd0] sm:$0xff]
      %v4437 = vld [vmem:[%s301 + $0xd8] sm:$0xff]
      %v4438 = vadd.f32 %v4434, %v4359
      %v4439 = vadd.f32 %v4435, %v4360
      %v4440 = vadd.f32 %v4436, %v4361
      %v4441 = vadd.f32 %v4437, %v4362
      %4442 = vst [vmem:[%s301 + $0xc0] sm:$0xff] %v4438
      %4443 = vst [vmem:[%s301 + $0xc8] sm:$0xff] %v4439
      %4444 = vst [vmem:[%s301 + $0xd0] sm:$0xff] %v4440
      %4445 = vst [vmem:[%s301 + $0xd8] sm:$0xff] %v4441
      loop: start=0, step=1, limit=8
      $region313: #{deep_hist_l1_loss.2} parent=27 // loop_pre_header
        _
      $region314: #{deep_hist_l1_loss.2} parent=27 // loop_header
        %s4447 = sphi 0, %s4451
        %p4448 = scmp.ge.s32.totalorder %s4447, 8
        %v4452 = vphi 0.0, %v4524
        %v4453 = vphi 0.0, %v4525
        %v4454 = vphi 0.0, %v4526
        %v4455 = vphi 0.0, %v4527
      $region315: #{deep_hist_l1_loss.2} parent=27 // loop_header_branch
        %4450 = sbr.rel (%p4448) target = $region319
      $region316: #{deep_hist_l1_loss.2} parent=27 // loop_body
        %s4456 = sadd.s32 %s4447, 8
        %s4457 = sadd.s32 %s4456, 24
        %s4458 = scalar_lea.vmem [#allocation2], %s4457
        %v4459 = vld [vmem:[%s4458] sm:$0x1]
        %v4460 = vlaneseq
        %v4461 = vshrl.u32 %v4460, 7
        %v4462 = vsub.s32 0, %v4461
        %v4463 = vrot.slane %v4459, %v4462
        %v4464 = vsub.f32 %v4071, %v4463
        %v4465 = vsub.f32 %v4072, %v4463
        %v4466 = vsub.f32 %v4073, %v4463
        %v4467 = vsub.f32 %v4074, %v4463
        %v4468 = vmax.f32 %v4464, -40.0
        %v4469 = vmax.f32 %v4465, -40.0
        %v4470 = vmax.f32 %v4466, -40.0
        %v4471 = vmax.f32 %v4467, -40.0
        %v4472 = vmin.f32 %v4468, 40.0
        %v4473 = vmin.f32 %v4469, 40.0
        %v4474 = vmin.f32 %v4470, 40.0
        %v4475 = vmin.f32 %v4471, 40.0
        %v4476 = vmul.f32 %v4472, 1.442695
        %v4477 = vpow.pop %v4476
        %v4478 = vmul.f32 %v4473, 1.442695
        %v4479 = vpow.pop %v4478
        %v4480 = vmul.f32 %v4474, 1.442695
        %v4481 = vpow.pop %v4480
        %v4482 = vmul.f32 %v4475, 1.442695
        %v4483 = vpow.pop %v4482
        %v4484 = vmul.f32 %v4477, 3.203838
        %v4485 = vmul.f32 %v4479, 3.203838
        %v4486 = vmul.f32 %v4481, 3.203838
        %v4487 = vmul.f32 %v4483, 3.203838
        %v4488 = vmul.f32 %v4477, 3.7768478
        %v4489 = vmul.f32 %v4479, 3.7768478
        %v4490 = vmul.f32 %v4481, 3.7768478
        %v4491 = vmul.f32 %v4483, 3.7768478
        %v4492 = vadd.f32 %v4488, 1.0
        %v4493 = vadd.f32 %v4489, 1.0
        %v4494 = vadd.f32 %v4490, 1.0
        %v4495 = vadd.f32 %v4491, 1.0
        %v4496 = vmul.f32 %v4477, %v4477
        %v4497 = vmul.f32 %v4479, %v4479
        %v4498 = vmul.f32 %v4481, %v4481
        %v4499 = vmul.f32 %v4483, %v4483
        %v4500 = vadd.f32 %v4492, %v4496
        %v4501 = vadd.f32 %v4493, %v4497
        %v4502 = vadd.f32 %v4494, %v4498
        %v4503 = vadd.f32 %v4495, %v4499
        %v4504 = vrcp.pop %v4500
        %v4505 = vrcp.pop %v4501
        %v4506 = vrcp.pop %v4502
        %v4507 = vrcp.pop %v4503
        %v4508 = vmul.f32 %v4500, %v4504
        %v4509 = vmul.f32 %v4501, %v4505
        %v4510 = vmul.f32 %v4502, %v4506
        %v4511 = vmul.f32 %v4503, %v4507
        %v4512 = vsub.f32 2.0, %v4508
        %v4513 = vsub.f32 2.0, %v4509
        %v4514 = vsub.f32 2.0, %v4510
        %v4515 = vsub.f32 2.0, %v4511
        %v4516 = vmul.f32 %v4504, %v4512
        %v4517 = vmul.f32 %v4505, %v4513
        %v4518 = vmul.f32 %v4506, %v4514
        %v4519 = vmul.f32 %v4507, %v4515
        %v4520 = vmul.f32 %v4484, %v4516
        %v4521 = vmul.f32 %v4485, %v4517
        %v4522 = vmul.f32 %v4486, %v4518
        %v4523 = vmul.f32 %v4487, %v4519
        %v4524 = vadd.f32 %v4452, %v4520
        %v4525 = vadd.f32 %v4453, %v4521
        %v4526 = vadd.f32 %v4454, %v4522
        %v4527 = vadd.f32 %v4455, %v4523
      $region317: #{deep_hist_l1_loss.2} parent=27 // loop_footer
        %s4451 = sadd.s32 1, %s4447
      $region318: #{deep_hist_l1_loss.2} parent=27 // loop_footer_branch
        %4446 = sbr.rel target = $region314
      $region319: #{deep_hist_l1_loss.2} parent=27 // loop_exit
        _
      %v4528 = vld [vmem:[%s1124 + $0xc0] sm:$0xff]
      %v4529 = vld [vmem:[%s1124 + $0xc8] sm:$0xff]
      %v4530 = vld [vmem:[%s1124 + $0xd0] sm:$0xff]
      %v4531 = vld [vmem:[%s1124 + $0xd8] sm:$0xff]
      %v4532 = vadd.f32 %v4528, %v4452
      %v4533 = vadd.f32 %v4529, %v4453
      %v4534 = vadd.f32 %v4530, %v4454
      %v4535 = vadd.f32 %v4531, %v4455
      %4536 = vst [vmem:[%s1124 + $0xc0] sm:$0xff] %v4532
      %4537 = vst [vmem:[%s1124 + $0xc8] sm:$0xff] %v4533
      %4538 = vst [vmem:[%s1124 + $0xd0] sm:$0xff] %v4534
      %4539 = vst [vmem:[%s1124 + $0xd8] sm:$0xff] %v4535
      loop: start=0, step=1, limit=8
      $region320: #{deep_hist_l1_loss.2} parent=27 // loop_pre_header
        _
      $region321: #{deep_hist_l1_loss.2} parent=27 // loop_header
        %s4541 = sphi 0, %s4545
        %p4542 = scmp.ge.s32.totalorder %s4541, 8
        %v4546 = vphi 0.0, %v4618
        %v4547 = vphi 0.0, %v4619
        %v4548 = vphi 0.0, %v4620
        %v4549 = vphi 0.0, %v4621
      $region322: #{deep_hist_l1_loss.2} parent=27 // loop_header_branch
        %4544 = sbr.rel (%p4542) target = $region326
      $region323: #{deep_hist_l1_loss.2} parent=27 // loop_body
        %s4550 = sadd.s32 %s4541, 16
        %s4551 = sadd.s32 %s4550, 24
        %s4552 = scalar_lea.vmem [#allocation2], %s4551
        %v4553 = vld [vmem:[%s4552] sm:$0x1]
        %v4554 = vlaneseq
        %v4555 = vshrl.u32 %v4554, 7
        %v4556 = vsub.s32 0, %v4555
        %v4557 = vrot.slane %v4553, %v4556
        %v4558 = vsub.f32 %v4071, %v4557
        %v4559 = vsub.f32 %v4072, %v4557
        %v4560 = vsub.f32 %v4073, %v4557
        %v4561 = vsub.f32 %v4074, %v4557
        %v4562 = vmax.f32 %v4558, -40.0
        %v4563 = vmax.f32 %v4559, -40.0
        %v4564 = vmax.f32 %v4560, -40.0
        %v4565 = vmax.f32 %v4561, -40.0
        %v4566 = vmin.f32 %v4562, 40.0
        %v4567 = vmin.f32 %v4563, 40.0
        %v4568 = vmin.f32 %v4564, 40.0
        %v4569 = vmin.f32 %v4565, 40.0
        %v4570 = vmul.f32 %v4566, 1.442695
        %v4571 = vpow.pop %v4570
        %v4572 = vmul.f32 %v4567, 1.442695
        %v4573 = vpow.pop %v4572
        %v4574 = vmul.f32 %v4568, 1.442695
        %v4575 = vpow.pop %v4574
        %v4576 = vmul.f32 %v4569, 1.442695
        %v4577 = vpow.pop %v4576
        %v4578 = vmul.f32 %v4571, 3.203838
        %v4579 = vmul.f32 %v4573, 3.203838
        %v4580 = vmul.f32 %v4575, 3.203838
        %v4581 = vmul.f32 %v4577, 3.203838
        %v4582 = vmul.f32 %v4571, 3.7768478
        %v4583 = vmul.f32 %v4573, 3.7768478
        %v4584 = vmul.f32 %v4575, 3.7768478
        %v4585 = vmul.f32 %v4577, 3.7768478
        %v4586 = vadd.f32 %v4582, 1.0
        %v4587 = vadd.f32 %v4583, 1.0
        %v4588 = vadd.f32 %v4584, 1.0
        %v4589 = vadd.f32 %v4585, 1.0
        %v4590 = vmul.f32 %v4571, %v4571
        %v4591 = vmul.f32 %v4573, %v4573
        %v4592 = vmul.f32 %v4575, %v4575
        %v4593 = vmul.f32 %v4577, %v4577
        %v4594 = vadd.f32 %v4586, %v4590
        %v4595 = vadd.f32 %v4587, %v4591
        %v4596 = vadd.f32 %v4588, %v4592
        %v4597 = vadd.f32 %v4589, %v4593
        %v4598 = vrcp.pop %v4594
        %v4599 = vrcp.pop %v4595
        %v4600 = vrcp.pop %v4596
        %v4601 = vrcp.pop %v4597
        %v4602 = vmul.f32 %v4594, %v4598
        %v4603 = vmul.f32 %v4595, %v4599
        %v4604 = vmul.f32 %v4596, %v4600
        %v4605 = vmul.f32 %v4597, %v4601
        %v4606 = vsub.f32 2.0, %v4602
        %v4607 = vsub.f32 2.0, %v4603
        %v4608 = vsub.f32 2.0, %v4604
        %v4609 = vsub.f32 2.0, %v4605
        %v4610 = vmul.f32 %v4598, %v4606
        %v4611 = vmul.f32 %v4599, %v4607
        %v4612 = vmul.f32 %v4600, %v4608
        %v4613 = vmul.f32 %v4601, %v4609
        %v4614 = vmul.f32 %v4578, %v4610
        %v4615 = vmul.f32 %v4579, %v4611
        %v4616 = vmul.f32 %v4580, %v4612
        %v4617 = vmul.f32 %v4581, %v4613
        %v4618 = vadd.f32 %v4546, %v4614
        %v4619 = vadd.f32 %v4547, %v4615
        %v4620 = vadd.f32 %v4548, %v4616
        %v4621 = vadd.f32 %v4549, %v4617
      $region324: #{deep_hist_l1_loss.2} parent=27 // loop_footer
        %s4545 = sadd.s32 1, %s4541
      $region325: #{deep_hist_l1_loss.2} parent=27 // loop_footer_branch
        %4540 = sbr.rel target = $region321
      $region326: #{deep_hist_l1_loss.2} parent=27 // loop_exit
        _
      %v4622 = vld [vmem:[%s1219 + $0xc0] sm:$0xff]
      %v4623 = vld [vmem:[%s1219 + $0xc8] sm:$0xff]
      %v4624 = vld [vmem:[%s1219 + $0xd0] sm:$0xff]
      %v4625 = vld [vmem:[%s1219 + $0xd8] sm:$0xff]
      %v4626 = vadd.f32 %v4622, %v4546
      %v4627 = vadd.f32 %v4623, %v4547
      %v4628 = vadd.f32 %v4624, %v4548
      %v4629 = vadd.f32 %v4625, %v4549
      %4630 = vst [vmem:[%s1219 + $0xc0] sm:$0xff] %v4626
      %4631 = vst [vmem:[%s1219 + $0xc8] sm:$0xff] %v4627
      %4632 = vst [vmem:[%s1219 + $0xd0] sm:$0xff] %v4628
      %4633 = vst [vmem:[%s1219 + $0xd8] sm:$0xff] %v4629
      %v4634 = vadd.f32 %v657, 224.5
      %v4635 = vadd.f32 %v658, 224.5
      %v4636 = vadd.f32 %v659, 224.5
      %v4637 = vadd.f32 %v660, 224.5
      %v4638 = vmul.f32 %v4634, 2.5
      %v4639 = vmul.f32 %v4635, 2.5
      %v4640 = vmul.f32 %v4636, 2.5
      %v4641 = vmul.f32 %v4637, 2.5
      loop: start=0, step=1, limit=8
      $region327: #{deep_hist_l1_loss.2} parent=27 // loop_pre_header
        _
      $region328: #{deep_hist_l1_loss.2} parent=27 // loop_header
        %s4643 = sphi 0, %s4647
        %p4644 = scmp.ge.s32.totalorder %s4643, 8
        %v4648 = vphi 0.0, %v4718
        %v4649 = vphi 0.0, %v4719
        %v4650 = vphi 0.0, %v4720
        %v4651 = vphi 0.0, %v4721
      $region329: #{deep_hist_l1_loss.2} parent=27 // loop_header_branch
        %4646 = sbr.rel (%p4644) target = $region333
      $region330: #{deep_hist_l1_loss.2} parent=27 // loop_body
        %s4652 = scalar_lea.vmem [#allocation2], %s4643
        %v4653 = vld [vmem:[%s4652] sm:$0x1]
        %v4654 = vlaneseq
        %v4655 = vshrl.u32 %v4654, 7
        %v4656 = vsub.s32 0, %v4655
        %v4657 = vrot.slane %v4653, %v4656
        %v4658 = vsub.f32 %v4638, %v4657
        %v4659 = vsub.f32 %v4639, %v4657
        %v4660 = vsub.f32 %v4640, %v4657
        %v4661 = vsub.f32 %v4641, %v4657
        %v4662 = vmax.f32 %v4658, -40.0
        %v4663 = vmax.f32 %v4659, -40.0
        %v4664 = vmax.f32 %v4660, -40.0
        %v4665 = vmax.f32 %v4661, -40.0
        %v4666 = vmin.f32 %v4662, 40.0
        %v4667 = vmin.f32 %v4663, 40.0
        %v4668 = vmin.f32 %v4664, 40.0
        %v4669 = vmin.f32 %v4665, 40.0
        %v4670 = vmul.f32 %v4666, 1.442695
        %v4671 = vpow.pop %v4670
        %v4672 = vmul.f32 %v4667, 1.442695
        %v4673 = vpow.pop %v4672
        %v4674 = vmul.f32 %v4668, 1.442695
        %v4675 = vpow.pop %v4674
        %v4676 = vmul.f32 %v4669, 1.442695
        %v4677 = vpow.pop %v4676
        %v4678 = vmul.f32 %v4671, 3.203838
        %v4679 = vmul.f32 %v4673, 3.203838
        %v4680 = vmul.f32 %v4675, 3.203838
        %v4681 = vmul.f32 %v4677, 3.203838
        %v4682 = vmul.f32 %v4671, 3.7768478
        %v4683 = vmul.f32 %v4673, 3.7768478
        %v4684 = vmul.f32 %v4675, 3.7768478
        %v4685 = vmul.f32 %v4677, 3.7768478
        %v4686 = vadd.f32 %v4682, 1.0
        %v4687 = vadd.f32 %v4683, 1.0
        %v4688 = vadd.f32 %v4684, 1.0
        %v4689 = vadd.f32 %v4685, 1.0
        %v4690 = vmul.f32 %v4671, %v4671
        %v4691 = vmul.f32 %v4673, %v4673
        %v4692 = vmul.f32 %v4675, %v4675
        %v4693 = vmul.f32 %v4677, %v4677
        %v4694 = vadd.f32 %v4686, %v4690
        %v4695 = vadd.f32 %v4687, %v4691
        %v4696 = vadd.f32 %v4688, %v4692
        %v4697 = vadd.f32 %v4689, %v4693
        %v4698 = vrcp.pop %v4694
        %v4699 = vrcp.pop %v4695
        %v4700 = vrcp.pop %v4696
        %v4701 = vrcp.pop %v4697
        %v4702 = vmul.f32 %v4694, %v4698
        %v4703 = vmul.f32 %v4695, %v4699
        %v4704 = vmul.f32 %v4696, %v4700
        %v4705 = vmul.f32 %v4697, %v4701
        %v4706 = vsub.f32 2.0, %v4702
        %v4707 = vsub.f32 2.0, %v4703
        %v4708 = vsub.f32 2.0, %v4704
        %v4709 = vsub.f32 2.0, %v4705
        %v4710 = vmul.f32 %v4698, %v4706
        %v4711 = vmul.f32 %v4699, %v4707
        %v4712 = vmul.f32 %v4700, %v4708
        %v4713 = vmul.f32 %v4701, %v4709
        %v4714 = vmul.f32 %v4678, %v4710
        %v4715 = vmul.f32 %v4679, %v4711
        %v4716 = vmul.f32 %v4680, %v4712
        %v4717 = vmul.f32 %v4681, %v4713
        %v4718 = vadd.f32 %v4648, %v4714
        %v4719 = vadd.f32 %v4649, %v4715
        %v4720 = vadd.f32 %v4650, %v4716
        %v4721 = vadd.f32 %v4651, %v4717
      $region331: #{deep_hist_l1_loss.2} parent=27 // loop_footer
        %s4647 = sadd.s32 1, %s4643
      $region332: #{deep_hist_l1_loss.2} parent=27 // loop_footer_branch
        %4642 = sbr.rel target = $region328
      $region333: #{deep_hist_l1_loss.2} parent=27 // loop_exit
        _
      %v4722 = vld [vmem:[%s296 + $0xe0] sm:$0xff]
      %v4723 = vld [vmem:[%s296 + $0xe8] sm:$0xff]
      %v4724 = vld [vmem:[%s296 + $0xf0] sm:$0xff]
      %v4725 = vld [vmem:[%s296 + $0xf8] sm:$0xff]
      %v4726 = vadd.f32 %v4722, %v4648
      %v4727 = vadd.f32 %v4723, %v4649
      %v4728 = vadd.f32 %v4724, %v4650
      %v4729 = vadd.f32 %v4725, %v4651
      %4730 = vst [vmem:[%s296 + $0xe0] sm:$0xff] %v4726
      %4731 = vst [vmem:[%s296 + $0xe8] sm:$0xff] %v4727
      %4732 = vst [vmem:[%s296 + $0xf0] sm:$0xff] %v4728
      %4733 = vst [vmem:[%s296 + $0xf8] sm:$0xff] %v4729
      loop: start=0, step=1, limit=8
      $region334: #{deep_hist_l1_loss.2} parent=27 // loop_pre_header
        _
      $region335: #{deep_hist_l1_loss.2} parent=27 // loop_header
        %s4735 = sphi 0, %s4739
        %p4736 = scmp.ge.s32.totalorder %s4735, 8
        %v4740 = vphi 0.0, %v4811
        %v4741 = vphi 0.0, %v4812
        %v4742 = vphi 0.0, %v4813
        %v4743 = vphi 0.0, %v4814
      $region336: #{deep_hist_l1_loss.2} parent=27 // loop_header_branch
        %4738 = sbr.rel (%p4736) target = $region340
      $region337: #{deep_hist_l1_loss.2} parent=27 // loop_body
        %s4744 = sadd.s32 %s4735, 8
        %s4745 = scalar_lea.vmem [#allocation2], %s4744
        %v4746 = vld [vmem:[%s4745] sm:$0x1]
        %v4747 = vlaneseq
        %v4748 = vshrl.u32 %v4747, 7
        %v4749 = vsub.s32 0, %v4748
        %v4750 = vrot.slane %v4746, %v4749
        %v4751 = vsub.f32 %v4638, %v4750
        %v4752 = vsub.f32 %v4639, %v4750
        %v4753 = vsub.f32 %v4640, %v4750
        %v4754 = vsub.f32 %v4641, %v4750
        %v4755 = vmax.f32 %v4751, -40.0
        %v4756 = vmax.f32 %v4752, -40.0
        %v4757 = vmax.f32 %v4753, -40.0
        %v4758 = vmax.f32 %v4754, -40.0
        %v4759 = vmin.f32 %v4755, 40.0
        %v4760 = vmin.f32 %v4756, 40.0
        %v4761 = vmin.f32 %v4757, 40.0
        %v4762 = vmin.f32 %v4758, 40.0
        %v4763 = vmul.f32 %v4759, 1.442695
        %v4764 = vpow.pop %v4763
        %v4765 = vmul.f32 %v4760, 1.442695
        %v4766 = vpow.pop %v4765
        %v4767 = vmul.f32 %v4761, 1.442695
        %v4768 = vpow.pop %v4767
        %v4769 = vmul.f32 %v4762, 1.442695
        %v4770 = vpow.pop %v4769
        %v4771 = vmul.f32 %v4764, 3.203838
        %v4772 = vmul.f32 %v4766, 3.203838
        %v4773 = vmul.f32 %v4768, 3.203838
        %v4774 = vmul.f32 %v4770, 3.203838
        %v4775 = vmul.f32 %v4764, 3.7768478
        %v4776 = vmul.f32 %v4766, 3.7768478
        %v4777 = vmul.f32 %v4768, 3.7768478
        %v4778 = vmul.f32 %v4770, 3.7768478
        %v4779 = vadd.f32 %v4775, 1.0
        %v4780 = vadd.f32 %v4776, 1.0
        %v4781 = vadd.f32 %v4777, 1.0
        %v4782 = vadd.f32 %v4778, 1.0
        %v4783 = vmul.f32 %v4764, %v4764
        %v4784 = vmul.f32 %v4766, %v4766
        %v4785 = vmul.f32 %v4768, %v4768
        %v4786 = vmul.f32 %v4770, %v4770
        %v4787 = vadd.f32 %v4779, %v4783
        %v4788 = vadd.f32 %v4780, %v4784
        %v4789 = vadd.f32 %v4781, %v4785
        %v4790 = vadd.f32 %v4782, %v4786
        %v4791 = vrcp.pop %v4787
        %v4792 = vrcp.pop %v4788
        %v4793 = vrcp.pop %v4789
        %v4794 = vrcp.pop %v4790
        %v4795 = vmul.f32 %v4787, %v4791
        %v4796 = vmul.f32 %v4788, %v4792
        %v4797 = vmul.f32 %v4789, %v4793
        %v4798 = vmul.f32 %v4790, %v4794
        %v4799 = vsub.f32 2.0, %v4795
        %v4800 = vsub.f32 2.0, %v4796
        %v4801 = vsub.f32 2.0, %v4797
        %v4802 = vsub.f32 2.0, %v4798
        %v4803 = vmul.f32 %v4791, %v4799
        %v4804 = vmul.f32 %v4792, %v4800
        %v4805 = vmul.f32 %v4793, %v4801
        %v4806 = vmul.f32 %v4794, %v4802
        %v4807 = vmul.f32 %v4771, %v4803
        %v4808 = vmul.f32 %v4772, %v4804
        %v4809 = vmul.f32 %v4773, %v4805
        %v4810 = vmul.f32 %v4774, %v4806
        %v4811 = vadd.f32 %v4740, %v4807
        %v4812 = vadd.f32 %v4741, %v4808
        %v4813 = vadd.f32 %v4742, %v4809
        %v4814 = vadd.f32 %v4743, %v4810
      $region338: #{deep_hist_l1_loss.2} parent=27 // loop_footer
        %s4739 = sadd.s32 1, %s4735
      $region339: #{deep_hist_l1_loss.2} parent=27 // loop_footer_branch
        %4734 = sbr.rel target = $region335
      $region340: #{deep_hist_l1_loss.2} parent=27 // loop_exit
        _
      %v4815 = vld [vmem:[%s842 + $0xe0] sm:$0xff]
      %v4816 = vld [vmem:[%s842 + $0xe8] sm:$0xff]
      %v4817 = vld [vmem:[%s842 + $0xf0] sm:$0xff]
      %v4818 = vld [vmem:[%s842 + $0xf8] sm:$0xff]
      %v4819 = vadd.f32 %v4815, %v4740
      %v4820 = vadd.f32 %v4816, %v4741
      %v4821 = vadd.f32 %v4817, %v4742
      %v4822 = vadd.f32 %v4818, %v4743
      %4823 = vst [vmem:[%s842 + $0xe0] sm:$0xff] %v4819
      %4824 = vst [vmem:[%s842 + $0xe8] sm:$0xff] %v4820
      %4825 = vst [vmem:[%s842 + $0xf0] sm:$0xff] %v4821
      %4826 = vst [vmem:[%s842 + $0xf8] sm:$0xff] %v4822
      loop: start=0, step=1, limit=8
      $region341: #{deep_hist_l1_loss.2} parent=27 // loop_pre_header
        _
      $region342: #{deep_hist_l1_loss.2} parent=27 // loop_header
        %s4828 = sphi 0, %s4832
        %p4829 = scmp.ge.s32.totalorder %s4828, 8
        %v4833 = vphi 0.0, %v4904
        %v4834 = vphi 0.0, %v4905
        %v4835 = vphi 0.0, %v4906
        %v4836 = vphi 0.0, %v4907
      $region343: #{deep_hist_l1_loss.2} parent=27 // loop_header_branch
        %4831 = sbr.rel (%p4829) target = $region347
      $region344: #{deep_hist_l1_loss.2} parent=27 // loop_body
        %s4837 = sadd.s32 %s4828, 16
        %s4838 = scalar_lea.vmem [#allocation2], %s4837
        %v4839 = vld [vmem:[%s4838] sm:$0x1]
        %v4840 = vlaneseq
        %v4841 = vshrl.u32 %v4840, 7
        %v4842 = vsub.s32 0, %v4841
        %v4843 = vrot.slane %v4839, %v4842
        %v4844 = vsub.f32 %v4638, %v4843
        %v4845 = vsub.f32 %v4639, %v4843
        %v4846 = vsub.f32 %v4640, %v4843
        %v4847 = vsub.f32 %v4641, %v4843
        %v4848 = vmax.f32 %v4844, -40.0
        %v4849 = vmax.f32 %v4845, -40.0
        %v4850 = vmax.f32 %v4846, -40.0
        %v4851 = vmax.f32 %v4847, -40.0
        %v4852 = vmin.f32 %v4848, 40.0
        %v4853 = vmin.f32 %v4849, 40.0
        %v4854 = vmin.f32 %v4850, 40.0
        %v4855 = vmin.f32 %v4851, 40.0
        %v4856 = vmul.f32 %v4852, 1.442695
        %v4857 = vpow.pop %v4856
        %v4858 = vmul.f32 %v4853, 1.442695
        %v4859 = vpow.pop %v4858
        %v4860 = vmul.f32 %v4854, 1.442695
        %v4861 = vpow.pop %v4860
        %v4862 = vmul.f32 %v4855, 1.442695
        %v4863 = vpow.pop %v4862
        %v4864 = vmul.f32 %v4857, 3.203838
        %v4865 = vmul.f32 %v4859, 3.203838
        %v4866 = vmul.f32 %v4861, 3.203838
        %v4867 = vmul.f32 %v4863, 3.203838
        %v4868 = vmul.f32 %v4857, 3.7768478
        %v4869 = vmul.f32 %v4859, 3.7768478
        %v4870 = vmul.f32 %v4861, 3.7768478
        %v4871 = vmul.f32 %v4863, 3.7768478
        %v4872 = vadd.f32 %v4868, 1.0
        %v4873 = vadd.f32 %v4869, 1.0
        %v4874 = vadd.f32 %v4870, 1.0
        %v4875 = vadd.f32 %v4871, 1.0
        %v4876 = vmul.f32 %v4857, %v4857
        %v4877 = vmul.f32 %v4859, %v4859
        %v4878 = vmul.f32 %v4861, %v4861
        %v4879 = vmul.f32 %v4863, %v4863
        %v4880 = vadd.f32 %v4872, %v4876
        %v4881 = vadd.f32 %v4873, %v4877
        %v4882 = vadd.f32 %v4874, %v4878
        %v4883 = vadd.f32 %v4875, %v4879
        %v4884 = vrcp.pop %v4880
        %v4885 = vrcp.pop %v4881
        %v4886 = vrcp.pop %v4882
        %v4887 = vrcp.pop %v4883
        %v4888 = vmul.f32 %v4880, %v4884
        %v4889 = vmul.f32 %v4881, %v4885
        %v4890 = vmul.f32 %v4882, %v4886
        %v4891 = vmul.f32 %v4883, %v4887
        %v4892 = vsub.f32 2.0, %v4888
        %v4893 = vsub.f32 2.0, %v4889
        %v4894 = vsub.f32 2.0, %v4890
        %v4895 = vsub.f32 2.0, %v4891
        %v4896 = vmul.f32 %v4884, %v4892
        %v4897 = vmul.f32 %v4885, %v4893
        %v4898 = vmul.f32 %v4886, %v4894
        %v4899 = vmul.f32 %v4887, %v4895
        %v4900 = vmul.f32 %v4864, %v4896
        %v4901 = vmul.f32 %v4865, %v4897
        %v4902 = vmul.f32 %v4866, %v4898
        %v4903 = vmul.f32 %v4867, %v4899
        %v4904 = vadd.f32 %v4833, %v4900
        %v4905 = vadd.f32 %v4834, %v4901
        %v4906 = vadd.f32 %v4835, %v4902
        %v4907 = vadd.f32 %v4836, %v4903
      $region345: #{deep_hist_l1_loss.2} parent=27 // loop_footer
        %s4832 = sadd.s32 1, %s4828
      $region346: #{deep_hist_l1_loss.2} parent=27 // loop_footer_branch
        %4827 = sbr.rel target = $region342
      $region347: #{deep_hist_l1_loss.2} parent=27 // loop_exit
        _
      %v4908 = vld [vmem:[%s936 + $0xe0] sm:$0xff]
      %v4909 = vld [vmem:[%s936 + $0xe8] sm:$0xff]
      %v4910 = vld [vmem:[%s936 + $0xf0] sm:$0xff]
      %v4911 = vld [vmem:[%s936 + $0xf8] sm:$0xff]
      %v4912 = vadd.f32 %v4908, %v4833
      %v4913 = vadd.f32 %v4909, %v4834
      %v4914 = vadd.f32 %v4910, %v4835
      %v4915 = vadd.f32 %v4911, %v4836
      %4916 = vst [vmem:[%s936 + $0xe0] sm:$0xff] %v4912
      %4917 = vst [vmem:[%s936 + $0xe8] sm:$0xff] %v4913
      %4918 = vst [vmem:[%s936 + $0xf0] sm:$0xff] %v4914
      %4919 = vst [vmem:[%s936 + $0xf8] sm:$0xff] %v4915
      loop: start=0, step=1, limit=8
      $region348: #{deep_hist_l1_loss.2} parent=27 // loop_pre_header
        _
      $region349: #{deep_hist_l1_loss.2} parent=27 // loop_header
        %s4921 = sphi 0, %s4925
        %p4922 = scmp.ge.s32.totalorder %s4921, 8
        %v4926 = vphi 0.0, %v4997
        %v4927 = vphi 0.0, %v4998
        %v4928 = vphi 0.0, %v4999
        %v4929 = vphi 0.0, %v5000
      $region350: #{deep_hist_l1_loss.2} parent=27 // loop_header_branch
        %4924 = sbr.rel (%p4922) target = $region354
      $region351: #{deep_hist_l1_loss.2} parent=27 // loop_body
        %s4930 = sadd.s32 %s4921, 24
        %s4931 = scalar_lea.vmem [#allocation2], %s4930
        %v4932 = vld [vmem:[%s4931] sm:$0x1]
        %v4933 = vlaneseq
        %v4934 = vshrl.u32 %v4933, 7
        %v4935 = vsub.s32 0, %v4934
        %v4936 = vrot.slane %v4932, %v4935
        %v4937 = vsub.f32 %v4638, %v4936
        %v4938 = vsub.f32 %v4639, %v4936
        %v4939 = vsub.f32 %v4640, %v4936
        %v4940 = vsub.f32 %v4641, %v4936
        %v4941 = vmax.f32 %v4937, -40.0
        %v4942 = vmax.f32 %v4938, -40.0
        %v4943 = vmax.f32 %v4939, -40.0
        %v4944 = vmax.f32 %v4940, -40.0
        %v4945 = vmin.f32 %v4941, 40.0
        %v4946 = vmin.f32 %v4942, 40.0
        %v4947 = vmin.f32 %v4943, 40.0
        %v4948 = vmin.f32 %v4944, 40.0
        %v4949 = vmul.f32 %v4945, 1.442695
        %v4950 = vpow.pop %v4949
        %v4951 = vmul.f32 %v4946, 1.442695
        %v4952 = vpow.pop %v4951
        %v4953 = vmul.f32 %v4947, 1.442695
        %v4954 = vpow.pop %v4953
        %v4955 = vmul.f32 %v4948, 1.442695
        %v4956 = vpow.pop %v4955
        %v4957 = vmul.f32 %v4950, 3.203838
        %v4958 = vmul.f32 %v4952, 3.203838
        %v4959 = vmul.f32 %v4954, 3.203838
        %v4960 = vmul.f32 %v4956, 3.203838
        %v4961 = vmul.f32 %v4950, 3.7768478
        %v4962 = vmul.f32 %v4952, 3.7768478
        %v4963 = vmul.f32 %v4954, 3.7768478
        %v4964 = vmul.f32 %v4956, 3.7768478
        %v4965 = vadd.f32 %v4961, 1.0
        %v4966 = vadd.f32 %v4962, 1.0
        %v4967 = vadd.f32 %v4963, 1.0
        %v4968 = vadd.f32 %v4964, 1.0
        %v4969 = vmul.f32 %v4950, %v4950
        %v4970 = vmul.f32 %v4952, %v4952
        %v4971 = vmul.f32 %v4954, %v4954
        %v4972 = vmul.f32 %v4956, %v4956
        %v4973 = vadd.f32 %v4965, %v4969
        %v4974 = vadd.f32 %v4966, %v4970
        %v4975 = vadd.f32 %v4967, %v4971
        %v4976 = vadd.f32 %v4968, %v4972
        %v4977 = vrcp.pop %v4973
        %v4978 = vrcp.pop %v4974
        %v4979 = vrcp.pop %v4975
        %v4980 = vrcp.pop %v4976
        %v4981 = vmul.f32 %v4973, %v4977
        %v4982 = vmul.f32 %v4974, %v4978
        %v4983 = vmul.f32 %v4975, %v4979
        %v4984 = vmul.f32 %v4976, %v4980
        %v4985 = vsub.f32 2.0, %v4981
        %v4986 = vsub.f32 2.0, %v4982
        %v4987 = vsub.f32 2.0, %v4983
        %v4988 = vsub.f32 2.0, %v4984
        %v4989 = vmul.f32 %v4977, %v4985
        %v4990 = vmul.f32 %v4978, %v4986
        %v4991 = vmul.f32 %v4979, %v4987
        %v4992 = vmul.f32 %v4980, %v4988
        %v4993 = vmul.f32 %v4957, %v4989
        %v4994 = vmul.f32 %v4958, %v4990
        %v4995 = vmul.f32 %v4959, %v4991
        %v4996 = vmul.f32 %v4960, %v4992
        %v4997 = vadd.f32 %v4926, %v4993
        %v4998 = vadd.f32 %v4927, %v4994
        %v4999 = vadd.f32 %v4928, %v4995
        %v5000 = vadd.f32 %v4929, %v4996
      $region352: #{deep_hist_l1_loss.2} parent=27 // loop_footer
        %s4925 = sadd.s32 1, %s4921
      $region353: #{deep_hist_l1_loss.2} parent=27 // loop_footer_branch
        %4920 = sbr.rel target = $region349
      $region354: #{deep_hist_l1_loss.2} parent=27 // loop_exit
        _
      %v5001 = vld [vmem:[%s301 + $0xe0] sm:$0xff]
      %v5002 = vld [vmem:[%s301 + $0xe8] sm:$0xff]
      %v5003 = vld [vmem:[%s301 + $0xf0] sm:$0xff]
      %v5004 = vld [vmem:[%s301 + $0xf8] sm:$0xff]
      %v5005 = vadd.f32 %v5001, %v4926
      %v5006 = vadd.f32 %v5002, %v4927
      %v5007 = vadd.f32 %v5003, %v4928
      %v5008 = vadd.f32 %v5004, %v4929
      %5009 = vst [vmem:[%s301 + $0xe0] sm:$0xff] %v5005
      %5010 = vst [vmem:[%s301 + $0xe8] sm:$0xff] %v5006
      %5011 = vst [vmem:[%s301 + $0xf0] sm:$0xff] %v5007
      %5012 = vst [vmem:[%s301 + $0xf8] sm:$0xff] %v5008
      loop: start=0, step=1, limit=8
      $region355: #{deep_hist_l1_loss.2} parent=27 // loop_pre_header
        _
      $region356: #{deep_hist_l1_loss.2} parent=27 // loop_header
        %s5014 = sphi 0, %s5018
        %p5015 = scmp.ge.s32.totalorder %s5014, 8
        %v5019 = vphi 0.0, %v5091
        %v5020 = vphi 0.0, %v5092
        %v5021 = vphi 0.0, %v5093
        %v5022 = vphi 0.0, %v5094
      $region357: #{deep_hist_l1_loss.2} parent=27 // loop_header_branch
        %5017 = sbr.rel (%p5015) target = $region361
      $region358: #{deep_hist_l1_loss.2} parent=27 // loop_body
        %s5023 = sadd.s32 %s5014, 8
        %s5024 = sadd.s32 %s5023, 24
        %s5025 = scalar_lea.vmem [#allocation2], %s5024
        %v5026 = vld [vmem:[%s5025] sm:$0x1]
        %v5027 = vlaneseq
        %v5028 = vshrl.u32 %v5027, 7
        %v5029 = vsub.s32 0, %v5028
        %v5030 = vrot.slane %v5026, %v5029
        %v5031 = vsub.f32 %v4638, %v5030
        %v5032 = vsub.f32 %v4639, %v5030
        %v5033 = vsub.f32 %v4640, %v5030
        %v5034 = vsub.f32 %v4641, %v5030
        %v5035 = vmax.f32 %v5031, -40.0
        %v5036 = vmax.f32 %v5032, -40.0
        %v5037 = vmax.f32 %v5033, -40.0
        %v5038 = vmax.f32 %v5034, -40.0
        %v5039 = vmin.f32 %v5035, 40.0
        %v5040 = vmin.f32 %v5036, 40.0
        %v5041 = vmin.f32 %v5037, 40.0
        %v5042 = vmin.f32 %v5038, 40.0
        %v5043 = vmul.f32 %v5039, 1.442695
        %v5044 = vpow.pop %v5043
        %v5045 = vmul.f32 %v5040, 1.442695
        %v5046 = vpow.pop %v5045
        %v5047 = vmul.f32 %v5041, 1.442695
        %v5048 = vpow.pop %v5047
        %v5049 = vmul.f32 %v5042, 1.442695
        %v5050 = vpow.pop %v5049
        %v5051 = vmul.f32 %v5044, 3.203838
        %v5052 = vmul.f32 %v5046, 3.203838
        %v5053 = vmul.f32 %v5048, 3.203838
        %v5054 = vmul.f32 %v5050, 3.203838
        %v5055 = vmul.f32 %v5044, 3.7768478
        %v5056 = vmul.f32 %v5046, 3.7768478
        %v5057 = vmul.f32 %v5048, 3.7768478
        %v5058 = vmul.f32 %v5050, 3.7768478
        %v5059 = vadd.f32 %v5055, 1.0
        %v5060 = vadd.f32 %v5056, 1.0
        %v5061 = vadd.f32 %v5057, 1.0
        %v5062 = vadd.f32 %v5058, 1.0
        %v5063 = vmul.f32 %v5044, %v5044
        %v5064 = vmul.f32 %v5046, %v5046
        %v5065 = vmul.f32 %v5048, %v5048
        %v5066 = vmul.f32 %v5050, %v5050
        %v5067 = vadd.f32 %v5059, %v5063
        %v5068 = vadd.f32 %v5060, %v5064
        %v5069 = vadd.f32 %v5061, %v5065
        %v5070 = vadd.f32 %v5062, %v5066
        %v5071 = vrcp.pop %v5067
        %v5072 = vrcp.pop %v5068
        %v5073 = vrcp.pop %v5069
        %v5074 = vrcp.pop %v5070
        %v5075 = vmul.f32 %v5067, %v5071
        %v5076 = vmul.f32 %v5068, %v5072
        %v5077 = vmul.f32 %v5069, %v5073
        %v5078 = vmul.f32 %v5070, %v5074
        %v5079 = vsub.f32 2.0, %v5075
        %v5080 = vsub.f32 2.0, %v5076
        %v5081 = vsub.f32 2.0, %v5077
        %v5082 = vsub.f32 2.0, %v5078
        %v5083 = vmul.f32 %v5071, %v5079
        %v5084 = vmul.f32 %v5072, %v5080
        %v5085 = vmul.f32 %v5073, %v5081
        %v5086 = vmul.f32 %v5074, %v5082
        %v5087 = vmul.f32 %v5051, %v5083
        %v5088 = vmul.f32 %v5052, %v5084
        %v5089 = vmul.f32 %v5053, %v5085
        %v5090 = vmul.f32 %v5054, %v5086
        %v5091 = vadd.f32 %v5019, %v5087
        %v5092 = vadd.f32 %v5020, %v5088
        %v5093 = vadd.f32 %v5021, %v5089
        %v5094 = vadd.f32 %v5022, %v5090
      $region359: #{deep_hist_l1_loss.2} parent=27 // loop_footer
        %s5018 = sadd.s32 1, %s5014
      $region360: #{deep_hist_l1_loss.2} parent=27 // loop_footer_branch
        %5013 = sbr.rel target = $region356
      $region361: #{deep_hist_l1_loss.2} parent=27 // loop_exit
        _
      %v5095 = vld [vmem:[%s1124 + $0xe0] sm:$0xff]
      %v5096 = vld [vmem:[%s1124 + $0xe8] sm:$0xff]
      %v5097 = vld [vmem:[%s1124 + $0xf0] sm:$0xff]
      %v5098 = vld [vmem:[%s1124 + $0xf8] sm:$0xff]
      %v5099 = vadd.f32 %v5095, %v5019
      %v5100 = vadd.f32 %v5096, %v5020
      %v5101 = vadd.f32 %v5097, %v5021
      %v5102 = vadd.f32 %v5098, %v5022
      %5103 = vst [vmem:[%s1124 + $0xe0] sm:$0xff] %v5099
      %5104 = vst [vmem:[%s1124 + $0xe8] sm:$0xff] %v5100
      %5105 = vst [vmem:[%s1124 + $0xf0] sm:$0xff] %v5101
      %5106 = vst [vmem:[%s1124 + $0xf8] sm:$0xff] %v5102
      loop: start=0, step=1, limit=8
      $region362: #{deep_hist_l1_loss.2} parent=27 // loop_pre_header
        _
      $region363: #{deep_hist_l1_loss.2} parent=27 // loop_header
        %s5108 = sphi 0, %s5112
        %p5109 = scmp.ge.s32.totalorder %s5108, 8
        %v5113 = vphi 0.0, %v5185
        %v5114 = vphi 0.0, %v5186
        %v5115 = vphi 0.0, %v5187
        %v5116 = vphi 0.0, %v5188
      $region364: #{deep_hist_l1_loss.2} parent=27 // loop_header_branch
        %5111 = sbr.rel (%p5109) target = $region368
      $region365: #{deep_hist_l1_loss.2} parent=27 // loop_body
        %s5117 = sadd.s32 %s5108, 16
        %s5118 = sadd.s32 %s5117, 24
        %s5119 = scalar_lea.vmem [#allocation2], %s5118
        %v5120 = vld [vmem:[%s5119] sm:$0x1]
        %v5121 = vlaneseq
        %v5122 = vshrl.u32 %v5121, 7
        %v5123 = vsub.s32 0, %v5122
        %v5124 = vrot.slane %v5120, %v5123
        %v5125 = vsub.f32 %v4638, %v5124
        %v5126 = vsub.f32 %v4639, %v5124
        %v5127 = vsub.f32 %v4640, %v5124
        %v5128 = vsub.f32 %v4641, %v5124
        %v5129 = vmax.f32 %v5125, -40.0
        %v5130 = vmax.f32 %v5126, -40.0
        %v5131 = vmax.f32 %v5127, -40.0
        %v5132 = vmax.f32 %v5128, -40.0
        %v5133 = vmin.f32 %v5129, 40.0
        %v5134 = vmin.f32 %v5130, 40.0
        %v5135 = vmin.f32 %v5131, 40.0
        %v5136 = vmin.f32 %v5132, 40.0
        %v5137 = vmul.f32 %v5133, 1.442695
        %v5138 = vpow.pop %v5137
        %v5139 = vmul.f32 %v5134, 1.442695
        %v5140 = vpow.pop %v5139
        %v5141 = vmul.f32 %v5135, 1.442695
        %v5142 = vpow.pop %v5141
        %v5143 = vmul.f32 %v5136, 1.442695
        %v5144 = vpow.pop %v5143
        %v5145 = vmul.f32 %v5138, 3.203838
        %v5146 = vmul.f32 %v5140, 3.203838
        %v5147 = vmul.f32 %v5142, 3.203838
        %v5148 = vmul.f32 %v5144, 3.203838
        %v5149 = vmul.f32 %v5138, 3.7768478
        %v5150 = vmul.f32 %v5140, 3.7768478
        %v5151 = vmul.f32 %v5142, 3.7768478
        %v5152 = vmul.f32 %v5144, 3.7768478
        %v5153 = vadd.f32 %v5149, 1.0
        %v5154 = vadd.f32 %v5150, 1.0
        %v5155 = vadd.f32 %v5151, 1.0
        %v5156 = vadd.f32 %v5152, 1.0
        %v5157 = vmul.f32 %v5138, %v5138
        %v5158 = vmul.f32 %v5140, %v5140
        %v5159 = vmul.f32 %v5142, %v5142
        %v5160 = vmul.f32 %v5144, %v5144
        %v5161 = vadd.f32 %v5153, %v5157
        %v5162 = vadd.f32 %v5154, %v5158
        %v5163 = vadd.f32 %v5155, %v5159
        %v5164 = vadd.f32 %v5156, %v5160
        %v5165 = vrcp.pop %v5161
        %v5166 = vrcp.pop %v5162
        %v5167 = vrcp.pop %v5163
        %v5168 = vrcp.pop %v5164
        %v5169 = vmul.f32 %v5161, %v5165
        %v5170 = vmul.f32 %v5162, %v5166
        %v5171 = vmul.f32 %v5163, %v5167
        %v5172 = vmul.f32 %v5164, %v5168
        %v5173 = vsub.f32 2.0, %v5169
        %v5174 = vsub.f32 2.0, %v5170
        %v5175 = vsub.f32 2.0, %v5171
        %v5176 = vsub.f32 2.0, %v5172
        %v5177 = vmul.f32 %v5165, %v5173
        %v5178 = vmul.f32 %v5166, %v5174
        %v5179 = vmul.f32 %v5167, %v5175
        %v5180 = vmul.f32 %v5168, %v5176
        %v5181 = vmul.f32 %v5145, %v5177
        %v5182 = vmul.f32 %v5146, %v5178
        %v5183 = vmul.f32 %v5147, %v5179
        %v5184 = vmul.f32 %v5148, %v5180
        %v5185 = vadd.f32 %v5113, %v5181
        %v5186 = vadd.f32 %v5114, %v5182
        %v5187 = vadd.f32 %v5115, %v5183
        %v5188 = vadd.f32 %v5116, %v5184
      $region366: #{deep_hist_l1_loss.2} parent=27 // loop_footer
        %s5112 = sadd.s32 1, %s5108
      $region367: #{deep_hist_l1_loss.2} parent=27 // loop_footer_branch
        %5107 = sbr.rel target = $region363
      $region368: #{deep_hist_l1_loss.2} parent=27 // loop_exit
        _
      %v5189 = vld [vmem:[%s1219 + $0xe0] sm:$0xff]
      %v5190 = vld [vmem:[%s1219 + $0xe8] sm:$0xff]
      %v5191 = vld [vmem:[%s1219 + $0xf0] sm:$0xff]
      %v5192 = vld [vmem:[%s1219 + $0xf8] sm:$0xff]
      %v5193 = vadd.f32 %v5189, %v5113
      %v5194 = vadd.f32 %v5190, %v5114
      %v5195 = vadd.f32 %v5191, %v5115
      %v5196 = vadd.f32 %v5192, %v5116
      %5197 = vst [vmem:[%s1219 + $0xe0] sm:$0xff] %v5193
      %5198 = vst [vmem:[%s1219 + $0xe8] sm:$0xff] %v5194
      %5199 = vst [vmem:[%s1219 + $0xf0] sm:$0xff] %v5195
      %5200 = vst [vmem:[%s1219 + $0xf8] sm:$0xff] %v5196
      %p5201 = scmp.lt.s32.totalorder %s21, 1
      %s5202 = scalar_select %p5201, %s21, 1
      %s5203 = smul.addr %s5202, 96
      %s5204 = smul.addr %s5203, 8
      %s5205 = scalar_lea.vmem %s2, %s5204
      %p5206 = scmp.lt.s32.totalorder %s21, 1
      %s5207 = scalar_select %p5206, %s21, 1
      %s5208 = smul.addr %s5207, 96
      %s5209 = smul.addr %s5208, 8
      %s5210 = scalar_lea.vmem %s3, %s5209
      %p5211 = scmp.lt.s32.totalorder %s21, 1
      %s5212 = scalar_select %p5211, %s21, 1
      %s5213 = scalar_lea.vmem %s4, %s5212
      %p5214 = scmp.lt.s32.totalorder %s21, 1
      %s5215 = scalar_select %p5214, %s21, 1
      %s5216 = scalar_lea.vmem %s5, %s5215
      // Predicated region
      $region369: #{deep_hist_l1_loss.2} parent=27 // pred_check
        %p5217 = pneg %p103
      $region370: #{deep_hist_l1_loss.2} parent=27 // pred_check_branch
        %5219 = sbr.rel (%p5217) target = $region372
      $region371: #{deep_hist_l1_loss.2} parent=27 // pred_region
        _
      $region372: #{deep_hist_l1_loss.2} parent=27 // pred_fallthru
        _
      // Predicated region
      $region373: #{deep_hist_l1_loss.2} parent=27 // pred_check
        %p5220 = pneg %p129
      $region374: #{deep_hist_l1_loss.2} parent=27 // pred_check_branch
        %5222 = sbr.rel (%p5220) target = $region376
      $region375: #{deep_hist_l1_loss.2} parent=27 // pred_region
        _
      $region376: #{deep_hist_l1_loss.2} parent=27 // pred_fallthru
        _
      // Predicated region
      $region377: #{deep_hist_l1_loss.2} parent=27 // pred_check
        %p5223 = pneg %p155
      $region378: #{deep_hist_l1_loss.2} parent=27 // pred_check_branch
        %5225 = sbr.rel (%p5223) target = $region380
      $region379: #{deep_hist_l1_loss.2} parent=27 // pred_region
        _
      $region380: #{deep_hist_l1_loss.2} parent=27 // pred_fallthru
        _
      // Predicated region
      $region381: #{deep_hist_l1_loss.2} parent=27 // pred_check
        %p5226 = pneg %p181
      $region382: #{deep_hist_l1_loss.2} parent=27 // pred_check_branch
        %5228 = sbr.rel (%p5226) target = $region384
      $region383: #{deep_hist_l1_loss.2} parent=27 // pred_region
        _
      $region384: #{deep_hist_l1_loss.2} parent=27 // pred_fallthru
        _
    $region28: #{deep_hist_l1_loss.2} parent=5 // pred_fallthru
      _
    %p5229 = scmp.le.s32.totalorder 2, %s12
    // Predicated region
    $region385: #{deep_hist_l1_loss.2} parent=5 // pred_check
      %p5230 = pneg %p5229
    $region386: #{deep_hist_l1_loss.2} parent=5 // pred_check_branch
      %5232 = sbr.rel (%p5230) target = $region388
    $region387: #{deep_hist_l1_loss.2} parent=5 // pred_region
      %s5233 = ssub.s32 %s12, 2
      // Predicated region
      $region389: #{deep_hist_l1_loss.2} parent=387 // pred_check
        %p5234 = pneg %p109
      $region390: #{deep_hist_l1_loss.2} parent=387 // pred_check_branch
        %5236 = sbr.rel (%p5234) target = $region392
      $region391: #{deep_hist_l1_loss.2} parent=387 // pred_region
        %p5237 = scmp.lt.s32.totalorder %s23, 1
        %s5238 = scalar_select %p5237, %s23, 1
        %s5239 = smul.addr %s5238, 96
        %s5240 = smul.addr %s5239, 8
        %s5241 = scalar_lea.vmem %s2, %s5240
      $region392: #{deep_hist_l1_loss.2} parent=387 // pred_fallthru
        _
      // Predicated region
      $region393: #{deep_hist_l1_loss.2} parent=387 // pred_check
        %p5242 = pneg %p135
      $region394: #{deep_hist_l1_loss.2} parent=387 // pred_check_branch
        %5244 = sbr.rel (%p5242) target = $region396
      $region395: #{deep_hist_l1_loss.2} parent=387 // pred_region
        %p5245 = scmp.lt.s32.totalorder %s23, 1
        %s5246 = scalar_select %p5245, %s23, 1
        %s5247 = smul.addr %s5246, 96
        %s5248 = smul.addr %s5247, 8
        %s5249 = scalar_lea.vmem %s3, %s5248
      $region396: #{deep_hist_l1_loss.2} parent=387 // pred_fallthru
        _
      // Predicated region
      $region397: #{deep_hist_l1_loss.2} parent=387 // pred_check
        %p5250 = pneg %p161
      $region398: #{deep_hist_l1_loss.2} parent=387 // pred_check_branch
        %5252 = sbr.rel (%p5250) target = $region400
      $region399: #{deep_hist_l1_loss.2} parent=387 // pred_region
        %p5253 = scmp.lt.s32.totalorder %s23, 1
        %s5254 = scalar_select %p5253, %s23, 1
        %s5255 = scalar_lea.vmem %s4, %s5254
      $region400: #{deep_hist_l1_loss.2} parent=387 // pred_fallthru
        _
      // Predicated region
      $region401: #{deep_hist_l1_loss.2} parent=387 // pred_check
        %p5256 = pneg %p187
      $region402: #{deep_hist_l1_loss.2} parent=387 // pred_check_branch
        %5258 = sbr.rel (%p5256) target = $region404
      $region403: #{deep_hist_l1_loss.2} parent=387 // pred_region
        %p5259 = scmp.lt.s32.totalorder %s23, 1
        %s5260 = scalar_select %p5259, %s23, 1
        %s5261 = scalar_lea.vmem %s5, %s5260
      $region404: #{deep_hist_l1_loss.2} parent=387 // pred_fallthru
        _
    $region388: #{deep_hist_l1_loss.2} parent=5 // pred_fallthru
      _
  $region6: #{deep_hist_l1_loss.2} parent=0 // loop_footer
    %s16 = sadd.s32 1, %s12
  $region7: #{deep_hist_l1_loss.2} parent=0 // loop_footer_branch
    %11 = sbr.rel target = $region3
  $region8: #{deep_hist_l1_loss.2} parent=0 // loop_exit
    _

</llo_original>
